<compile_context>
chip_gen: v7x
topology: tpu7x:2x2x1
jax: 0.10.0
libtpu: 0.0.40
codegen_flags: <defaults>
</compile_context>

<pallas_src>
import jax
import jax.numpy as jnp
from jax.experimental import pallas as pl
from jax.experimental.pallas import tpu as pltpu

BN_EPS = 1e-5
LANE = 128  # Cout is zero-padded to a full lane width -> unmasked vector stores


# ------------------------- Pallas kernels -------------------------
#
#   x_ref: [Px, M, K]     per-output-phase im2col patches (Px == 1 -> shared input)
#   w_ref: [P,  K, LANE]  per-phase matmul weights, Cout zero-padded to 128 lanes
#   o_ref: [P,  M, LANE]  per-phase outputs

def _phase_matmul_bn_relu_kernel(x_ref, w_ref, o_ref):
    """o[p] = relu(BatchNorm(x[p] @ w[p])), batch stats over all phases and rows."""
    nphase, _, cpad = w_ref.shape
    nrows = x_ref.shape[1]
    s = jnp.zeros((1, cpad), jnp.float32)
    s2 = jnp.zeros((1, cpad), jnp.float32)
    for p in range(nphase):                        # static unroll (4 or 16 phases)
        x = x_ref[p % x_ref.shape[0]]              # shared input when Px == 1
        y = jnp.dot(x, w_ref[p], preferred_element_type=jnp.float32)   # MXU
        o_ref[p] = y                               # park raw matmul result in VMEM
        s = s + jnp.sum(y, axis=0, keepdims=True)
        s2 = s2 + jnp.sum(y * y, axis=0, keepdims=True)
    cnt = float(nphase * nrows)                    # = N * H_out * W_out
    mean = s / cnt
    var = s2 / cnt - mean * mean                   # biased variance, as PyTorch BN uses
    scale = jax.lax.rsqrt(var + BN_EPS)
    shift = -mean * scale
    for p in range(nphase):                        # in-place normalize + ReLU
        o_ref[p] = jnp.maximum(o_ref[p] * scale + shift, 0.0)


def _phase_matmul_bias_tanh_kernel(x_ref, w_ref, b_ref, o_ref):
    """o[p] = tanh(x[p] @ w[p] + b)."""
    nphase = w_ref.shape[0]
    for p in range(nphase):
        x = x_ref[p % x_ref.shape[0]]
        y = jnp.dot(x, w_ref[p], preferred_element_type=jnp.float32)
        o_ref[p] = jnp.tanh(y + b_ref[...])


def phase_matmul_bn_relu(patches, w):
    nphase, _, cpad = w.shape
    nrows = patches.shape[1]
    return pl.pallas_call(
        _phase_matmul_bn_relu_kernel,
        out_shape=jax.ShapeDtypeStruct((nphase, nrows, cpad), jnp.float32),
        grid=(1,),
        in_specs=[pl.BlockSpec(patches.shape, lambda i: (0, 0, 0)),
                  pl.BlockSpec(w.shape, lambda i: (0, 0, 0))],
        out_specs=pl.BlockSpec((nphase, nrows, cpad), lambda i: (0, 0, 0)),
        compiler_params=pltpu.CompilerParams(dimension_semantics=("arbitrary",)),
    )(patches, w)


def phase_matmul_bias_tanh(patches, w, b):
    nphase, _, cpad = w.shape
    nrows = patches.shape[1]
    return pl.pallas_call(
        _phase_matmul_bias_tanh_kernel,
        out_shape=jax.ShapeDtypeStruct((nphase, nrows, cpad), jnp.float32),
        grid=(1,),
        in_specs=[pl.BlockSpec(patches.shape, lambda i: (0, 0, 0)),
                  pl.BlockSpec(w.shape, lambda i: (0, 0, 0)),
                  pl.BlockSpec((1, cpad), lambda i: (0, 0))],
        out_specs=pl.BlockSpec((nphase, nrows, cpad), lambda i: (0, 0, 0)),
        compiler_params=pltpu.CompilerParams(dimension_semantics=("arbitrary",)),
    )(patches, w, b.reshape(1, cpad))


# --------------- JAX glue: phase decomposition of the stride-2 deconv ---------------

def _build_phase_patches(x):
    """x: [N,H,W,C] -> [4, N*H*W, 4*C] patches for ConvTranspose2d(k=4, s=2, p=1).

    Only the 4 structurally non-zero taps per output phase are gathered (no
    zero-insertion): output pixel (2m+pr, 2l+pc) reads padded-input offsets
    (m+pr+a, l+pc+b) with kernel taps kh=3-pr-2a, kw=3-pc-2b, a,b in {0,1}.
    """
    N, H, W, C = x.shape
    xp = jnp.pad(x, ((0, 0), (1, 1), (1, 1), (0, 0)))
    slabs = [[xp[:, i:i + H, j:j + W, :] for j in range(3)] for i in range(3)]
    phases = []
    for pr in range(2):
        for pc in range(2):
            taps = jnp.stack([slabs[pr + a][pc + b]
                              for a in range(2) for b in range(2)], axis=3)  # [N,H,W,4,C]
            phases.append(taps.reshape(N * H * W, 4 * C))
    return jnp.stack(phases, axis=0)               # [4, N*H*W, 4*C], phase = pr*2+pc


def _interleave_phases(y, n, h, w, cout):
    """y: [4, n*h*w, LANE] phase-major outputs -> [n, 2h, 2w, cout] NHWC."""
    y = y[:, :, :cout].reshape(2, 2, n, h, w, cout)
    y = jnp.transpose(y, (2, 3, 0, 4, 1, 5))       # [n, h, pr, w, pc, c]
    return y.reshape(n, 2 * h, 2 * w, cout)


def _prep_tconv1_weight(w_t, cpad=LANE):
    """[Cin, Cout, 4, 4] -> [16, Cin, cpad]: one matmul weight per output position
    (1x1 input, pad=0, so output (kh, kw) = kernel tap (kh, kw))."""
    cin, cout = w_t.shape[:2]
    w = jnp.transpose(w_t, (2, 3, 0, 1)).reshape(16, cin, cout)   # phase = kh*4 + kw
    return jnp.pad(w, ((0, 0), (0, 0), (0, cpad - cout)))


def _prep_tconv_s2_weight(w_t, cpad=LANE):
    """[Cin, Cout, 4, 4] -> [4, 4*Cin, cpad]: per-output-phase weights for k=4,s=2,p=1."""
    cin, cout = w_t.shape[:2]
    phases = []
    for pr in range(2):
        for pc in range(2):
            taps = [w_t[:, :, 3 - pr - 2 * a, 3 - pc - 2 * b]     # [Cin, Cout]
                    for a in range(2) for b in range(2)]          # tap order matches patches
            phases.append(jnp.stack(taps, axis=0).reshape(4 * cin, cout))
    w = jnp.stack(phases, axis=0)                                  # [4, 4*Cin, Cout]
    return jnp.pad(w, ((0, 0), (0, 0), (0, cpad - cout)))


# ------------------------- Generator -------------------------

def init_generator_params(key, z_dim=32, channels=1, conv_dim=16):
    """PyTorch-layout ConvTranspose2d weights [Cin, Cout, 4, 4], N(0, 0.02) init."""
    dims = [(z_dim, conv_dim * 4), (conv_dim * 4, conv_dim * 2),
            (conv_dim * 2, conv_dim), (conv_dim, channels)]
    keys = jax.random.split(key, len(dims) + 1)
    params = {}
    for idx, (ci, co) in enumerate(dims):
        params[f"w{idx + 1}"] = 0.02 * jax.random.normal(keys[idx], (ci, co, 4, 4), jnp.float32)
    params["b4"] = 0.02 * jax.random.normal(keys[-1], (channels,), jnp.float32)  # tconv4 bias
    return params


def prepare_generator_params(params):
    """One-time repack of PyTorch-layout weights into phase-matmul layout
    (hoisted out of the per-call forward pass)."""
    cout4 = params["w4"].shape[1]
    return {
        "w1": _prep_tconv1_weight(params["w1"]),
        "w2": _prep_tconv_s2_weight(params["w2"]),
        "w3": _prep_tconv_s2_weight(params["w3"]),
        "w4": _prep_tconv_s2_weight(params["w4"]),
        "b4": jnp.pad(params["b4"], (0, LANE - cout4)),
    }


def generator_forward(prep, z, couts):
    """z: [N, z_dim] -> image [N, channels, 32, 32] (NCHW, matching PyTorch)."""
    N, z_dim = z.shape
    c1, c2, c3, c4 = couts

    # tconv1 (pad=0, 1x1 input) + BN + ReLU: one fused Pallas call (16 positions).
    y = phase_matmul_bn_relu(z.reshape(1, N, z_dim), prep["w1"])          # [16, N, 128]
    x = jnp.transpose(y[:, :, :c1].reshape(4, 4, N, c1), (2, 0, 1, 3))    # [N, 4, 4, c1]

    # tconv2 / tconv3 (k=4, s=2, p=1) + BN + ReLU: one fused Pallas call each.
    for wname, cout in (("w2", c2), ("w3", c3)):
        n, h, w, _ = x.shape
        patches = _build_phase_patches(x)                                 # [4, n*h*w, 4*Cin]
        y = phase_matmul_bn_relu(patches, prep[wname])                    # [4, n*h*w, 128]
        x = _interleave_phases(y, n, h, w, cout)                          # [n, 2h, 2w, cout]

    # tconv4 (k=4, s=2, p=1) + bias + tanh: one fused Pallas call.
    n, h, w, _ = x.shape
    patches = _build_phase_patches(x)
    y = phase_matmul_bias_tanh(patches, prep["w4"], prep["b4"])
    x = _interleave_phases(y, n, h, w, c4)                                # [n, 32, 32, c4]

    return jnp.transpose(x, (0, 3, 1, 2))                                 # -> NCHW


# ------------------------- Pure-JAX reference (self-check) -------------------------

def _ref_tconv(x_nhwc, w_t, pad):
    """ConvTranspose2d(k=4, s=2, padding=pad) == conv over the stride-dilated input
    with the spatially flipped kernel and padding k-1-pad."""
    k = w_t.shape[-1]
    w_conv = jnp.transpose(w_t[:, :, ::-1, ::-1], (2, 3, 0, 1))           # [kh, kw, Cin, Cout]
    return jax.lax.conv_general_dilated(
        x_nhwc, w_conv, window_strides=(1, 1),
        padding=[(k - 1 - pad, k - 1 - pad)] * 2, lhs_dilation=(2, 2),
        dimension_numbers=("NHWC", "HWIO", "NHWC"),
        precision=jax.lax.Precision.HIGHEST)


def reference_forward(params, z):
    N = z.shape[0]
    x = z.reshape(N, 1, 1, z.shape[1])
    for name, pad, use_bn in (("w1", 0, True), ("w2", 1, True),
                              ("w3", 1, True), ("w4", 1, False)):
        y = _ref_tconv(x, params[name], pad)
        if use_bn:
            mean = jnp.mean(y, axis=(0, 1, 2))
            var = jnp.mean((y - mean) ** 2, axis=(0, 1, 2))
            x = jnp.maximum((y - mean) * jax.lax.rsqrt(var + BN_EPS), 0.0)
        else:
            x = jnp.tanh(y + params["b4"])
    return jnp.transpose(x, (0, 3, 1, 2))


if __name__ == "__main__":
    key = jax.random.PRNGKey(0)
    pkey, zkey = jax.random.split(key)

    # Small shapes consistent with the module: Generator(z_dim=32, channels=1, conv_dim=16)
    batch, z_dim, channels, conv_dim = 2, 32, 1, 16
    raw = init_generator_params(pkey, z_dim=z_dim, channels=channels, conv_dim=conv_dim)
    prep = prepare_generator_params(raw)          # one-time weight repack (hoisted)
    couts = (conv_dim * 4, conv_dim * 2, conv_dim, channels)
    z = jax.random.normal(zkey, (batch, z_dim), jnp.float32)

    fwd = jax.jit(generator_forward, static_argnums=2)
    out = jax.block_until_ready(fwd(prep, z, couts))

    assert out.shape == (batch, channels, 32, 32), out.shape
    assert bool(jnp.all(jnp.isfinite(out)))
    assert bool(jnp.all(jnp.abs(out) <= 1.0 + 1e-6))      # tanh output range

    ref = jax.block_until_ready(jax.jit(reference_forward)(raw, z))
    max_err = float(jnp.max(jnp.abs(out - ref)))
    assert bool(jnp.allclose(out, ref, atol=2e-2)), max_err

    print("KERNEL_OK")
</pallas_src>

<mosaic_0001>
module attributes {stable_mosaic.version = 11 : i64} {
  func.func @_phase_matmul_bn_relu_kernel(%arg0: i32, %arg1: memref<1x2x32xf32, #tpu.memory_space<vmem>>, %arg2: memref<16x32x128xf32, #tpu.memory_space<vmem>>, %arg3: memref<16x2x128xf32, #tpu.memory_space<vmem>>) attributes {dimension_semantics = [#tpu.dimension_semantics<arbitrary>], iteration_bounds = array<i64: 1>, scalar_prefetch = 0 : i64, scratch_operands = 0 : i64, tpu.core_type = #tpu.core_type<tc>, window_params = [{pipeline_mode = #tpu.pipeline_mode<synchronous>, transform_indices = @transform_0, window_bounds = array<i64: 1, 2, 32>}, {pipeline_mode = #tpu.pipeline_mode<synchronous>, transform_indices = @transform_1, window_bounds = array<i64: 16, 32, 128>}, {pipeline_mode = #tpu.pipeline_mode<synchronous>, transform_indices = @transform_2, window_bounds = array<i64: 16, 2, 128>}]} {
    %cst = arith.constant 0.000000e+00 : f32
    %0 = vector.broadcast %cst : f32 to vector<1x128xf32>
    %cst_0 = arith.constant 0.000000e+00 : f32
    %1 = vector.broadcast %cst_0 : f32 to vector<1x128xf32>
    %c0 = arith.constant 0 : index
    %c0_1 = arith.constant 0 : index
    %c0_2 = arith.constant 0 : index
    %2 = vector.load %arg1[%c0, %c0_1, %c0_2] : memref<1x2x32xf32, #tpu.memory_space<vmem>>, vector<1x2x32xf32>
    %3 = vector.shape_cast %2 : vector<1x2x32xf32> to vector<2x32xf32>
    %c0_3 = arith.constant 0 : index
    %c0_4 = arith.constant 0 : index
    %c0_5 = arith.constant 0 : index
    %4 = vector.load %arg2[%c0_3, %c0_4, %c0_5] : memref<16x32x128xf32, #tpu.memory_space<vmem>>, vector<1x32x128xf32>
    %5 = vector.shape_cast %4 : vector<1x32x128xf32> to vector<32x128xf32>
    %cst_6 = arith.constant dense<0.000000e+00> : vector<2x128xf32>
    %6 = tpu.matmul %3, %5, %cst_6 {dimension_numbers = #tpu.dot_dimension_numbers<[1], [0], [0], [1], [0, 0, 1, 1], [], []>} : vector<2x32xf32>, vector<32x128xf32>, vector<2x128xf32> -> vector<2x128xf32>
    %c0_7 = arith.constant 0 : index
    %c0_8 = arith.constant 0 : index
    %c0_9 = arith.constant 0 : index
    %7 = vector.load %arg3[%c0_7, %c0_8, %c0_9] : memref<16x2x128xf32, #tpu.memory_space<vmem>>, vector<1x2x128xf32>
    %8 = vector.shape_cast %7 : vector<1x2x128xf32> to vector<2x128xf32>
    %9 = vector.shape_cast %6 : vector<2x128xf32> to vector<1x2x128xf32>
    tpu.vector_store %arg3[%c0_7, %c0_8, %c0_9], %9 {strides = array<i32>} : memref<16x2x128xf32, #tpu.memory_space<vmem>>, vector<1x2x128xf32>,
    %cst_10 = arith.constant dense<0.000000e+00> : vector<128xf32>
    %10 = vector.multi_reduction <add>, %6, %cst_10 [0] : vector<2x128xf32> to vector<128xf32>
    %11 = vector.shape_cast %10 : vector<128xf32> to vector<1x128xf32>
    %12 = arith.addf %0, %11 : vector<1x128xf32>
    %13 = arith.mulf %6, %6 : vector<2x128xf32>
    %cst_11 = arith.constant dense<0.000000e+00> : vector<128xf32>
    %14 = vector.multi_reduction <add>, %13, %cst_11 [0] : vector<2x128xf32> to vector<128xf32>
    %15 = vector.shape_cast %14 : vector<128xf32> to vector<1x128xf32>
    %16 = arith.addf %1, %15 : vector<1x128xf32>
    %c0_12 = arith.constant 0 : index
    %c0_13 = arith.constant 0 : index
    %c0_14 = arith.constant 0 : index
    %17 = vector.load %arg1[%c0_12, %c0_13, %c0_14] : memref<1x2x32xf32, #tpu.memory_space<vmem>>, vector<1x2x32xf32>
    %18 = vector.shape_cast %17 : vector<1x2x32xf32> to vector<2x32xf32>
    %c1 = arith.constant 1 : index
    %c0_15 = arith.constant 0 : index
    %c0_16 = arith.constant 0 : index
    %19 = vector.load %arg2[%c1, %c0_15, %c0_16] : memref<16x32x128xf32, #tpu.memory_space<vmem>>, vector<1x32x128xf32>
    %20 = vector.shape_cast %19 : vector<1x32x128xf32> to vector<32x128xf32>
    %cst_17 = arith.constant dense<0.000000e+00> : vector<2x128xf32>
    %21 = tpu.matmul %18, %20, %cst_17 {dimension_numbers = #tpu.dot_dimension_numbers<[1], [0], [0], [1], [0, 0, 1, 1], [], []>} : vector<2x32xf32>, vector<32x128xf32>, vector<2x128xf32> -> vector<2x128xf32>
    %c1_18 = arith.constant 1 : index
    %c0_19 = arith.constant 0 : index
    %c0_20 = arith.constant 0 : index
    %22 = vector.load %arg3[%c1_18, %c0_19, %c0_20] : memref<16x2x128xf32, #tpu.memory_space<vmem>>, vector<1x2x128xf32>
    %23 = vector.shape_cast %22 : vector<1x2x128xf32> to vector<2x128xf32>
    %24 = vector.shape_cast %21 : vector<2x128xf32> to vector<1x2x128xf32>
    tpu.vector_store %arg3[%c1_18, %c0_19, %c0_20], %24 {strides = array<i32>} : memref<16x2x128xf32, #tpu.memory_space<vmem>>, vector<1x2x128xf32>,
    %cst_21 = arith.constant dense<0.000000e+00> : vector<128xf32>
    %25 = vector.multi_reduction <add>, %21, %cst_21 [0] : vector<2x128xf32> to vector<128xf32>
    %26 = vector.shape_cast %25 : vector<128xf32> to vector<1x128xf32>
    %27 = arith.addf %12, %26 : vector<1x128xf32>
    %28 = arith.mulf %21, %21 : vector<2x128xf32>
    %cst_22 = arith.constant dense<0.000000e+00> : vector<128xf32>
    %29 = vector.multi_reduction <add>, %28, %cst_22 [0] : vector<2x128xf32> to vector<128xf32>
    %30 = vector.shape_cast %29 : vector<128xf32> to vector<1x128xf32>
    %31 = arith.addf %16, %30 : vector<1x128xf32>
    %c0_23 = arith.constant 0 : index
    %c0_24 = arith.constant 0 : index
    %c0_25 = arith.constant 0 : index
    %32 = vector.load %arg1[%c0_23, %c0_24, %c0_25] : memref<1x2x32xf32, #tpu.memory_space<vmem>>, vector<1x2x32xf32>
    %33 = vector.shape_cast %32 : vector<1x2x32xf32> to vector<2x32xf32>
    %c2 = arith.constant 2 : index
    %c0_26 = arith.constant 0 : index
    %c0_27 = arith.constant 0 : index
    %34 = vector.load %arg2[%c2, %c0_26, %c0_27] : memref<16x32x128xf32, #tpu.memory_space<vmem>>, vector<1x32x128xf32>
    %35 = vector.shape_cast %34 : vector<1x32x128xf32> to vector<32x128xf32>
    %cst_28 = arith.constant dense<0.000000e+00> : vector<2x128xf32>
    %36 = tpu.matmul %33, %35, %cst_28 {dimension_numbers = #tpu.dot_dimension_numbers<[1], [0], [0], [1], [0, 0, 1, 1], [], []>} : vector<2x32xf32>, vector<32x128xf32>, vector<2x128xf32> -> vector<2x128xf32>
    %c2_29 = arith.constant 2 : index
    %c0_30 = arith.constant 0 : index
    %c0_31 = arith.constant 0 : index
    %37 = vector.load %arg3[%c2_29, %c0_30, %c0_31] : memref<16x2x128xf32, #tpu.memory_space<vmem>>, vector<1x2x128xf32>
    %38 = vector.shape_cast %37 : vector<1x2x128xf32> to vector<2x128xf32>
    %39 = vector.shape_cast %36 : vector<2x128xf32> to vector<1x2x128xf32>
    tpu.vector_store %arg3[%c2_29, %c0_30, %c0_31], %39 {strides = array<i32>} : memref<16x2x128xf32, #tpu.memory_space<vmem>>, vector<1x2x128xf32>,
    %cst_32 = arith.constant dense<0.000000e+00> : vector<128xf32>
    %40 = vector.multi_reduction <add>, %36, %cst_32 [0] : vector<2x128xf32> to vector<128xf32>
    %41 = vector.shape_cast %40 : vector<128xf32> to vector<1x128xf32>
    %42 = arith.addf %27, %41 : vector<1x128xf32>
    %43 = arith.mulf %36, %36 : vector<2x128xf32>
    %cst_33 = arith.constant dense<0.000000e+00> : vector<128xf32>
    %44 = vector.multi_reduction <add>, %43, %cst_33 [0] : vector<2x128xf32> to vector<128xf32>
    %45 = vector.shape_cast %44 : vector<128xf32> to vector<1x128xf32>
    %46 = arith.addf %31, %45 : vector<1x128xf32>
    %c0_34 = arith.constant 0 : index
    %c0_35 = arith.constant 0 : index
    %c0_36 = arith.constant 0 : index
    %47 = vector.load %arg1[%c0_34, %c0_35, %c0_36] : memref<1x2x32xf32, #tpu.memory_space<vmem>>, vector<1x2x32xf32>
    %48 = vector.shape_cast %47 : vector<1x2x32xf32> to vector<2x32xf32>
    %c3 = arith.constant 3 : index
    %c0_37 = arith.constant 0 : index
    %c0_38 = arith.constant 0 : index
    %49 = vector.load %arg2[%c3, %c0_37, %c0_38] : memref<16x32x128xf32, #tpu.memory_space<vmem>>, vector<1x32x128xf32>
    %50 = vector.shape_cast %49 : vector<1x32x128xf32> to vector<32x128xf32>
    %cst_39 = arith.constant dense<0.000000e+00> : vector<2x128xf32>
    %51 = tpu.matmul %48, %50, %cst_39 {dimension_numbers = #tpu.dot_dimension_numbers<[1], [0], [0], [1], [0, 0, 1, 1], [], []>} : vector<2x32xf32>, vector<32x128xf32>, vector<2x128xf32> -> vector<2x128xf32>
    %c3_40 = arith.constant 3 : index
    %c0_41 = arith.constant 0 : index
    %c0_42 = arith.constant 0 : index
    %52 = vector.load %arg3[%c3_40, %c0_41, %c0_42] : memref<16x2x128xf32, #tpu.memory_space<vmem>>, vector<1x2x128xf32>
    %53 = vector.shape_cast %52 : vector<1x2x128xf32> to vector<2x128xf32>
    %54 = vector.shape_cast %51 : vector<2x128xf32> to vector<1x2x128xf32>
    tpu.vector_store %arg3[%c3_40, %c0_41, %c0_42], %54 {strides = array<i32>} : memref<16x2x128xf32, #tpu.memory_space<vmem>>, vector<1x2x128xf32>,
    %cst_43 = arith.constant dense<0.000000e+00> : vector<128xf32>
    %55 = vector.multi_reduction <add>, %51, %cst_43 [0] : vector<2x128xf32> to vector<128xf32>
    %56 = vector.shape_cast %55 : vector<128xf32> to vector<1x128xf32>
    %57 = arith.addf %42, %56 : vector<1x128xf32>
    %58 = arith.mulf %51, %51 : vector<2x128xf32>
    %cst_44 = arith.constant dense<0.000000e+00> : vector<128xf32>
    %59 = vector.multi_reduction <add>, %58, %cst_44 [0] : vector<2x128xf32> to vector<128xf32>
    %60 = vector.shape_cast %59 : vector<128xf32> to vector<1x128xf32>
    %61 = arith.addf %46, %60 : vector<1x128xf32>
    %c0_45 = arith.constant 0 : index
    %c0_46 = arith.constant 0 : index
    %c0_47 = arith.constant 0 : index
    %62 = vector.load %arg1[%c0_45, %c0_46, %c0_47] : memref<1x2x32xf32, #tpu.memory_space<vmem>>, vector<1x2x32xf32>
    %63 = vector.shape_cast %62 : vector<1x2x32xf32> to vector<2x32xf32>
    %c4 = arith.constant 4 : index
    %c0_48 = arith.constant 0 : index
    %c0_49 = arith.constant 0 : index
    %64 = vector.load %arg2[%c4, %c0_48, %c0_49] : memref<16x32x128xf32, #tpu.memory_space<vmem>>, vector<1x32x128xf32>
    %65 = vector.shape_cast %64 : vector<1x32x128xf32> to vector<32x128xf32>
    %cst_50 = arith.constant dense<0.000000e+00> : vector<2x128xf32>
    %66 = tpu.matmul %63, %65, %cst_50 {dimension_numbers = #tpu.dot_dimension_numbers<[1], [0], [0], [1], [0, 0, 1, 1], [], []>} : vector<2x32xf32>, vector<32x128xf32>, vector<2x128xf32> -> vector<2x128xf32>
    %c4_51 = arith.constant 4 : index
    %c0_52 = arith.constant 0 : index
    %c0_53 = arith.constant 0 : index
    %67 = vector.load %arg3[%c4_51, %c0_52, %c0_53] : memref<16x2x128xf32, #tpu.memory_space<vmem>>, vector<1x2x128xf32>
    %68 = vector.shape_cast %67 : vector<1x2x128xf32> to vector<2x128xf32>
    %69 = vector.shape_cast %66 : vector<2x128xf32> to vector<1x2x128xf32>
    tpu.vector_store %arg3[%c4_51, %c0_52, %c0_53], %69 {strides = array<i32>} : memref<16x2x128xf32, #tpu.memory_space<vmem>>, vector<1x2x128xf32>,
    %cst_54 = arith.constant dense<0.000000e+00> : vector<128xf32>
    %70 = vector.multi_reduction <add>, %66, %cst_54 [0] : vector<2x128xf32> to vector<128xf32>
    %71 = vector.shape_cast %70 : vector<128xf32> to vector<1x128xf32>
    %72 = arith.addf %57, %71 : vector<1x128xf32>
    %73 = arith.mulf %66, %66 : vector<2x128xf32>
    %cst_55 = arith.constant dense<0.000000e+00> : vector<128xf32>
    %74 = vector.multi_reduction <add>, %73, %cst_55 [0] : vector<2x128xf32> to vector<128xf32>
    %75 = vector.shape_cast %74 : vector<128xf32> to vector<1x128xf32>
    %76 = arith.addf %61, %75 : vector<1x128xf32>
    %c0_56 = arith.constant 0 : index
    %c0_57 = arith.constant 0 : index
    %c0_58 = arith.constant 0 : index
    %77 = vector.load %arg1[%c0_56, %c0_57, %c0_58] : memref<1x2x32xf32, #tpu.memory_space<vmem>>, vector<1x2x32xf32>
    %78 = vector.shape_cast %77 : vector<1x2x32xf32> to vector<2x32xf32>
    %c5 = arith.constant 5 : index
    %c0_59 = arith.constant 0 : index
    %c0_60 = arith.constant 0 : index
    %79 = vector.load %arg2[%c5, %c0_59, %c0_60] : memref<16x32x128xf32, #tpu.memory_space<vmem>>, vector<1x32x128xf32>
    %80 = vector.shape_cast %79 : vector<1x32x128xf32> to vector<32x128xf32>
    %cst_61 = arith.constant dense<0.000000e+00> : vector<2x128xf32>
    %81 = tpu.matmul %78, %80, %cst_61 {dimension_numbers = #tpu.dot_dimension_numbers<[1], [0], [0], [1], [0, 0, 1, 1], [], []>} : vector<2x32xf32>, vector<32x128xf32>, vector<2x128xf32> -> vector<2x128xf32>
    %c5_62 = arith.constant 5 : index
    %c0_63 = arith.constant 0 : index
    %c0_64 = arith.constant 0 : index
    %82 = vector.load %arg3[%c5_62, %c0_63, %c0_64] : memref<16x2x128xf32, #tpu.memory_space<vmem>>, vector<1x2x128xf32>
    %83 = vector.shape_cast %82 : vector<1x2x128xf32> to vector<2x128xf32>
    %84 = vector.shape_cast %81 : vector<2x128xf32> to vector<1x2x128xf32>
    tpu.vector_store %arg3[%c5_62, %c0_63, %c0_64], %84 {strides = array<i32>} : memref<16x2x128xf32, #tpu.memory_space<vmem>>, vector<1x2x128xf32>,
    %cst_65 = arith.constant dense<0.000000e+00> : vector<128xf32>
    %85 = vector.multi_reduction <add>, %81, %cst_65 [0] : vector<2x128xf32> to vector<128xf32>
    %86 = vector.shape_cast %85 : vector<128xf32> to vector<1x128xf32>
    %87 = arith.addf %72, %86 : vector<1x128xf32>
    %88 = arith.mulf %81, %81 : vector<2x128xf32>
    %cst_66 = arith.constant dense<0.000000e+00> : vector<128xf32>
    %89 = vector.multi_reduction <add>, %88, %cst_66 [0] : vector<2x128xf32> to vector<128xf32>
    %90 = vector.shape_cast %89 : vector<128xf32> to vector<1x128xf32>
    %91 = arith.addf %76, %90 : vector<1x128xf32>
    %c0_67 = arith.constant 0 : index
    %c0_68 = arith.constant 0 : index
    %c0_69 = arith.constant 0 : index
    %92 = vector.load %arg1[%c0_67, %c0_68, %c0_69] : memref<1x2x32xf32, #tpu.memory_space<vmem>>, vector<1x2x32xf32>
    %93 = vector.shape_cast %92 : vector<1x2x32xf32> to vector<2x32xf32>
    %c6 = arith.constant 6 : index
    %c0_70 = arith.constant 0 : index
    %c0_71 = arith.constant 0 : index
    %94 = vector.load %arg2[%c6, %c0_70, %c0_71] : memref<16x32x128xf32, #tpu.memory_space<vmem>>, vector<1x32x128xf32>
    %95 = vector.shape_cast %94 : vector<1x32x128xf32> to vector<32x128xf32>
    %cst_72 = arith.constant dense<0.000000e+00> : vector<2x128xf32>
    %96 = tpu.matmul %93, %95, %cst_72 {dimension_numbers = #tpu.dot_dimension_numbers<[1], [0], [0], [1], [0, 0, 1, 1], [], []>} : vector<2x32xf32>, vector<32x128xf32>, vector<2x128xf32> -> vector<2x128xf32>
    %c6_73 = arith.constant 6 : index
    %c0_74 = arith.constant 0 : index
    %c0_75 = arith.constant 0 : index
    %97 = vector.load %arg3[%c6_73, %c0_74, %c0_75] : memref<16x2x128xf32, #tpu.memory_space<vmem>>, vector<1x2x128xf32>
    %98 = vector.shape_cast %97 : vector<1x2x128xf32> to vector<2x128xf32>
    %99 = vector.shape_cast %96 : vector<2x128xf32> to vector<1x2x128xf32>
    tpu.vector_store %arg3[%c6_73, %c0_74, %c0_75], %99 {strides = array<i32>} : memref<16x2x128xf32, #tpu.memory_space<vmem>>, vector<1x2x128xf32>,
    %cst_76 = arith.constant dense<0.000000e+00> : vector<128xf32>
    %100 = vector.multi_reduction <add>, %96, %cst_76 [0] : vector<2x128xf32> to vector<128xf32>
    %101 = vector.shape_cast %100 : vector<128xf32> to vector<1x128xf32>
    %102 = arith.addf %87, %101 : vector<1x128xf32>
    %103 = arith.mulf %96, %96 : vector<2x128xf32>
    %cst_77 = arith.constant dense<0.000000e+00> : vector<128xf32>
    %104 = vector.multi_reduction <add>, %103, %cst_77 [0] : vector<2x128xf32> to vector<128xf32>
    %105 = vector.shape_cast %104 : vector<128xf32> to vector<1x128xf32>
    %106 = arith.addf %91, %105 : vector<1x128xf32>
    %c0_78 = arith.constant 0 : index
    %c0_79 = arith.constant 0 : index
    %c0_80 = arith.constant 0 : index
    %107 = vector.load %arg1[%c0_78, %c0_79, %c0_80] : memref<1x2x32xf32, #tpu.memory_space<vmem>>, vector<1x2x32xf32>
    %108 = vector.shape_cast %107 : vector<1x2x32xf32> to vector<2x32xf32>
    %c7 = arith.constant 7 : index
    %c0_81 = arith.constant 0 : index
    %c0_82 = arith.constant 0 : index
    %109 = vector.load %arg2[%c7, %c0_81, %c0_82] : memref<16x32x128xf32, #tpu.memory_space<vmem>>, vector<1x32x128xf32>
    %110 = vector.shape_cast %109 : vector<1x32x128xf32> to vector<32x128xf32>
    %cst_83 = arith.constant dense<0.000000e+00> : vector<2x128xf32>
    %111 = tpu.matmul %108, %110, %cst_83 {dimension_numbers = #tpu.dot_dimension_numbers<[1], [0], [0], [1], [0, 0, 1, 1], [], []>} : vector<2x32xf32>, vector<32x128xf32>, vector<2x128xf32> -> vector<2x128xf32>
    %c7_84 = arith.constant 7 : index
    %c0_85 = arith.constant 0 : index
    %c0_86 = arith.constant 0 : index
    %112 = vector.load %arg3[%c7_84, %c0_85, %c0_86] : memref<16x2x128xf32, #tpu.memory_space<vmem>>, vector<1x2x128xf32>
    %113 = vector.shape_cast %112 : vector<1x2x128xf32> to vector<2x128xf32>
    %114 = vector.shape_cast %111 : vector<2x128xf32> to vector<1x2x128xf32>
    tpu.vector_store %arg3[%c7_84, %c0_85, %c0_86], %114 {strides = array<i32>} : memref<16x2x128xf32, #tpu.memory_space<vmem>>, vector<1x2x128xf32>,
    %cst_87 = arith.constant dense<0.000000e+00> : vector<128xf32>
    %115 = vector.multi_reduction <add>, %111, %cst_87 [0] : vector<2x128xf32> to vector<128xf32>
    %116 = vector.shape_cast %115 : vector<128xf32> to vector<1x128xf32>
    %117 = arith.addf %102, %116 : vector<1x128xf32>
    %118 = arith.mulf %111, %111 : vector<2x128xf32>
    %cst_88 = arith.constant dense<0.000000e+00> : vector<128xf32>
    %119 = vector.multi_reduction <add>, %118, %cst_88 [0] : vector<2x128xf32> to vector<128xf32>
    %120 = vector.shape_cast %119 : vector<128xf32> to vector<1x128xf32>
    %121 = arith.addf %106, %120 : vector<1x128xf32>
    %c0_89 = arith.constant 0 : index
    %c0_90 = arith.constant 0 : index
    %c0_91 = arith.constant 0 : index
    %122 = vector.load %arg1[%c0_89, %c0_90, %c0_91] : memref<1x2x32xf32, #tpu.memory_space<vmem>>, vector<1x2x32xf32>
    %123 = vector.shape_cast %122 : vector<1x2x32xf32> to vector<2x32xf32>
    %c8 = arith.constant 8 : index
    %c0_92 = arith.constant 0 : index
    %c0_93 = arith.constant 0 : index
    %124 = vector.load %arg2[%c8, %c0_92, %c0_93] : memref<16x32x128xf32, #tpu.memory_space<vmem>>, vector<1x32x128xf32>
    %125 = vector.shape_cast %124 : vector<1x32x128xf32> to vector<32x128xf32>
    %cst_94 = arith.constant dense<0.000000e+00> : vector<2x128xf32>
    %126 = tpu.matmul %123, %125, %cst_94 {dimension_numbers = #tpu.dot_dimension_numbers<[1], [0], [0], [1], [0, 0, 1, 1], [], []>} : vector<2x32xf32>, vector<32x128xf32>, vector<2x128xf32> -> vector<2x128xf32>
    %c8_95 = arith.constant 8 : index
    %c0_96 = arith.constant 0 : index
    %c0_97 = arith.constant 0 : index
    %127 = vector.load %arg3[%c8_95, %c0_96, %c0_97] : memref<16x2x128xf32, #tpu.memory_space<vmem>>, vector<1x2x128xf32>
    %128 = vector.shape_cast %127 : vector<1x2x128xf32> to vector<2x128xf32>
    %129 = vector.shape_cast %126 : vector<2x128xf32> to vector<1x2x128xf32>
    tpu.vector_store %arg3[%c8_95, %c0_96, %c0_97], %129 {strides = array<i32>} : memref<16x2x128xf32, #tpu.memory_space<vmem>>, vector<1x2x128xf32>,
    %cst_98 = arith.constant dense<0.000000e+00> : vector<128xf32>
    %130 = vector.multi_reduction <add>, %126, %cst_98 [0] : vector<2x128xf32> to vector<128xf32>
    %131 = vector.shape_cast %130 : vector<128xf32> to vector<1x128xf32>
    %132 = arith.addf %117, %131 : vector<1x128xf32>
    %133 = arith.mulf %126, %126 : vector<2x128xf32>
    %cst_99 = arith.constant dense<0.000000e+00> : vector<128xf32>
    %134 = vector.multi_reduction <add>, %133, %cst_99 [0] : vector<2x128xf32> to vector<128xf32>
    %135 = vector.shape_cast %134 : vector<128xf32> to vector<1x128xf32>
    %136 = arith.addf %121, %135 : vector<1x128xf32>
    %c0_100 = arith.constant 0 : index
    %c0_101 = arith.constant 0 : index
    %c0_102 = arith.constant 0 : index
    %137 = vector.load %arg1[%c0_100, %c0_101, %c0_102] : memref<1x2x32xf32, #tpu.memory_space<vmem>>, vector<1x2x32xf32>
    %138 = vector.shape_cast %137 : vector<1x2x32xf32> to vector<2x32xf32>
    %c9 = arith.constant 9 : index
    %c0_103 = arith.constant 0 : index
    %c0_104 = arith.constant 0 : index
    %139 = vector.load %arg2[%c9, %c0_103, %c0_104] : memref<16x32x128xf32, #tpu.memory_space<vmem>>, vector<1x32x128xf32>
    %140 = vector.shape_cast %139 : vector<1x32x128xf32> to vector<32x128xf32>
    %cst_105 = arith.constant dense<0.000000e+00> : vector<2x128xf32>
    %141 = tpu.matmul %138, %140, %cst_105 {dimension_numbers = #tpu.dot_dimension_numbers<[1], [0], [0], [1], [0, 0, 1, 1], [], []>} : vector<2x32xf32>, vector<32x128xf32>, vector<2x128xf32> -> vector<2x128xf32>
    %c9_106 = arith.constant 9 : index
    %c0_107 = arith.constant 0 : index
    %c0_108 = arith.constant 0 : index
    %142 = vector.load %arg3[%c9_106, %c0_107, %c0_108] : memref<16x2x128xf32, #tpu.memory_space<vmem>>, vector<1x2x128xf32>
    %143 = vector.shape_cast %142 : vector<1x2x128xf32> to vector<2x128xf32>
    %144 = vector.shape_cast %141 : vector<2x128xf32> to vector<1x2x128xf32>
    tpu.vector_store %arg3[%c9_106, %c0_107, %c0_108], %144 {strides = array<i32>} : memref<16x2x128xf32, #tpu.memory_space<vmem>>, vector<1x2x128xf32>,
    %cst_109 = arith.constant dense<0.000000e+00> : vector<128xf32>
    %145 = vector.multi_reduction <add>, %141, %cst_109 [0] : vector<2x128xf32> to vector<128xf32>
    %146 = vector.shape_cast %145 : vector<128xf32> to vector<1x128xf32>
    %147 = arith.addf %132, %146 : vector<1x128xf32>
    %148 = arith.mulf %141, %141 : vector<2x128xf32>
    %cst_110 = arith.constant dense<0.000000e+00> : vector<128xf32>
    %149 = vector.multi_reduction <add>, %148, %cst_110 [0] : vector<2x128xf32> to vector<128xf32>
    %150 = vector.shape_cast %149 : vector<128xf32> to vector<1x128xf32>
    %151 = arith.addf %136, %150 : vector<1x128xf32>
    %c0_111 = arith.constant 0 : index
    %c0_112 = arith.constant 0 : index
    %c0_113 = arith.constant 0 : index
    %152 = vector.load %arg1[%c0_111, %c0_112, %c0_113] : memref<1x2x32xf32, #tpu.memory_space<vmem>>, vector<1x2x32xf32>
    %153 = vector.shape_cast %152 : vector<1x2x32xf32> to vector<2x32xf32>
    %c10 = arith.constant 10 : index
    %c0_114 = arith.constant 0 : index
    %c0_115 = arith.constant 0 : index
    %154 = vector.load %arg2[%c10, %c0_114, %c0_115] : memref<16x32x128xf32, #tpu.memory_space<vmem>>, vector<1x32x128xf32>
    %155 = vector.shape_cast %154 : vector<1x32x128xf32> to vector<32x128xf32>
    %cst_116 = arith.constant dense<0.000000e+00> : vector<2x128xf32>
    %156 = tpu.matmul %153, %155, %cst_116 {dimension_numbers = #tpu.dot_dimension_numbers<[1], [0], [0], [1], [0, 0, 1, 1], [], []>} : vector<2x32xf32>, vector<32x128xf32>, vector<2x128xf32> -> vector<2x128xf32>
    %c10_117 = arith.constant 10 : index
    %c0_118 = arith.constant 0 : index
    %c0_119 = arith.constant 0 : index
    %157 = vector.load %arg3[%c10_117, %c0_118, %c0_119] : memref<16x2x128xf32, #tpu.memory_space<vmem>>, vector<1x2x128xf32>
    %158 = vector.shape_cast %157 : vector<1x2x128xf32> to vector<2x128xf32>
    %159 = vector.shape_cast %156 : vector<2x128xf32> to vector<1x2x128xf32>
    tpu.vector_store %arg3[%c10_117, %c0_118, %c0_119], %159 {strides = array<i32>} : memref<16x2x128xf32, #tpu.memory_space<vmem>>, vector<1x2x128xf32>,
    %cst_120 = arith.constant dense<0.000000e+00> : vector<128xf32>
    %160 = vector.multi_reduction <add>, %156, %cst_120 [0] : vector<2x128xf32> to vector<128xf32>
    %161 = vector.shape_cast %160 : vector<128xf32> to vector<1x128xf32>
    %162 = arith.addf %147, %161 : vector<1x128xf32>
    %163 = arith.mulf %156, %156 : vector<2x128xf32>
    %cst_121 = arith.constant dense<0.000000e+00> : vector<128xf32>
    %164 = vector.multi_reduction <add>, %163, %cst_121 [0] : vector<2x128xf32> to vector<128xf32>
    %165 = vector.shape_cast %164 : vector<128xf32> to vector<1x128xf32>
    %166 = arith.addf %151, %165 : vector<1x128xf32>
    %c0_122 = arith.constant 0 : index
    %c0_123 = arith.constant 0 : index
    %c0_124 = arith.constant 0 : index
    %167 = vector.load %arg1[%c0_122, %c0_123, %c0_124] : memref<1x2x32xf32, #tpu.memory_space<vmem>>, vector<1x2x32xf32>
    %168 = vector.shape_cast %167 : vector<1x2x32xf32> to vector<2x32xf32>
    %c11 = arith.constant 11 : index
    %c0_125 = arith.constant 0 : index
    %c0_126 = arith.constant 0 : index
    %169 = vector.load %arg2[%c11, %c0_125, %c0_126] : memref<16x32x128xf32, #tpu.memory_space<vmem>>, vector<1x32x128xf32>
    %170 = vector.shape_cast %169 : vector<1x32x128xf32> to vector<32x128xf32>
    %cst_127 = arith.constant dense<0.000000e+00> : vector<2x128xf32>
    %171 = tpu.matmul %168, %170, %cst_127 {dimension_numbers = #tpu.dot_dimension_numbers<[1], [0], [0], [1], [0, 0, 1, 1], [], []>} : vector<2x32xf32>, vector<32x128xf32>, vector<2x128xf32> -> vector<2x128xf32>
    %c11_128 = arith.constant 11 : index
    %c0_129 = arith.constant 0 : index
    %c0_130 = arith.constant 0 : index
    %172 = vector.load %arg3[%c11_128, %c0_129, %c0_130] : memref<16x2x128xf32, #tpu.memory_space<vmem>>, vector<1x2x128xf32>
    %173 = vector.shape_cast %172 : vector<1x2x128xf32> to vector<2x128xf32>
    %174 = vector.shape_cast %171 : vector<2x128xf32> to vector<1x2x128xf32>
    tpu.vector_store %arg3[%c11_128, %c0_129, %c0_130], %174 {strides = array<i32>} : memref<16x2x128xf32, #tpu.memory_space<vmem>>, vector<1x2x128xf32>,
    %cst_131 = arith.constant dense<0.000000e+00> : vector<128xf32>
    %175 = vector.multi_reduction <add>, %171, %cst_131 [0] : vector<2x128xf32> to vector<128xf32>
    %176 = vector.shape_cast %175 : vector<128xf32> to vector<1x128xf32>
    %177 = arith.addf %162, %176 : vector<1x128xf32>
    %178 = arith.mulf %171, %171 : vector<2x128xf32>
    %cst_132 = arith.constant dense<0.000000e+00> : vector<128xf32>
    %179 = vector.multi_reduction <add>, %178, %cst_132 [0] : vector<2x128xf32> to vector<128xf32>
    %180 = vector.shape_cast %179 : vector<128xf32> to vector<1x128xf32>
    %181 = arith.addf %166, %180 : vector<1x128xf32>
    %c0_133 = arith.constant 0 : index
    %c0_134 = arith.constant 0 : index
    %c0_135 = arith.constant 0 : index
    %182 = vector.load %arg1[%c0_133, %c0_134, %c0_135] : memref<1x2x32xf32, #tpu.memory_space<vmem>>, vector<1x2x32xf32>
    %183 = vector.shape_cast %182 : vector<1x2x32xf32> to vector<2x32xf32>
    %c12 = arith.constant 12 : index
    %c0_136 = arith.constant 0 : index
    %c0_137 = arith.constant 0 : index
    %184 = vector.load %arg2[%c12, %c0_136, %c0_137] : memref<16x32x128xf32, #tpu.memory_space<vmem>>, vector<1x32x128xf32>
    %185 = vector.shape_cast %184 : vector<1x32x128xf32> to vector<32x128xf32>
    %cst_138 = arith.constant dense<0.000000e+00> : vector<2x128xf32>
    %186 = tpu.matmul %183, %185, %cst_138 {dimension_numbers = #tpu.dot_dimension_numbers<[1], [0], [0], [1], [0, 0, 1, 1], [], []>} : vector<2x32xf32>, vector<32x128xf32>, vector<2x128xf32> -> vector<2x128xf32>
    %c12_139 = arith.constant 12 : index
    %c0_140 = arith.constant 0 : index
    %c0_141 = arith.constant 0 : index
    %187 = vector.load %arg3[%c12_139, %c0_140, %c0_141] : memref<16x2x128xf32, #tpu.memory_space<vmem>>, vector<1x2x128xf32>
    %188 = vector.shape_cast %187 : vector<1x2x128xf32> to vector<2x128xf32>
    %189 = vector.shape_cast %186 : vector<2x128xf32> to vector<1x2x128xf32>
    tpu.vector_store %arg3[%c12_139, %c0_140, %c0_141], %189 {strides = array<i32>} : memref<16x2x128xf32, #tpu.memory_space<vmem>>, vector<1x2x128xf32>,
    %cst_142 = arith.constant dense<0.000000e+00> : vector<128xf32>
    %190 = vector.multi_reduction <add>, %186, %cst_142 [0] : vector<2x128xf32> to vector<128xf32>
    %191 = vector.shape_cast %190 : vector<128xf32> to vector<1x128xf32>
    %192 = arith.addf %177, %191 : vector<1x128xf32>
    %193 = arith.mulf %186, %186 : vector<2x128xf32>
    %cst_143 = arith.constant dense<0.000000e+00> : vector<128xf32>
    %194 = vector.multi_reduction <add>, %193, %cst_143 [0] : vector<2x128xf32> to vector<128xf32>
    %195 = vector.shape_cast %194 : vector<128xf32> to vector<1x128xf32>
    %196 = arith.addf %181, %195 : vector<1x128xf32>
    %c0_144 = arith.constant 0 : index
    %c0_145 = arith.constant 0 : index
    %c0_146 = arith.constant 0 : index
    %197 = vector.load %arg1[%c0_144, %c0_145, %c0_146] : memref<1x2x32xf32, #tpu.memory_space<vmem>>, vector<1x2x32xf32>
    %198 = vector.shape_cast %197 : vector<1x2x32xf32> to vector<2x32xf32>
    %c13 = arith.constant 13 : index
    %c0_147 = arith.constant 0 : index
    %c0_148 = arith.constant 0 : index
    %199 = vector.load %arg2[%c13, %c0_147, %c0_148] : memref<16x32x128xf32, #tpu.memory_space<vmem>>, vector<1x32x128xf32>
    %200 = vector.shape_cast %199 : vector<1x32x128xf32> to vector<32x128xf32>
    %cst_149 = arith.constant dense<0.000000e+00> : vector<2x128xf32>
    %201 = tpu.matmul %198, %200, %cst_149 {dimension_numbers = #tpu.dot_dimension_numbers<[1], [0], [0], [1], [0, 0, 1, 1], [], []>} : vector<2x32xf32>, vector<32x128xf32>, vector<2x128xf32> -> vector<2x128xf32>
    %c13_150 = arith.constant 13 : index
    %c0_151 = arith.constant 0 : index
    %c0_152 = arith.constant 0 : index
    %202 = vector.load %arg3[%c13_150, %c0_151, %c0_152] : memref<16x2x128xf32, #tpu.memory_space<vmem>>, vector<1x2x128xf32>
    %203 = vector.shape_cast %202 : vector<1x2x128xf32> to vector<2x128xf32>
    %204 = vector.shape_cast %201 : vector<2x128xf32> to vector<1x2x128xf32>
    tpu.vector_store %arg3[%c13_150, %c0_151, %c0_152], %204 {strides = array<i32>} : memref<16x2x128xf32, #tpu.memory_space<vmem>>, vector<1x2x128xf32>,
    %cst_153 = arith.constant dense<0.000000e+00> : vector<128xf32>
    %205 = vector.multi_reduction <add>, %201, %cst_153 [0] : vector<2x128xf32> to vector<128xf32>
    %206 = vector.shape_cast %205 : vector<128xf32> to vector<1x128xf32>
    %207 = arith.addf %192, %206 : vector<1x128xf32>
    %208 = arith.mulf %201, %201 : vector<2x128xf32>
    %cst_154 = arith.constant dense<0.000000e+00> : vector<128xf32>
    %209 = vector.multi_reduction <add>, %208, %cst_154 [0] : vector<2x128xf32> to vector<128xf32>
    %210 = vector.shape_cast %209 : vector<128xf32> to vector<1x128xf32>
    %211 = arith.addf %196, %210 : vector<1x128xf32>
    %c0_155 = arith.constant 0 : index
    %c0_156 = arith.constant 0 : index
    %c0_157 = arith.constant 0 : index
    %212 = vector.load %arg1[%c0_155, %c0_156, %c0_157] : memref<1x2x32xf32, #tpu.memory_space<vmem>>, vector<1x2x32xf32>
    %213 = vector.shape_cast %212 : vector<1x2x32xf32> to vector<2x32xf32>
    %c14 = arith.constant 14 : index
    %c0_158 = arith.constant 0 : index
    %c0_159 = arith.constant 0 : index
    %214 = vector.load %arg2[%c14, %c0_158, %c0_159] : memref<16x32x128xf32, #tpu.memory_space<vmem>>, vector<1x32x128xf32>
    %215 = vector.shape_cast %214 : vector<1x32x128xf32> to vector<32x128xf32>
    %cst_160 = arith.constant dense<0.000000e+00> : vector<2x128xf32>
    %216 = tpu.matmul %213, %215, %cst_160 {dimension_numbers = #tpu.dot_dimension_numbers<[1], [0], [0], [1], [0, 0, 1, 1], [], []>} : vector<2x32xf32>, vector<32x128xf32>, vector<2x128xf32> -> vector<2x128xf32>
    %c14_161 = arith.constant 14 : index
    %c0_162 = arith.constant 0 : index
    %c0_163 = arith.constant 0 : index
    %217 = vector.load %arg3[%c14_161, %c0_162, %c0_163] : memref<16x2x128xf32, #tpu.memory_space<vmem>>, vector<1x2x128xf32>
    %218 = vector.shape_cast %217 : vector<1x2x128xf32> to vector<2x128xf32>
    %219 = vector.shape_cast %216 : vector<2x128xf32> to vector<1x2x128xf32>
    tpu.vector_store %arg3[%c14_161, %c0_162, %c0_163], %219 {strides = array<i32>} : memref<16x2x128xf32, #tpu.memory_space<vmem>>, vector<1x2x128xf32>,
    %cst_164 = arith.constant dense<0.000000e+00> : vector<128xf32>
    %220 = vector.multi_reduction <add>, %216, %cst_164 [0] : vector<2x128xf32> to vector<128xf32>
    %221 = vector.shape_cast %220 : vector<128xf32> to vector<1x128xf32>
    %222 = arith.addf %207, %221 : vector<1x128xf32>
    %223 = arith.mulf %216, %216 : vector<2x128xf32>
    %cst_165 = arith.constant dense<0.000000e+00> : vector<128xf32>
    %224 = vector.multi_reduction <add>, %223, %cst_165 [0] : vector<2x128xf32> to vector<128xf32>
    %225 = vector.shape_cast %224 : vector<128xf32> to vector<1x128xf32>
    %226 = arith.addf %211, %225 : vector<1x128xf32>
    %c0_166 = arith.constant 0 : index
    %c0_167 = arith.constant 0 : index
    %c0_168 = arith.constant 0 : index
    %227 = vector.load %arg1[%c0_166, %c0_167, %c0_168] : memref<1x2x32xf32, #tpu.memory_space<vmem>>, vector<1x2x32xf32>
    %228 = vector.shape_cast %227 : vector<1x2x32xf32> to vector<2x32xf32>
    %c15 = arith.constant 15 : index
    %c0_169 = arith.constant 0 : index
    %c0_170 = arith.constant 0 : index
    %229 = vector.load %arg2[%c15, %c0_169, %c0_170] : memref<16x32x128xf32, #tpu.memory_space<vmem>>, vector<1x32x128xf32>
    %230 = vector.shape_cast %229 : vector<1x32x128xf32> to vector<32x128xf32>
    %cst_171 = arith.constant dense<0.000000e+00> : vector<2x128xf32>
    %231 = tpu.matmul %228, %230, %cst_171 {dimension_numbers = #tpu.dot_dimension_numbers<[1], [0], [0], [1], [0, 0, 1, 1], [], []>} : vector<2x32xf32>, vector<32x128xf32>, vector<2x128xf32> -> vector<2x128xf32>
    %c15_172 = arith.constant 15 : index
    %c0_173 = arith.constant 0 : index
    %c0_174 = arith.constant 0 : index
    %232 = vector.load %arg3[%c15_172, %c0_173, %c0_174] : memref<16x2x128xf32, #tpu.memory_space<vmem>>, vector<1x2x128xf32>
    %233 = vector.shape_cast %232 : vector<1x2x128xf32> to vector<2x128xf32>
    %234 = vector.shape_cast %231 : vector<2x128xf32> to vector<1x2x128xf32>
    tpu.vector_store %arg3[%c15_172, %c0_173, %c0_174], %234 {strides = array<i32>} : memref<16x2x128xf32, #tpu.memory_space<vmem>>, vector<1x2x128xf32>,
    %cst_175 = arith.constant dense<0.000000e+00> : vector<128xf32>
    %235 = vector.multi_reduction <add>, %231, %cst_175 [0] : vector<2x128xf32> to vector<128xf32>
    %236 = vector.shape_cast %235 : vector<128xf32> to vector<1x128xf32>
    %237 = arith.addf %222, %236 : vector<1x128xf32>
    %238 = arith.mulf %231, %231 : vector<2x128xf32>
    %cst_176 = arith.constant dense<0.000000e+00> : vector<128xf32>
    %239 = vector.multi_reduction <add>, %238, %cst_176 [0] : vector<2x128xf32> to vector<128xf32>
    %240 = vector.shape_cast %239 : vector<128xf32> to vector<1x128xf32>
    %241 = arith.addf %226, %240 : vector<1x128xf32>
    %cst_177 = arith.constant 3.200000e+01 : f32
    %242 = vector.broadcast %cst_177 : f32 to vector<1x128xf32>
    %243 = arith.divf %237, %242 : vector<1x128xf32>
    %cst_178 = arith.constant 3.200000e+01 : f32
    %244 = vector.broadcast %cst_178 : f32 to vector<1x128xf32>
    %245 = arith.divf %241, %244 : vector<1x128xf32>
    %246 = arith.mulf %243, %243 : vector<1x128xf32>
    %247 = arith.subf %245, %246 : vector<1x128xf32>
    %cst_179 = arith.constant 9.99999974E-6 : f32
    %248 = vector.broadcast %cst_179 : f32 to vector<1x128xf32>
    %249 = arith.addf %247, %248 : vector<1x128xf32>
    %250 = math.rsqrt %249 : vector<1x128xf32>
    %cst_180 = arith.constant 0.000000e+00 : f32
    %251 = vector.broadcast %cst_180 : f32 to vector<1x128xf32>
    %252 = arith.subf %251, %243 : vector<1x128xf32>
    %253 = arith.mulf %252, %250 : vector<1x128xf32>
    %c0_181 = arith.constant 0 : index
    %c0_182 = arith.constant 0 : index
    %c0_183 = arith.constant 0 : index
    %254 = vector.load %arg3[%c0_181, %c0_182, %c0_183] : memref<16x2x128xf32, #tpu.memory_space<vmem>>, vector<1x2x128xf32>
    %255 = vector.shape_cast %254 : vector<1x2x128xf32> to vector<2x128xf32>
    %256 = vector.broadcast %250 : vector<1x128xf32> to vector<2x128xf32>
    %257 = arith.mulf %255, %256 : vector<2x128xf32>
    %258 = vector.broadcast %253 : vector<1x128xf32> to vector<2x128xf32>
    %259 = arith.addf %257, %258 : vector<2x128xf32>
    %cst_184 = arith.constant 0.000000e+00 : f32
    %260 = vector.broadcast %cst_184 : f32 to vector<2x128xf32>
    %261 = arith.maximumf %259, %260 : vector<2x128xf32>
    %c0_185 = arith.constant 0 : index
    %c0_186 = arith.constant 0 : index
    %c0_187 = arith.constant 0 : index
    %262 = vector.load %arg3[%c0_185, %c0_186, %c0_187] : memref<16x2x128xf32, #tpu.memory_space<vmem>>, vector<1x2x128xf32>
    %263 = vector.shape_cast %262 : vector<1x2x128xf32> to vector<2x128xf32>
    %264 = vector.shape_cast %261 : vector<2x128xf32> to vector<1x2x128xf32>
    tpu.vector_store %arg3[%c0_185, %c0_186, %c0_187], %264 {strides = array<i32>} : memref<16x2x128xf32, #tpu.memory_space<vmem>>, vector<1x2x128xf32>,
    %c1_188 = arith.constant 1 : index
    %c0_189 = arith.constant 0 : index
    %c0_190 = arith.constant 0 : index
    %265 = vector.load %arg3[%c1_188, %c0_189, %c0_190] : memref<16x2x128xf32, #tpu.memory_space<vmem>>, vector<1x2x128xf32>
    %266 = vector.shape_cast %265 : vector<1x2x128xf32> to vector<2x128xf32>
    %267 = vector.broadcast %250 : vector<1x128xf32> to vector<2x128xf32>
    %268 = arith.mulf %266, %267 : vector<2x128xf32>
    %269 = vector.broadcast %253 : vector<1x128xf32> to vector<2x128xf32>
    %270 = arith.addf %268, %269 : vector<2x128xf32>
    %cst_191 = arith.constant 0.000000e+00 : f32
    %271 = vector.broadcast %cst_191 : f32 to vector<2x128xf32>
    %272 = arith.maximumf %270, %271 : vector<2x128xf32>
    %c1_192 = arith.constant 1 : index
    %c0_193 = arith.constant 0 : index
    %c0_194 = arith.constant 0 : index
    %273 = vector.load %arg3[%c1_192, %c0_193, %c0_194] : memref<16x2x128xf32, #tpu.memory_space<vmem>>, vector<1x2x128xf32>
    %274 = vector.shape_cast %273 : vector<1x2x128xf32> to vector<2x128xf32>
    %275 = vector.shape_cast %272 : vector<2x128xf32> to vector<1x2x128xf32>
    tpu.vector_store %arg3[%c1_192, %c0_193, %c0_194], %275 {strides = array<i32>} : memref<16x2x128xf32, #tpu.memory_space<vmem>>, vector<1x2x128xf32>,
    %c2_195 = arith.constant 2 : index
    %c0_196 = arith.constant 0 : index
    %c0_197 = arith.constant 0 : index
    %276 = vector.load %arg3[%c2_195, %c0_196, %c0_197] : memref<16x2x128xf32, #tpu.memory_space<vmem>>, vector<1x2x128xf32>
    %277 = vector.shape_cast %276 : vector<1x2x128xf32> to vector<2x128xf32>
    %278 = vector.broadcast %250 : vector<1x128xf32> to vector<2x128xf32>
    %279 = arith.mulf %277, %278 : vector<2x128xf32>
    %280 = vector.broadcast %253 : vector<1x128xf32> to vector<2x128xf32>
    %281 = arith.addf %279, %280 : vector<2x128xf32>
    %cst_198 = arith.constant 0.000000e+00 : f32
    %282 = vector.broadcast %cst_198 : f32 to vector<2x128xf32>
    %283 = arith.maximumf %281, %282 : vector<2x128xf32>
    %c2_199 = arith.constant 2 : index
    %c0_200 = arith.constant 0 : index
    %c0_201 = arith.constant 0 : index
    %284 = vector.load %arg3[%c2_199, %c0_200, %c0_201] : memref<16x2x128xf32, #tpu.memory_space<vmem>>, vector<1x2x128xf32>
    %285 = vector.shape_cast %284 : vector<1x2x128xf32> to vector<2x128xf32>
    %286 = vector.shape_cast %283 : vector<2x128xf32> to vector<1x2x128xf32>
    tpu.vector_store %arg3[%c2_199, %c0_200, %c0_201], %286 {strides = array<i32>} : memref<16x2x128xf32, #tpu.memory_space<vmem>>, vector<1x2x128xf32>,
    %c3_202 = arith.constant 3 : index
    %c0_203 = arith.constant 0 : index
    %c0_204 = arith.constant 0 : index
    %287 = vector.load %arg3[%c3_202, %c0_203, %c0_204] : memref<16x2x128xf32, #tpu.memory_space<vmem>>, vector<1x2x128xf32>
    %288 = vector.shape_cast %287 : vector<1x2x128xf32> to vector<2x128xf32>
    %289 = vector.broadcast %250 : vector<1x128xf32> to vector<2x128xf32>
    %290 = arith.mulf %288, %289 : vector<2x128xf32>
    %291 = vector.broadcast %253 : vector<1x128xf32> to vector<2x128xf32>
    %292 = arith.addf %290, %291 : vector<2x128xf32>
    %cst_205 = arith.constant 0.000000e+00 : f32
    %293 = vector.broadcast %cst_205 : f32 to vector<2x128xf32>
    %294 = arith.maximumf %292, %293 : vector<2x128xf32>
    %c3_206 = arith.constant 3 : index
    %c0_207 = arith.constant 0 : index
    %c0_208 = arith.constant 0 : index
    %295 = vector.load %arg3[%c3_206, %c0_207, %c0_208] : memref<16x2x128xf32, #tpu.memory_space<vmem>>, vector<1x2x128xf32>
    %296 = vector.shape_cast %295 : vector<1x2x128xf32> to vector<2x128xf32>
    %297 = vector.shape_cast %294 : vector<2x128xf32> to vector<1x2x128xf32>
    tpu.vector_store %arg3[%c3_206, %c0_207, %c0_208], %297 {strides = array<i32>} : memref<16x2x128xf32, #tpu.memory_space<vmem>>, vector<1x2x128xf32>,
    %c4_209 = arith.constant 4 : index
    %c0_210 = arith.constant 0 : index
    %c0_211 = arith.constant 0 : index
    %298 = vector.load %arg3[%c4_209, %c0_210, %c0_211] : memref<16x2x128xf32, #tpu.memory_space<vmem>>, vector<1x2x128xf32>
    %299 = vector.shape_cast %298 : vector<1x2x128xf32> to vector<2x128xf32>
    %300 = vector.broadcast %250 : vector<1x128xf32> to vector<2x128xf32>
    %301 = arith.mulf %299, %300 : vector<2x128xf32>
    %302 = vector.broadcast %253 : vector<1x128xf32> to vector<2x128xf32>
    %303 = arith.addf %301, %302 : vector<2x128xf32>
    %cst_212 = arith.constant 0.000000e+00 : f32
    %304 = vector.broadcast %cst_212 : f32 to vector<2x128xf32>
    %305 = arith.maximumf %303, %304 : vector<2x128xf32>
    %c4_213 = arith.constant 4 : index
    %c0_214 = arith.constant 0 : index
    %c0_215 = arith.constant 0 : index
    %306 = vector.load %arg3[%c4_213, %c0_214, %c0_215] : memref<16x2x128xf32, #tpu.memory_space<vmem>>, vector<1x2x128xf32>
    %307 = vector.shape_cast %306 : vector<1x2x128xf32> to vector<2x128xf32>
    %308 = vector.shape_cast %305 : vector<2x128xf32> to vector<1x2x128xf32>
    tpu.vector_store %arg3[%c4_213, %c0_214, %c0_215], %308 {strides = array<i32>} : memref<16x2x128xf32, #tpu.memory_space<vmem>>, vector<1x2x128xf32>,
    %c5_216 = arith.constant 5 : index
    %c0_217 = arith.constant 0 : index
    %c0_218 = arith.constant 0 : index
    %309 = vector.load %arg3[%c5_216, %c0_217, %c0_218] : memref<16x2x128xf32, #tpu.memory_space<vmem>>, vector<1x2x128xf32>
    %310 = vector.shape_cast %309 : vector<1x2x128xf32> to vector<2x128xf32>
    %311 = vector.broadcast %250 : vector<1x128xf32> to vector<2x128xf32>
    %312 = arith.mulf %310, %311 : vector<2x128xf32>
    %313 = vector.broadcast %253 : vector<1x128xf32> to vector<2x128xf32>
    %314 = arith.addf %312, %313 : vector<2x128xf32>
    %cst_219 = arith.constant 0.000000e+00 : f32
    %315 = vector.broadcast %cst_219 : f32 to vector<2x128xf32>
    %316 = arith.maximumf %314, %315 : vector<2x128xf32>
    %c5_220 = arith.constant 5 : index
    %c0_221 = arith.constant 0 : index
    %c0_222 = arith.constant 0 : index
    %317 = vector.load %arg3[%c5_220, %c0_221, %c0_222] : memref<16x2x128xf32, #tpu.memory_space<vmem>>, vector<1x2x128xf32>
    %318 = vector.shape_cast %317 : vector<1x2x128xf32> to vector<2x128xf32>
    %319 = vector.shape_cast %316 : vector<2x128xf32> to vector<1x2x128xf32>
    tpu.vector_store %arg3[%c5_220, %c0_221, %c0_222], %319 {strides = array<i32>} : memref<16x2x128xf32, #tpu.memory_space<vmem>>, vector<1x2x128xf32>,
    %c6_223 = arith.constant 6 : index
    %c0_224 = arith.constant 0 : index
    %c0_225 = arith.constant 0 : index
    %320 = vector.load %arg3[%c6_223, %c0_224, %c0_225] : memref<16x2x128xf32, #tpu.memory_space<vmem>>, vector<1x2x128xf32>
    %321 = vector.shape_cast %320 : vector<1x2x128xf32> to vector<2x128xf32>
    %322 = vector.broadcast %250 : vector<1x128xf32> to vector<2x128xf32>
    %323 = arith.mulf %321, %322 : vector<2x128xf32>
    %324 = vector.broadcast %253 : vector<1x128xf32> to vector<2x128xf32>
    %325 = arith.addf %323, %324 : vector<2x128xf32>
    %cst_226 = arith.constant 0.000000e+00 : f32
    %326 = vector.broadcast %cst_226 : f32 to vector<2x128xf32>
    %327 = arith.maximumf %325, %326 : vector<2x128xf32>
    %c6_227 = arith.constant 6 : index
    %c0_228 = arith.constant 0 : index
    %c0_229 = arith.constant 0 : index
    %328 = vector.load %arg3[%c6_227, %c0_228, %c0_229] : memref<16x2x128xf32, #tpu.memory_space<vmem>>, vector<1x2x128xf32>
    %329 = vector.shape_cast %328 : vector<1x2x128xf32> to vector<2x128xf32>
    %330 = vector.shape_cast %327 : vector<2x128xf32> to vector<1x2x128xf32>
    tpu.vector_store %arg3[%c6_227, %c0_228, %c0_229], %330 {strides = array<i32>} : memref<16x2x128xf32, #tpu.memory_space<vmem>>, vector<1x2x128xf32>,
    %c7_230 = arith.constant 7 : index
    %c0_231 = arith.constant 0 : index
    %c0_232 = arith.constant 0 : index
    %331 = vector.load %arg3[%c7_230, %c0_231, %c0_232] : memref<16x2x128xf32, #tpu.memory_space<vmem>>, vector<1x2x128xf32>
    %332 = vector.shape_cast %331 : vector<1x2x128xf32> to vector<2x128xf32>
    %333 = vector.broadcast %250 : vector<1x128xf32> to vector<2x128xf32>
    %334 = arith.mulf %332, %333 : vector<2x128xf32>
    %335 = vector.broadcast %253 : vector<1x128xf32> to vector<2x128xf32>
    %336 = arith.addf %334, %335 : vector<2x128xf32>
    %cst_233 = arith.constant 0.000000e+00 : f32
    %337 = vector.broadcast %cst_233 : f32 to vector<2x128xf32>
    %338 = arith.maximumf %336, %337 : vector<2x128xf32>
    %c7_234 = arith.constant 7 : index
    %c0_235 = arith.constant 0 : index
    %c0_236 = arith.constant 0 : index
    %339 = vector.load %arg3[%c7_234, %c0_235, %c0_236] : memref<16x2x128xf32, #tpu.memory_space<vmem>>, vector<1x2x128xf32>
    %340 = vector.shape_cast %339 : vector<1x2x128xf32> to vector<2x128xf32>
    %341 = vector.shape_cast %338 : vector<2x128xf32> to vector<1x2x128xf32>
    tpu.vector_store %arg3[%c7_234, %c0_235, %c0_236], %341 {strides = array<i32>} : memref<16x2x128xf32, #tpu.memory_space<vmem>>, vector<1x2x128xf32>,
    %c8_237 = arith.constant 8 : index
    %c0_238 = arith.constant 0 : index
    %c0_239 = arith.constant 0 : index
    %342 = vector.load %arg3[%c8_237, %c0_238, %c0_239] : memref<16x2x128xf32, #tpu.memory_space<vmem>>, vector<1x2x128xf32>
    %343 = vector.shape_cast %342 : vector<1x2x128xf32> to vector<2x128xf32>
    %344 = vector.broadcast %250 : vector<1x128xf32> to vector<2x128xf32>
    %345 = arith.mulf %343, %344 : vector<2x128xf32>
    %346 = vector.broadcast %253 : vector<1x128xf32> to vector<2x128xf32>
    %347 = arith.addf %345, %346 : vector<2x128xf32>
    %cst_240 = arith.constant 0.000000e+00 : f32
    %348 = vector.broadcast %cst_240 : f32 to vector<2x128xf32>
    %349 = arith.maximumf %347, %348 : vector<2x128xf32>
    %c8_241 = arith.constant 8 : index
    %c0_242 = arith.constant 0 : index
    %c0_243 = arith.constant 0 : index
    %350 = vector.load %arg3[%c8_241, %c0_242, %c0_243] : memref<16x2x128xf32, #tpu.memory_space<vmem>>, vector<1x2x128xf32>
    %351 = vector.shape_cast %350 : vector<1x2x128xf32> to vector<2x128xf32>
    %352 = vector.shape_cast %349 : vector<2x128xf32> to vector<1x2x128xf32>
    tpu.vector_store %arg3[%c8_241, %c0_242, %c0_243], %352 {strides = array<i32>} : memref<16x2x128xf32, #tpu.memory_space<vmem>>, vector<1x2x128xf32>,
    %c9_244 = arith.constant 9 : index
    %c0_245 = arith.constant 0 : index
    %c0_246 = arith.constant 0 : index
    %353 = vector.load %arg3[%c9_244, %c0_245, %c0_246] : memref<16x2x128xf32, #tpu.memory_space<vmem>>, vector<1x2x128xf32>
    %354 = vector.shape_cast %353 : vector<1x2x128xf32> to vector<2x128xf32>
    %355 = vector.broadcast %250 : vector<1x128xf32> to vector<2x128xf32>
    %356 = arith.mulf %354, %355 : vector<2x128xf32>
    %357 = vector.broadcast %253 : vector<1x128xf32> to vector<2x128xf32>
    %358 = arith.addf %356, %357 : vector<2x128xf32>
    %cst_247 = arith.constant 0.000000e+00 : f32
    %359 = vector.broadcast %cst_247 : f32 to vector<2x128xf32>
    %360 = arith.maximumf %358, %359 : vector<2x128xf32>
    %c9_248 = arith.constant 9 : index
    %c0_249 = arith.constant 0 : index
    %c0_250 = arith.constant 0 : index
    %361 = vector.load %arg3[%c9_248, %c0_249, %c0_250] : memref<16x2x128xf32, #tpu.memory_space<vmem>>, vector<1x2x128xf32>
    %362 = vector.shape_cast %361 : vector<1x2x128xf32> to vector<2x128xf32>
    %363 = vector.shape_cast %360 : vector<2x128xf32> to vector<1x2x128xf32>
    tpu.vector_store %arg3[%c9_248, %c0_249, %c0_250], %363 {strides = array<i32>} : memref<16x2x128xf32, #tpu.memory_space<vmem>>, vector<1x2x128xf32>,
    %c10_251 = arith.constant 10 : index
    %c0_252 = arith.constant 0 : index
    %c0_253 = arith.constant 0 : index
    %364 = vector.load %arg3[%c10_251, %c0_252, %c0_253] : memref<16x2x128xf32, #tpu.memory_space<vmem>>, vector<1x2x128xf32>
    %365 = vector.shape_cast %364 : vector<1x2x128xf32> to vector<2x128xf32>
    %366 = vector.broadcast %250 : vector<1x128xf32> to vector<2x128xf32>
    %367 = arith.mulf %365, %366 : vector<2x128xf32>
    %368 = vector.broadcast %253 : vector<1x128xf32> to vector<2x128xf32>
    %369 = arith.addf %367, %368 : vector<2x128xf32>
    %cst_254 = arith.constant 0.000000e+00 : f32
    %370 = vector.broadcast %cst_254 : f32 to vector<2x128xf32>
    %371 = arith.maximumf %369, %370 : vector<2x128xf32>
    %c10_255 = arith.constant 10 : index
    %c0_256 = arith.constant 0 : index
    %c0_257 = arith.constant 0 : index
    %372 = vector.load %arg3[%c10_255, %c0_256, %c0_257] : memref<16x2x128xf32, #tpu.memory_space<vmem>>, vector<1x2x128xf32>
    %373 = vector.shape_cast %372 : vector<1x2x128xf32> to vector<2x128xf32>
    %374 = vector.shape_cast %371 : vector<2x128xf32> to vector<1x2x128xf32>
    tpu.vector_store %arg3[%c10_255, %c0_256, %c0_257], %374 {strides = array<i32>} : memref<16x2x128xf32, #tpu.memory_space<vmem>>, vector<1x2x128xf32>,
    %c11_258 = arith.constant 11 : index
    %c0_259 = arith.constant 0 : index
    %c0_260 = arith.constant 0 : index
    %375 = vector.load %arg3[%c11_258, %c0_259, %c0_260] : memref<16x2x128xf32, #tpu.memory_space<vmem>>, vector<1x2x128xf32>
    %376 = vector.shape_cast %375 : vector<1x2x128xf32> to vector<2x128xf32>
    %377 = vector.broadcast %250 : vector<1x128xf32> to vector<2x128xf32>
    %378 = arith.mulf %376, %377 : vector<2x128xf32>
    %379 = vector.broadcast %253 : vector<1x128xf32> to vector<2x128xf32>
    %380 = arith.addf %378, %379 : vector<2x128xf32>
    %cst_261 = arith.constant 0.000000e+00 : f32
    %381 = vector.broadcast %cst_261 : f32 to vector<2x128xf32>
    %382 = arith.maximumf %380, %381 : vector<2x128xf32>
    %c11_262 = arith.constant 11 : index
    %c0_263 = arith.constant 0 : index
    %c0_264 = arith.constant 0 : index
    %383 = vector.load %arg3[%c11_262, %c0_263, %c0_264] : memref<16x2x128xf32, #tpu.memory_space<vmem>>, vector<1x2x128xf32>
    %384 = vector.shape_cast %383 : vector<1x2x128xf32> to vector<2x128xf32>
    %385 = vector.shape_cast %382 : vector<2x128xf32> to vector<1x2x128xf32>
    tpu.vector_store %arg3[%c11_262, %c0_263, %c0_264], %385 {strides = array<i32>} : memref<16x2x128xf32, #tpu.memory_space<vmem>>, vector<1x2x128xf32>,
    %c12_265 = arith.constant 12 : index
    %c0_266 = arith.constant 0 : index
    %c0_267 = arith.constant 0 : index
    %386 = vector.load %arg3[%c12_265, %c0_266, %c0_267] : memref<16x2x128xf32, #tpu.memory_space<vmem>>, vector<1x2x128xf32>
    %387 = vector.shape_cast %386 : vector<1x2x128xf32> to vector<2x128xf32>
    %388 = vector.broadcast %250 : vector<1x128xf32> to vector<2x128xf32>
    %389 = arith.mulf %387, %388 : vector<2x128xf32>
    %390 = vector.broadcast %253 : vector<1x128xf32> to vector<2x128xf32>
    %391 = arith.addf %389, %390 : vector<2x128xf32>
    %cst_268 = arith.constant 0.000000e+00 : f32
    %392 = vector.broadcast %cst_268 : f32 to vector<2x128xf32>
    %393 = arith.maximumf %391, %392 : vector<2x128xf32>
    %c12_269 = arith.constant 12 : index
    %c0_270 = arith.constant 0 : index
    %c0_271 = arith.constant 0 : index
    %394 = vector.load %arg3[%c12_269, %c0_270, %c0_271] : memref<16x2x128xf32, #tpu.memory_space<vmem>>, vector<1x2x128xf32>
    %395 = vector.shape_cast %394 : vector<1x2x128xf32> to vector<2x128xf32>
    %396 = vector.shape_cast %393 : vector<2x128xf32> to vector<1x2x128xf32>
    tpu.vector_store %arg3[%c12_269, %c0_270, %c0_271], %396 {strides = array<i32>} : memref<16x2x128xf32, #tpu.memory_space<vmem>>, vector<1x2x128xf32>,
    %c13_272 = arith.constant 13 : index
    %c0_273 = arith.constant 0 : index
    %c0_274 = arith.constant 0 : index
    %397 = vector.load %arg3[%c13_272, %c0_273, %c0_274] : memref<16x2x128xf32, #tpu.memory_space<vmem>>, vector<1x2x128xf32>
    %398 = vector.shape_cast %397 : vector<1x2x128xf32> to vector<2x128xf32>
    %399 = vector.broadcast %250 : vector<1x128xf32> to vector<2x128xf32>
    %400 = arith.mulf %398, %399 : vector<2x128xf32>
    %401 = vector.broadcast %253 : vector<1x128xf32> to vector<2x128xf32>
    %402 = arith.addf %400, %401 : vector<2x128xf32>
    %cst_275 = arith.constant 0.000000e+00 : f32
    %403 = vector.broadcast %cst_275 : f32 to vector<2x128xf32>
    %404 = arith.maximumf %402, %403 : vector<2x128xf32>
    %c13_276 = arith.constant 13 : index
    %c0_277 = arith.constant 0 : index
    %c0_278 = arith.constant 0 : index
    %405 = vector.load %arg3[%c13_276, %c0_277, %c0_278] : memref<16x2x128xf32, #tpu.memory_space<vmem>>, vector<1x2x128xf32>
    %406 = vector.shape_cast %405 : vector<1x2x128xf32> to vector<2x128xf32>
    %407 = vector.shape_cast %404 : vector<2x128xf32> to vector<1x2x128xf32>
    tpu.vector_store %arg3[%c13_276, %c0_277, %c0_278], %407 {strides = array<i32>} : memref<16x2x128xf32, #tpu.memory_space<vmem>>, vector<1x2x128xf32>,
    %c14_279 = arith.constant 14 : index
    %c0_280 = arith.constant 0 : index
    %c0_281 = arith.constant 0 : index
    %408 = vector.load %arg3[%c14_279, %c0_280, %c0_281] : memref<16x2x128xf32, #tpu.memory_space<vmem>>, vector<1x2x128xf32>
    %409 = vector.shape_cast %408 : vector<1x2x128xf32> to vector<2x128xf32>
    %410 = vector.broadcast %250 : vector<1x128xf32> to vector<2x128xf32>
    %411 = arith.mulf %409, %410 : vector<2x128xf32>
    %412 = vector.broadcast %253 : vector<1x128xf32> to vector<2x128xf32>
    %413 = arith.addf %411, %412 : vector<2x128xf32>
    %cst_282 = arith.constant 0.000000e+00 : f32
    %414 = vector.broadcast %cst_282 : f32 to vector<2x128xf32>
    %415 = arith.maximumf %413, %414 : vector<2x128xf32>
    %c14_283 = arith.constant 14 : index
    %c0_284 = arith.constant 0 : index
    %c0_285 = arith.constant 0 : index
    %416 = vector.load %arg3[%c14_283, %c0_284, %c0_285] : memref<16x2x128xf32, #tpu.memory_space<vmem>>, vector<1x2x128xf32>
    %417 = vector.shape_cast %416 : vector<1x2x128xf32> to vector<2x128xf32>
    %418 = vector.shape_cast %415 : vector<2x128xf32> to vector<1x2x128xf32>
    tpu.vector_store %arg3[%c14_283, %c0_284, %c0_285], %418 {strides = array<i32>} : memref<16x2x128xf32, #tpu.memory_space<vmem>>, vector<1x2x128xf32>,
    %c15_286 = arith.constant 15 : index
    %c0_287 = arith.constant 0 : index
    %c0_288 = arith.constant 0 : index
    %419 = vector.load %arg3[%c15_286, %c0_287, %c0_288] : memref<16x2x128xf32, #tpu.memory_space<vmem>>, vector<1x2x128xf32>
    %420 = vector.shape_cast %419 : vector<1x2x128xf32> to vector<2x128xf32>
    %421 = vector.broadcast %250 : vector<1x128xf32> to vector<2x128xf32>
    %422 = arith.mulf %420, %421 : vector<2x128xf32>
    %423 = vector.broadcast %253 : vector<1x128xf32> to vector<2x128xf32>
    %424 = arith.addf %422, %423 : vector<2x128xf32>
    %cst_289 = arith.constant 0.000000e+00 : f32
    %425 = vector.broadcast %cst_289 : f32 to vector<2x128xf32>
    %426 = arith.maximumf %424, %425 : vector<2x128xf32>
    %c15_290 = arith.constant 15 : index
    %c0_291 = arith.constant 0 : index
    %c0_292 = arith.constant 0 : index
    %427 = vector.load %arg3[%c15_290, %c0_291, %c0_292] : memref<16x2x128xf32, #tpu.memory_space<vmem>>, vector<1x2x128xf32>
    %428 = vector.shape_cast %427 : vector<1x2x128xf32> to vector<2x128xf32>
    %429 = vector.shape_cast %426 : vector<2x128xf32> to vector<1x2x128xf32>
    tpu.vector_store %arg3[%c15_290, %c0_291, %c0_292], %429 {strides = array<i32>} : memref<16x2x128xf32, #tpu.memory_space<vmem>>, vector<1x2x128xf32>,
    return
  }
  func.func @transform_0(%arg0: i32) -> (i32, i32, i32) {
    %c0_i32 = arith.constant 0 : i32
    %c0_i32_0 = arith.constant 0 : i32
    %c0_i32_1 = arith.constant 0 : i32
    %c0_i32_2 = arith.constant 0 : i32
    return %c0_i32, %c0_i32_0, %c0_i32_1 : i32, i32, i32
  }
  func.func @transform_1(%arg0: i32) -> (i32, i32, i32) {
    %c0_i32 = arith.constant 0 : i32
    %c0_i32_0 = arith.constant 0 : i32
    %c0_i32_1 = arith.constant 0 : i32
    %c0_i32_2 = arith.constant 0 : i32
    return %c0_i32, %c0_i32_0, %c0_i32_1 : i32, i32, i32
  }
  func.func @transform_2(%arg0: i32) -> (i32, i32, i32) {
    %c0_i32 = arith.constant 0 : i32
    %c0_i32_0 = arith.constant 0 : i32
    %c0_i32_1 = arith.constant 0 : i32
    %c0_i32_2 = arith.constant 0 : i32
    return %c0_i32, %c0_i32_0, %c0_i32_1 : i32, i32, i32
  }
}

module attributes {stable_mosaic.version = 11 : i64} {
  func.func @_phase_matmul_bn_relu_kernel(%arg0: i32, %arg1: memref<4x32x256xf32, #tpu.memory_space<vmem>>, %arg2: memref<4x256x128xf32, #tpu.memory_space<vmem>>, %arg3: memref<4x32x128xf32, #tpu.memory_space<vmem>>) attributes {dimension_semantics = [#tpu.dimension_semantics<arbitrary>], iteration_bounds = array<i64: 1>, scalar_prefetch = 0 : i64, scratch_operands = 0 : i64, tpu.core_type = #tpu.core_type<tc>, window_params = [{pipeline_mode = #tpu.pipeline_mode<synchronous>, transform_indices = @transform_0, window_bounds = array<i64: 4, 32, 256>}, {pipeline_mode = #tpu.pipeline_mode<synchronous>, transform_indices = @transform_1, window_bounds = array<i64: 4, 256, 128>}, {pipeline_mode = #tpu.pipeline_mode<synchronous>, transform_indices = @transform_2, window_bounds = array<i64: 4, 32, 128>}]} {
    %cst = arith.constant 0.000000e+00 : f32
    %0 = vector.broadcast %cst : f32 to vector<1x128xf32>
    %cst_0 = arith.constant 0.000000e+00 : f32
    %1 = vector.broadcast %cst_0 : f32 to vector<1x128xf32>
    %c0 = arith.constant 0 : index
    %c0_1 = arith.constant 0 : index
    %c0_2 = arith.constant 0 : index
    %2 = vector.load %arg1[%c0, %c0_1, %c0_2] : memref<4x32x256xf32, #tpu.memory_space<vmem>>, vector<1x32x256xf32>
    %3 = vector.shape_cast %2 : vector<1x32x256xf32> to vector<32x256xf32>
    %c0_3 = arith.constant 0 : index
    %c0_4 = arith.constant 0 : index
    %c0_5 = arith.constant 0 : index
    %4 = vector.load %arg2[%c0_3, %c0_4, %c0_5] : memref<4x256x128xf32, #tpu.memory_space<vmem>>, vector<1x256x128xf32>
    %5 = vector.shape_cast %4 : vector<1x256x128xf32> to vector<256x128xf32>
    %cst_6 = arith.constant dense<0.000000e+00> : vector<32x128xf32>
    %6 = tpu.matmul %3, %5, %cst_6 {dimension_numbers = #tpu.dot_dimension_numbers<[1], [0], [0], [1], [0, 0, 1, 1], [], []>} : vector<32x256xf32>, vector<256x128xf32>, vector<32x128xf32> -> vector<32x128xf32>
    %c0_7 = arith.constant 0 : index
    %c0_8 = arith.constant 0 : index
    %c0_9 = arith.constant 0 : index
    %7 = vector.load %arg3[%c0_7, %c0_8, %c0_9] : memref<4x32x128xf32, #tpu.memory_space<vmem>>, vector<1x32x128xf32>
    %8 = vector.shape_cast %7 : vector<1x32x128xf32> to vector<32x128xf32>
    %9 = vector.shape_cast %6 : vector<32x128xf32> to vector<1x32x128xf32>
    tpu.vector_store %arg3[%c0_7, %c0_8, %c0_9], %9 {strides = array<i32>} : memref<4x32x128xf32, #tpu.memory_space<vmem>>, vector<1x32x128xf32>,
    %cst_10 = arith.constant dense<0.000000e+00> : vector<128xf32>
    %10 = vector.multi_reduction <add>, %6, %cst_10 [0] : vector<32x128xf32> to vector<128xf32>
    %11 = vector.shape_cast %10 : vector<128xf32> to vector<1x128xf32>
    %12 = arith.addf %0, %11 : vector<1x128xf32>
    %13 = arith.mulf %6, %6 : vector<32x128xf32>
    %cst_11 = arith.constant dense<0.000000e+00> : vector<128xf32>
    %14 = vector.multi_reduction <add>, %13, %cst_11 [0] : vector<32x128xf32> to vector<128xf32>
    %15 = vector.shape_cast %14 : vector<128xf32> to vector<1x128xf32>
    %16 = arith.addf %1, %15 : vector<1x128xf32>
    %c1 = arith.constant 1 : index
    %c0_12 = arith.constant 0 : index
    %c0_13 = arith.constant 0 : index
    %17 = vector.load %arg1[%c1, %c0_12, %c0_13] : memref<4x32x256xf32, #tpu.memory_space<vmem>>, vector<1x32x256xf32>
    %18 = vector.shape_cast %17 : vector<1x32x256xf32> to vector<32x256xf32>
    %c1_14 = arith.constant 1 : index
    %c0_15 = arith.constant 0 : index
    %c0_16 = arith.constant 0 : index
    %19 = vector.load %arg2[%c1_14, %c0_15, %c0_16] : memref<4x256x128xf32, #tpu.memory_space<vmem>>, vector<1x256x128xf32>
    %20 = vector.shape_cast %19 : vector<1x256x128xf32> to vector<256x128xf32>
    %cst_17 = arith.constant dense<0.000000e+00> : vector<32x128xf32>
    %21 = tpu.matmul %18, %20, %cst_17 {dimension_numbers = #tpu.dot_dimension_numbers<[1], [0], [0], [1], [0, 0, 1, 1], [], []>} : vector<32x256xf32>, vector<256x128xf32>, vector<32x128xf32> -> vector<32x128xf32>
    %c1_18 = arith.constant 1 : index
    %c0_19 = arith.constant 0 : index
    %c0_20 = arith.constant 0 : index
    %22 = vector.load %arg3[%c1_18, %c0_19, %c0_20] : memref<4x32x128xf32, #tpu.memory_space<vmem>>, vector<1x32x128xf32>
    %23 = vector.shape_cast %22 : vector<1x32x128xf32> to vector<32x128xf32>
    %24 = vector.shape_cast %21 : vector<32x128xf32> to vector<1x32x128xf32>
    tpu.vector_store %arg3[%c1_18, %c0_19, %c0_20], %24 {strides = array<i32>} : memref<4x32x128xf32, #tpu.memory_space<vmem>>, vector<1x32x128xf32>,
    %cst_21 = arith.constant dense<0.000000e+00> : vector<128xf32>
    %25 = vector.multi_reduction <add>, %21, %cst_21 [0] : vector<32x128xf32> to vector<128xf32>
    %26 = vector.shape_cast %25 : vector<128xf32> to vector<1x128xf32>
    %27 = arith.addf %12, %26 : vector<1x128xf32>
    %28 = arith.mulf %21, %21 : vector<32x128xf32>
    %cst_22 = arith.constant dense<0.000000e+00> : vector<128xf32>
    %29 = vector.multi_reduction <add>, %28, %cst_22 [0] : vector<32x128xf32> to vector<128xf32>
    %30 = vector.shape_cast %29 : vector<128xf32> to vector<1x128xf32>
    %31 = arith.addf %16, %30 : vector<1x128xf32>
    %c2 = arith.constant 2 : index
    %c0_23 = arith.constant 0 : index
    %c0_24 = arith.constant 0 : index
    %32 = vector.load %arg1[%c2, %c0_23, %c0_24] : memref<4x32x256xf32, #tpu.memory_space<vmem>>, vector<1x32x256xf32>
    %33 = vector.shape_cast %32 : vector<1x32x256xf32> to vector<32x256xf32>
    %c2_25 = arith.constant 2 : index
    %c0_26 = arith.constant 0 : index
    %c0_27 = arith.constant 0 : index
    %34 = vector.load %arg2[%c2_25, %c0_26, %c0_27] : memref<4x256x128xf32, #tpu.memory_space<vmem>>, vector<1x256x128xf32>
    %35 = vector.shape_cast %34 : vector<1x256x128xf32> to vector<256x128xf32>
    %cst_28 = arith.constant dense<0.000000e+00> : vector<32x128xf32>
    %36 = tpu.matmul %33, %35, %cst_28 {dimension_numbers = #tpu.dot_dimension_numbers<[1], [0], [0], [1], [0, 0, 1, 1], [], []>} : vector<32x256xf32>, vector<256x128xf32>, vector<32x128xf32> -> vector<32x128xf32>
    %c2_29 = arith.constant 2 : index
    %c0_30 = arith.constant 0 : index
    %c0_31 = arith.constant 0 : index
    %37 = vector.load %arg3[%c2_29, %c0_30, %c0_31] : memref<4x32x128xf32, #tpu.memory_space<vmem>>, vector<1x32x128xf32>
    %38 = vector.shape_cast %37 : vector<1x32x128xf32> to vector<32x128xf32>
    %39 = vector.shape_cast %36 : vector<32x128xf32> to vector<1x32x128xf32>
    tpu.vector_store %arg3[%c2_29, %c0_30, %c0_31], %39 {strides = array<i32>} : memref<4x32x128xf32, #tpu.memory_space<vmem>>, vector<1x32x128xf32>,
    %cst_32 = arith.constant dense<0.000000e+00> : vector<128xf32>
    %40 = vector.multi_reduction <add>, %36, %cst_32 [0] : vector<32x128xf32> to vector<128xf32>
    %41 = vector.shape_cast %40 : vector<128xf32> to vector<1x128xf32>
    %42 = arith.addf %27, %41 : vector<1x128xf32>
    %43 = arith.mulf %36, %36 : vector<32x128xf32>
    %cst_33 = arith.constant dense<0.000000e+00> : vector<128xf32>
    %44 = vector.multi_reduction <add>, %43, %cst_33 [0] : vector<32x128xf32> to vector<128xf32>
    %45 = vector.shape_cast %44 : vector<128xf32> to vector<1x128xf32>
    %46 = arith.addf %31, %45 : vector<1x128xf32>
    %c3 = arith.constant 3 : index
    %c0_34 = arith.constant 0 : index
    %c0_35 = arith.constant 0 : index
    %47 = vector.load %arg1[%c3, %c0_34, %c0_35] : memref<4x32x256xf32, #tpu.memory_space<vmem>>, vector<1x32x256xf32>
    %48 = vector.shape_cast %47 : vector<1x32x256xf32> to vector<32x256xf32>
    %c3_36 = arith.constant 3 : index
    %c0_37 = arith.constant 0 : index
    %c0_38 = arith.constant 0 : index
    %49 = vector.load %arg2[%c3_36, %c0_37, %c0_38] : memref<4x256x128xf32, #tpu.memory_space<vmem>>, vector<1x256x128xf32>
    %50 = vector.shape_cast %49 : vector<1x256x128xf32> to vector<256x128xf32>
    %cst_39 = arith.constant dense<0.000000e+00> : vector<32x128xf32>
    %51 = tpu.matmul %48, %50, %cst_39 {dimension_numbers = #tpu.dot_dimension_numbers<[1], [0], [0], [1], [0, 0, 1, 1], [], []>} : vector<32x256xf32>, vector<256x128xf32>, vector<32x128xf32> -> vector<32x128xf32>
    %c3_40 = arith.constant 3 : index
    %c0_41 = arith.constant 0 : index
    %c0_42 = arith.constant 0 : index
    %52 = vector.load %arg3[%c3_40, %c0_41, %c0_42] : memref<4x32x128xf32, #tpu.memory_space<vmem>>, vector<1x32x128xf32>
    %53 = vector.shape_cast %52 : vector<1x32x128xf32> to vector<32x128xf32>
    %54 = vector.shape_cast %51 : vector<32x128xf32> to vector<1x32x128xf32>
    tpu.vector_store %arg3[%c3_40, %c0_41, %c0_42], %54 {strides = array<i32>} : memref<4x32x128xf32, #tpu.memory_space<vmem>>, vector<1x32x128xf32>,
    %cst_43 = arith.constant dense<0.000000e+00> : vector<128xf32>
    %55 = vector.multi_reduction <add>, %51, %cst_43 [0] : vector<32x128xf32> to vector<128xf32>
    %56 = vector.shape_cast %55 : vector<128xf32> to vector<1x128xf32>
    %57 = arith.addf %42, %56 : vector<1x128xf32>
    %58 = arith.mulf %51, %51 : vector<32x128xf32>
    %cst_44 = arith.constant dense<0.000000e+00> : vector<128xf32>
    %59 = vector.multi_reduction <add>, %58, %cst_44 [0] : vector<32x128xf32> to vector<128xf32>
    %60 = vector.shape_cast %59 : vector<128xf32> to vector<1x128xf32>
    %61 = arith.addf %46, %60 : vector<1x128xf32>
    %cst_45 = arith.constant 1.280000e+02 : f32
    %62 = vector.broadcast %cst_45 : f32 to vector<1x128xf32>
    %63 = arith.divf %57, %62 : vector<1x128xf32>
    %cst_46 = arith.constant 1.280000e+02 : f32
    %64 = vector.broadcast %cst_46 : f32 to vector<1x128xf32>
    %65 = arith.divf %61, %64 : vector<1x128xf32>
    %66 = arith.mulf %63, %63 : vector<1x128xf32>
    %67 = arith.subf %65, %66 : vector<1x128xf32>
    %cst_47 = arith.constant 9.99999974E-6 : f32
    %68 = vector.broadcast %cst_47 : f32 to vector<1x128xf32>
    %69 = arith.addf %67, %68 : vector<1x128xf32>
    %70 = math.rsqrt %69 : vector<1x128xf32>
    %cst_48 = arith.constant 0.000000e+00 : f32
    %71 = vector.broadcast %cst_48 : f32 to vector<1x128xf32>
    %72 = arith.subf %71, %63 : vector<1x128xf32>
    %73 = arith.mulf %72, %70 : vector<1x128xf32>
    %c0_49 = arith.constant 0 : index
    %c0_50 = arith.constant 0 : index
    %c0_51 = arith.constant 0 : index
    %74 = vector.load %arg3[%c0_49, %c0_50, %c0_51] : memref<4x32x128xf32, #tpu.memory_space<vmem>>, vector<1x32x128xf32>
    %75 = vector.shape_cast %74 : vector<1x32x128xf32> to vector<32x128xf32>
    %76 = vector.broadcast %70 : vector<1x128xf32> to vector<32x128xf32>
    %77 = arith.mulf %75, %76 : vector<32x128xf32>
    %78 = vector.broadcast %73 : vector<1x128xf32> to vector<32x128xf32>
    %79 = arith.addf %77, %78 : vector<32x128xf32>
    %cst_52 = arith.constant 0.000000e+00 : f32
    %80 = vector.broadcast %cst_52 : f32 to vector<32x128xf32>
    %81 = arith.maximumf %79, %80 : vector<32x128xf32>
    %c0_53 = arith.constant 0 : index
    %c0_54 = arith.constant 0 : index
    %c0_55 = arith.constant 0 : index
    %82 = vector.load %arg3[%c0_53, %c0_54, %c0_55] : memref<4x32x128xf32, #tpu.memory_space<vmem>>, vector<1x32x128xf32>
    %83 = vector.shape_cast %82 : vector<1x32x128xf32> to vector<32x128xf32>
    %84 = vector.shape_cast %81 : vector<32x128xf32> to vector<1x32x128xf32>
    tpu.vector_store %arg3[%c0_53, %c0_54, %c0_55], %84 {strides = array<i32>} : memref<4x32x128xf32, #tpu.memory_space<vmem>>, vector<1x32x128xf32>,
    %c1_56 = arith.constant 1 : index
    %c0_57 = arith.constant 0 : index
    %c0_58 = arith.constant 0 : index
    %85 = vector.load %arg3[%c1_56, %c0_57, %c0_58] : memref<4x32x128xf32, #tpu.memory_space<vmem>>, vector<1x32x128xf32>
    %86 = vector.shape_cast %85 : vector<1x32x128xf32> to vector<32x128xf32>
    %87 = vector.broadcast %70 : vector<1x128xf32> to vector<32x128xf32>
    %88 = arith.mulf %86, %87 : vector<32x128xf32>
    %89 = vector.broadcast %73 : vector<1x128xf32> to vector<32x128xf32>
    %90 = arith.addf %88, %89 : vector<32x128xf32>
    %cst_59 = arith.constant 0.000000e+00 : f32
    %91 = vector.broadcast %cst_59 : f32 to vector<32x128xf32>
    %92 = arith.maximumf %90, %91 : vector<32x128xf32>
    %c1_60 = arith.constant 1 : index
    %c0_61 = arith.constant 0 : index
    %c0_62 = arith.constant 0 : index
    %93 = vector.load %arg3[%c1_60, %c0_61, %c0_62] : memref<4x32x128xf32, #tpu.memory_space<vmem>>, vector<1x32x128xf32>
    %94 = vector.shape_cast %93 : vector<1x32x128xf32> to vector<32x128xf32>
    %95 = vector.shape_cast %92 : vector<32x128xf32> to vector<1x32x128xf32>
    tpu.vector_store %arg3[%c1_60, %c0_61, %c0_62], %95 {strides = array<i32>} : memref<4x32x128xf32, #tpu.memory_space<vmem>>, vector<1x32x128xf32>,
    %c2_63 = arith.constant 2 : index
    %c0_64 = arith.constant 0 : index
    %c0_65 = arith.constant 0 : index
    %96 = vector.load %arg3[%c2_63, %c0_64, %c0_65] : memref<4x32x128xf32, #tpu.memory_space<vmem>>, vector<1x32x128xf32>
    %97 = vector.shape_cast %96 : vector<1x32x128xf32> to vector<32x128xf32>
    %98 = vector.broadcast %70 : vector<1x128xf32> to vector<32x128xf32>
    %99 = arith.mulf %97, %98 : vector<32x128xf32>
    %100 = vector.broadcast %73 : vector<1x128xf32> to vector<32x128xf32>
    %101 = arith.addf %99, %100 : vector<32x128xf32>
    %cst_66 = arith.constant 0.000000e+00 : f32
    %102 = vector.broadcast %cst_66 : f32 to vector<32x128xf32>
    %103 = arith.maximumf %101, %102 : vector<32x128xf32>
    %c2_67 = arith.constant 2 : index
    %c0_68 = arith.constant 0 : index
    %c0_69 = arith.constant 0 : index
    %104 = vector.load %arg3[%c2_67, %c0_68, %c0_69] : memref<4x32x128xf32, #tpu.memory_space<vmem>>, vector<1x32x128xf32>
    %105 = vector.shape_cast %104 : vector<1x32x128xf32> to vector<32x128xf32>
    %106 = vector.shape_cast %103 : vector<32x128xf32> to vector<1x32x128xf32>
    tpu.vector_store %arg3[%c2_67, %c0_68, %c0_69], %106 {strides = array<i32>} : memref<4x32x128xf32, #tpu.memory_space<vmem>>, vector<1x32x128xf32>,
    %c3_70 = arith.constant 3 : index
    %c0_71 = arith.constant 0 : index
    %c0_72 = arith.constant 0 : index
    %107 = vector.load %arg3[%c3_70, %c0_71, %c0_72] : memref<4x32x128xf32, #tpu.memory_space<vmem>>, vector<1x32x128xf32>
    %108 = vector.shape_cast %107 : vector<1x32x128xf32> to vector<32x128xf32>
    %109 = vector.broadcast %70 : vector<1x128xf32> to vector<32x128xf32>
    %110 = arith.mulf %108, %109 : vector<32x128xf32>
    %111 = vector.broadcast %73 : vector<1x128xf32> to vector<32x128xf32>
    %112 = arith.addf %110, %111 : vector<32x128xf32>
    %cst_73 = arith.constant 0.000000e+00 : f32
    %113 = vector.broadcast %cst_73 : f32 to vector<32x128xf32>
    %114 = arith.maximumf %112, %113 : vector<32x128xf32>
    %c3_74 = arith.constant 3 : index
    %c0_75 = arith.constant 0 : index
    %c0_76 = arith.constant 0 : index
    %115 = vector.load %arg3[%c3_74, %c0_75, %c0_76] : memref<4x32x128xf32, #tpu.memory_space<vmem>>, vector<1x32x128xf32>
    %116 = vector.shape_cast %115 : vector<1x32x128xf32> to vector<32x128xf32>
    %117 = vector.shape_cast %114 : vector<32x128xf32> to vector<1x32x128xf32>
    tpu.vector_store %arg3[%c3_74, %c0_75, %c0_76], %117 {strides = array<i32>} : memref<4x32x128xf32, #tpu.memory_space<vmem>>, vector<1x32x128xf32>,
    return
  }
  func.func @transform_0(%arg0: i32) -> (i32, i32, i32) {
    %c0_i32 = arith.constant 0 : i32
    %c0_i32_0 = arith.constant 0 : i32
    %c0_i32_1 = arith.constant 0 : i32
    %c0_i32_2 = arith.constant 0 : i32
    return %c0_i32, %c0_i32_0, %c0_i32_1 : i32, i32, i32
  }
  func.func @transform_1(%arg0: i32) -> (i32, i32, i32) {
    %c0_i32 = arith.constant 0 : i32
    %c0_i32_0 = arith.constant 0 : i32
    %c0_i32_1 = arith.constant 0 : i32
    %c0_i32_2 = arith.constant 0 : i32
    return %c0_i32, %c0_i32_0, %c0_i32_1 : i32, i32, i32
  }
  func.func @transform_2(%arg0: i32) -> (i32, i32, i32) {
    %c0_i32 = arith.constant 0 : i32
    %c0_i32_0 = arith.constant 0 : i32
    %c0_i32_1 = arith.constant 0 : i32
    %c0_i32_2 = arith.constant 0 : i32
    return %c0_i32, %c0_i32_0, %c0_i32_1 : i32, i32, i32
  }
}

module attributes {stable_mosaic.version = 11 : i64} {
  func.func @_phase_matmul_bn_relu_kernel(%arg0: i32, %arg1: memref<4x128x128xf32, #tpu.memory_space<vmem>>, %arg2: memref<4x128x128xf32, #tpu.memory_space<vmem>>, %arg3: memref<4x128x128xf32, #tpu.memory_space<vmem>>) attributes {dimension_semantics = [#tpu.dimension_semantics<arbitrary>], iteration_bounds = array<i64: 1>, scalar_prefetch = 0 : i64, scratch_operands = 0 : i64, tpu.core_type = #tpu.core_type<tc>, window_params = [{pipeline_mode = #tpu.pipeline_mode<synchronous>, transform_indices = @transform_0, window_bounds = array<i64: 4, 128, 128>}, {pipeline_mode = #tpu.pipeline_mode<synchronous>, transform_indices = @transform_1, window_bounds = array<i64: 4, 128, 128>}, {pipeline_mode = #tpu.pipeline_mode<synchronous>, transform_indices = @transform_2, window_bounds = array<i64: 4, 128, 128>}]} {
    %cst = arith.constant 0.000000e+00 : f32
    %0 = vector.broadcast %cst : f32 to vector<1x128xf32>
    %cst_0 = arith.constant 0.000000e+00 : f32
    %1 = vector.broadcast %cst_0 : f32 to vector<1x128xf32>
    %c0 = arith.constant 0 : index
    %c0_1 = arith.constant 0 : index
    %c0_2 = arith.constant 0 : index
    %2 = vector.load %arg1[%c0, %c0_1, %c0_2] : memref<4x128x128xf32, #tpu.memory_space<vmem>>, vector<1x128x128xf32>
    %3 = vector.shape_cast %2 : vector<1x128x128xf32> to vector<128x128xf32>
    %c0_3 = arith.constant 0 : index
    %c0_4 = arith.constant 0 : index
    %c0_5 = arith.constant 0 : index
    %4 = vector.load %arg2[%c0_3, %c0_4, %c0_5] : memref<4x128x128xf32, #tpu.memory_space<vmem>>, vector<1x128x128xf32>
    %5 = vector.shape_cast %4 : vector<1x128x128xf32> to vector<128x128xf32>
    %cst_6 = arith.constant dense<0.000000e+00> : vector<128x128xf32>
    %6 = tpu.matmul %3, %5, %cst_6 {dimension_numbers = #tpu.dot_dimension_numbers<[1], [0], [0], [1], [0, 0, 1, 1], [], []>} : vector<128x128xf32>, vector<128x128xf32>, vector<128x128xf32> -> vector<128x128xf32>
    %c0_7 = arith.constant 0 : index
    %c0_8 = arith.constant 0 : index
    %c0_9 = arith.constant 0 : index
    %7 = vector.load %arg3[%c0_7, %c0_8, %c0_9] : memref<4x128x128xf32, #tpu.memory_space<vmem>>, vector<1x128x128xf32>
    %8 = vector.shape_cast %7 : vector<1x128x128xf32> to vector<128x128xf32>
    %9 = vector.shape_cast %6 : vector<128x128xf32> to vector<1x128x128xf32>
    tpu.vector_store %arg3[%c0_7, %c0_8, %c0_9], %9 {strides = array<i32>} : memref<4x128x128xf32, #tpu.memory_space<vmem>>, vector<1x128x128xf32>,
    %cst_10 = arith.constant dense<0.000000e+00> : vector<128xf32>
    %10 = vector.multi_reduction <add>, %6, %cst_10 [0] : vector<128x128xf32> to vector<128xf32>
    %11 = vector.shape_cast %10 : vector<128xf32> to vector<1x128xf32>
    %12 = arith.addf %0, %11 : vector<1x128xf32>
    %13 = arith.mulf %6, %6 : vector<128x128xf32>
    %cst_11 = arith.constant dense<0.000000e+00> : vector<128xf32>
    %14 = vector.multi_reduction <add>, %13, %cst_11 [0] : vector<128x128xf32> to vector<128xf32>
    %15 = vector.shape_cast %14 : vector<128xf32> to vector<1x128xf32>
    %16 = arith.addf %1, %15 : vector<1x128xf32>
    %c1 = arith.constant 1 : index
    %c0_12 = arith.constant 0 : index
    %c0_13 = arith.constant 0 : index
    %17 = vector.load %arg1[%c1, %c0_12, %c0_13] : memref<4x128x128xf32, #tpu.memory_space<vmem>>, vector<1x128x128xf32>
    %18 = vector.shape_cast %17 : vector<1x128x128xf32> to vector<128x128xf32>
    %c1_14 = arith.constant 1 : index
    %c0_15 = arith.constant 0 : index
    %c0_16 = arith.constant 0 : index
    %19 = vector.load %arg2[%c1_14, %c0_15, %c0_16] : memref<4x128x128xf32, #tpu.memory_space<vmem>>, vector<1x128x128xf32>
    %20 = vector.shape_cast %19 : vector<1x128x128xf32> to vector<128x128xf32>
    %cst_17 = arith.constant dense<0.000000e+00> : vector<128x128xf32>
    %21 = tpu.matmul %18, %20, %cst_17 {dimension_numbers = #tpu.dot_dimension_numbers<[1], [0], [0], [1], [0, 0, 1, 1], [], []>} : vector<128x128xf32>, vector<128x128xf32>, vector<128x128xf32> -> vector<128x128xf32>
    %c1_18 = arith.constant 1 : index
    %c0_19 = arith.constant 0 : index
    %c0_20 = arith.constant 0 : index
    %22 = vector.load %arg3[%c1_18, %c0_19, %c0_20] : memref<4x128x128xf32, #tpu.memory_space<vmem>>, vector<1x128x128xf32>
    %23 = vector.shape_cast %22 : vector<1x128x128xf32> to vector<128x128xf32>
    %24 = vector.shape_cast %21 : vector<128x128xf32> to vector<1x128x128xf32>
    tpu.vector_store %arg3[%c1_18, %c0_19, %c0_20], %24 {strides = array<i32>} : memref<4x128x128xf32, #tpu.memory_space<vmem>>, vector<1x128x128xf32>,
    %cst_21 = arith.constant dense<0.000000e+00> : vector<128xf32>
    %25 = vector.multi_reduction <add>, %21, %cst_21 [0] : vector<128x128xf32> to vector<128xf32>
    %26 = vector.shape_cast %25 : vector<128xf32> to vector<1x128xf32>
    %27 = arith.addf %12, %26 : vector<1x128xf32>
    %28 = arith.mulf %21, %21 : vector<128x128xf32>
    %cst_22 = arith.constant dense<0.000000e+00> : vector<128xf32>
    %29 = vector.multi_reduction <add>, %28, %cst_22 [0] : vector<128x128xf32> to vector<128xf32>
    %30 = vector.shape_cast %29 : vector<128xf32> to vector<1x128xf32>
    %31 = arith.addf %16, %30 : vector<1x128xf32>
    %c2 = arith.constant 2 : index
    %c0_23 = arith.constant 0 : index
    %c0_24 = arith.constant 0 : index
    %32 = vector.load %arg1[%c2, %c0_23, %c0_24] : memref<4x128x128xf32, #tpu.memory_space<vmem>>, vector<1x128x128xf32>
    %33 = vector.shape_cast %32 : vector<1x128x128xf32> to vector<128x128xf32>
    %c2_25 = arith.constant 2 : index
    %c0_26 = arith.constant 0 : index
    %c0_27 = arith.constant 0 : index
    %34 = vector.load %arg2[%c2_25, %c0_26, %c0_27] : memref<4x128x128xf32, #tpu.memory_space<vmem>>, vector<1x128x128xf32>
    %35 = vector.shape_cast %34 : vector<1x128x128xf32> to vector<128x128xf32>
    %cst_28 = arith.constant dense<0.000000e+00> : vector<128x128xf32>
    %36 = tpu.matmul %33, %35, %cst_28 {dimension_numbers = #tpu.dot_dimension_numbers<[1], [0], [0], [1], [0, 0, 1, 1], [], []>} : vector<128x128xf32>, vector<128x128xf32>, vector<128x128xf32> -> vector<128x128xf32>
    %c2_29 = arith.constant 2 : index
    %c0_30 = arith.constant 0 : index
    %c0_31 = arith.constant 0 : index
    %37 = vector.load %arg3[%c2_29, %c0_30, %c0_31] : memref<4x128x128xf32, #tpu.memory_space<vmem>>, vector<1x128x128xf32>
    %38 = vector.shape_cast %37 : vector<1x128x128xf32> to vector<128x128xf32>
    %39 = vector.shape_cast %36 : vector<128x128xf32> to vector<1x128x128xf32>
    tpu.vector_store %arg3[%c2_29, %c0_30, %c0_31], %39 {strides = array<i32>} : memref<4x128x128xf32, #tpu.memory_space<vmem>>, vector<1x128x128xf32>,
    %cst_32 = arith.constant dense<0.000000e+00> : vector<128xf32>
    %40 = vector.multi_reduction <add>, %36, %cst_32 [0] : vector<128x128xf32> to vector<128xf32>
    %41 = vector.shape_cast %40 : vector<128xf32> to vector<1x128xf32>
    %42 = arith.addf %27, %41 : vector<1x128xf32>
    %43 = arith.mulf %36, %36 : vector<128x128xf32>
    %cst_33 = arith.constant dense<0.000000e+00> : vector<128xf32>
    %44 = vector.multi_reduction <add>, %43, %cst_33 [0] : vector<128x128xf32> to vector<128xf32>
    %45 = vector.shape_cast %44 : vector<128xf32> to vector<1x128xf32>
    %46 = arith.addf %31, %45 : vector<1x128xf32>
    %c3 = arith.constant 3 : index
    %c0_34 = arith.constant 0 : index
    %c0_35 = arith.constant 0 : index
    %47 = vector.load %arg1[%c3, %c0_34, %c0_35] : memref<4x128x128xf32, #tpu.memory_space<vmem>>, vector<1x128x128xf32>
    %48 = vector.shape_cast %47 : vector<1x128x128xf32> to vector<128x128xf32>
    %c3_36 = arith.constant 3 : index
    %c0_37 = arith.constant 0 : index
    %c0_38 = arith.constant 0 : index
    %49 = vector.load %arg2[%c3_36, %c0_37, %c0_38] : memref<4x128x128xf32, #tpu.memory_space<vmem>>, vector<1x128x128xf32>
    %50 = vector.shape_cast %49 : vector<1x128x128xf32> to vector<128x128xf32>
    %cst_39 = arith.constant dense<0.000000e+00> : vector<128x128xf32>
    %51 = tpu.matmul %48, %50, %cst_39 {dimension_numbers = #tpu.dot_dimension_numbers<[1], [0], [0], [1], [0, 0, 1, 1], [], []>} : vector<128x128xf32>, vector<128x128xf32>, vector<128x128xf32> -> vector<128x128xf32>
    %c3_40 = arith.constant 3 : index
    %c0_41 = arith.constant 0 : index
    %c0_42 = arith.constant 0 : index
    %52 = vector.load %arg3[%c3_40, %c0_41, %c0_42] : memref<4x128x128xf32, #tpu.memory_space<vmem>>, vector<1x128x128xf32>
    %53 = vector.shape_cast %52 : vector<1x128x128xf32> to vector<128x128xf32>
    %54 = vector.shape_cast %51 : vector<128x128xf32> to vector<1x128x128xf32>
    tpu.vector_store %arg3[%c3_40, %c0_41, %c0_42], %54 {strides = array<i32>} : memref<4x128x128xf32, #tpu.memory_space<vmem>>, vector<1x128x128xf32>,
    %cst_43 = arith.constant dense<0.000000e+00> : vector<128xf32>
    %55 = vector.multi_reduction <add>, %51, %cst_43 [0] : vector<128x128xf32> to vector<128xf32>
    %56 = vector.shape_cast %55 : vector<128xf32> to vector<1x128xf32>
    %57 = arith.addf %42, %56 : vector<1x128xf32>
    %58 = arith.mulf %51, %51 : vector<128x128xf32>
    %cst_44 = arith.constant dense<0.000000e+00> : vector<128xf32>
    %59 = vector.multi_reduction <add>, %58, %cst_44 [0] : vector<128x128xf32> to vector<128xf32>
    %60 = vector.shape_cast %59 : vector<128xf32> to vector<1x128xf32>
    %61 = arith.addf %46, %60 : vector<1x128xf32>
    %cst_45 = arith.constant 5.120000e+02 : f32
    %62 = vector.broadcast %cst_45 : f32 to vector<1x128xf32>
    %63 = arith.divf %57, %62 : vector<1x128xf32>
    %cst_46 = arith.constant 5.120000e+02 : f32
    %64 = vector.broadcast %cst_46 : f32 to vector<1x128xf32>
    %65 = arith.divf %61, %64 : vector<1x128xf32>
    %66 = arith.mulf %63, %63 : vector<1x128xf32>
    %67 = arith.subf %65, %66 : vector<1x128xf32>
    %cst_47 = arith.constant 9.99999974E-6 : f32
    %68 = vector.broadcast %cst_47 : f32 to vector<1x128xf32>
    %69 = arith.addf %67, %68 : vector<1x128xf32>
    %70 = math.rsqrt %69 : vector<1x128xf32>
    %cst_48 = arith.constant 0.000000e+00 : f32
    %71 = vector.broadcast %cst_48 : f32 to vector<1x128xf32>
    %72 = arith.subf %71, %63 : vector<1x128xf32>
    %73 = arith.mulf %72, %70 : vector<1x128xf32>
    %c0_49 = arith.constant 0 : index
    %c0_50 = arith.constant 0 : index
    %c0_51 = arith.constant 0 : index
    %74 = vector.load %arg3[%c0_49, %c0_50, %c0_51] : memref<4x128x128xf32, #tpu.memory_space<vmem>>, vector<1x128x128xf32>
    %75 = vector.shape_cast %74 : vector<1x128x128xf32> to vector<128x128xf32>
    %76 = vector.broadcast %70 : vector<1x128xf32> to vector<128x128xf32>
    %77 = arith.mulf %75, %76 : vector<128x128xf32>
    %78 = vector.broadcast %73 : vector<1x128xf32> to vector<128x128xf32>
    %79 = arith.addf %77, %78 : vector<128x128xf32>
    %cst_52 = arith.constant 0.000000e+00 : f32
    %80 = vector.broadcast %cst_52 : f32 to vector<128x128xf32>
    %81 = arith.maximumf %79, %80 : vector<128x128xf32>
    %c0_53 = arith.constant 0 : index
    %c0_54 = arith.constant 0 : index
    %c0_55 = arith.constant 0 : index
    %82 = vector.load %arg3[%c0_53, %c0_54, %c0_55] : memref<4x128x128xf32, #tpu.memory_space<vmem>>, vector<1x128x128xf32>
    %83 = vector.shape_cast %82 : vector<1x128x128xf32> to vector<128x128xf32>
    %84 = vector.shape_cast %81 : vector<128x128xf32> to vector<1x128x128xf32>
    tpu.vector_store %arg3[%c0_53, %c0_54, %c0_55], %84 {strides = array<i32>} : memref<4x128x128xf32, #tpu.memory_space<vmem>>, vector<1x128x128xf32>,
    %c1_56 = arith.constant 1 : index
    %c0_57 = arith.constant 0 : index
    %c0_58 = arith.constant 0 : index
    %85 = vector.load %arg3[%c1_56, %c0_57, %c0_58] : memref<4x128x128xf32, #tpu.memory_space<vmem>>, vector<1x128x128xf32>
    %86 = vector.shape_cast %85 : vector<1x128x128xf32> to vector<128x128xf32>
    %87 = vector.broadcast %70 : vector<1x128xf32> to vector<128x128xf32>
    %88 = arith.mulf %86, %87 : vector<128x128xf32>
    %89 = vector.broadcast %73 : vector<1x128xf32> to vector<128x128xf32>
    %90 = arith.addf %88, %89 : vector<128x128xf32>
    %cst_59 = arith.constant 0.000000e+00 : f32
    %91 = vector.broadcast %cst_59 : f32 to vector<128x128xf32>
    %92 = arith.maximumf %90, %91 : vector<128x128xf32>
    %c1_60 = arith.constant 1 : index
    %c0_61 = arith.constant 0 : index
    %c0_62 = arith.constant 0 : index
    %93 = vector.load %arg3[%c1_60, %c0_61, %c0_62] : memref<4x128x128xf32, #tpu.memory_space<vmem>>, vector<1x128x128xf32>
    %94 = vector.shape_cast %93 : vector<1x128x128xf32> to vector<128x128xf32>
    %95 = vector.shape_cast %92 : vector<128x128xf32> to vector<1x128x128xf32>
    tpu.vector_store %arg3[%c1_60, %c0_61, %c0_62], %95 {strides = array<i32>} : memref<4x128x128xf32, #tpu.memory_space<vmem>>, vector<1x128x128xf32>,
    %c2_63 = arith.constant 2 : index
    %c0_64 = arith.constant 0 : index
    %c0_65 = arith.constant 0 : index
    %96 = vector.load %arg3[%c2_63, %c0_64, %c0_65] : memref<4x128x128xf32, #tpu.memory_space<vmem>>, vector<1x128x128xf32>
    %97 = vector.shape_cast %96 : vector<1x128x128xf32> to vector<128x128xf32>
    %98 = vector.broadcast %70 : vector<1x128xf32> to vector<128x128xf32>
    %99 = arith.mulf %97, %98 : vector<128x128xf32>
    %100 = vector.broadcast %73 : vector<1x128xf32> to vector<128x128xf32>
    %101 = arith.addf %99, %100 : vector<128x128xf32>
    %cst_66 = arith.constant 0.000000e+00 : f32
    %102 = vector.broadcast %cst_66 : f32 to vector<128x128xf32>
    %103 = arith.maximumf %101, %102 : vector<128x128xf32>
    %c2_67 = arith.constant 2 : index
    %c0_68 = arith.constant 0 : index
    %c0_69 = arith.constant 0 : index
    %104 = vector.load %arg3[%c2_67, %c0_68, %c0_69] : memref<4x128x128xf32, #tpu.memory_space<vmem>>, vector<1x128x128xf32>
    %105 = vector.shape_cast %104 : vector<1x128x128xf32> to vector<128x128xf32>
    %106 = vector.shape_cast %103 : vector<128x128xf32> to vector<1x128x128xf32>
    tpu.vector_store %arg3[%c2_67, %c0_68, %c0_69], %106 {strides = array<i32>} : memref<4x128x128xf32, #tpu.memory_space<vmem>>, vector<1x128x128xf32>,
    %c3_70 = arith.constant 3 : index
    %c0_71 = arith.constant 0 : index
    %c0_72 = arith.constant 0 : index
    %107 = vector.load %arg3[%c3_70, %c0_71, %c0_72] : memref<4x128x128xf32, #tpu.memory_space<vmem>>, vector<1x128x128xf32>
    %108 = vector.shape_cast %107 : vector<1x128x128xf32> to vector<128x128xf32>
    %109 = vector.broadcast %70 : vector<1x128xf32> to vector<128x128xf32>
    %110 = arith.mulf %108, %109 : vector<128x128xf32>
    %111 = vector.broadcast %73 : vector<1x128xf32> to vector<128x128xf32>
    %112 = arith.addf %110, %111 : vector<128x128xf32>
    %cst_73 = arith.constant 0.000000e+00 : f32
    %113 = vector.broadcast %cst_73 : f32 to vector<128x128xf32>
    %114 = arith.maximumf %112, %113 : vector<128x128xf32>
    %c3_74 = arith.constant 3 : index
    %c0_75 = arith.constant 0 : index
    %c0_76 = arith.constant 0 : index
    %115 = vector.load %arg3[%c3_74, %c0_75, %c0_76] : memref<4x128x128xf32, #tpu.memory_space<vmem>>, vector<1x128x128xf32>
    %116 = vector.shape_cast %115 : vector<1x128x128xf32> to vector<128x128xf32>
    %117 = vector.shape_cast %114 : vector<128x128xf32> to vector<1x128x128xf32>
    tpu.vector_store %arg3[%c3_74, %c0_75, %c0_76], %117 {strides = array<i32>} : memref<4x128x128xf32, #tpu.memory_space<vmem>>, vector<1x128x128xf32>,
    return
  }
  func.func @transform_0(%arg0: i32) -> (i32, i32, i32) {
    %c0_i32 = arith.constant 0 : i32
    %c0_i32_0 = arith.constant 0 : i32
    %c0_i32_1 = arith.constant 0 : i32
    %c0_i32_2 = arith.constant 0 : i32
    return %c0_i32, %c0_i32_0, %c0_i32_1 : i32, i32, i32
  }
  func.func @transform_1(%arg0: i32) -> (i32, i32, i32) {
    %c0_i32 = arith.constant 0 : i32
    %c0_i32_0 = arith.constant 0 : i32
    %c0_i32_1 = arith.constant 0 : i32
    %c0_i32_2 = arith.constant 0 : i32
    return %c0_i32, %c0_i32_0, %c0_i32_1 : i32, i32, i32
  }
  func.func @transform_2(%arg0: i32) -> (i32, i32, i32) {
    %c0_i32 = arith.constant 0 : i32
    %c0_i32_0 = arith.constant 0 : i32
    %c0_i32_1 = arith.constant 0 : i32
    %c0_i32_2 = arith.constant 0 : i32
    return %c0_i32, %c0_i32_0, %c0_i32_1 : i32, i32, i32
  }
}

module attributes {stable_mosaic.version = 11 : i64} {
  func.func @_phase_matmul_bias_tanh_kernel(%arg0: i32, %arg1: memref<4x512x64xf32, #tpu.memory_space<vmem>>, %arg2: memref<4x64x128xf32, #tpu.memory_space<vmem>>, %arg3: memref<1x128xf32, #tpu.memory_space<vmem>>, %arg4: memref<4x512x128xf32, #tpu.memory_space<vmem>>) attributes {dimension_semantics = [#tpu.dimension_semantics<arbitrary>], iteration_bounds = array<i64: 1>, scalar_prefetch = 0 : i64, scratch_operands = 0 : i64, tpu.core_type = #tpu.core_type<tc>, window_params = [{pipeline_mode = #tpu.pipeline_mode<synchronous>, transform_indices = @transform_0, window_bounds = array<i64: 4, 512, 64>}, {pipeline_mode = #tpu.pipeline_mode<synchronous>, transform_indices = @transform_1, window_bounds = array<i64: 4, 64, 128>}, {pipeline_mode = #tpu.pipeline_mode<synchronous>, transform_indices = @transform_2, window_bounds = array<i64: 1, 128>}, {pipeline_mode = #tpu.pipeline_mode<synchronous>, transform_indices = @transform_3, window_bounds = array<i64: 4, 512, 128>}]} {
    %c0 = arith.constant 0 : index
    %c0_0 = arith.constant 0 : index
    %c0_1 = arith.constant 0 : index
    %0 = vector.load %arg1[%c0, %c0_0, %c0_1] : memref<4x512x64xf32, #tpu.memory_space<vmem>>, vector<1x512x64xf32>
    %1 = vector.shape_cast %0 : vector<1x512x64xf32> to vector<512x64xf32>
    %c0_2 = arith.constant 0 : index
    %c0_3 = arith.constant 0 : index
    %c0_4 = arith.constant 0 : index
    %2 = vector.load %arg2[%c0_2, %c0_3, %c0_4] : memref<4x64x128xf32, #tpu.memory_space<vmem>>, vector<1x64x128xf32>
    %3 = vector.shape_cast %2 : vector<1x64x128xf32> to vector<64x128xf32>
    %cst = arith.constant dense<0.000000e+00> : vector<512x128xf32>
    %4 = tpu.matmul %1, %3, %cst {dimension_numbers = #tpu.dot_dimension_numbers<[1], [0], [0], [1], [0, 0, 1, 1], [], []>} : vector<512x64xf32>, vector<64x128xf32>, vector<512x128xf32> -> vector<512x128xf32>
    %c0_5 = arith.constant 0 : index
    %c0_6 = arith.constant 0 : index
    %5 = vector.load %arg3[%c0_5, %c0_6] : memref<1x128xf32, #tpu.memory_space<vmem>>, vector<1x128xf32>
    %6 = vector.broadcast %5 : vector<1x128xf32> to vector<512x128xf32>
    %7 = arith.addf %4, %6 : vector<512x128xf32>
    %8 = math.tanh %7 : vector<512x128xf32>
    %c0_7 = arith.constant 0 : index
    %c0_8 = arith.constant 0 : index
    %c0_9 = arith.constant 0 : index
    %9 = vector.load %arg4[%c0_7, %c0_8, %c0_9] : memref<4x512x128xf32, #tpu.memory_space<vmem>>, vector<1x512x128xf32>
    %10 = vector.shape_cast %9 : vector<1x512x128xf32> to vector<512x128xf32>
    %11 = vector.shape_cast %8 : vector<512x128xf32> to vector<1x512x128xf32>
    tpu.vector_store %arg4[%c0_7, %c0_8, %c0_9], %11 {strides = array<i32>} : memref<4x512x128xf32, #tpu.memory_space<vmem>>, vector<1x512x128xf32>,
    %c1 = arith.constant 1 : index
    %c0_10 = arith.constant 0 : index
    %c0_11 = arith.constant 0 : index
    %12 = vector.load %arg1[%c1, %c0_10, %c0_11] : memref<4x512x64xf32, #tpu.memory_space<vmem>>, vector<1x512x64xf32>
    %13 = vector.shape_cast %12 : vector<1x512x64xf32> to vector<512x64xf32>
    %c1_12 = arith.constant 1 : index
    %c0_13 = arith.constant 0 : index
    %c0_14 = arith.constant 0 : index
    %14 = vector.load %arg2[%c1_12, %c0_13, %c0_14] : memref<4x64x128xf32, #tpu.memory_space<vmem>>, vector<1x64x128xf32>
    %15 = vector.shape_cast %14 : vector<1x64x128xf32> to vector<64x128xf32>
    %cst_15 = arith.constant dense<0.000000e+00> : vector<512x128xf32>
    %16 = tpu.matmul %13, %15, %cst_15 {dimension_numbers = #tpu.dot_dimension_numbers<[1], [0], [0], [1], [0, 0, 1, 1], [], []>} : vector<512x64xf32>, vector<64x128xf32>, vector<512x128xf32> -> vector<512x128xf32>
    %c0_16 = arith.constant 0 : index
    %c0_17 = arith.constant 0 : index
    %17 = vector.load %arg3[%c0_16, %c0_17] : memref<1x128xf32, #tpu.memory_space<vmem>>, vector<1x128xf32>
    %18 = vector.broadcast %17 : vector<1x128xf32> to vector<512x128xf32>
    %19 = arith.addf %16, %18 : vector<512x128xf32>
    %20 = math.tanh %19 : vector<512x128xf32>
    %c1_18 = arith.constant 1 : index
    %c0_19 = arith.constant 0 : index
    %c0_20 = arith.constant 0 : index
    %21 = vector.load %arg4[%c1_18, %c0_19, %c0_20] : memref<4x512x128xf32, #tpu.memory_space<vmem>>, vector<1x512x128xf32>
    %22 = vector.shape_cast %21 : vector<1x512x128xf32> to vector<512x128xf32>
    %23 = vector.shape_cast %20 : vector<512x128xf32> to vector<1x512x128xf32>
    tpu.vector_store %arg4[%c1_18, %c0_19, %c0_20], %23 {strides = array<i32>} : memref<4x512x128xf32, #tpu.memory_space<vmem>>, vector<1x512x128xf32>,
    %c2 = arith.constant 2 : index
    %c0_21 = arith.constant 0 : index
    %c0_22 = arith.constant 0 : index
    %24 = vector.load %arg1[%c2, %c0_21, %c0_22] : memref<4x512x64xf32, #tpu.memory_space<vmem>>, vector<1x512x64xf32>
    %25 = vector.shape_cast %24 : vector<1x512x64xf32> to vector<512x64xf32>
    %c2_23 = arith.constant 2 : index
    %c0_24 = arith.constant 0 : index
    %c0_25 = arith.constant 0 : index
    %26 = vector.load %arg2[%c2_23, %c0_24, %c0_25] : memref<4x64x128xf32, #tpu.memory_space<vmem>>, vector<1x64x128xf32>
    %27 = vector.shape_cast %26 : vector<1x64x128xf32> to vector<64x128xf32>
    %cst_26 = arith.constant dense<0.000000e+00> : vector<512x128xf32>
    %28 = tpu.matmul %25, %27, %cst_26 {dimension_numbers = #tpu.dot_dimension_numbers<[1], [0], [0], [1], [0, 0, 1, 1], [], []>} : vector<512x64xf32>, vector<64x128xf32>, vector<512x128xf32> -> vector<512x128xf32>
    %c0_27 = arith.constant 0 : index
    %c0_28 = arith.constant 0 : index
    %29 = vector.load %arg3[%c0_27, %c0_28] : memref<1x128xf32, #tpu.memory_space<vmem>>, vector<1x128xf32>
    %30 = vector.broadcast %29 : vector<1x128xf32> to vector<512x128xf32>
    %31 = arith.addf %28, %30 : vector<512x128xf32>
    %32 = math.tanh %31 : vector<512x128xf32>
    %c2_29 = arith.constant 2 : index
    %c0_30 = arith.constant 0 : index
    %c0_31 = arith.constant 0 : index
    %33 = vector.load %arg4[%c2_29, %c0_30, %c0_31] : memref<4x512x128xf32, #tpu.memory_space<vmem>>, vector<1x512x128xf32>
    %34 = vector.shape_cast %33 : vector<1x512x128xf32> to vector<512x128xf32>
    %35 = vector.shape_cast %32 : vector<512x128xf32> to vector<1x512x128xf32>
    tpu.vector_store %arg4[%c2_29, %c0_30, %c0_31], %35 {strides = array<i32>} : memref<4x512x128xf32, #tpu.memory_space<vmem>>, vector<1x512x128xf32>,
    %c3 = arith.constant 3 : index
    %c0_32 = arith.constant 0 : index
    %c0_33 = arith.constant 0 : index
    %36 = vector.load %arg1[%c3, %c0_32, %c0_33] : memref<4x512x64xf32, #tpu.memory_space<vmem>>, vector<1x512x64xf32>
    %37 = vector.shape_cast %36 : vector<1x512x64xf32> to vector<512x64xf32>
    %c3_34 = arith.constant 3 : index
    %c0_35 = arith.constant 0 : index
    %c0_36 = arith.constant 0 : index
    %38 = vector.load %arg2[%c3_34, %c0_35, %c0_36] : memref<4x64x128xf32, #tpu.memory_space<vmem>>, vector<1x64x128xf32>
    %39 = vector.shape_cast %38 : vector<1x64x128xf32> to vector<64x128xf32>
    %cst_37 = arith.constant dense<0.000000e+00> : vector<512x128xf32>
    %40 = tpu.matmul %37, %39, %cst_37 {dimension_numbers = #tpu.dot_dimension_numbers<[1], [0], [0], [1], [0, 0, 1, 1], [], []>} : vector<512x64xf32>, vector<64x128xf32>, vector<512x128xf32> -> vector<512x128xf32>
    %c0_38 = arith.constant 0 : index
    %c0_39 = arith.constant 0 : index
    %41 = vector.load %arg3[%c0_38, %c0_39] : memref<1x128xf32, #tpu.memory_space<vmem>>, vector<1x128xf32>
    %42 = vector.broadcast %41 : vector<1x128xf32> to vector<512x128xf32>
    %43 = arith.addf %40, %42 : vector<512x128xf32>
    %44 = math.tanh %43 : vector<512x128xf32>
    %c3_40 = arith.constant 3 : index
    %c0_41 = arith.constant 0 : index
    %c0_42 = arith.constant 0 : index
    %45 = vector.load %arg4[%c3_40, %c0_41, %c0_42] : memref<4x512x128xf32, #tpu.memory_space<vmem>>, vector<1x512x128xf32>
    %46 = vector.shape_cast %45 : vector<1x512x128xf32> to vector<512x128xf32>
    %47 = vector.shape_cast %44 : vector<512x128xf32> to vector<1x512x128xf32>
    tpu.vector_store %arg4[%c3_40, %c0_41, %c0_42], %47 {strides = array<i32>} : memref<4x512x128xf32, #tpu.memory_space<vmem>>, vector<1x512x128xf32>,
    return
  }
  func.func @transform_0(%arg0: i32) -> (i32, i32, i32) {
    %c0_i32 = arith.constant 0 : i32
    %c0_i32_0 = arith.constant 0 : i32
    %c0_i32_1 = arith.constant 0 : i32
    %c0_i32_2 = arith.constant 0 : i32
    return %c0_i32, %c0_i32_0, %c0_i32_1 : i32, i32, i32
  }
  func.func @transform_1(%arg0: i32) -> (i32, i32, i32) {
    %c0_i32 = arith.constant 0 : i32
    %c0_i32_0 = arith.constant 0 : i32
    %c0_i32_1 = arith.constant 0 : i32
    %c0_i32_2 = arith.constant 0 : i32
    return %c0_i32, %c0_i32_0, %c0_i32_1 : i32, i32, i32
  }
  func.func @transform_2(%arg0: i32) -> (i32, i32) {
    %c0_i32 = arith.constant 0 : i32
    %c0_i32_0 = arith.constant 0 : i32
    %c0_i32_1 = arith.constant 0 : i32
    return %c0_i32, %c0_i32_0 : i32, i32
  }
  func.func @transform_3(%arg0: i32) -> (i32, i32, i32) {
    %c0_i32 = arith.constant 0 : i32
    %c0_i32_0 = arith.constant 0 : i32
    %c0_i32_1 = arith.constant 0 : i32
    %c0_i32_2 = arith.constant 0 : i32
    return %c0_i32, %c0_i32_0, %c0_i32_1 : i32, i32, i32
  }
}

</mosaic_0001>

<llo_original>
// kernel: generator_forward.5
$region0: #{generator_forward.5}
  #allocation0 [shape = 'u32[]', space=smem, size = 0x4, offset = 0x4, fixed_abs, tag = 'smem constant byte address 0x4 - core index']
  #allocation1 [shape = 'u32[144,128]{1,0:T(1,128)}', space=vmem, size = 0x12000, scoped, tag = 'internal scratch']
  %s0 = inlined_call_operand.vmem [shape: f32[4,32,256], index: 0, kind: input, shape index: {}]
  %s1 = inlined_call_operand.vmem [shape: f32[4,256,128], index: 1, kind: input, shape index: {}]
  %s2 = inlined_call_operand.vmem [shape: f32[4,32,128], index: 2, kind: output, shape index: {}]
  %s3 = sld [smem:[#allocation0]]
  $region18: #{generator_forward.5} parent=0
    _
  %s5 = ssub.s32 1, %s3
  %s6 = scalar_select 0, %s5, %s3
  // Predicated region
  $region2: #{generator_forward.5} parent=0 // pred_check
    _
  $region3: #{generator_forward.5} parent=0 // pred_check_branch
    %8 = sbr.rel (0) target = $region5
  $region4: #{generator_forward.5} parent=0 // pred_region
    _
  $region5: #{generator_forward.5} parent=0 // pred_fallthru
    _
  // Predicated region
  $region6: #{generator_forward.5} parent=0 // pred_check
    _
  $region7: #{generator_forward.5} parent=0 // pred_check_branch
    %10 = sbr.rel (0) target = $region9
  $region8: #{generator_forward.5} parent=0 // pred_region
    _
  $region9: #{generator_forward.5} parent=0 // pred_fallthru
    _
  %v11 = vld [vmem:[%s0] sm:$0xff]
  %v12 = vld [vmem:[%s0 + $0x8] sm:$0xff]
  %v13 = vld [vmem:[%s0 + $0x10] sm:$0xff]
  %v14 = vld [vmem:[%s0 + $0x18] sm:$0xff]
  %v15 = vld [vmem:[%s0 + $0x20] sm:$0xff]
  %v16 = vld [vmem:[%s0 + $0x28] sm:$0xff]
  %v17 = vld [vmem:[%s0 + $0x30] sm:$0xff]
  %v18 = vld [vmem:[%s0 + $0x38] sm:$0xff]
  %v19 = vld [vmem:[%s1] sm:$0xff]
  %v20 = vld [vmem:[%s1 + $0x8] sm:$0xff]
  %v21 = vld [vmem:[%s1 + $0x10] sm:$0xff]
  %v22 = vld [vmem:[%s1 + $0x18] sm:$0xff]
  %v23 = vld [vmem:[%s1 + $0x20] sm:$0xff]
  %v24 = vld [vmem:[%s1 + $0x28] sm:$0xff]
  %v25 = vld [vmem:[%s1 + $0x30] sm:$0xff]
  %v26 = vld [vmem:[%s1 + $0x38] sm:$0xff]
  %v27 = vld [vmem:[%s1 + $0x40] sm:$0xff]
  %v28 = vld [vmem:[%s1 + $0x48] sm:$0xff]
  %v29 = vld [vmem:[%s1 + $0x50] sm:$0xff]
  %v30 = vld [vmem:[%s1 + $0x58] sm:$0xff]
  %v31 = vld [vmem:[%s1 + $0x60] sm:$0xff]
  %v32 = vld [vmem:[%s1 + $0x68] sm:$0xff]
  %v33 = vld [vmem:[%s1 + $0x70] sm:$0xff]
  %v34 = vld [vmem:[%s1 + $0x78] sm:$0xff]
  %v35 = vld [vmem:[%s1 + $0x80] sm:$0xff]
  %v36 = vld [vmem:[%s1 + $0x88] sm:$0xff]
  %v37 = vld [vmem:[%s1 + $0x90] sm:$0xff]
  %v38 = vld [vmem:[%s1 + $0x98] sm:$0xff]
  %v39 = vld [vmem:[%s1 + $0xa0] sm:$0xff]
  %v40 = vld [vmem:[%s1 + $0xa8] sm:$0xff]
  %v41 = vld [vmem:[%s1 + $0xb0] sm:$0xff]
  %v42 = vld [vmem:[%s1 + $0xb8] sm:$0xff]
  %v43 = vld [vmem:[%s1 + $0xc0] sm:$0xff]
  %v44 = vld [vmem:[%s1 + $0xc8] sm:$0xff]
  %v45 = vld [vmem:[%s1 + $0xd0] sm:$0xff]
  %v46 = vld [vmem:[%s1 + $0xd8] sm:$0xff]
  %v47 = vld [vmem:[%s1 + $0xe0] sm:$0xff]
  %v48 = vld [vmem:[%s1 + $0xe8] sm:$0xff]
  %v49 = vld [vmem:[%s1 + $0xf0] sm:$0xff]
  %v50 = vld [vmem:[%s1 + $0xf8] sm:$0xff]
  %51 = vmatprep.subr.mxu0 0.0
  %52 = vmatpush1.msra.mxu0 %v19
  %53 = vmatprep.subr.mxu0 0.0
  %54 = vmatpush1.msra.mxu0 %v20
  %55 = vmatprep.subr.mxu0 0.0
  %56 = vmatpush1.msra.mxu0 %v21
  %57 = vmatprep.subr.mxu0 0.0
  %58 = vmatpush1.msra.mxu0 %v22
  %59 = vmatprep.subr.mxu0 0.0
  %60 = vmatpush1.msra.mxu0 %v23
  %61 = vmatprep.subr.mxu0 0.0
  %62 = vmatpush1.msra.mxu0 %v24
  %63 = vmatprep.subr.mxu0 0.0
  %64 = vmatpush1.msra.mxu0 %v25
  %65 = vmatprep.subr.mxu0 0.0
  %66 = vmatpush1.msra.mxu0 %v26
  %67 = vmatprep.subr.mxu0 0.0
  %68 = vmatpush1.msra.mxu0 %v27
  %69 = vmatprep.subr.mxu0 0.0
  %70 = vmatpush1.msra.mxu0 %v28
  %71 = vmatprep.subr.mxu0 0.0
  %72 = vmatpush1.msra.mxu0 %v29
  %73 = vmatprep.subr.mxu0 0.0
  %74 = vmatpush1.msra.mxu0 %v30
  %75 = vmatprep.subr.mxu0 0.0
  %76 = vmatpush1.msra.mxu0 %v31
  %77 = vmatprep.subr.mxu0 0.0
  %78 = vmatpush1.msra.mxu0 %v32
  %79 = vmatprep.subr.mxu0 0.0
  %80 = vmatpush1.msra.mxu0 %v33
  %81 = vmatprep.subr.mxu0 0.0
  %82 = vmatpush1.msra.mxu0 %v34
  %83 = vmatprep.subr.mxu0 0.0
  %84 = vmatpush1.msra.mxu0 %v35
  %85 = vmatprep.subr.mxu0 0.0
  %86 = vmatpush1.msra.mxu0 %v36
  %87 = vmatprep.subr.mxu0 0.0
  %88 = vmatpush1.msra.mxu0 %v37
  %89 = vmatprep.subr.mxu0 0.0
  %90 = vmatpush1.msra.mxu0 %v38
  %91 = vmatprep.subr.mxu0 0.0
  %92 = vmatpush1.msra.mxu0 %v39
  %93 = vmatprep.subr.mxu0 0.0
  %94 = vmatpush1.msra.mxu0 %v40
  %95 = vmatprep.subr.mxu0 0.0
  %96 = vmatpush1.msra.mxu0 %v41
  %97 = vmatprep.subr.mxu0 0.0
  %98 = vmatpush1.msra.mxu0 %v42
  %99 = vmatprep.subr.mxu0 0.0
  %100 = vmatpush1.msra.mxu0 %v43
  %101 = vmatprep.subr.mxu0 0.0
  %102 = vmatpush1.msra.mxu0 %v44
  %103 = vmatprep.subr.mxu0 0.0
  %104 = vmatpush1.msra.mxu0 %v45
  %105 = vmatprep.subr.mxu0 0.0
  %106 = vmatpush1.msra.mxu0 %v46
  %107 = vmatprep.subr.mxu0 0.0
  %108 = vmatpush1.msra.mxu0 %v47
  %109 = vmatprep.subr.mxu0 0.0
  %110 = vmatpush1.msra.mxu0 %v48
  %111 = vmatprep.subr.mxu0 0.0
  %112 = vmatpush1.msra.mxu0 %v49
  %113 = vmatprep.subr.mxu0 0.0
  %114 = vmatpush1.msra.mxu0 %v50
  %115 = vmatprep.mubr.f32.mxu0 %v12
  %116 = vmatmul.mubr.f32.gmra.mrb[0].mxu0 %v11
  %v117 = vpop.f32.mrb[0].mxu0
  %v118 = vadd.f32 0.0, %v117
  %v119 = vpop.f32.mrb[0].mxu0
  %120 = vmatprep.mubr.f32.mxu0 %v14
  %121 = vmatmul.mubr.f32.gmra.mrb[0].mxu0 %v13
  %v122 = vpop.f32.mrb[0].mxu0
  %v123 = vadd.f32 0.0, %v122
  %v124 = vpop.f32.mrb[0].mxu0
  %125 = vmatprep.mubr.f32.mxu0 %v16
  %126 = vmatmul.mubr.f32.gmra.mrb[0].mxu0 %v15
  %v127 = vpop.f32.mrb[0].mxu0
  %v128 = vadd.f32 0.0, %v127
  %v129 = vpop.f32.mrb[0].mxu0
  %130 = vmatprep.mubr.f32.mxu0 %v18
  %131 = vmatmul.mubr.f32.gmra.mrb[0].mxu0 %v17
  %v132 = vpop.f32.mrb[0].mxu0
  %v133 = vadd.f32 0.0, %v132
  %v134 = vpop.f32.mrb[0].mxu0
  %135 = vdwg.mxu0
  %136 = vst [vmem:[%s2] sm:$0xff] %v118
  %137 = vst [vmem:[%s2 + $0x8] sm:$0xff] %v123
  %138 = vst [vmem:[%s2 + $0x10] sm:$0xff] %v128
  %139 = vst [vmem:[%s2 + $0x18] sm:$0xff] %v133
  %v140 = vadd.f32 %v118, %v123
  %v141 = vadd.f32 %v140, %v128
  %v142 = vadd.f32 %v141, %v133
  %v143 = vrot.slane %v142, 4
  %v144 = vadd.f32 %v142, %v143
  %v145 = vrot.slane %v144, 2
  %v146 = vadd.f32 %v144, %v145
  %v147 = vrot.slane %v146, 1
  %v148 = vadd.f32 %v146, %v147
  %v149 = vadd.f32 %v148, 0.0
  %v150 = vmul.f32 %v118, %v118
  %v151 = vmul.f32 %v123, %v123
  %v152 = vmul.f32 %v128, %v128
  %v153 = vmul.f32 %v133, %v133
  %v154 = vadd.f32 %v150, %v151
  %v155 = vadd.f32 %v154, %v152
  %v156 = vadd.f32 %v155, %v153
  %v157 = vrot.slane %v156, 4
  %v158 = vadd.f32 %v156, %v157
  %v159 = vrot.slane %v158, 2
  %v160 = vadd.f32 %v158, %v159
  %v161 = vrot.slane %v160, 1
  %v162 = vadd.f32 %v160, %v161
  %v163 = vadd.f32 %v162, 0.0
  %s164 = scalar_lea.vmem %s0, 64
  %v165 = vld [vmem:[%s164] sm:$0xff]
  %v166 = vld [vmem:[%s164 + $0x8] sm:$0xff]
  %v167 = vld [vmem:[%s164 + $0x10] sm:$0xff]
  %v168 = vld [vmem:[%s164 + $0x18] sm:$0xff]
  %v169 = vld [vmem:[%s164 + $0x20] sm:$0xff]
  %v170 = vld [vmem:[%s164 + $0x28] sm:$0xff]
  %v171 = vld [vmem:[%s164 + $0x30] sm:$0xff]
  %v172 = vld [vmem:[%s164 + $0x38] sm:$0xff]
  %s173 = scalar_lea.vmem %s1, 256
  %v174 = vld [vmem:[%s173] sm:$0xff]
  %v175 = vld [vmem:[%s173 + $0x8] sm:$0xff]
  %v176 = vld [vmem:[%s173 + $0x10] sm:$0xff]
  %v177 = vld [vmem:[%s173 + $0x18] sm:$0xff]
  %v178 = vld [vmem:[%s173 + $0x20] sm:$0xff]
  %v179 = vld [vmem:[%s173 + $0x28] sm:$0xff]
  %v180 = vld [vmem:[%s173 + $0x30] sm:$0xff]
  %v181 = vld [vmem:[%s173 + $0x38] sm:$0xff]
  %v182 = vld [vmem:[%s173 + $0x40] sm:$0xff]
  %v183 = vld [vmem:[%s173 + $0x48] sm:$0xff]
  %v184 = vld [vmem:[%s173 + $0x50] sm:$0xff]
  %v185 = vld [vmem:[%s173 + $0x58] sm:$0xff]
  %v186 = vld [vmem:[%s173 + $0x60] sm:$0xff]
  %v187 = vld [vmem:[%s173 + $0x68] sm:$0xff]
  %v188 = vld [vmem:[%s173 + $0x70] sm:$0xff]
  %v189 = vld [vmem:[%s173 + $0x78] sm:$0xff]
  %v190 = vld [vmem:[%s173 + $0x80] sm:$0xff]
  %v191 = vld [vmem:[%s173 + $0x88] sm:$0xff]
  %v192 = vld [vmem:[%s173 + $0x90] sm:$0xff]
  %v193 = vld [vmem:[%s173 + $0x98] sm:$0xff]
  %v194 = vld [vmem:[%s173 + $0xa0] sm:$0xff]
  %v195 = vld [vmem:[%s173 + $0xa8] sm:$0xff]
  %v196 = vld [vmem:[%s173 + $0xb0] sm:$0xff]
  %v197 = vld [vmem:[%s173 + $0xb8] sm:$0xff]
  %v198 = vld [vmem:[%s173 + $0xc0] sm:$0xff]
  %v199 = vld [vmem:[%s173 + $0xc8] sm:$0xff]
  %v200 = vld [vmem:[%s173 + $0xd0] sm:$0xff]
  %v201 = vld [vmem:[%s173 + $0xd8] sm:$0xff]
  %v202 = vld [vmem:[%s173 + $0xe0] sm:$0xff]
  %v203 = vld [vmem:[%s173 + $0xe8] sm:$0xff]
  %v204 = vld [vmem:[%s173 + $0xf0] sm:$0xff]
  %v205 = vld [vmem:[%s173 + $0xf8] sm:$0xff]
  %206 = vmatprep.subr.mxu0 0.0
  %207 = vmatpush1.msra.mxu0 %v174
  %208 = vmatprep.subr.mxu0 0.0
  %209 = vmatpush1.msra.mxu0 %v175
  %210 = vmatprep.subr.mxu0 0.0
  %211 = vmatpush1.msra.mxu0 %v176
  %212 = vmatprep.subr.mxu0 0.0
  %213 = vmatpush1.msra.mxu0 %v177
  %214 = vmatprep.subr.mxu0 0.0
  %215 = vmatpush1.msra.mxu0 %v178
  %216 = vmatprep.subr.mxu0 0.0
  %217 = vmatpush1.msra.mxu0 %v179
  %218 = vmatprep.subr.mxu0 0.0
  %219 = vmatpush1.msra.mxu0 %v180
  %220 = vmatprep.subr.mxu0 0.0
  %221 = vmatpush1.msra.mxu0 %v181
  %222 = vmatprep.subr.mxu0 0.0
  %223 = vmatpush1.msra.mxu0 %v182
  %224 = vmatprep.subr.mxu0 0.0
  %225 = vmatpush1.msra.mxu0 %v183
  %226 = vmatprep.subr.mxu0 0.0
  %227 = vmatpush1.msra.mxu0 %v184
  %228 = vmatprep.subr.mxu0 0.0
  %229 = vmatpush1.msra.mxu0 %v185
  %230 = vmatprep.subr.mxu0 0.0
  %231 = vmatpush1.msra.mxu0 %v186
  %232 = vmatprep.subr.mxu0 0.0
  %233 = vmatpush1.msra.mxu0 %v187
  %234 = vmatprep.subr.mxu0 0.0
  %235 = vmatpush1.msra.mxu0 %v188
  %236 = vmatprep.subr.mxu0 0.0
  %237 = vmatpush1.msra.mxu0 %v189
  %238 = vmatprep.subr.mxu0 0.0
  %239 = vmatpush1.msra.mxu0 %v190
  %240 = vmatprep.subr.mxu0 0.0
  %241 = vmatpush1.msra.mxu0 %v191
  %242 = vmatprep.subr.mxu0 0.0
  %243 = vmatpush1.msra.mxu0 %v192
  %244 = vmatprep.subr.mxu0 0.0
  %245 = vmatpush1.msra.mxu0 %v193
  %246 = vmatprep.subr.mxu0 0.0
  %247 = vmatpush1.msra.mxu0 %v194
  %248 = vmatprep.subr.mxu0 0.0
  %249 = vmatpush1.msra.mxu0 %v195
  %250 = vmatprep.subr.mxu0 0.0
  %251 = vmatpush1.msra.mxu0 %v196
  %252 = vmatprep.subr.mxu0 0.0
  %253 = vmatpush1.msra.mxu0 %v197
  %254 = vmatprep.subr.mxu0 0.0
  %255 = vmatpush1.msra.mxu0 %v198
  %256 = vmatprep.subr.mxu0 0.0
  %257 = vmatpush1.msra.mxu0 %v199
  %258 = vmatprep.subr.mxu0 0.0
  %259 = vmatpush1.msra.mxu0 %v200
  %260 = vmatprep.subr.mxu0 0.0
  %261 = vmatpush1.msra.mxu0 %v201
  %262 = vmatprep.subr.mxu0 0.0
  %263 = vmatpush1.msra.mxu0 %v202
  %264 = vmatprep.subr.mxu0 0.0
  %265 = vmatpush1.msra.mxu0 %v203
  %266 = vmatprep.subr.mxu0 0.0
  %267 = vmatpush1.msra.mxu0 %v204
  %268 = vmatprep.subr.mxu0 0.0
  %269 = vmatpush1.msra.mxu0 %v205
  %270 = vmatprep.mubr.f32.mxu0 %v166
  %271 = vmatmul.mubr.f32.gmra.mrb[0].mxu0 %v165
  %v272 = vpop.f32.mrb[0].mxu0
  %v273 = vadd.f32 0.0, %v272
  %v274 = vpop.f32.mrb[0].mxu0
  %275 = vmatprep.mubr.f32.mxu0 %v168
  %276 = vmatmul.mubr.f32.gmra.mrb[0].mxu0 %v167
  %v277 = vpop.f32.mrb[0].mxu0
  %v278 = vadd.f32 0.0, %v277
  %v279 = vpop.f32.mrb[0].mxu0
  %280 = vmatprep.mubr.f32.mxu0 %v170
  %281 = vmatmul.mubr.f32.gmra.mrb[0].mxu0 %v169
  %v282 = vpop.f32.mrb[0].mxu0
  %v283 = vadd.f32 0.0, %v282
  %v284 = vpop.f32.mrb[0].mxu0
  %285 = vmatprep.mubr.f32.mxu0 %v172
  %286 = vmatmul.mubr.f32.gmra.mrb[0].mxu0 %v171
  %v287 = vpop.f32.mrb[0].mxu0
  %v288 = vadd.f32 0.0, %v287
  %v289 = vpop.f32.mrb[0].mxu0
  %290 = vdwg.mxu0
  %s291 = scalar_lea.vmem %s2, 32
  %292 = vst [vmem:[%s291] sm:$0xff] %v273
  %293 = vst [vmem:[%s291 + $0x8] sm:$0xff] %v278
  %294 = vst [vmem:[%s291 + $0x10] sm:$0xff] %v283
  %295 = vst [vmem:[%s291 + $0x18] sm:$0xff] %v288
  %v296 = vadd.f32 %v273, %v278
  %v297 = vadd.f32 %v296, %v283
  %v298 = vadd.f32 %v297, %v288
  %v299 = vrot.slane %v298, 4
  %v300 = vadd.f32 %v298, %v299
  %v301 = vrot.slane %v300, 2
  %v302 = vadd.f32 %v300, %v301
  %v303 = vrot.slane %v302, 1
  %v304 = vadd.f32 %v302, %v303
  %v305 = vadd.f32 %v149, %v304
  %v306 = vmul.f32 %v273, %v273
  %v307 = vmul.f32 %v278, %v278
  %v308 = vmul.f32 %v283, %v283
  %v309 = vmul.f32 %v288, %v288
  %v310 = vadd.f32 %v306, %v307
  %v311 = vadd.f32 %v310, %v308
  %v312 = vadd.f32 %v311, %v309
  %v313 = vrot.slane %v312, 4
  %v314 = vadd.f32 %v312, %v313
  %v315 = vrot.slane %v314, 2
  %v316 = vadd.f32 %v314, %v315
  %v317 = vrot.slane %v316, 1
  %v318 = vadd.f32 %v316, %v317
  %v319 = vadd.f32 %v163, %v318
  %s320 = scalar_lea.vmem %s0, 128
  %v321 = vld [vmem:[%s320] sm:$0xff]
  %v322 = vld [vmem:[%s320 + $0x8] sm:$0xff]
  %v323 = vld [vmem:[%s320 + $0x10] sm:$0xff]
  %v324 = vld [vmem:[%s320 + $0x18] sm:$0xff]
  %v325 = vld [vmem:[%s320 + $0x20] sm:$0xff]
  %v326 = vld [vmem:[%s320 + $0x28] sm:$0xff]
  %v327 = vld [vmem:[%s320 + $0x30] sm:$0xff]
  %v328 = vld [vmem:[%s320 + $0x38] sm:$0xff]
  %s329 = scalar_lea.vmem %s1, 512
  %v330 = vld [vmem:[%s329] sm:$0xff]
  %v331 = vld [vmem:[%s329 + $0x8] sm:$0xff]
  %v332 = vld [vmem:[%s329 + $0x10] sm:$0xff]
  %v333 = vld [vmem:[%s329 + $0x18] sm:$0xff]
  %v334 = vld [vmem:[%s329 + $0x20] sm:$0xff]
  %v335 = vld [vmem:[%s329 + $0x28] sm:$0xff]
  %v336 = vld [vmem:[%s329 + $0x30] sm:$0xff]
  %v337 = vld [vmem:[%s329 + $0x38] sm:$0xff]
  %v338 = vld [vmem:[%s329 + $0x40] sm:$0xff]
  %v339 = vld [vmem:[%s329 + $0x48] sm:$0xff]
  %v340 = vld [vmem:[%s329 + $0x50] sm:$0xff]
  %v341 = vld [vmem:[%s329 + $0x58] sm:$0xff]
  %v342 = vld [vmem:[%s329 + $0x60] sm:$0xff]
  %v343 = vld [vmem:[%s329 + $0x68] sm:$0xff]
  %v344 = vld [vmem:[%s329 + $0x70] sm:$0xff]
  %v345 = vld [vmem:[%s329 + $0x78] sm:$0xff]
  %v346 = vld [vmem:[%s329 + $0x80] sm:$0xff]
  %v347 = vld [vmem:[%s329 + $0x88] sm:$0xff]
  %v348 = vld [vmem:[%s329 + $0x90] sm:$0xff]
  %v349 = vld [vmem:[%s329 + $0x98] sm:$0xff]
  %v350 = vld [vmem:[%s329 + $0xa0] sm:$0xff]
  %v351 = vld [vmem:[%s329 + $0xa8] sm:$0xff]
  %v352 = vld [vmem:[%s329 + $0xb0] sm:$0xff]
  %v353 = vld [vmem:[%s329 + $0xb8] sm:$0xff]
  %v354 = vld [vmem:[%s329 + $0xc0] sm:$0xff]
  %v355 = vld [vmem:[%s329 + $0xc8] sm:$0xff]
  %v356 = vld [vmem:[%s329 + $0xd0] sm:$0xff]
  %v357 = vld [vmem:[%s329 + $0xd8] sm:$0xff]
  %v358 = vld [vmem:[%s329 + $0xe0] sm:$0xff]
  %v359 = vld [vmem:[%s329 + $0xe8] sm:$0xff]
  %v360 = vld [vmem:[%s329 + $0xf0] sm:$0xff]
  %v361 = vld [vmem:[%s329 + $0xf8] sm:$0xff]
  %362 = vmatprep.subr.mxu0 0.0
  %363 = vmatpush1.msra.mxu0 %v330
  %364 = vmatprep.subr.mxu0 0.0
  %365 = vmatpush1.msra.mxu0 %v331
  %366 = vmatprep.subr.mxu0 0.0
  %367 = vmatpush1.msra.mxu0 %v332
  %368 = vmatprep.subr.mxu0 0.0
  %369 = vmatpush1.msra.mxu0 %v333
  %370 = vmatprep.subr.mxu0 0.0
  %371 = vmatpush1.msra.mxu0 %v334
  %372 = vmatprep.subr.mxu0 0.0
  %373 = vmatpush1.msra.mxu0 %v335
  %374 = vmatprep.subr.mxu0 0.0
  %375 = vmatpush1.msra.mxu0 %v336
  %376 = vmatprep.subr.mxu0 0.0
  %377 = vmatpush1.msra.mxu0 %v337
  %378 = vmatprep.subr.mxu0 0.0
  %379 = vmatpush1.msra.mxu0 %v338
  %380 = vmatprep.subr.mxu0 0.0
  %381 = vmatpush1.msra.mxu0 %v339
  %382 = vmatprep.subr.mxu0 0.0
  %383 = vmatpush1.msra.mxu0 %v340
  %384 = vmatprep.subr.mxu0 0.0
  %385 = vmatpush1.msra.mxu0 %v341
  %386 = vmatprep.subr.mxu0 0.0
  %387 = vmatpush1.msra.mxu0 %v342
  %388 = vmatprep.subr.mxu0 0.0
  %389 = vmatpush1.msra.mxu0 %v343
  %390 = vmatprep.subr.mxu0 0.0
  %391 = vmatpush1.msra.mxu0 %v344
  %392 = vmatprep.subr.mxu0 0.0
  %393 = vmatpush1.msra.mxu0 %v345
  %394 = vmatprep.subr.mxu0 0.0
  %395 = vmatpush1.msra.mxu0 %v346
  %396 = vmatprep.subr.mxu0 0.0
  %397 = vmatpush1.msra.mxu0 %v347
  %398 = vmatprep.subr.mxu0 0.0
  %399 = vmatpush1.msra.mxu0 %v348
  %400 = vmatprep.subr.mxu0 0.0
  %401 = vmatpush1.msra.mxu0 %v349
  %402 = vmatprep.subr.mxu0 0.0
  %403 = vmatpush1.msra.mxu0 %v350
  %404 = vmatprep.subr.mxu0 0.0
  %405 = vmatpush1.msra.mxu0 %v351
  %406 = vmatprep.subr.mxu0 0.0
  %407 = vmatpush1.msra.mxu0 %v352
  %408 = vmatprep.subr.mxu0 0.0
  %409 = vmatpush1.msra.mxu0 %v353
  %410 = vmatprep.subr.mxu0 0.0
  %411 = vmatpush1.msra.mxu0 %v354
  %412 = vmatprep.subr.mxu0 0.0
  %413 = vmatpush1.msra.mxu0 %v355
  %414 = vmatprep.subr.mxu0 0.0
  %415 = vmatpush1.msra.mxu0 %v356
  %416 = vmatprep.subr.mxu0 0.0
  %417 = vmatpush1.msra.mxu0 %v357
  %418 = vmatprep.subr.mxu0 0.0
  %419 = vmatpush1.msra.mxu0 %v358
  %420 = vmatprep.subr.mxu0 0.0
  %421 = vmatpush1.msra.mxu0 %v359
  %422 = vmatprep.subr.mxu0 0.0
  %423 = vmatpush1.msra.mxu0 %v360
  %424 = vmatprep.subr.mxu0 0.0
  %425 = vmatpush1.msra.mxu0 %v361
  %426 = vmatprep.mubr.f32.mxu0 %v322
  %427 = vmatmul.mubr.f32.gmra.mrb[0].mxu0 %v321
  %v428 = vpop.f32.mrb[0].mxu0
  %v429 = vadd.f32 0.0, %v428
  %v430 = vpop.f32.mrb[0].mxu0
  %431 = vmatprep.mubr.f32.mxu0 %v324
  %432 = vmatmul.mubr.f32.gmra.mrb[0].mxu0 %v323
  %v433 = vpop.f32.mrb[0].mxu0
  %v434 = vadd.f32 0.0, %v433
  %v435 = vpop.f32.mrb[0].mxu0
  %436 = vmatprep.mubr.f32.mxu0 %v326
  %437 = vmatmul.mubr.f32.gmra.mrb[0].mxu0 %v325
  %v438 = vpop.f32.mrb[0].mxu0
  %v439 = vadd.f32 0.0, %v438
  %v440 = vpop.f32.mrb[0].mxu0
  %441 = vmatprep.mubr.f32.mxu0 %v328
  %442 = vmatmul.mubr.f32.gmra.mrb[0].mxu0 %v327
  %v443 = vpop.f32.mrb[0].mxu0
  %v444 = vadd.f32 0.0, %v443
  %v445 = vpop.f32.mrb[0].mxu0
  %446 = vdwg.mxu0
  %s447 = scalar_lea.vmem %s2, 64
  %448 = vst [vmem:[%s447] sm:$0xff] %v429
  %449 = vst [vmem:[%s447 + $0x8] sm:$0xff] %v434
  %450 = vst [vmem:[%s447 + $0x10] sm:$0xff] %v439
  %451 = vst [vmem:[%s447 + $0x18] sm:$0xff] %v444
  %v452 = vadd.f32 %v429, %v434
  %v453 = vadd.f32 %v452, %v439
  %v454 = vadd.f32 %v453, %v444
  %v455 = vrot.slane %v454, 4
  %v456 = vadd.f32 %v454, %v455
  %v457 = vrot.slane %v456, 2
  %v458 = vadd.f32 %v456, %v457
  %v459 = vrot.slane %v458, 1
  %v460 = vadd.f32 %v458, %v459
  %v461 = vadd.f32 %v305, %v460
  %v462 = vmul.f32 %v429, %v429
  %v463 = vmul.f32 %v434, %v434
  %v464 = vmul.f32 %v439, %v439
  %v465 = vmul.f32 %v444, %v444
  %v466 = vadd.f32 %v462, %v463
  %v467 = vadd.f32 %v466, %v464
  %v468 = vadd.f32 %v467, %v465
  %v469 = vrot.slane %v468, 4
  %v470 = vadd.f32 %v468, %v469
  %v471 = vrot.slane %v470, 2
  %v472 = vadd.f32 %v470, %v471
  %v473 = vrot.slane %v472, 1
  %v474 = vadd.f32 %v472, %v473
  %v475 = vadd.f32 %v319, %v474
  %s476 = scalar_lea.vmem %s0, 192
  %v477 = vld [vmem:[%s476] sm:$0xff]
  %v478 = vld [vmem:[%s476 + $0x8] sm:$0xff]
  %v479 = vld [vmem:[%s476 + $0x10] sm:$0xff]
  %v480 = vld [vmem:[%s476 + $0x18] sm:$0xff]
  %v481 = vld [vmem:[%s476 + $0x20] sm:$0xff]
  %v482 = vld [vmem:[%s476 + $0x28] sm:$0xff]
  %v483 = vld [vmem:[%s476 + $0x30] sm:$0xff]
  %v484 = vld [vmem:[%s476 + $0x38] sm:$0xff]
  %s485 = scalar_lea.vmem %s1, 768
  %v486 = vld [vmem:[%s485] sm:$0xff]
  %v487 = vld [vmem:[%s485 + $0x8] sm:$0xff]
  %v488 = vld [vmem:[%s485 + $0x10] sm:$0xff]
  %v489 = vld [vmem:[%s485 + $0x18] sm:$0xff]
  %v490 = vld [vmem:[%s485 + $0x20] sm:$0xff]
  %v491 = vld [vmem:[%s485 + $0x28] sm:$0xff]
  %v492 = vld [vmem:[%s485 + $0x30] sm:$0xff]
  %v493 = vld [vmem:[%s485 + $0x38] sm:$0xff]
  %v494 = vld [vmem:[%s485 + $0x40] sm:$0xff]
  %v495 = vld [vmem:[%s485 + $0x48] sm:$0xff]
  %v496 = vld [vmem:[%s485 + $0x50] sm:$0xff]
  %v497 = vld [vmem:[%s485 + $0x58] sm:$0xff]
  %v498 = vld [vmem:[%s485 + $0x60] sm:$0xff]
  %v499 = vld [vmem:[%s485 + $0x68] sm:$0xff]
  %v500 = vld [vmem:[%s485 + $0x70] sm:$0xff]
  %v501 = vld [vmem:[%s485 + $0x78] sm:$0xff]
  %v502 = vld [vmem:[%s485 + $0x80] sm:$0xff]
  %v503 = vld [vmem:[%s485 + $0x88] sm:$0xff]
  %v504 = vld [vmem:[%s485 + $0x90] sm:$0xff]
  %v505 = vld [vmem:[%s485 + $0x98] sm:$0xff]
  %v506 = vld [vmem:[%s485 + $0xa0] sm:$0xff]
  %v507 = vld [vmem:[%s485 + $0xa8] sm:$0xff]
  %v508 = vld [vmem:[%s485 + $0xb0] sm:$0xff]
  %v509 = vld [vmem:[%s485 + $0xb8] sm:$0xff]
  %v510 = vld [vmem:[%s485 + $0xc0] sm:$0xff]
  %v511 = vld [vmem:[%s485 + $0xc8] sm:$0xff]
  %v512 = vld [vmem:[%s485 + $0xd0] sm:$0xff]
  %v513 = vld [vmem:[%s485 + $0xd8] sm:$0xff]
  %v514 = vld [vmem:[%s485 + $0xe0] sm:$0xff]
  %v515 = vld [vmem:[%s485 + $0xe8] sm:$0xff]
  %v516 = vld [vmem:[%s485 + $0xf0] sm:$0xff]
  %v517 = vld [vmem:[%s485 + $0xf8] sm:$0xff]
  %518 = vmatprep.subr.mxu0 0.0
  %519 = vmatpush1.msra.mxu0 %v486
  %520 = vmatprep.subr.mxu0 0.0
  %521 = vmatpush1.msra.mxu0 %v487
  %522 = vmatprep.subr.mxu0 0.0
  %523 = vmatpush1.msra.mxu0 %v488
  %524 = vmatprep.subr.mxu0 0.0
  %525 = vmatpush1.msra.mxu0 %v489
  %526 = vmatprep.subr.mxu0 0.0
  %527 = vmatpush1.msra.mxu0 %v490
  %528 = vmatprep.subr.mxu0 0.0
  %529 = vmatpush1.msra.mxu0 %v491
  %530 = vmatprep.subr.mxu0 0.0
  %531 = vmatpush1.msra.mxu0 %v492
  %532 = vmatprep.subr.mxu0 0.0
  %533 = vmatpush1.msra.mxu0 %v493
  %534 = vmatprep.subr.mxu0 0.0
  %535 = vmatpush1.msra.mxu0 %v494
  %536 = vmatprep.subr.mxu0 0.0
  %537 = vmatpush1.msra.mxu0 %v495
  %538 = vmatprep.subr.mxu0 0.0
  %539 = vmatpush1.msra.mxu0 %v496
  %540 = vmatprep.subr.mxu0 0.0
  %541 = vmatpush1.msra.mxu0 %v497
  %542 = vmatprep.subr.mxu0 0.0
  %543 = vmatpush1.msra.mxu0 %v498
  %544 = vmatprep.subr.mxu0 0.0
  %545 = vmatpush1.msra.mxu0 %v499
  %546 = vmatprep.subr.mxu0 0.0
  %547 = vmatpush1.msra.mxu0 %v500
  %548 = vmatprep.subr.mxu0 0.0
  %549 = vmatpush1.msra.mxu0 %v501
  %550 = vmatprep.subr.mxu0 0.0
  %551 = vmatpush1.msra.mxu0 %v502
  %552 = vmatprep.subr.mxu0 0.0
  %553 = vmatpush1.msra.mxu0 %v503
  %554 = vmatprep.subr.mxu0 0.0
  %555 = vmatpush1.msra.mxu0 %v504
  %556 = vmatprep.subr.mxu0 0.0
  %557 = vmatpush1.msra.mxu0 %v505
  %558 = vmatprep.subr.mxu0 0.0
  %559 = vmatpush1.msra.mxu0 %v506
  %560 = vmatprep.subr.mxu0 0.0
  %561 = vmatpush1.msra.mxu0 %v507
  %562 = vmatprep.subr.mxu0 0.0
  %563 = vmatpush1.msra.mxu0 %v508
  %564 = vmatprep.subr.mxu0 0.0
  %565 = vmatpush1.msra.mxu0 %v509
  %566 = vmatprep.subr.mxu0 0.0
  %567 = vmatpush1.msra.mxu0 %v510
  %568 = vmatprep.subr.mxu0 0.0
  %569 = vmatpush1.msra.mxu0 %v511
  %570 = vmatprep.subr.mxu0 0.0
  %571 = vmatpush1.msra.mxu0 %v512
  %572 = vmatprep.subr.mxu0 0.0
  %573 = vmatpush1.msra.mxu0 %v513
  %574 = vmatprep.subr.mxu0 0.0
  %575 = vmatpush1.msra.mxu0 %v514
  %576 = vmatprep.subr.mxu0 0.0
  %577 = vmatpush1.msra.mxu0 %v515
  %578 = vmatprep.subr.mxu0 0.0
  %579 = vmatpush1.msra.mxu0 %v516
  %580 = vmatprep.subr.mxu0 0.0
  %581 = vmatpush1.msra.mxu0 %v517
  %582 = vmatprep.mubr.f32.mxu0 %v478
  %583 = vmatmul.mubr.f32.gmra.mrb[0].mxu0 %v477
  %v584 = vpop.f32.mrb[0].mxu0
  %v585 = vadd.f32 0.0, %v584
  %v586 = vpop.f32.mrb[0].mxu0
  %587 = vmatprep.mubr.f32.mxu0 %v480
  %588 = vmatmul.mubr.f32.gmra.mrb[0].mxu0 %v479
  %v589 = vpop.f32.mrb[0].mxu0
  %v590 = vadd.f32 0.0, %v589
  %v591 = vpop.f32.mrb[0].mxu0
  %592 = vmatprep.mubr.f32.mxu0 %v482
  %593 = vmatmul.mubr.f32.gmra.mrb[0].mxu0 %v481
  %v594 = vpop.f32.mrb[0].mxu0
  %v595 = vadd.f32 0.0, %v594
  %v596 = vpop.f32.mrb[0].mxu0
  %597 = vmatprep.mubr.f32.mxu0 %v484
  %598 = vmatmul.mubr.f32.gmra.mrb[0].mxu0 %v483
  %v599 = vpop.f32.mrb[0].mxu0
  %v600 = vadd.f32 0.0, %v599
  %v601 = vpop.f32.mrb[0].mxu0
  %602 = vdwg.mxu0
  %s603 = scalar_lea.vmem %s2, 96
  %604 = vst [vmem:[%s603] sm:$0xff] %v585
  %605 = vst [vmem:[%s603 + $0x8] sm:$0xff] %v590
  %606 = vst [vmem:[%s603 + $0x10] sm:$0xff] %v595
  %607 = vst [vmem:[%s603 + $0x18] sm:$0xff] %v600
  %v608 = vadd.f32 %v585, %v590
  %v609 = vadd.f32 %v608, %v595
  %v610 = vadd.f32 %v609, %v600
  %v611 = vrot.slane %v610, 4
  %v612 = vadd.f32 %v610, %v611
  %v613 = vrot.slane %v612, 2
  %v614 = vadd.f32 %v612, %v613
  %v615 = vrot.slane %v614, 1
  %v616 = vadd.f32 %v614, %v615
  %v617 = vadd.f32 %v461, %v616
  %v618 = vmul.f32 %v585, %v585
  %v619 = vmul.f32 %v590, %v590
  %v620 = vmul.f32 %v595, %v595
  %v621 = vmul.f32 %v600, %v600
  %v622 = vadd.f32 %v618, %v619
  %v623 = vadd.f32 %v622, %v620
  %v624 = vadd.f32 %v623, %v621
  %v625 = vrot.slane %v624, 4
  %v626 = vadd.f32 %v624, %v625
  %v627 = vrot.slane %v626, 2
  %v628 = vadd.f32 %v626, %v627
  %v629 = vrot.slane %v628, 1
  %v630 = vadd.f32 %v628, %v629
  %v631 = vadd.f32 %v475, %v630
  %v632 = vrcp.pop 128.0
  %v633 = vmul.f32 %v617, %v632
  %v634 = vmul.f32 %v631, %v632
  %v635 = vmul.f32 %v633, %v633
  %v636 = vsub.f32 %v634, %v635
  %v637 = vadd.f32 %v636, 1e-05
  %v638 = vrsqrt.pop %v637
  %v639 = vsub.f32 0.0, %v633
  %v640 = vmul.f32 %v639, %v638
  %v641 = vld [vmem:[%s2] sm:$0xff]
  %v642 = vld [vmem:[%s2 + $0x8] sm:$0xff]
  %v643 = vld [vmem:[%s2 + $0x10] sm:$0xff]
  %v644 = vld [vmem:[%s2 + $0x18] sm:$0xff]
  %v645 = vmul.f32 %v641, %v638
  %v646 = vmul.f32 %v642, %v638
  %v647 = vmul.f32 %v643, %v638
  %v648 = vmul.f32 %v644, %v638
  %v649 = vadd.f32 %v645, %v640
  %v650 = vadd.f32 %v646, %v640
  %v651 = vadd.f32 %v647, %v640
  %v652 = vadd.f32 %v648, %v640
  %v653 = vmax.f32 %v649, 0.0
  %v654 = vmax.f32 %v650, 0.0
  %v655 = vmax.f32 %v651, 0.0
  %v656 = vmax.f32 %v652, 0.0
  %657 = vst [vmem:[%s2] sm:$0xff] %v653
  %658 = vst [vmem:[%s2 + $0x8] sm:$0xff] %v654
  %659 = vst [vmem:[%s2 + $0x10] sm:$0xff] %v655
  %660 = vst [vmem:[%s2 + $0x18] sm:$0xff] %v656
  %v661 = vld [vmem:[%s291] sm:$0xff]
  %v662 = vld [vmem:[%s291 + $0x8] sm:$0xff]
  %v663 = vld [vmem:[%s291 + $0x10] sm:$0xff]
  %v664 = vld [vmem:[%s291 + $0x18] sm:$0xff]
  %v665 = vmul.f32 %v661, %v638
  %v666 = vmul.f32 %v662, %v638
  %v667 = vmul.f32 %v663, %v638
  %v668 = vmul.f32 %v664, %v638
  %v669 = vadd.f32 %v665, %v640
  %v670 = vadd.f32 %v666, %v640
  %v671 = vadd.f32 %v667, %v640
  %v672 = vadd.f32 %v668, %v640
  %v673 = vmax.f32 %v669, 0.0
  %v674 = vmax.f32 %v670, 0.0
  %v675 = vmax.f32 %v671, 0.0
  %v676 = vmax.f32 %v672, 0.0
  %677 = vst [vmem:[%s291] sm:$0xff] %v673
  %678 = vst [vmem:[%s291 + $0x8] sm:$0xff] %v674
  %679 = vst [vmem:[%s291 + $0x10] sm:$0xff] %v675
  %680 = vst [vmem:[%s291 + $0x18] sm:$0xff] %v676
  %v681 = vld [vmem:[%s447] sm:$0xff]
  %v682 = vld [vmem:[%s447 + $0x8] sm:$0xff]
  %v683 = vld [vmem:[%s447 + $0x10] sm:$0xff]
  %v684 = vld [vmem:[%s447 + $0x18] sm:$0xff]
  %v685 = vmul.f32 %v681, %v638
  %v686 = vmul.f32 %v682, %v638
  %v687 = vmul.f32 %v683, %v638
  %v688 = vmul.f32 %v684, %v638
  %v689 = vadd.f32 %v685, %v640
  %v690 = vadd.f32 %v686, %v640
  %v691 = vadd.f32 %v687, %v640
  %v692 = vadd.f32 %v688, %v640
  %v693 = vmax.f32 %v689, 0.0
  %v694 = vmax.f32 %v690, 0.0
  %v695 = vmax.f32 %v691, 0.0
  %v696 = vmax.f32 %v692, 0.0
  %697 = vst [vmem:[%s447] sm:$0xff] %v693
  %698 = vst [vmem:[%s447 + $0x8] sm:$0xff] %v694
  %699 = vst [vmem:[%s447 + $0x10] sm:$0xff] %v695
  %700 = vst [vmem:[%s447 + $0x18] sm:$0xff] %v696
  %v701 = vld [vmem:[%s603] sm:$0xff]
  %v702 = vld [vmem:[%s603 + $0x8] sm:$0xff]
  %v703 = vld [vmem:[%s603 + $0x10] sm:$0xff]
  %v704 = vld [vmem:[%s603 + $0x18] sm:$0xff]
  %v705 = vmul.f32 %v701, %v638
  %v706 = vmul.f32 %v702, %v638
  %v707 = vmul.f32 %v703, %v638
  %v708 = vmul.f32 %v704, %v638
  %v709 = vadd.f32 %v705, %v640
  %v710 = vadd.f32 %v706, %v640
  %v711 = vadd.f32 %v707, %v640
  %v712 = vadd.f32 %v708, %v640
  %v713 = vmax.f32 %v709, 0.0
  %v714 = vmax.f32 %v710, 0.0
  %v715 = vmax.f32 %v711, 0.0
  %v716 = vmax.f32 %v712, 0.0
  %717 = vst [vmem:[%s603] sm:$0xff] %v713
  %718 = vst [vmem:[%s603 + $0x8] sm:$0xff] %v714
  %719 = vst [vmem:[%s603 + $0x10] sm:$0xff] %v715
  %720 = vst [vmem:[%s603 + $0x18] sm:$0xff] %v716
  // Predicated region
  $region10: #{generator_forward.5} parent=0 // pred_check
    _
  $region11: #{generator_forward.5} parent=0 // pred_check_branch
    %722 = sbr.rel (0) target = $region13
  $region12: #{generator_forward.5} parent=0 // pred_region
    _
  $region13: #{generator_forward.5} parent=0 // pred_fallthru
    _
  // Predicated region
  $region14: #{generator_forward.5} parent=0 // pred_check
    _
  $region15: #{generator_forward.5} parent=0 // pred_check_branch
    %724 = sbr.rel (0) target = $region17
  $region16: #{generator_forward.5} parent=0 // pred_region
    _
  $region17: #{generator_forward.5} parent=0 // pred_fallthru
    _

// kernel: generator_forward.4
$region0: #{generator_forward.4}
  #allocation0 [shape = 'u32[]', space=smem, size = 0x4, offset = 0x4, fixed_abs, tag = 'smem constant byte address 0x4 - core index']
  #allocation1 [shape = 'u32[144,128]{1,0:T(1,128)}', space=vmem, size = 0x12000, scoped, tag = 'internal scratch']
  %s0 = inlined_call_operand.vmem [shape: f32[1,2,32], index: 0, kind: input, shape index: {}]
  %s1 = inlined_call_operand.hbm [shape: f32[16,32,128], index: 1, kind: input, shape index: {}]
  %s2 = inlined_call_operand.vmem [shape: f32[16,2,128], index: 2, kind: output, shape index: {}]
  %s3 = sld [smem:[#allocation0]]
  $region22: #{generator_forward.4} parent=0
    _
  %s5 = ssub.s32 1, %s3
  %s6 = scalar_select 0, %s5, %s3
  $region1: #{generator_forward.4} parent=0
    #allocation2 [shape = 'u8[262144]{0}', space=vmem, size = 0x40000, scoped, tag = 'input window, operand 1, single buffered']
    #allocation3 [shape = 's32[1]{0}', space=sflag, size = 0x4, scoped, tag = 'scoped memory for generator_forward.4']
    %7 = vsyncpa [#allocation3], 0
    // Predicated region
    $region2: #{generator_forward.4} parent=1 // pred_check
      _
    $region3: #{generator_forward.4} parent=1 // pred_check_branch
      %9 = sbr.rel (0) target = $region5
    $region4: #{generator_forward.4} parent=1 // pred_region
      _
    $region5: #{generator_forward.4} parent=1 // pred_fallthru
      _
    // Predicated region
    $region6: #{generator_forward.4} parent=1 // pred_check
      _
    $region7: #{generator_forward.4} parent=1 // pred_check_branch
      %11 = sbr.rel (0) target = $region9
    $region8: #{generator_forward.4} parent=1 // pred_region
      %s13 = ssub.s32 8192, 8192
      %14 = vsyncadd [#allocation3], %s13
      %s15 = sshll.u32 [#allocation2], 4
      %s16 = int_to_ptr.vmem [resolvable:$true] %s15
      %21 = dma.hbm_to_vmem [thread:$0]  %s1, 8192, %s16, [#allocation3], 128, 128, 8
    $region9: #{generator_forward.4} parent=1 // pred_fallthru
      _
    // Predicated region
    $region10: #{generator_forward.4} parent=1 // pred_check
      _
    $region11: #{generator_forward.4} parent=1 // pred_check_branch
      %23 = sbr.rel (0) target = $region13
    $region12: #{generator_forward.4} parent=1 // pred_region
      %24 = dma.done [#allocation3], 8192
    $region13: #{generator_forward.4} parent=1 // pred_fallthru
      _
    %v25 = vld [vmem:[%s0] sm:$0x3]
    %v26 = vld [vmem:[#allocation2] sm:$0xff]
    %v27 = vld [vmem:[#allocation2 + $0x8] sm:$0xff]
    %v28 = vld [vmem:[#allocation2 + $0x10] sm:$0xff]
    %v29 = vld [vmem:[#allocation2 + $0x18] sm:$0xff]
    %vm30 = vcmask 261120
    %v32 = vsel %vm30, %v25, 0
    %34 = vmatprep.subr.mxu0 0.0
    %35 = vmatpush1.msra.mxu0 %v26
    %36 = vmatprep.subr.mxu0 0.0
    %37 = vmatpush1.msra.mxu0 %v27
    %38 = vmatprep.subr.mxu0 0.0
    %39 = vmatpush1.msra.mxu0 %v28
    %40 = vmatprep.subr.mxu0 0.0
    %41 = vmatpush1.msra.mxu0 %v29
    %42 = vmatprep.subr.mxu0 0.0
    %43 = vmatpush1.msra.mxu0 0.0
    %44 = vmatprep.subr.mxu0 0.0
    %45 = vmatpush1.msra.mxu0 0.0
    %46 = vmatprep.subr.mxu0 0.0
    %47 = vmatpush1.msra.mxu0 0.0
    %48 = vmatprep.subr.mxu0 0.0
    %49 = vmatpush1.msra.mxu0 0.0
    %50 = vmatprep.subr.mxu0 0.0
    %51 = vmatpush1.msra.mxu0 0.0
    %52 = vmatprep.subr.mxu0 0.0
    %53 = vmatpush1.msra.mxu0 0.0
    %54 = vmatprep.subr.mxu0 0.0
    %55 = vmatpush1.msra.mxu0 0.0
    %56 = vmatprep.subr.mxu0 0.0
    %57 = vmatpush1.msra.mxu0 0.0
    %58 = vmatprep.subr.mxu0 0.0
    %59 = vmatpush1.msra.mxu0 0.0
    %60 = vmatprep.subr.mxu0 0.0
    %61 = vmatpush1.msra.mxu0 0.0
    %62 = vmatprep.subr.mxu0 0.0
    %63 = vmatpush1.msra.mxu0 0.0
    %64 = vmatprep.subr.mxu0 0.0
    %65 = vmatpush1.msra.mxu0 0.0
    %66 = vmatprep.subr.mxu0 0.0
    %67 = vmatpush1.msra.mxu0 0.0
    %68 = vmatprep.subr.mxu0 0.0
    %69 = vmatpush1.msra.mxu0 0.0
    %70 = vmatprep.subr.mxu0 0.0
    %71 = vmatpush1.msra.mxu0 0.0
    %72 = vmatprep.subr.mxu0 0.0
    %73 = vmatpush1.msra.mxu0 0.0
    %74 = vmatprep.subr.mxu0 0.0
    %75 = vmatpush1.msra.mxu0 0.0
    %76 = vmatprep.subr.mxu0 0.0
    %77 = vmatpush1.msra.mxu0 0.0
    %78 = vmatprep.subr.mxu0 0.0
    %79 = vmatpush1.msra.mxu0 0.0
    %80 = vmatprep.subr.mxu0 0.0
    %81 = vmatpush1.msra.mxu0 0.0
    %82 = vmatprep.subr.mxu0 0.0
    %83 = vmatpush1.msra.mxu0 0.0
    %84 = vmatprep.subr.mxu0 0.0
    %85 = vmatpush1.msra.mxu0 0.0
    %86 = vmatprep.subr.mxu0 0.0
    %87 = vmatpush1.msra.mxu0 0.0
    %88 = vmatprep.subr.mxu0 0.0
    %89 = vmatpush1.msra.mxu0 0.0
    %90 = vmatprep.subr.mxu0 0.0
    %91 = vmatpush1.msra.mxu0 0.0
    %92 = vmatprep.subr.mxu0 0.0
    %93 = vmatpush1.msra.mxu0 0.0
    %94 = vmatprep.subr.mxu0 0.0
    %95 = vmatpush1.msra.mxu0 0.0
    %96 = vmatprep.subr.mxu0 0.0
    %97 = vmatpush1.msra.mxu0 0.0
    %98 = vmatprep.mubr.f32.mxu0 0.0
    %99 = vmatmul.mubr.f32.gmra.mrb[0].mxu0 %v32
    %v100 = vpop.f32.mrb[0].mxu0
    %v101 = vadd.f32 0.0, %v100
    %v102 = vpop.f32.mrb[0].mxu0
    %103 = vdwg.mxu0
    %104 = vst [vmem:[%s2] sm:$0x3] %v101
    %vm105 = vcmask 1041408
    %v106 = vsel %vm105, %v101, 0.0
    %v107 = vrot.slane %v106, 4
    %v108 = vadd.f32 %v106, %v107
    %v109 = vrot.slane %v108, 2
    %v110 = vadd.f32 %v108, %v109
    %v111 = vrot.slane %v110, 1
    %v112 = vadd.f32 %v110, %v111
    %v113 = vadd.f32 %v112, 0.0
    %v114 = vmul.f32 %v101, %v101
    %v115 = vsel %vm105, %v114, 0.0
    %v116 = vrot.slane %v115, 4
    %v117 = vadd.f32 %v115, %v116
    %v118 = vrot.slane %v117, 2
    %v119 = vadd.f32 %v117, %v118
    %v120 = vrot.slane %v119, 1
    %v121 = vadd.f32 %v119, %v120
    %v122 = vadd.f32 %v121, 0.0
    %v123 = vld [vmem:[%s0] sm:$0x3]
    %s124 = scalar_lea.vmem [#allocation2], 32
    %v125 = vld [vmem:[%s124] sm:$0xff]
    %v126 = vld [vmem:[%s124 + $0x8] sm:$0xff]
    %v127 = vld [vmem:[%s124 + $0x10] sm:$0xff]
    %v128 = vld [vmem:[%s124 + $0x18] sm:$0xff]
    %v130 = vsel %vm30, %v123, 0
    %132 = vmatprep.subr.mxu0 0.0
    %133 = vmatpush1.msra.mxu0 %v125
    %134 = vmatprep.subr.mxu0 0.0
    %135 = vmatpush1.msra.mxu0 %v126
    %136 = vmatprep.subr.mxu0 0.0
    %137 = vmatpush1.msra.mxu0 %v127
    %138 = vmatprep.subr.mxu0 0.0
    %139 = vmatpush1.msra.mxu0 %v128
    %140 = vmatprep.subr.mxu0 0.0
    %141 = vmatpush1.msra.mxu0 0.0
    %142 = vmatprep.subr.mxu0 0.0
    %143 = vmatpush1.msra.mxu0 0.0
    %144 = vmatprep.subr.mxu0 0.0
    %145 = vmatpush1.msra.mxu0 0.0
    %146 = vmatprep.subr.mxu0 0.0
    %147 = vmatpush1.msra.mxu0 0.0
    %148 = vmatprep.subr.mxu0 0.0
    %149 = vmatpush1.msra.mxu0 0.0
    %150 = vmatprep.subr.mxu0 0.0
    %151 = vmatpush1.msra.mxu0 0.0
    %152 = vmatprep.subr.mxu0 0.0
    %153 = vmatpush1.msra.mxu0 0.0
    %154 = vmatprep.subr.mxu0 0.0
    %155 = vmatpush1.msra.mxu0 0.0
    %156 = vmatprep.subr.mxu0 0.0
    %157 = vmatpush1.msra.mxu0 0.0
    %158 = vmatprep.subr.mxu0 0.0
    %159 = vmatpush1.msra.mxu0 0.0
    %160 = vmatprep.subr.mxu0 0.0
    %161 = vmatpush1.msra.mxu0 0.0
    %162 = vmatprep.subr.mxu0 0.0
    %163 = vmatpush1.msra.mxu0 0.0
    %164 = vmatprep.subr.mxu0 0.0
    %165 = vmatpush1.msra.mxu0 0.0
    %166 = vmatprep.subr.mxu0 0.0
    %167 = vmatpush1.msra.mxu0 0.0
    %168 = vmatprep.subr.mxu0 0.0
    %169 = vmatpush1.msra.mxu0 0.0
    %170 = vmatprep.subr.mxu0 0.0
    %171 = vmatpush1.msra.mxu0 0.0
    %172 = vmatprep.subr.mxu0 0.0
    %173 = vmatpush1.msra.mxu0 0.0
    %174 = vmatprep.subr.mxu0 0.0
    %175 = vmatpush1.msra.mxu0 0.0
    %176 = vmatprep.subr.mxu0 0.0
    %177 = vmatpush1.msra.mxu0 0.0
    %178 = vmatprep.subr.mxu0 0.0
    %179 = vmatpush1.msra.mxu0 0.0
    %180 = vmatprep.subr.mxu0 0.0
    %181 = vmatpush1.msra.mxu0 0.0
    %182 = vmatprep.subr.mxu0 0.0
    %183 = vmatpush1.msra.mxu0 0.0
    %184 = vmatprep.subr.mxu0 0.0
    %185 = vmatpush1.msra.mxu0 0.0
    %186 = vmatprep.subr.mxu0 0.0
    %187 = vmatpush1.msra.mxu0 0.0
    %188 = vmatprep.subr.mxu0 0.0
    %189 = vmatpush1.msra.mxu0 0.0
    %190 = vmatprep.subr.mxu0 0.0
    %191 = vmatpush1.msra.mxu0 0.0
    %192 = vmatprep.subr.mxu0 0.0
    %193 = vmatpush1.msra.mxu0 0.0
    %194 = vmatprep.subr.mxu0 0.0
    %195 = vmatpush1.msra.mxu0 0.0
    %196 = vmatprep.mubr.f32.mxu0 0.0
    %197 = vmatmul.mubr.f32.gmra.mrb[0].mxu0 %v130
    %v198 = vpop.f32.mrb[0].mxu0
    %v199 = vadd.f32 0.0, %v198
    %v200 = vpop.f32.mrb[0].mxu0
    %201 = vdwg.mxu0
    %s202 = scalar_lea.vmem %s2, 2
    %203 = vst [vmem:[%s202] sm:$0x3] %v199
    %v204 = vsel %vm105, %v199, 0.0
    %v205 = vrot.slane %v204, 4
    %v206 = vadd.f32 %v204, %v205
    %v207 = vrot.slane %v206, 2
    %v208 = vadd.f32 %v206, %v207
    %v209 = vrot.slane %v208, 1
    %v210 = vadd.f32 %v208, %v209
    %v211 = vadd.f32 %v113, %v210
    %v212 = vmul.f32 %v199, %v199
    %v213 = vsel %vm105, %v212, 0.0
    %v214 = vrot.slane %v213, 4
    %v215 = vadd.f32 %v213, %v214
    %v216 = vrot.slane %v215, 2
    %v217 = vadd.f32 %v215, %v216
    %v218 = vrot.slane %v217, 1
    %v219 = vadd.f32 %v217, %v218
    %v220 = vadd.f32 %v122, %v219
    %v221 = vld [vmem:[%s0] sm:$0x3]
    %s222 = scalar_lea.vmem [#allocation2], 64
    %v223 = vld [vmem:[%s222] sm:$0xff]
    %v224 = vld [vmem:[%s222 + $0x8] sm:$0xff]
    %v225 = vld [vmem:[%s222 + $0x10] sm:$0xff]
    %v226 = vld [vmem:[%s222 + $0x18] sm:$0xff]
    %v228 = vsel %vm30, %v221, 0
    %230 = vmatprep.subr.mxu0 0.0
    %231 = vmatpush1.msra.mxu0 %v223
    %232 = vmatprep.subr.mxu0 0.0
    %233 = vmatpush1.msra.mxu0 %v224
    %234 = vmatprep.subr.mxu0 0.0
    %235 = vmatpush1.msra.mxu0 %v225
    %236 = vmatprep.subr.mxu0 0.0
    %237 = vmatpush1.msra.mxu0 %v226
    %238 = vmatprep.subr.mxu0 0.0
    %239 = vmatpush1.msra.mxu0 0.0
    %240 = vmatprep.subr.mxu0 0.0
    %241 = vmatpush1.msra.mxu0 0.0
    %242 = vmatprep.subr.mxu0 0.0
    %243 = vmatpush1.msra.mxu0 0.0
    %244 = vmatprep.subr.mxu0 0.0
    %245 = vmatpush1.msra.mxu0 0.0
    %246 = vmatprep.subr.mxu0 0.0
    %247 = vmatpush1.msra.mxu0 0.0
    %248 = vmatprep.subr.mxu0 0.0
    %249 = vmatpush1.msra.mxu0 0.0
    %250 = vmatprep.subr.mxu0 0.0
    %251 = vmatpush1.msra.mxu0 0.0
    %252 = vmatprep.subr.mxu0 0.0
    %253 = vmatpush1.msra.mxu0 0.0
    %254 = vmatprep.subr.mxu0 0.0
    %255 = vmatpush1.msra.mxu0 0.0
    %256 = vmatprep.subr.mxu0 0.0
    %257 = vmatpush1.msra.mxu0 0.0
    %258 = vmatprep.subr.mxu0 0.0
    %259 = vmatpush1.msra.mxu0 0.0
    %260 = vmatprep.subr.mxu0 0.0
    %261 = vmatpush1.msra.mxu0 0.0
    %262 = vmatprep.subr.mxu0 0.0
    %263 = vmatpush1.msra.mxu0 0.0
    %264 = vmatprep.subr.mxu0 0.0
    %265 = vmatpush1.msra.mxu0 0.0
    %266 = vmatprep.subr.mxu0 0.0
    %267 = vmatpush1.msra.mxu0 0.0
    %268 = vmatprep.subr.mxu0 0.0
    %269 = vmatpush1.msra.mxu0 0.0
    %270 = vmatprep.subr.mxu0 0.0
    %271 = vmatpush1.msra.mxu0 0.0
    %272 = vmatprep.subr.mxu0 0.0
    %273 = vmatpush1.msra.mxu0 0.0
    %274 = vmatprep.subr.mxu0 0.0
    %275 = vmatpush1.msra.mxu0 0.0
    %276 = vmatprep.subr.mxu0 0.0
    %277 = vmatpush1.msra.mxu0 0.0
    %278 = vmatprep.subr.mxu0 0.0
    %279 = vmatpush1.msra.mxu0 0.0
    %280 = vmatprep.subr.mxu0 0.0
    %281 = vmatpush1.msra.mxu0 0.0
    %282 = vmatprep.subr.mxu0 0.0
    %283 = vmatpush1.msra.mxu0 0.0
    %284 = vmatprep.subr.mxu0 0.0
    %285 = vmatpush1.msra.mxu0 0.0
    %286 = vmatprep.subr.mxu0 0.0
    %287 = vmatpush1.msra.mxu0 0.0
    %288 = vmatprep.subr.mxu0 0.0
    %289 = vmatpush1.msra.mxu0 0.0
    %290 = vmatprep.subr.mxu0 0.0
    %291 = vmatpush1.msra.mxu0 0.0
    %292 = vmatprep.subr.mxu0 0.0
    %293 = vmatpush1.msra.mxu0 0.0
    %294 = vmatprep.mubr.f32.mxu0 0.0
    %295 = vmatmul.mubr.f32.gmra.mrb[0].mxu0 %v228
    %v296 = vpop.f32.mrb[0].mxu0
    %v297 = vadd.f32 0.0, %v296
    %v298 = vpop.f32.mrb[0].mxu0
    %299 = vdwg.mxu0
    %s300 = scalar_lea.vmem %s2, 4
    %301 = vst [vmem:[%s300] sm:$0x3] %v297
    %v302 = vsel %vm105, %v297, 0.0
    %v303 = vrot.slane %v302, 4
    %v304 = vadd.f32 %v302, %v303
    %v305 = vrot.slane %v304, 2
    %v306 = vadd.f32 %v304, %v305
    %v307 = vrot.slane %v306, 1
    %v308 = vadd.f32 %v306, %v307
    %v309 = vadd.f32 %v211, %v308
    %v310 = vmul.f32 %v297, %v297
    %v311 = vsel %vm105, %v310, 0.0
    %v312 = vrot.slane %v311, 4
    %v313 = vadd.f32 %v311, %v312
    %v314 = vrot.slane %v313, 2
    %v315 = vadd.f32 %v313, %v314
    %v316 = vrot.slane %v315, 1
    %v317 = vadd.f32 %v315, %v316
    %v318 = vadd.f32 %v220, %v317
    %v319 = vld [vmem:[%s0] sm:$0x3]
    %s320 = scalar_lea.vmem [#allocation2], 96
    %v321 = vld [vmem:[%s320] sm:$0xff]
    %v322 = vld [vmem:[%s320 + $0x8] sm:$0xff]
    %v323 = vld [vmem:[%s320 + $0x10] sm:$0xff]
    %v324 = vld [vmem:[%s320 + $0x18] sm:$0xff]
    %v326 = vsel %vm30, %v319, 0
    %328 = vmatprep.subr.mxu0 0.0
    %329 = vmatpush1.msra.mxu0 %v321
    %330 = vmatprep.subr.mxu0 0.0
    %331 = vmatpush1.msra.mxu0 %v322
    %332 = vmatprep.subr.mxu0 0.0
    %333 = vmatpush1.msra.mxu0 %v323
    %334 = vmatprep.subr.mxu0 0.0
    %335 = vmatpush1.msra.mxu0 %v324
    %336 = vmatprep.subr.mxu0 0.0
    %337 = vmatpush1.msra.mxu0 0.0
    %338 = vmatprep.subr.mxu0 0.0
    %339 = vmatpush1.msra.mxu0 0.0
    %340 = vmatprep.subr.mxu0 0.0
    %341 = vmatpush1.msra.mxu0 0.0
    %342 = vmatprep.subr.mxu0 0.0
    %343 = vmatpush1.msra.mxu0 0.0
    %344 = vmatprep.subr.mxu0 0.0
    %345 = vmatpush1.msra.mxu0 0.0
    %346 = vmatprep.subr.mxu0 0.0
    %347 = vmatpush1.msra.mxu0 0.0
    %348 = vmatprep.subr.mxu0 0.0
    %349 = vmatpush1.msra.mxu0 0.0
    %350 = vmatprep.subr.mxu0 0.0
    %351 = vmatpush1.msra.mxu0 0.0
    %352 = vmatprep.subr.mxu0 0.0
    %353 = vmatpush1.msra.mxu0 0.0
    %354 = vmatprep.subr.mxu0 0.0
    %355 = vmatpush1.msra.mxu0 0.0
    %356 = vmatprep.subr.mxu0 0.0
    %357 = vmatpush1.msra.mxu0 0.0
    %358 = vmatprep.subr.mxu0 0.0
    %359 = vmatpush1.msra.mxu0 0.0
    %360 = vmatprep.subr.mxu0 0.0
    %361 = vmatpush1.msra.mxu0 0.0
    %362 = vmatprep.subr.mxu0 0.0
    %363 = vmatpush1.msra.mxu0 0.0
    %364 = vmatprep.subr.mxu0 0.0
    %365 = vmatpush1.msra.mxu0 0.0
    %366 = vmatprep.subr.mxu0 0.0
    %367 = vmatpush1.msra.mxu0 0.0
    %368 = vmatprep.subr.mxu0 0.0
    %369 = vmatpush1.msra.mxu0 0.0
    %370 = vmatprep.subr.mxu0 0.0
    %371 = vmatpush1.msra.mxu0 0.0
    %372 = vmatprep.subr.mxu0 0.0
    %373 = vmatpush1.msra.mxu0 0.0
    %374 = vmatprep.subr.mxu0 0.0
    %375 = vmatpush1.msra.mxu0 0.0
    %376 = vmatprep.subr.mxu0 0.0
    %377 = vmatpush1.msra.mxu0 0.0
    %378 = vmatprep.subr.mxu0 0.0
    %379 = vmatpush1.msra.mxu0 0.0
    %380 = vmatprep.subr.mxu0 0.0
    %381 = vmatpush1.msra.mxu0 0.0
    %382 = vmatprep.subr.mxu0 0.0
    %383 = vmatpush1.msra.mxu0 0.0
    %384 = vmatprep.subr.mxu0 0.0
    %385 = vmatpush1.msra.mxu0 0.0
    %386 = vmatprep.subr.mxu0 0.0
    %387 = vmatpush1.msra.mxu0 0.0
    %388 = vmatprep.subr.mxu0 0.0
    %389 = vmatpush1.msra.mxu0 0.0
    %390 = vmatprep.subr.mxu0 0.0
    %391 = vmatpush1.msra.mxu0 0.0
    %392 = vmatprep.mubr.f32.mxu0 0.0
    %393 = vmatmul.mubr.f32.gmra.mrb[0].mxu0 %v326
    %v394 = vpop.f32.mrb[0].mxu0
    %v395 = vadd.f32 0.0, %v394
    %v396 = vpop.f32.mrb[0].mxu0
    %397 = vdwg.mxu0
    %s398 = scalar_lea.vmem %s2, 6
    %399 = vst [vmem:[%s398] sm:$0x3] %v395
    %v400 = vsel %vm105, %v395, 0.0
    %v401 = vrot.slane %v400, 4
    %v402 = vadd.f32 %v400, %v401
    %v403 = vrot.slane %v402, 2
    %v404 = vadd.f32 %v402, %v403
    %v405 = vrot.slane %v404, 1
    %v406 = vadd.f32 %v404, %v405
    %v407 = vadd.f32 %v309, %v406
    %v408 = vmul.f32 %v395, %v395
    %v409 = vsel %vm105, %v408, 0.0
    %v410 = vrot.slane %v409, 4
    %v411 = vadd.f32 %v409, %v410
    %v412 = vrot.slane %v411, 2
    %v413 = vadd.f32 %v411, %v412
    %v414 = vrot.slane %v413, 1
    %v415 = vadd.f32 %v413, %v414
    %v416 = vadd.f32 %v318, %v415
    %v417 = vld [vmem:[%s0] sm:$0x3]
    %s418 = scalar_lea.vmem [#allocation2], 128
    %v419 = vld [vmem:[%s418] sm:$0xff]
    %v420 = vld [vmem:[%s418 + $0x8] sm:$0xff]
    %v421 = vld [vmem:[%s418 + $0x10] sm:$0xff]
    %v422 = vld [vmem:[%s418 + $0x18] sm:$0xff]
    %v424 = vsel %vm30, %v417, 0
    %426 = vmatprep.subr.mxu0 0.0
    %427 = vmatpush1.msra.mxu0 %v419
    %428 = vmatprep.subr.mxu0 0.0
    %429 = vmatpush1.msra.mxu0 %v420
    %430 = vmatprep.subr.mxu0 0.0
    %431 = vmatpush1.msra.mxu0 %v421
    %432 = vmatprep.subr.mxu0 0.0
    %433 = vmatpush1.msra.mxu0 %v422
    %434 = vmatprep.subr.mxu0 0.0
    %435 = vmatpush1.msra.mxu0 0.0
    %436 = vmatprep.subr.mxu0 0.0
    %437 = vmatpush1.msra.mxu0 0.0
    %438 = vmatprep.subr.mxu0 0.0
    %439 = vmatpush1.msra.mxu0 0.0
    %440 = vmatprep.subr.mxu0 0.0
    %441 = vmatpush1.msra.mxu0 0.0
    %442 = vmatprep.subr.mxu0 0.0
    %443 = vmatpush1.msra.mxu0 0.0
    %444 = vmatprep.subr.mxu0 0.0
    %445 = vmatpush1.msra.mxu0 0.0
    %446 = vmatprep.subr.mxu0 0.0
    %447 = vmatpush1.msra.mxu0 0.0
    %448 = vmatprep.subr.mxu0 0.0
    %449 = vmatpush1.msra.mxu0 0.0
    %450 = vmatprep.subr.mxu0 0.0
    %451 = vmatpush1.msra.mxu0 0.0
    %452 = vmatprep.subr.mxu0 0.0
    %453 = vmatpush1.msra.mxu0 0.0
    %454 = vmatprep.subr.mxu0 0.0
    %455 = vmatpush1.msra.mxu0 0.0
    %456 = vmatprep.subr.mxu0 0.0
    %457 = vmatpush1.msra.mxu0 0.0
    %458 = vmatprep.subr.mxu0 0.0
    %459 = vmatpush1.msra.mxu0 0.0
    %460 = vmatprep.subr.mxu0 0.0
    %461 = vmatpush1.msra.mxu0 0.0
    %462 = vmatprep.subr.mxu0 0.0
    %463 = vmatpush1.msra.mxu0 0.0
    %464 = vmatprep.subr.mxu0 0.0
    %465 = vmatpush1.msra.mxu0 0.0
    %466 = vmatprep.subr.mxu0 0.0
    %467 = vmatpush1.msra.mxu0 0.0
    %468 = vmatprep.subr.mxu0 0.0
    %469 = vmatpush1.msra.mxu0 0.0
    %470 = vmatprep.subr.mxu0 0.0
    %471 = vmatpush1.msra.mxu0 0.0
    %472 = vmatprep.subr.mxu0 0.0
    %473 = vmatpush1.msra.mxu0 0.0
    %474 = vmatprep.subr.mxu0 0.0
    %475 = vmatpush1.msra.mxu0 0.0
    %476 = vmatprep.subr.mxu0 0.0
    %477 = vmatpush1.msra.mxu0 0.0
    %478 = vmatprep.subr.mxu0 0.0
    %479 = vmatpush1.msra.mxu0 0.0
    %480 = vmatprep.subr.mxu0 0.0
    %481 = vmatpush1.msra.mxu0 0.0
    %482 = vmatprep.subr.mxu0 0.0
    %483 = vmatpush1.msra.mxu0 0.0
    %484 = vmatprep.subr.mxu0 0.0
    %485 = vmatpush1.msra.mxu0 0.0
    %486 = vmatprep.subr.mxu0 0.0
    %487 = vmatpush1.msra.mxu0 0.0
    %488 = vmatprep.subr.mxu0 0.0
    %489 = vmatpush1.msra.mxu0 0.0
    %490 = vmatprep.mubr.f32.mxu0 0.0
    %491 = vmatmul.mubr.f32.gmra.mrb[0].mxu0 %v424
    %v492 = vpop.f32.mrb[0].mxu0
    %v493 = vadd.f32 0.0, %v492
    %v494 = vpop.f32.mrb[0].mxu0
    %495 = vdwg.mxu0
    %s496 = scalar_lea.vmem %s2, 8
    %497 = vst [vmem:[%s496] sm:$0x3] %v493
    %v498 = vsel %vm105, %v493, 0.0
    %v499 = vrot.slane %v498, 4
    %v500 = vadd.f32 %v498, %v499
    %v501 = vrot.slane %v500, 2
    %v502 = vadd.f32 %v500, %v501
    %v503 = vrot.slane %v502, 1
    %v504 = vadd.f32 %v502, %v503
    %v505 = vadd.f32 %v407, %v504
    %v506 = vmul.f32 %v493, %v493
    %v507 = vsel %vm105, %v506, 0.0
    %v508 = vrot.slane %v507, 4
    %v509 = vadd.f32 %v507, %v508
    %v510 = vrot.slane %v509, 2
    %v511 = vadd.f32 %v509, %v510
    %v512 = vrot.slane %v511, 1
    %v513 = vadd.f32 %v511, %v512
    %v514 = vadd.f32 %v416, %v513
    %v515 = vld [vmem:[%s0] sm:$0x3]
    %s516 = scalar_lea.vmem [#allocation2], 160
    %v517 = vld [vmem:[%s516] sm:$0xff]
    %v518 = vld [vmem:[%s516 + $0x8] sm:$0xff]
    %v519 = vld [vmem:[%s516 + $0x10] sm:$0xff]
    %v520 = vld [vmem:[%s516 + $0x18] sm:$0xff]
    %v522 = vsel %vm30, %v515, 0
    %524 = vmatprep.subr.mxu0 0.0
    %525 = vmatpush1.msra.mxu0 %v517
    %526 = vmatprep.subr.mxu0 0.0
    %527 = vmatpush1.msra.mxu0 %v518
    %528 = vmatprep.subr.mxu0 0.0
    %529 = vmatpush1.msra.mxu0 %v519
    %530 = vmatprep.subr.mxu0 0.0
    %531 = vmatpush1.msra.mxu0 %v520
    %532 = vmatprep.subr.mxu0 0.0
    %533 = vmatpush1.msra.mxu0 0.0
    %534 = vmatprep.subr.mxu0 0.0
    %535 = vmatpush1.msra.mxu0 0.0
    %536 = vmatprep.subr.mxu0 0.0
    %537 = vmatpush1.msra.mxu0 0.0
    %538 = vmatprep.subr.mxu0 0.0
    %539 = vmatpush1.msra.mxu0 0.0
    %540 = vmatprep.subr.mxu0 0.0
    %541 = vmatpush1.msra.mxu0 0.0
    %542 = vmatprep.subr.mxu0 0.0
    %543 = vmatpush1.msra.mxu0 0.0
    %544 = vmatprep.subr.mxu0 0.0
    %545 = vmatpush1.msra.mxu0 0.0
    %546 = vmatprep.subr.mxu0 0.0
    %547 = vmatpush1.msra.mxu0 0.0
    %548 = vmatprep.subr.mxu0 0.0
    %549 = vmatpush1.msra.mxu0 0.0
    %550 = vmatprep.subr.mxu0 0.0
    %551 = vmatpush1.msra.mxu0 0.0
    %552 = vmatprep.subr.mxu0 0.0
    %553 = vmatpush1.msra.mxu0 0.0
    %554 = vmatprep.subr.mxu0 0.0
    %555 = vmatpush1.msra.mxu0 0.0
    %556 = vmatprep.subr.mxu0 0.0
    %557 = vmatpush1.msra.mxu0 0.0
    %558 = vmatprep.subr.mxu0 0.0
    %559 = vmatpush1.msra.mxu0 0.0
    %560 = vmatprep.subr.mxu0 0.0
    %561 = vmatpush1.msra.mxu0 0.0
    %562 = vmatprep.subr.mxu0 0.0
    %563 = vmatpush1.msra.mxu0 0.0
    %564 = vmatprep.subr.mxu0 0.0
    %565 = vmatpush1.msra.mxu0 0.0
    %566 = vmatprep.subr.mxu0 0.0
    %567 = vmatpush1.msra.mxu0 0.0
    %568 = vmatprep.subr.mxu0 0.0
    %569 = vmatpush1.msra.mxu0 0.0
    %570 = vmatprep.subr.mxu0 0.0
    %571 = vmatpush1.msra.mxu0 0.0
    %572 = vmatprep.subr.mxu0 0.0
    %573 = vmatpush1.msra.mxu0 0.0
    %574 = vmatprep.subr.mxu0 0.0
    %575 = vmatpush1.msra.mxu0 0.0
    %576 = vmatprep.subr.mxu0 0.0
    %577 = vmatpush1.msra.mxu0 0.0
    %578 = vmatprep.subr.mxu0 0.0
    %579 = vmatpush1.msra.mxu0 0.0
    %580 = vmatprep.subr.mxu0 0.0
    %581 = vmatpush1.msra.mxu0 0.0
    %582 = vmatprep.subr.mxu0 0.0
    %583 = vmatpush1.msra.mxu0 0.0
    %584 = vmatprep.subr.mxu0 0.0
    %585 = vmatpush1.msra.mxu0 0.0
    %586 = vmatprep.subr.mxu0 0.0
    %587 = vmatpush1.msra.mxu0 0.0
    %588 = vmatprep.mubr.f32.mxu0 0.0
    %589 = vmatmul.mubr.f32.gmra.mrb[0].mxu0 %v522
    %v590 = vpop.f32.mrb[0].mxu0
    %v591 = vadd.f32 0.0, %v590
    %v592 = vpop.f32.mrb[0].mxu0
    %593 = vdwg.mxu0
    %s594 = scalar_lea.vmem %s2, 10
    %595 = vst [vmem:[%s594] sm:$0x3] %v591
    %v596 = vsel %vm105, %v591, 0.0
    %v597 = vrot.slane %v596, 4
    %v598 = vadd.f32 %v596, %v597
    %v599 = vrot.slane %v598, 2
    %v600 = vadd.f32 %v598, %v599
    %v601 = vrot.slane %v600, 1
    %v602 = vadd.f32 %v600, %v601
    %v603 = vadd.f32 %v505, %v602
    %v604 = vmul.f32 %v591, %v591
    %v605 = vsel %vm105, %v604, 0.0
    %v606 = vrot.slane %v605, 4
    %v607 = vadd.f32 %v605, %v606
    %v608 = vrot.slane %v607, 2
    %v609 = vadd.f32 %v607, %v608
    %v610 = vrot.slane %v609, 1
    %v611 = vadd.f32 %v609, %v610
    %v612 = vadd.f32 %v514, %v611
    %v613 = vld [vmem:[%s0] sm:$0x3]
    %s614 = scalar_lea.vmem [#allocation2], 192
    %v615 = vld [vmem:[%s614] sm:$0xff]
    %v616 = vld [vmem:[%s614 + $0x8] sm:$0xff]
    %v617 = vld [vmem:[%s614 + $0x10] sm:$0xff]
    %v618 = vld [vmem:[%s614 + $0x18] sm:$0xff]
    %v620 = vsel %vm30, %v613, 0
    %622 = vmatprep.subr.mxu0 0.0
    %623 = vmatpush1.msra.mxu0 %v615
    %624 = vmatprep.subr.mxu0 0.0
    %625 = vmatpush1.msra.mxu0 %v616
    %626 = vmatprep.subr.mxu0 0.0
    %627 = vmatpush1.msra.mxu0 %v617
    %628 = vmatprep.subr.mxu0 0.0
    %629 = vmatpush1.msra.mxu0 %v618
    %630 = vmatprep.subr.mxu0 0.0
    %631 = vmatpush1.msra.mxu0 0.0
    %632 = vmatprep.subr.mxu0 0.0
    %633 = vmatpush1.msra.mxu0 0.0
    %634 = vmatprep.subr.mxu0 0.0
    %635 = vmatpush1.msra.mxu0 0.0
    %636 = vmatprep.subr.mxu0 0.0
    %637 = vmatpush1.msra.mxu0 0.0
    %638 = vmatprep.subr.mxu0 0.0
    %639 = vmatpush1.msra.mxu0 0.0
    %640 = vmatprep.subr.mxu0 0.0
    %641 = vmatpush1.msra.mxu0 0.0
    %642 = vmatprep.subr.mxu0 0.0
    %643 = vmatpush1.msra.mxu0 0.0
    %644 = vmatprep.subr.mxu0 0.0
    %645 = vmatpush1.msra.mxu0 0.0
    %646 = vmatprep.subr.mxu0 0.0
    %647 = vmatpush1.msra.mxu0 0.0
    %648 = vmatprep.subr.mxu0 0.0
    %649 = vmatpush1.msra.mxu0 0.0
    %650 = vmatprep.subr.mxu0 0.0
    %651 = vmatpush1.msra.mxu0 0.0
    %652 = vmatprep.subr.mxu0 0.0
    %653 = vmatpush1.msra.mxu0 0.0
    %654 = vmatprep.subr.mxu0 0.0
    %655 = vmatpush1.msra.mxu0 0.0
    %656 = vmatprep.subr.mxu0 0.0
    %657 = vmatpush1.msra.mxu0 0.0
    %658 = vmatprep.subr.mxu0 0.0
    %659 = vmatpush1.msra.mxu0 0.0
    %660 = vmatprep.subr.mxu0 0.0
    %661 = vmatpush1.msra.mxu0 0.0
    %662 = vmatprep.subr.mxu0 0.0
    %663 = vmatpush1.msra.mxu0 0.0
    %664 = vmatprep.subr.mxu0 0.0
    %665 = vmatpush1.msra.mxu0 0.0
    %666 = vmatprep.subr.mxu0 0.0
    %667 = vmatpush1.msra.mxu0 0.0
    %668 = vmatprep.subr.mxu0 0.0
    %669 = vmatpush1.msra.mxu0 0.0
    %670 = vmatprep.subr.mxu0 0.0
    %671 = vmatpush1.msra.mxu0 0.0
    %672 = vmatprep.subr.mxu0 0.0
    %673 = vmatpush1.msra.mxu0 0.0
    %674 = vmatprep.subr.mxu0 0.0
    %675 = vmatpush1.msra.mxu0 0.0
    %676 = vmatprep.subr.mxu0 0.0
    %677 = vmatpush1.msra.mxu0 0.0
    %678 = vmatprep.subr.mxu0 0.0
    %679 = vmatpush1.msra.mxu0 0.0
    %680 = vmatprep.subr.mxu0 0.0
    %681 = vmatpush1.msra.mxu0 0.0
    %682 = vmatprep.subr.mxu0 0.0
    %683 = vmatpush1.msra.mxu0 0.0
    %684 = vmatprep.subr.mxu0 0.0
    %685 = vmatpush1.msra.mxu0 0.0
    %686 = vmatprep.mubr.f32.mxu0 0.0
    %687 = vmatmul.mubr.f32.gmra.mrb[0].mxu0 %v620
    %v688 = vpop.f32.mrb[0].mxu0
    %v689 = vadd.f32 0.0, %v688
    %v690 = vpop.f32.mrb[0].mxu0
    %691 = vdwg.mxu0
    %s692 = scalar_lea.vmem %s2, 12
    %693 = vst [vmem:[%s692] sm:$0x3] %v689
    %v694 = vsel %vm105, %v689, 0.0
    %v695 = vrot.slane %v694, 4
    %v696 = vadd.f32 %v694, %v695
    %v697 = vrot.slane %v696, 2
    %v698 = vadd.f32 %v696, %v697
    %v699 = vrot.slane %v698, 1
    %v700 = vadd.f32 %v698, %v699
    %v701 = vadd.f32 %v603, %v700
    %v702 = vmul.f32 %v689, %v689
    %v703 = vsel %vm105, %v702, 0.0
    %v704 = vrot.slane %v703, 4
    %v705 = vadd.f32 %v703, %v704
    %v706 = vrot.slane %v705, 2
    %v707 = vadd.f32 %v705, %v706
    %v708 = vrot.slane %v707, 1
    %v709 = vadd.f32 %v707, %v708
    %v710 = vadd.f32 %v612, %v709
    %v711 = vld [vmem:[%s0] sm:$0x3]
    %s712 = scalar_lea.vmem [#allocation2], 224
    %v713 = vld [vmem:[%s712] sm:$0xff]
    %v714 = vld [vmem:[%s712 + $0x8] sm:$0xff]
    %v715 = vld [vmem:[%s712 + $0x10] sm:$0xff]
    %v716 = vld [vmem:[%s712 + $0x18] sm:$0xff]
    %v718 = vsel %vm30, %v711, 0
    %720 = vmatprep.subr.mxu0 0.0
    %721 = vmatpush1.msra.mxu0 %v713
    %722 = vmatprep.subr.mxu0 0.0
    %723 = vmatpush1.msra.mxu0 %v714
    %724 = vmatprep.subr.mxu0 0.0
    %725 = vmatpush1.msra.mxu0 %v715
    %726 = vmatprep.subr.mxu0 0.0
    %727 = vmatpush1.msra.mxu0 %v716
    %728 = vmatprep.subr.mxu0 0.0
    %729 = vmatpush1.msra.mxu0 0.0
    %730 = vmatprep.subr.mxu0 0.0
    %731 = vmatpush1.msra.mxu0 0.0
    %732 = vmatprep.subr.mxu0 0.0
    %733 = vmatpush1.msra.mxu0 0.0
    %734 = vmatprep.subr.mxu0 0.0
    %735 = vmatpush1.msra.mxu0 0.0
    %736 = vmatprep.subr.mxu0 0.0
    %737 = vmatpush1.msra.mxu0 0.0
    %738 = vmatprep.subr.mxu0 0.0
    %739 = vmatpush1.msra.mxu0 0.0
    %740 = vmatprep.subr.mxu0 0.0
    %741 = vmatpush1.msra.mxu0 0.0
    %742 = vmatprep.subr.mxu0 0.0
    %743 = vmatpush1.msra.mxu0 0.0
    %744 = vmatprep.subr.mxu0 0.0
    %745 = vmatpush1.msra.mxu0 0.0
    %746 = vmatprep.subr.mxu0 0.0
    %747 = vmatpush1.msra.mxu0 0.0
    %748 = vmatprep.subr.mxu0 0.0
    %749 = vmatpush1.msra.mxu0 0.0
    %750 = vmatprep.subr.mxu0 0.0
    %751 = vmatpush1.msra.mxu0 0.0
    %752 = vmatprep.subr.mxu0 0.0
    %753 = vmatpush1.msra.mxu0 0.0
    %754 = vmatprep.subr.mxu0 0.0
    %755 = vmatpush1.msra.mxu0 0.0
    %756 = vmatprep.subr.mxu0 0.0
    %757 = vmatpush1.msra.mxu0 0.0
    %758 = vmatprep.subr.mxu0 0.0
    %759 = vmatpush1.msra.mxu0 0.0
    %760 = vmatprep.subr.mxu0 0.0
    %761 = vmatpush1.msra.mxu0 0.0
    %762 = vmatprep.subr.mxu0 0.0
    %763 = vmatpush1.msra.mxu0 0.0
    %764 = vmatprep.subr.mxu0 0.0
    %765 = vmatpush1.msra.mxu0 0.0
    %766 = vmatprep.subr.mxu0 0.0
    %767 = vmatpush1.msra.mxu0 0.0
    %768 = vmatprep.subr.mxu0 0.0
    %769 = vmatpush1.msra.mxu0 0.0
    %770 = vmatprep.subr.mxu0 0.0
    %771 = vmatpush1.msra.mxu0 0.0
    %772 = vmatprep.subr.mxu0 0.0
    %773 = vmatpush1.msra.mxu0 0.0
    %774 = vmatprep.subr.mxu0 0.0
    %775 = vmatpush1.msra.mxu0 0.0
    %776 = vmatprep.subr.mxu0 0.0
    %777 = vmatpush1.msra.mxu0 0.0
    %778 = vmatprep.subr.mxu0 0.0
    %779 = vmatpush1.msra.mxu0 0.0
    %780 = vmatprep.subr.mxu0 0.0
    %781 = vmatpush1.msra.mxu0 0.0
    %782 = vmatprep.subr.mxu0 0.0
    %783 = vmatpush1.msra.mxu0 0.0
    %784 = vmatprep.mubr.f32.mxu0 0.0
    %785 = vmatmul.mubr.f32.gmra.mrb[0].mxu0 %v718
    %v786 = vpop.f32.mrb[0].mxu0
    %v787 = vadd.f32 0.0, %v786
    %v788 = vpop.f32.mrb[0].mxu0
    %789 = vdwg.mxu0
    %s790 = scalar_lea.vmem %s2, 14
    %791 = vst [vmem:[%s790] sm:$0x3] %v787
    %v792 = vsel %vm105, %v787, 0.0
    %v793 = vrot.slane %v792, 4
    %v794 = vadd.f32 %v792, %v793
    %v795 = vrot.slane %v794, 2
    %v796 = vadd.f32 %v794, %v795
    %v797 = vrot.slane %v796, 1
    %v798 = vadd.f32 %v796, %v797
    %v799 = vadd.f32 %v701, %v798
    %v800 = vmul.f32 %v787, %v787
    %v801 = vsel %vm105, %v800, 0.0
    %v802 = vrot.slane %v801, 4
    %v803 = vadd.f32 %v801, %v802
    %v804 = vrot.slane %v803, 2
    %v805 = vadd.f32 %v803, %v804
    %v806 = vrot.slane %v805, 1
    %v807 = vadd.f32 %v805, %v806
    %v808 = vadd.f32 %v710, %v807
    %v809 = vld [vmem:[%s0] sm:$0x3]
    %s810 = scalar_lea.vmem [#allocation2], 256
    %v811 = vld [vmem:[%s810] sm:$0xff]
    %v812 = vld [vmem:[%s810 + $0x8] sm:$0xff]
    %v813 = vld [vmem:[%s810 + $0x10] sm:$0xff]
    %v814 = vld [vmem:[%s810 + $0x18] sm:$0xff]
    %v816 = vsel %vm30, %v809, 0
    %818 = vmatprep.subr.mxu0 0.0
    %819 = vmatpush1.msra.mxu0 %v811
    %820 = vmatprep.subr.mxu0 0.0
    %821 = vmatpush1.msra.mxu0 %v812
    %822 = vmatprep.subr.mxu0 0.0
    %823 = vmatpush1.msra.mxu0 %v813
    %824 = vmatprep.subr.mxu0 0.0
    %825 = vmatpush1.msra.mxu0 %v814
    %826 = vmatprep.subr.mxu0 0.0
    %827 = vmatpush1.msra.mxu0 0.0
    %828 = vmatprep.subr.mxu0 0.0
    %829 = vmatpush1.msra.mxu0 0.0
    %830 = vmatprep.subr.mxu0 0.0
    %831 = vmatpush1.msra.mxu0 0.0
    %832 = vmatprep.subr.mxu0 0.0
    %833 = vmatpush1.msra.mxu0 0.0
    %834 = vmatprep.subr.mxu0 0.0
    %835 = vmatpush1.msra.mxu0 0.0
    %836 = vmatprep.subr.mxu0 0.0
    %837 = vmatpush1.msra.mxu0 0.0
    %838 = vmatprep.subr.mxu0 0.0
    %839 = vmatpush1.msra.mxu0 0.0
    %840 = vmatprep.subr.mxu0 0.0
    %841 = vmatpush1.msra.mxu0 0.0
    %842 = vmatprep.subr.mxu0 0.0
    %843 = vmatpush1.msra.mxu0 0.0
    %844 = vmatprep.subr.mxu0 0.0
    %845 = vmatpush1.msra.mxu0 0.0
    %846 = vmatprep.subr.mxu0 0.0
    %847 = vmatpush1.msra.mxu0 0.0
    %848 = vmatprep.subr.mxu0 0.0
    %849 = vmatpush1.msra.mxu0 0.0
    %850 = vmatprep.subr.mxu0 0.0
    %851 = vmatpush1.msra.mxu0 0.0
    %852 = vmatprep.subr.mxu0 0.0
    %853 = vmatpush1.msra.mxu0 0.0
    %854 = vmatprep.subr.mxu0 0.0
    %855 = vmatpush1.msra.mxu0 0.0
    %856 = vmatprep.subr.mxu0 0.0
    %857 = vmatpush1.msra.mxu0 0.0
    %858 = vmatprep.subr.mxu0 0.0
    %859 = vmatpush1.msra.mxu0 0.0
    %860 = vmatprep.subr.mxu0 0.0
    %861 = vmatpush1.msra.mxu0 0.0
    %862 = vmatprep.subr.mxu0 0.0
    %863 = vmatpush1.msra.mxu0 0.0
    %864 = vmatprep.subr.mxu0 0.0
    %865 = vmatpush1.msra.mxu0 0.0
    %866 = vmatprep.subr.mxu0 0.0
    %867 = vmatpush1.msra.mxu0 0.0
    %868 = vmatprep.subr.mxu0 0.0
    %869 = vmatpush1.msra.mxu0 0.0
    %870 = vmatprep.subr.mxu0 0.0
    %871 = vmatpush1.msra.mxu0 0.0
    %872 = vmatprep.subr.mxu0 0.0
    %873 = vmatpush1.msra.mxu0 0.0
    %874 = vmatprep.subr.mxu0 0.0
    %875 = vmatpush1.msra.mxu0 0.0
    %876 = vmatprep.subr.mxu0 0.0
    %877 = vmatpush1.msra.mxu0 0.0
    %878 = vmatprep.subr.mxu0 0.0
    %879 = vmatpush1.msra.mxu0 0.0
    %880 = vmatprep.subr.mxu0 0.0
    %881 = vmatpush1.msra.mxu0 0.0
    %882 = vmatprep.mubr.f32.mxu0 0.0
    %883 = vmatmul.mubr.f32.gmra.mrb[0].mxu0 %v816
    %v884 = vpop.f32.mrb[0].mxu0
    %v885 = vadd.f32 0.0, %v884
    %v886 = vpop.f32.mrb[0].mxu0
    %887 = vdwg.mxu0
    %s888 = scalar_lea.vmem %s2, 16
    %889 = vst [vmem:[%s888] sm:$0x3] %v885
    %v890 = vsel %vm105, %v885, 0.0
    %v891 = vrot.slane %v890, 4
    %v892 = vadd.f32 %v890, %v891
    %v893 = vrot.slane %v892, 2
    %v894 = vadd.f32 %v892, %v893
    %v895 = vrot.slane %v894, 1
    %v896 = vadd.f32 %v894, %v895
    %v897 = vadd.f32 %v799, %v896
    %v898 = vmul.f32 %v885, %v885
    %v899 = vsel %vm105, %v898, 0.0
    %v900 = vrot.slane %v899, 4
    %v901 = vadd.f32 %v899, %v900
    %v902 = vrot.slane %v901, 2
    %v903 = vadd.f32 %v901, %v902
    %v904 = vrot.slane %v903, 1
    %v905 = vadd.f32 %v903, %v904
    %v906 = vadd.f32 %v808, %v905
    %v907 = vld [vmem:[%s0] sm:$0x3]
    %s908 = scalar_lea.vmem [#allocation2], 288
    %v909 = vld [vmem:[%s908] sm:$0xff]
    %v910 = vld [vmem:[%s908 + $0x8] sm:$0xff]
    %v911 = vld [vmem:[%s908 + $0x10] sm:$0xff]
    %v912 = vld [vmem:[%s908 + $0x18] sm:$0xff]
    %v914 = vsel %vm30, %v907, 0
    %916 = vmatprep.subr.mxu0 0.0
    %917 = vmatpush1.msra.mxu0 %v909
    %918 = vmatprep.subr.mxu0 0.0
    %919 = vmatpush1.msra.mxu0 %v910
    %920 = vmatprep.subr.mxu0 0.0
    %921 = vmatpush1.msra.mxu0 %v911
    %922 = vmatprep.subr.mxu0 0.0
    %923 = vmatpush1.msra.mxu0 %v912
    %924 = vmatprep.subr.mxu0 0.0
    %925 = vmatpush1.msra.mxu0 0.0
    %926 = vmatprep.subr.mxu0 0.0
    %927 = vmatpush1.msra.mxu0 0.0
    %928 = vmatprep.subr.mxu0 0.0
    %929 = vmatpush1.msra.mxu0 0.0
    %930 = vmatprep.subr.mxu0 0.0
    %931 = vmatpush1.msra.mxu0 0.0
    %932 = vmatprep.subr.mxu0 0.0
    %933 = vmatpush1.msra.mxu0 0.0
    %934 = vmatprep.subr.mxu0 0.0
    %935 = vmatpush1.msra.mxu0 0.0
    %936 = vmatprep.subr.mxu0 0.0
    %937 = vmatpush1.msra.mxu0 0.0
    %938 = vmatprep.subr.mxu0 0.0
    %939 = vmatpush1.msra.mxu0 0.0
    %940 = vmatprep.subr.mxu0 0.0
    %941 = vmatpush1.msra.mxu0 0.0
    %942 = vmatprep.subr.mxu0 0.0
    %943 = vmatpush1.msra.mxu0 0.0
    %944 = vmatprep.subr.mxu0 0.0
    %945 = vmatpush1.msra.mxu0 0.0
    %946 = vmatprep.subr.mxu0 0.0
    %947 = vmatpush1.msra.mxu0 0.0
    %948 = vmatprep.subr.mxu0 0.0
    %949 = vmatpush1.msra.mxu0 0.0
    %950 = vmatprep.subr.mxu0 0.0
    %951 = vmatpush1.msra.mxu0 0.0
    %952 = vmatprep.subr.mxu0 0.0
    %953 = vmatpush1.msra.mxu0 0.0
    %954 = vmatprep.subr.mxu0 0.0
    %955 = vmatpush1.msra.mxu0 0.0
    %956 = vmatprep.subr.mxu0 0.0
    %957 = vmatpush1.msra.mxu0 0.0
    %958 = vmatprep.subr.mxu0 0.0
    %959 = vmatpush1.msra.mxu0 0.0
    %960 = vmatprep.subr.mxu0 0.0
    %961 = vmatpush1.msra.mxu0 0.0
    %962 = vmatprep.subr.mxu0 0.0
    %963 = vmatpush1.msra.mxu0 0.0
    %964 = vmatprep.subr.mxu0 0.0
    %965 = vmatpush1.msra.mxu0 0.0
    %966 = vmatprep.subr.mxu0 0.0
    %967 = vmatpush1.msra.mxu0 0.0
    %968 = vmatprep.subr.mxu0 0.0
    %969 = vmatpush1.msra.mxu0 0.0
    %970 = vmatprep.subr.mxu0 0.0
    %971 = vmatpush1.msra.mxu0 0.0
    %972 = vmatprep.subr.mxu0 0.0
    %973 = vmatpush1.msra.mxu0 0.0
    %974 = vmatprep.subr.mxu0 0.0
    %975 = vmatpush1.msra.mxu0 0.0
    %976 = vmatprep.subr.mxu0 0.0
    %977 = vmatpush1.msra.mxu0 0.0
    %978 = vmatprep.subr.mxu0 0.0
    %979 = vmatpush1.msra.mxu0 0.0
    %980 = vmatprep.mubr.f32.mxu0 0.0
    %981 = vmatmul.mubr.f32.gmra.mrb[0].mxu0 %v914
    %v982 = vpop.f32.mrb[0].mxu0
    %v983 = vadd.f32 0.0, %v982
    %v984 = vpop.f32.mrb[0].mxu0
    %985 = vdwg.mxu0
    %s986 = scalar_lea.vmem %s2, 18
    %987 = vst [vmem:[%s986] sm:$0x3] %v983
    %v988 = vsel %vm105, %v983, 0.0
    %v989 = vrot.slane %v988, 4
    %v990 = vadd.f32 %v988, %v989
    %v991 = vrot.slane %v990, 2
    %v992 = vadd.f32 %v990, %v991
    %v993 = vrot.slane %v992, 1
    %v994 = vadd.f32 %v992, %v993
    %v995 = vadd.f32 %v897, %v994
    %v996 = vmul.f32 %v983, %v983
    %v997 = vsel %vm105, %v996, 0.0
    %v998 = vrot.slane %v997, 4
    %v999 = vadd.f32 %v997, %v998
    %v1000 = vrot.slane %v999, 2
    %v1001 = vadd.f32 %v999, %v1000
    %v1002 = vrot.slane %v1001, 1
    %v1003 = vadd.f32 %v1001, %v1002
    %v1004 = vadd.f32 %v906, %v1003
    %v1005 = vld [vmem:[%s0] sm:$0x3]
    %s1006 = scalar_lea.vmem [#allocation2], 320
    %v1007 = vld [vmem:[%s1006] sm:$0xff]
    %v1008 = vld [vmem:[%s1006 + $0x8] sm:$0xff]
    %v1009 = vld [vmem:[%s1006 + $0x10] sm:$0xff]
    %v1010 = vld [vmem:[%s1006 + $0x18] sm:$0xff]
    %v1012 = vsel %vm30, %v1005, 0
    %1014 = vmatprep.subr.mxu0 0.0
    %1015 = vmatpush1.msra.mxu0 %v1007
    %1016 = vmatprep.subr.mxu0 0.0
    %1017 = vmatpush1.msra.mxu0 %v1008
    %1018 = vmatprep.subr.mxu0 0.0
    %1019 = vmatpush1.msra.mxu0 %v1009
    %1020 = vmatprep.subr.mxu0 0.0
    %1021 = vmatpush1.msra.mxu0 %v1010
    %1022 = vmatprep.subr.mxu0 0.0
    %1023 = vmatpush1.msra.mxu0 0.0
    %1024 = vmatprep.subr.mxu0 0.0
    %1025 = vmatpush1.msra.mxu0 0.0
    %1026 = vmatprep.subr.mxu0 0.0
    %1027 = vmatpush1.msra.mxu0 0.0
    %1028 = vmatprep.subr.mxu0 0.0
    %1029 = vmatpush1.msra.mxu0 0.0
    %1030 = vmatprep.subr.mxu0 0.0
    %1031 = vmatpush1.msra.mxu0 0.0
    %1032 = vmatprep.subr.mxu0 0.0
    %1033 = vmatpush1.msra.mxu0 0.0
    %1034 = vmatprep.subr.mxu0 0.0
    %1035 = vmatpush1.msra.mxu0 0.0
    %1036 = vmatprep.subr.mxu0 0.0
    %1037 = vmatpush1.msra.mxu0 0.0
    %1038 = vmatprep.subr.mxu0 0.0
    %1039 = vmatpush1.msra.mxu0 0.0
    %1040 = vmatprep.subr.mxu0 0.0
    %1041 = vmatpush1.msra.mxu0 0.0
    %1042 = vmatprep.subr.mxu0 0.0
    %1043 = vmatpush1.msra.mxu0 0.0
    %1044 = vmatprep.subr.mxu0 0.0
    %1045 = vmatpush1.msra.mxu0 0.0
    %1046 = vmatprep.subr.mxu0 0.0
    %1047 = vmatpush1.msra.mxu0 0.0
    %1048 = vmatprep.subr.mxu0 0.0
    %1049 = vmatpush1.msra.mxu0 0.0
    %1050 = vmatprep.subr.mxu0 0.0
    %1051 = vmatpush1.msra.mxu0 0.0
    %1052 = vmatprep.subr.mxu0 0.0
    %1053 = vmatpush1.msra.mxu0 0.0
    %1054 = vmatprep.subr.mxu0 0.0
    %1055 = vmatpush1.msra.mxu0 0.0
    %1056 = vmatprep.subr.mxu0 0.0
    %1057 = vmatpush1.msra.mxu0 0.0
    %1058 = vmatprep.subr.mxu0 0.0
    %1059 = vmatpush1.msra.mxu0 0.0
    %1060 = vmatprep.subr.mxu0 0.0
    %1061 = vmatpush1.msra.mxu0 0.0
    %1062 = vmatprep.subr.mxu0 0.0
    %1063 = vmatpush1.msra.mxu0 0.0
    %1064 = vmatprep.subr.mxu0 0.0
    %1065 = vmatpush1.msra.mxu0 0.0
    %1066 = vmatprep.subr.mxu0 0.0
    %1067 = vmatpush1.msra.mxu0 0.0
    %1068 = vmatprep.subr.mxu0 0.0
    %1069 = vmatpush1.msra.mxu0 0.0
    %1070 = vmatprep.subr.mxu0 0.0
    %1071 = vmatpush1.msra.mxu0 0.0
    %1072 = vmatprep.subr.mxu0 0.0
    %1073 = vmatpush1.msra.mxu0 0.0
    %1074 = vmatprep.subr.mxu0 0.0
    %1075 = vmatpush1.msra.mxu0 0.0
    %1076 = vmatprep.subr.mxu0 0.0
    %1077 = vmatpush1.msra.mxu0 0.0
    %1078 = vmatprep.mubr.f32.mxu0 0.0
    %1079 = vmatmul.mubr.f32.gmra.mrb[0].mxu0 %v1012
    %v1080 = vpop.f32.mrb[0].mxu0
    %v1081 = vadd.f32 0.0, %v1080
    %v1082 = vpop.f32.mrb[0].mxu0
    %1083 = vdwg.mxu0
    %s1084 = scalar_lea.vmem %s2, 20
    %1085 = vst [vmem:[%s1084] sm:$0x3] %v1081
    %v1086 = vsel %vm105, %v1081, 0.0
    %v1087 = vrot.slane %v1086, 4
    %v1088 = vadd.f32 %v1086, %v1087
    %v1089 = vrot.slane %v1088, 2
    %v1090 = vadd.f32 %v1088, %v1089
    %v1091 = vrot.slane %v1090, 1
    %v1092 = vadd.f32 %v1090, %v1091
    %v1093 = vadd.f32 %v995, %v1092
    %v1094 = vmul.f32 %v1081, %v1081
    %v1095 = vsel %vm105, %v1094, 0.0
    %v1096 = vrot.slane %v1095, 4
    %v1097 = vadd.f32 %v1095, %v1096
    %v1098 = vrot.slane %v1097, 2
    %v1099 = vadd.f32 %v1097, %v1098
    %v1100 = vrot.slane %v1099, 1
    %v1101 = vadd.f32 %v1099, %v1100
    %v1102 = vadd.f32 %v1004, %v1101
    %v1103 = vld [vmem:[%s0] sm:$0x3]
    %s1104 = scalar_lea.vmem [#allocation2], 352
    %v1105 = vld [vmem:[%s1104] sm:$0xff]
    %v1106 = vld [vmem:[%s1104 + $0x8] sm:$0xff]
    %v1107 = vld [vmem:[%s1104 + $0x10] sm:$0xff]
    %v1108 = vld [vmem:[%s1104 + $0x18] sm:$0xff]
    %v1110 = vsel %vm30, %v1103, 0
    %1112 = vmatprep.subr.mxu0 0.0
    %1113 = vmatpush1.msra.mxu0 %v1105
    %1114 = vmatprep.subr.mxu0 0.0
    %1115 = vmatpush1.msra.mxu0 %v1106
    %1116 = vmatprep.subr.mxu0 0.0
    %1117 = vmatpush1.msra.mxu0 %v1107
    %1118 = vmatprep.subr.mxu0 0.0
    %1119 = vmatpush1.msra.mxu0 %v1108
    %1120 = vmatprep.subr.mxu0 0.0
    %1121 = vmatpush1.msra.mxu0 0.0
    %1122 = vmatprep.subr.mxu0 0.0
    %1123 = vmatpush1.msra.mxu0 0.0
    %1124 = vmatprep.subr.mxu0 0.0
    %1125 = vmatpush1.msra.mxu0 0.0
    %1126 = vmatprep.subr.mxu0 0.0
    %1127 = vmatpush1.msra.mxu0 0.0
    %1128 = vmatprep.subr.mxu0 0.0
    %1129 = vmatpush1.msra.mxu0 0.0
    %1130 = vmatprep.subr.mxu0 0.0
    %1131 = vmatpush1.msra.mxu0 0.0
    %1132 = vmatprep.subr.mxu0 0.0
    %1133 = vmatpush1.msra.mxu0 0.0
    %1134 = vmatprep.subr.mxu0 0.0
    %1135 = vmatpush1.msra.mxu0 0.0
    %1136 = vmatprep.subr.mxu0 0.0
    %1137 = vmatpush1.msra.mxu0 0.0
    %1138 = vmatprep.subr.mxu0 0.0
    %1139 = vmatpush1.msra.mxu0 0.0
    %1140 = vmatprep.subr.mxu0 0.0
    %1141 = vmatpush1.msra.mxu0 0.0
    %1142 = vmatprep.subr.mxu0 0.0
    %1143 = vmatpush1.msra.mxu0 0.0
    %1144 = vmatprep.subr.mxu0 0.0
    %1145 = vmatpush1.msra.mxu0 0.0
    %1146 = vmatprep.subr.mxu0 0.0
    %1147 = vmatpush1.msra.mxu0 0.0
    %1148 = vmatprep.subr.mxu0 0.0
    %1149 = vmatpush1.msra.mxu0 0.0
    %1150 = vmatprep.subr.mxu0 0.0
    %1151 = vmatpush1.msra.mxu0 0.0
    %1152 = vmatprep.subr.mxu0 0.0
    %1153 = vmatpush1.msra.mxu0 0.0
    %1154 = vmatprep.subr.mxu0 0.0
    %1155 = vmatpush1.msra.mxu0 0.0
    %1156 = vmatprep.subr.mxu0 0.0
    %1157 = vmatpush1.msra.mxu0 0.0
    %1158 = vmatprep.subr.mxu0 0.0
    %1159 = vmatpush1.msra.mxu0 0.0
    %1160 = vmatprep.subr.mxu0 0.0
    %1161 = vmatpush1.msra.mxu0 0.0
    %1162 = vmatprep.subr.mxu0 0.0
    %1163 = vmatpush1.msra.mxu0 0.0
    %1164 = vmatprep.subr.mxu0 0.0
    %1165 = vmatpush1.msra.mxu0 0.0
    %1166 = vmatprep.subr.mxu0 0.0
    %1167 = vmatpush1.msra.mxu0 0.0
    %1168 = vmatprep.subr.mxu0 0.0
    %1169 = vmatpush1.msra.mxu0 0.0
    %1170 = vmatprep.subr.mxu0 0.0
    %1171 = vmatpush1.msra.mxu0 0.0
    %1172 = vmatprep.subr.mxu0 0.0
    %1173 = vmatpush1.msra.mxu0 0.0
    %1174 = vmatprep.subr.mxu0 0.0
    %1175 = vmatpush1.msra.mxu0 0.0
    %1176 = vmatprep.mubr.f32.mxu0 0.0
    %1177 = vmatmul.mubr.f32.gmra.mrb[0].mxu0 %v1110
    %v1178 = vpop.f32.mrb[0].mxu0
    %v1179 = vadd.f32 0.0, %v1178
    %v1180 = vpop.f32.mrb[0].mxu0
    %1181 = vdwg.mxu0
    %s1182 = scalar_lea.vmem %s2, 22
    %1183 = vst [vmem:[%s1182] sm:$0x3] %v1179
    %v1184 = vsel %vm105, %v1179, 0.0
    %v1185 = vrot.slane %v1184, 4
    %v1186 = vadd.f32 %v1184, %v1185
    %v1187 = vrot.slane %v1186, 2
    %v1188 = vadd.f32 %v1186, %v1187
    %v1189 = vrot.slane %v1188, 1
    %v1190 = vadd.f32 %v1188, %v1189
    %v1191 = vadd.f32 %v1093, %v1190
    %v1192 = vmul.f32 %v1179, %v1179
    %v1193 = vsel %vm105, %v1192, 0.0
    %v1194 = vrot.slane %v1193, 4
    %v1195 = vadd.f32 %v1193, %v1194
    %v1196 = vrot.slane %v1195, 2
    %v1197 = vadd.f32 %v1195, %v1196
    %v1198 = vrot.slane %v1197, 1
    %v1199 = vadd.f32 %v1197, %v1198
    %v1200 = vadd.f32 %v1102, %v1199
    %v1201 = vld [vmem:[%s0] sm:$0x3]
    %s1202 = scalar_lea.vmem [#allocation2], 384
    %v1203 = vld [vmem:[%s1202] sm:$0xff]
    %v1204 = vld [vmem:[%s1202 + $0x8] sm:$0xff]
    %v1205 = vld [vmem:[%s1202 + $0x10] sm:$0xff]
    %v1206 = vld [vmem:[%s1202 + $0x18] sm:$0xff]
    %v1208 = vsel %vm30, %v1201, 0
    %1210 = vmatprep.subr.mxu0 0.0
    %1211 = vmatpush1.msra.mxu0 %v1203
    %1212 = vmatprep.subr.mxu0 0.0
    %1213 = vmatpush1.msra.mxu0 %v1204
    %1214 = vmatprep.subr.mxu0 0.0
    %1215 = vmatpush1.msra.mxu0 %v1205
    %1216 = vmatprep.subr.mxu0 0.0
    %1217 = vmatpush1.msra.mxu0 %v1206
    %1218 = vmatprep.subr.mxu0 0.0
    %1219 = vmatpush1.msra.mxu0 0.0
    %1220 = vmatprep.subr.mxu0 0.0
    %1221 = vmatpush1.msra.mxu0 0.0
    %1222 = vmatprep.subr.mxu0 0.0
    %1223 = vmatpush1.msra.mxu0 0.0
    %1224 = vmatprep.subr.mxu0 0.0
    %1225 = vmatpush1.msra.mxu0 0.0
    %1226 = vmatprep.subr.mxu0 0.0
    %1227 = vmatpush1.msra.mxu0 0.0
    %1228 = vmatprep.subr.mxu0 0.0
    %1229 = vmatpush1.msra.mxu0 0.0
    %1230 = vmatprep.subr.mxu0 0.0
    %1231 = vmatpush1.msra.mxu0 0.0
    %1232 = vmatprep.subr.mxu0 0.0
    %1233 = vmatpush1.msra.mxu0 0.0
    %1234 = vmatprep.subr.mxu0 0.0
    %1235 = vmatpush1.msra.mxu0 0.0
    %1236 = vmatprep.subr.mxu0 0.0
    %1237 = vmatpush1.msra.mxu0 0.0
    %1238 = vmatprep.subr.mxu0 0.0
    %1239 = vmatpush1.msra.mxu0 0.0
    %1240 = vmatprep.subr.mxu0 0.0
    %1241 = vmatpush1.msra.mxu0 0.0
    %1242 = vmatprep.subr.mxu0 0.0
    %1243 = vmatpush1.msra.mxu0 0.0
    %1244 = vmatprep.subr.mxu0 0.0
    %1245 = vmatpush1.msra.mxu0 0.0
    %1246 = vmatprep.subr.mxu0 0.0
    %1247 = vmatpush1.msra.mxu0 0.0
    %1248 = vmatprep.subr.mxu0 0.0
    %1249 = vmatpush1.msra.mxu0 0.0
    %1250 = vmatprep.subr.mxu0 0.0
    %1251 = vmatpush1.msra.mxu0 0.0
    %1252 = vmatprep.subr.mxu0 0.0
    %1253 = vmatpush1.msra.mxu0 0.0
    %1254 = vmatprep.subr.mxu0 0.0
    %1255 = vmatpush1.msra.mxu0 0.0
    %1256 = vmatprep.subr.mxu0 0.0
    %1257 = vmatpush1.msra.mxu0 0.0
    %1258 = vmatprep.subr.mxu0 0.0
    %1259 = vmatpush1.msra.mxu0 0.0
    %1260 = vmatprep.subr.mxu0 0.0
    %1261 = vmatpush1.msra.mxu0 0.0
    %1262 = vmatprep.subr.mxu0 0.0
    %1263 = vmatpush1.msra.mxu0 0.0
    %1264 = vmatprep.subr.mxu0 0.0
    %1265 = vmatpush1.msra.mxu0 0.0
    %1266 = vmatprep.subr.mxu0 0.0
    %1267 = vmatpush1.msra.mxu0 0.0
    %1268 = vmatprep.subr.mxu0 0.0
    %1269 = vmatpush1.msra.mxu0 0.0
    %1270 = vmatprep.subr.mxu0 0.0
    %1271 = vmatpush1.msra.mxu0 0.0
    %1272 = vmatprep.subr.mxu0 0.0
    %1273 = vmatpush1.msra.mxu0 0.0
    %1274 = vmatprep.mubr.f32.mxu0 0.0
    %1275 = vmatmul.mubr.f32.gmra.mrb[0].mxu0 %v1208
    %v1276 = vpop.f32.mrb[0].mxu0
    %v1277 = vadd.f32 0.0, %v1276
    %v1278 = vpop.f32.mrb[0].mxu0
    %1279 = vdwg.mxu0
    %s1280 = scalar_lea.vmem %s2, 24
    %1281 = vst [vmem:[%s1280] sm:$0x3] %v1277
    %v1282 = vsel %vm105, %v1277, 0.0
    %v1283 = vrot.slane %v1282, 4
    %v1284 = vadd.f32 %v1282, %v1283
    %v1285 = vrot.slane %v1284, 2
    %v1286 = vadd.f32 %v1284, %v1285
    %v1287 = vrot.slane %v1286, 1
    %v1288 = vadd.f32 %v1286, %v1287
    %v1289 = vadd.f32 %v1191, %v1288
    %v1290 = vmul.f32 %v1277, %v1277
    %v1291 = vsel %vm105, %v1290, 0.0
    %v1292 = vrot.slane %v1291, 4
    %v1293 = vadd.f32 %v1291, %v1292
    %v1294 = vrot.slane %v1293, 2
    %v1295 = vadd.f32 %v1293, %v1294
    %v1296 = vrot.slane %v1295, 1
    %v1297 = vadd.f32 %v1295, %v1296
    %v1298 = vadd.f32 %v1200, %v1297
    %v1299 = vld [vmem:[%s0] sm:$0x3]
    %s1300 = scalar_lea.vmem [#allocation2], 416
    %v1301 = vld [vmem:[%s1300] sm:$0xff]
    %v1302 = vld [vmem:[%s1300 + $0x8] sm:$0xff]
    %v1303 = vld [vmem:[%s1300 + $0x10] sm:$0xff]
    %v1304 = vld [vmem:[%s1300 + $0x18] sm:$0xff]
    %v1306 = vsel %vm30, %v1299, 0
    %1308 = vmatprep.subr.mxu0 0.0
    %1309 = vmatpush1.msra.mxu0 %v1301
    %1310 = vmatprep.subr.mxu0 0.0
    %1311 = vmatpush1.msra.mxu0 %v1302
    %1312 = vmatprep.subr.mxu0 0.0
    %1313 = vmatpush1.msra.mxu0 %v1303
    %1314 = vmatprep.subr.mxu0 0.0
    %1315 = vmatpush1.msra.mxu0 %v1304
    %1316 = vmatprep.subr.mxu0 0.0
    %1317 = vmatpush1.msra.mxu0 0.0
    %1318 = vmatprep.subr.mxu0 0.0
    %1319 = vmatpush1.msra.mxu0 0.0
    %1320 = vmatprep.subr.mxu0 0.0
    %1321 = vmatpush1.msra.mxu0 0.0
    %1322 = vmatprep.subr.mxu0 0.0
    %1323 = vmatpush1.msra.mxu0 0.0
    %1324 = vmatprep.subr.mxu0 0.0
    %1325 = vmatpush1.msra.mxu0 0.0
    %1326 = vmatprep.subr.mxu0 0.0
    %1327 = vmatpush1.msra.mxu0 0.0
    %1328 = vmatprep.subr.mxu0 0.0
    %1329 = vmatpush1.msra.mxu0 0.0
    %1330 = vmatprep.subr.mxu0 0.0
    %1331 = vmatpush1.msra.mxu0 0.0
    %1332 = vmatprep.subr.mxu0 0.0
    %1333 = vmatpush1.msra.mxu0 0.0
    %1334 = vmatprep.subr.mxu0 0.0
    %1335 = vmatpush1.msra.mxu0 0.0
    %1336 = vmatprep.subr.mxu0 0.0
    %1337 = vmatpush1.msra.mxu0 0.0
    %1338 = vmatprep.subr.mxu0 0.0
    %1339 = vmatpush1.msra.mxu0 0.0
    %1340 = vmatprep.subr.mxu0 0.0
    %1341 = vmatpush1.msra.mxu0 0.0
    %1342 = vmatprep.subr.mxu0 0.0
    %1343 = vmatpush1.msra.mxu0 0.0
    %1344 = vmatprep.subr.mxu0 0.0
    %1345 = vmatpush1.msra.mxu0 0.0
    %1346 = vmatprep.subr.mxu0 0.0
    %1347 = vmatpush1.msra.mxu0 0.0
    %1348 = vmatprep.subr.mxu0 0.0
    %1349 = vmatpush1.msra.mxu0 0.0
    %1350 = vmatprep.subr.mxu0 0.0
    %1351 = vmatpush1.msra.mxu0 0.0
    %1352 = vmatprep.subr.mxu0 0.0
    %1353 = vmatpush1.msra.mxu0 0.0
    %1354 = vmatprep.subr.mxu0 0.0
    %1355 = vmatpush1.msra.mxu0 0.0
    %1356 = vmatprep.subr.mxu0 0.0
    %1357 = vmatpush1.msra.mxu0 0.0
    %1358 = vmatprep.subr.mxu0 0.0
    %1359 = vmatpush1.msra.mxu0 0.0
    %1360 = vmatprep.subr.mxu0 0.0
    %1361 = vmatpush1.msra.mxu0 0.0
    %1362 = vmatprep.subr.mxu0 0.0
    %1363 = vmatpush1.msra.mxu0 0.0
    %1364 = vmatprep.subr.mxu0 0.0
    %1365 = vmatpush1.msra.mxu0 0.0
    %1366 = vmatprep.subr.mxu0 0.0
    %1367 = vmatpush1.msra.mxu0 0.0
    %1368 = vmatprep.subr.mxu0 0.0
    %1369 = vmatpush1.msra.mxu0 0.0
    %1370 = vmatprep.subr.mxu0 0.0
    %1371 = vmatpush1.msra.mxu0 0.0
    %1372 = vmatprep.mubr.f32.mxu0 0.0
    %1373 = vmatmul.mubr.f32.gmra.mrb[0].mxu0 %v1306
    %v1374 = vpop.f32.mrb[0].mxu0
    %v1375 = vadd.f32 0.0, %v1374
    %v1376 = vpop.f32.mrb[0].mxu0
    %1377 = vdwg.mxu0
    %s1378 = scalar_lea.vmem %s2, 26
    %1379 = vst [vmem:[%s1378] sm:$0x3] %v1375
    %v1380 = vsel %vm105, %v1375, 0.0
    %v1381 = vrot.slane %v1380, 4
    %v1382 = vadd.f32 %v1380, %v1381
    %v1383 = vrot.slane %v1382, 2
    %v1384 = vadd.f32 %v1382, %v1383
    %v1385 = vrot.slane %v1384, 1
    %v1386 = vadd.f32 %v1384, %v1385
    %v1387 = vadd.f32 %v1289, %v1386
    %v1388 = vmul.f32 %v1375, %v1375
    %v1389 = vsel %vm105, %v1388, 0.0
    %v1390 = vrot.slane %v1389, 4
    %v1391 = vadd.f32 %v1389, %v1390
    %v1392 = vrot.slane %v1391, 2
    %v1393 = vadd.f32 %v1391, %v1392
    %v1394 = vrot.slane %v1393, 1
    %v1395 = vadd.f32 %v1393, %v1394
    %v1396 = vadd.f32 %v1298, %v1395
    %v1397 = vld [vmem:[%s0] sm:$0x3]
    %s1398 = scalar_lea.vmem [#allocation2], 448
    %v1399 = vld [vmem:[%s1398] sm:$0xff]
    %v1400 = vld [vmem:[%s1398 + $0x8] sm:$0xff]
    %v1401 = vld [vmem:[%s1398 + $0x10] sm:$0xff]
    %v1402 = vld [vmem:[%s1398 + $0x18] sm:$0xff]
    %v1404 = vsel %vm30, %v1397, 0
    %1406 = vmatprep.subr.mxu0 0.0
    %1407 = vmatpush1.msra.mxu0 %v1399
    %1408 = vmatprep.subr.mxu0 0.0
    %1409 = vmatpush1.msra.mxu0 %v1400
    %1410 = vmatprep.subr.mxu0 0.0
    %1411 = vmatpush1.msra.mxu0 %v1401
    %1412 = vmatprep.subr.mxu0 0.0
    %1413 = vmatpush1.msra.mxu0 %v1402
    %1414 = vmatprep.subr.mxu0 0.0
    %1415 = vmatpush1.msra.mxu0 0.0
    %1416 = vmatprep.subr.mxu0 0.0
    %1417 = vmatpush1.msra.mxu0 0.0
    %1418 = vmatprep.subr.mxu0 0.0
    %1419 = vmatpush1.msra.mxu0 0.0
    %1420 = vmatprep.subr.mxu0 0.0
    %1421 = vmatpush1.msra.mxu0 0.0
    %1422 = vmatprep.subr.mxu0 0.0
    %1423 = vmatpush1.msra.mxu0 0.0
    %1424 = vmatprep.subr.mxu0 0.0
    %1425 = vmatpush1.msra.mxu0 0.0
    %1426 = vmatprep.subr.mxu0 0.0
    %1427 = vmatpush1.msra.mxu0 0.0
    %1428 = vmatprep.subr.mxu0 0.0
    %1429 = vmatpush1.msra.mxu0 0.0
    %1430 = vmatprep.subr.mxu0 0.0
    %1431 = vmatpush1.msra.mxu0 0.0
    %1432 = vmatprep.subr.mxu0 0.0
    %1433 = vmatpush1.msra.mxu0 0.0
    %1434 = vmatprep.subr.mxu0 0.0
    %1435 = vmatpush1.msra.mxu0 0.0
    %1436 = vmatprep.subr.mxu0 0.0
    %1437 = vmatpush1.msra.mxu0 0.0
    %1438 = vmatprep.subr.mxu0 0.0
    %1439 = vmatpush1.msra.mxu0 0.0
    %1440 = vmatprep.subr.mxu0 0.0
    %1441 = vmatpush1.msra.mxu0 0.0
    %1442 = vmatprep.subr.mxu0 0.0
    %1443 = vmatpush1.msra.mxu0 0.0
    %1444 = vmatprep.subr.mxu0 0.0
    %1445 = vmatpush1.msra.mxu0 0.0
    %1446 = vmatprep.subr.mxu0 0.0
    %1447 = vmatpush1.msra.mxu0 0.0
    %1448 = vmatprep.subr.mxu0 0.0
    %1449 = vmatpush1.msra.mxu0 0.0
    %1450 = vmatprep.subr.mxu0 0.0
    %1451 = vmatpush1.msra.mxu0 0.0
    %1452 = vmatprep.subr.mxu0 0.0
    %1453 = vmatpush1.msra.mxu0 0.0
    %1454 = vmatprep.subr.mxu0 0.0
    %1455 = vmatpush1.msra.mxu0 0.0
    %1456 = vmatprep.subr.mxu0 0.0
    %1457 = vmatpush1.msra.mxu0 0.0
    %1458 = vmatprep.subr.mxu0 0.0
    %1459 = vmatpush1.msra.mxu0 0.0
    %1460 = vmatprep.subr.mxu0 0.0
    %1461 = vmatpush1.msra.mxu0 0.0
    %1462 = vmatprep.subr.mxu0 0.0
    %1463 = vmatpush1.msra.mxu0 0.0
    %1464 = vmatprep.subr.mxu0 0.0
    %1465 = vmatpush1.msra.mxu0 0.0
    %1466 = vmatprep.subr.mxu0 0.0
    %1467 = vmatpush1.msra.mxu0 0.0
    %1468 = vmatprep.subr.mxu0 0.0
    %1469 = vmatpush1.msra.mxu0 0.0
    %1470 = vmatprep.mubr.f32.mxu0 0.0
    %1471 = vmatmul.mubr.f32.gmra.mrb[0].mxu0 %v1404
    %v1472 = vpop.f32.mrb[0].mxu0
    %v1473 = vadd.f32 0.0, %v1472
    %v1474 = vpop.f32.mrb[0].mxu0
    %1475 = vdwg.mxu0
    %s1476 = scalar_lea.vmem %s2, 28
    %1477 = vst [vmem:[%s1476] sm:$0x3] %v1473
    %v1478 = vsel %vm105, %v1473, 0.0
    %v1479 = vrot.slane %v1478, 4
    %v1480 = vadd.f32 %v1478, %v1479
    %v1481 = vrot.slane %v1480, 2
    %v1482 = vadd.f32 %v1480, %v1481
    %v1483 = vrot.slane %v1482, 1
    %v1484 = vadd.f32 %v1482, %v1483
    %v1485 = vadd.f32 %v1387, %v1484
    %v1486 = vmul.f32 %v1473, %v1473
    %v1487 = vsel %vm105, %v1486, 0.0
    %v1488 = vrot.slane %v1487, 4
    %v1489 = vadd.f32 %v1487, %v1488
    %v1490 = vrot.slane %v1489, 2
    %v1491 = vadd.f32 %v1489, %v1490
    %v1492 = vrot.slane %v1491, 1
    %v1493 = vadd.f32 %v1491, %v1492
    %v1494 = vadd.f32 %v1396, %v1493
    %v1495 = vld [vmem:[%s0] sm:$0x3]
    %s1496 = scalar_lea.vmem [#allocation2], 480
    %v1497 = vld [vmem:[%s1496] sm:$0xff]
    %v1498 = vld [vmem:[%s1496 + $0x8] sm:$0xff]
    %v1499 = vld [vmem:[%s1496 + $0x10] sm:$0xff]
    %v1500 = vld [vmem:[%s1496 + $0x18] sm:$0xff]
    %v1502 = vsel %vm30, %v1495, 0
    %1504 = vmatprep.subr.mxu0 0.0
    %1505 = vmatpush1.msra.mxu0 %v1497
    %1506 = vmatprep.subr.mxu0 0.0
    %1507 = vmatpush1.msra.mxu0 %v1498
    %1508 = vmatprep.subr.mxu0 0.0
    %1509 = vmatpush1.msra.mxu0 %v1499
    %1510 = vmatprep.subr.mxu0 0.0
    %1511 = vmatpush1.msra.mxu0 %v1500
    %1512 = vmatprep.subr.mxu0 0.0
    %1513 = vmatpush1.msra.mxu0 0.0
    %1514 = vmatprep.subr.mxu0 0.0
    %1515 = vmatpush1.msra.mxu0 0.0
    %1516 = vmatprep.subr.mxu0 0.0
    %1517 = vmatpush1.msra.mxu0 0.0
    %1518 = vmatprep.subr.mxu0 0.0
    %1519 = vmatpush1.msra.mxu0 0.0
    %1520 = vmatprep.subr.mxu0 0.0
    %1521 = vmatpush1.msra.mxu0 0.0
    %1522 = vmatprep.subr.mxu0 0.0
    %1523 = vmatpush1.msra.mxu0 0.0
    %1524 = vmatprep.subr.mxu0 0.0
    %1525 = vmatpush1.msra.mxu0 0.0
    %1526 = vmatprep.subr.mxu0 0.0
    %1527 = vmatpush1.msra.mxu0 0.0
    %1528 = vmatprep.subr.mxu0 0.0
    %1529 = vmatpush1.msra.mxu0 0.0
    %1530 = vmatprep.subr.mxu0 0.0
    %1531 = vmatpush1.msra.mxu0 0.0
    %1532 = vmatprep.subr.mxu0 0.0
    %1533 = vmatpush1.msra.mxu0 0.0
    %1534 = vmatprep.subr.mxu0 0.0
    %1535 = vmatpush1.msra.mxu0 0.0
    %1536 = vmatprep.subr.mxu0 0.0
    %1537 = vmatpush1.msra.mxu0 0.0
    %1538 = vmatprep.subr.mxu0 0.0
    %1539 = vmatpush1.msra.mxu0 0.0
    %1540 = vmatprep.subr.mxu0 0.0
    %1541 = vmatpush1.msra.mxu0 0.0
    %1542 = vmatprep.subr.mxu0 0.0
    %1543 = vmatpush1.msra.mxu0 0.0
    %1544 = vmatprep.subr.mxu0 0.0
    %1545 = vmatpush1.msra.mxu0 0.0
    %1546 = vmatprep.subr.mxu0 0.0
    %1547 = vmatpush1.msra.mxu0 0.0
    %1548 = vmatprep.subr.mxu0 0.0
    %1549 = vmatpush1.msra.mxu0 0.0
    %1550 = vmatprep.subr.mxu0 0.0
    %1551 = vmatpush1.msra.mxu0 0.0
    %1552 = vmatprep.subr.mxu0 0.0
    %1553 = vmatpush1.msra.mxu0 0.0
    %1554 = vmatprep.subr.mxu0 0.0
    %1555 = vmatpush1.msra.mxu0 0.0
    %1556 = vmatprep.subr.mxu0 0.0
    %1557 = vmatpush1.msra.mxu0 0.0
    %1558 = vmatprep.subr.mxu0 0.0
    %1559 = vmatpush1.msra.mxu0 0.0
    %1560 = vmatprep.subr.mxu0 0.0
    %1561 = vmatpush1.msra.mxu0 0.0
    %1562 = vmatprep.subr.mxu0 0.0
    %1563 = vmatpush1.msra.mxu0 0.0
    %1564 = vmatprep.subr.mxu0 0.0
    %1565 = vmatpush1.msra.mxu0 0.0
    %1566 = vmatprep.subr.mxu0 0.0
    %1567 = vmatpush1.msra.mxu0 0.0
    %1568 = vmatprep.mubr.f32.mxu0 0.0
    %1569 = vmatmul.mubr.f32.gmra.mrb[0].mxu0 %v1502
    %v1570 = vpop.f32.mrb[0].mxu0
    %v1571 = vadd.f32 0.0, %v1570
    %v1572 = vpop.f32.mrb[0].mxu0
    %1573 = vdwg.mxu0
    %s1574 = scalar_lea.vmem %s2, 30
    %1575 = vst [vmem:[%s1574] sm:$0x3] %v1571
    %v1576 = vsel %vm105, %v1571, 0.0
    %v1577 = vrot.slane %v1576, 4
    %v1578 = vadd.f32 %v1576, %v1577
    %v1579 = vrot.slane %v1578, 2
    %v1580 = vadd.f32 %v1578, %v1579
    %v1581 = vrot.slane %v1580, 1
    %v1582 = vadd.f32 %v1580, %v1581
    %v1583 = vadd.f32 %v1485, %v1582
    %v1584 = vmul.f32 %v1571, %v1571
    %v1585 = vsel %vm105, %v1584, 0.0
    %v1586 = vrot.slane %v1585, 4
    %v1587 = vadd.f32 %v1585, %v1586
    %v1588 = vrot.slane %v1587, 2
    %v1589 = vadd.f32 %v1587, %v1588
    %v1590 = vrot.slane %v1589, 1
    %v1591 = vadd.f32 %v1589, %v1590
    %v1592 = vadd.f32 %v1494, %v1591
    %v1593 = vrcp.pop 32.0
    %v1594 = vmul.f32 %v1583, %v1593
    %v1595 = vmul.f32 %v1592, %v1593
    %v1596 = vmul.f32 %v1594, %v1594
    %v1597 = vsub.f32 %v1595, %v1596
    %v1598 = vadd.f32 %v1597, 1e-05
    %v1599 = vrsqrt.pop %v1598
    %v1600 = vsub.f32 0.0, %v1594
    %v1601 = vmul.f32 %v1600, %v1599
    %v1602 = vld [vmem:[%s2] sm:$0x3]
    %v1603 = vmul.f32 %v1602, %v1599
    %v1604 = vadd.f32 %v1603, %v1601
    %v1605 = vmax.f32 %v1604, 0.0
    %1606 = vst [vmem:[%s2] sm:$0x3] %v1605
    %v1607 = vld [vmem:[%s202] sm:$0x3]
    %v1608 = vmul.f32 %v1607, %v1599
    %v1609 = vadd.f32 %v1608, %v1601
    %v1610 = vmax.f32 %v1609, 0.0
    %1611 = vst [vmem:[%s202] sm:$0x3] %v1610
    %v1612 = vld [vmem:[%s300] sm:$0x3]
    %v1613 = vmul.f32 %v1612, %v1599
    %v1614 = vadd.f32 %v1613, %v1601
    %v1615 = vmax.f32 %v1614, 0.0
    %1616 = vst [vmem:[%s300] sm:$0x3] %v1615
    %v1617 = vld [vmem:[%s398] sm:$0x3]
    %v1618 = vmul.f32 %v1617, %v1599
    %v1619 = vadd.f32 %v1618, %v1601
    %v1620 = vmax.f32 %v1619, 0.0
    %1621 = vst [vmem:[%s398] sm:$0x3] %v1620
    %v1622 = vld [vmem:[%s496] sm:$0x3]
    %v1623 = vmul.f32 %v1622, %v1599
    %v1624 = vadd.f32 %v1623, %v1601
    %v1625 = vmax.f32 %v1624, 0.0
    %1626 = vst [vmem:[%s496] sm:$0x3] %v1625
    %v1627 = vld [vmem:[%s594] sm:$0x3]
    %v1628 = vmul.f32 %v1627, %v1599
    %v1629 = vadd.f32 %v1628, %v1601
    %v1630 = vmax.f32 %v1629, 0.0
    %1631 = vst [vmem:[%s594] sm:$0x3] %v1630
    %v1632 = vld [vmem:[%s692] sm:$0x3]
    %v1633 = vmul.f32 %v1632, %v1599
    %v1634 = vadd.f32 %v1633, %v1601
    %v1635 = vmax.f32 %v1634, 0.0
    %1636 = vst [vmem:[%s692] sm:$0x3] %v1635
    %v1637 = vld [vmem:[%s790] sm:$0x3]
    %v1638 = vmul.f32 %v1637, %v1599
    %v1639 = vadd.f32 %v1638, %v1601
    %v1640 = vmax.f32 %v1639, 0.0
    %1641 = vst [vmem:[%s790] sm:$0x3] %v1640
    %v1642 = vld [vmem:[%s888] sm:$0x3]
    %v1643 = vmul.f32 %v1642, %v1599
    %v1644 = vadd.f32 %v1643, %v1601
    %v1645 = vmax.f32 %v1644, 0.0
    %1646 = vst [vmem:[%s888] sm:$0x3] %v1645
    %v1647 = vld [vmem:[%s986] sm:$0x3]
    %v1648 = vmul.f32 %v1647, %v1599
    %v1649 = vadd.f32 %v1648, %v1601
    %v1650 = vmax.f32 %v1649, 0.0
    %1651 = vst [vmem:[%s986] sm:$0x3] %v1650
    %v1652 = vld [vmem:[%s1084] sm:$0x3]
    %v1653 = vmul.f32 %v1652, %v1599
    %v1654 = vadd.f32 %v1653, %v1601
    %v1655 = vmax.f32 %v1654, 0.0
    %1656 = vst [vmem:[%s1084] sm:$0x3] %v1655
    %v1657 = vld [vmem:[%s1182] sm:$0x3]
    %v1658 = vmul.f32 %v1657, %v1599
    %v1659 = vadd.f32 %v1658, %v1601
    %v1660 = vmax.f32 %v1659, 0.0
    %1661 = vst [vmem:[%s1182] sm:$0x3] %v1660
    %v1662 = vld [vmem:[%s1280] sm:$0x3]
    %v1663 = vmul.f32 %v1662, %v1599
    %v1664 = vadd.f32 %v1663, %v1601
    %v1665 = vmax.f32 %v1664, 0.0
    %1666 = vst [vmem:[%s1280] sm:$0x3] %v1665
    %v1667 = vld [vmem:[%s1378] sm:$0x3]
    %v1668 = vmul.f32 %v1667, %v1599
    %v1669 = vadd.f32 %v1668, %v1601
    %v1670 = vmax.f32 %v1669, 0.0
    %1671 = vst [vmem:[%s1378] sm:$0x3] %v1670
    %v1672 = vld [vmem:[%s1476] sm:$0x3]
    %v1673 = vmul.f32 %v1672, %v1599
    %v1674 = vadd.f32 %v1673, %v1601
    %v1675 = vmax.f32 %v1674, 0.0
    %1676 = vst [vmem:[%s1476] sm:$0x3] %v1675
    %v1677 = vld [vmem:[%s1574] sm:$0x3]
    %v1678 = vmul.f32 %v1677, %v1599
    %v1679 = vadd.f32 %v1678, %v1601
    %v1680 = vmax.f32 %v1679, 0.0
    %1681 = vst [vmem:[%s1574] sm:$0x3] %v1680
    // Predicated region
    $region14: #{generator_forward.4} parent=1 // pred_check
      _
    $region15: #{generator_forward.4} parent=1 // pred_check_branch
      %1683 = sbr.rel (0) target = $region17
    $region16: #{generator_forward.4} parent=1 // pred_region
      _
    $region17: #{generator_forward.4} parent=1 // pred_fallthru
      _
    // Predicated region
    $region18: #{generator_forward.4} parent=1 // pred_check
      _
    $region19: #{generator_forward.4} parent=1 // pred_check_branch
      %1685 = sbr.rel (0) target = $region21
    $region20: #{generator_forward.4} parent=1 // pred_region
      _
    $region21: #{generator_forward.4} parent=1 // pred_fallthru
      _
    %1686 = vsyncpa [#allocation3], 1

// kernel: generator_forward.6
$region0: #{generator_forward.6}
  #allocation0 [shape = 'u32[]', space=smem, size = 0x4, offset = 0x4, fixed_abs, tag = 'smem constant byte address 0x4 - core index']
  #allocation1 [shape = 'u32[144,128]{1,0:T(1,128)}', space=vmem, size = 0x12000, scoped, tag = 'internal scratch']
  %s0 = inlined_call_operand.vmem [shape: f32[4,128,128], index: 0, kind: input, shape index: {}]
  %s1 = inlined_call_operand.vmem [shape: f32[4,128,128], index: 1, kind: input, shape index: {}]
  %s2 = inlined_call_operand.vmem [shape: f32[4,128,128], index: 2, kind: output, shape index: {}]
  %s3 = sld [smem:[#allocation0]]
  $region18: #{generator_forward.6} parent=0
    _
  %s5 = ssub.s32 1, %s3
  %s6 = scalar_select 0, %s5, %s3
  // Predicated region
  $region2: #{generator_forward.6} parent=0 // pred_check
    _
  $region3: #{generator_forward.6} parent=0 // pred_check_branch
    %8 = sbr.rel (0) target = $region5
  $region4: #{generator_forward.6} parent=0 // pred_region
    _
  $region5: #{generator_forward.6} parent=0 // pred_fallthru
    _
  // Predicated region
  $region6: #{generator_forward.6} parent=0 // pred_check
    _
  $region7: #{generator_forward.6} parent=0 // pred_check_branch
    %10 = sbr.rel (0) target = $region9
  $region8: #{generator_forward.6} parent=0 // pred_region
    _
  $region9: #{generator_forward.6} parent=0 // pred_fallthru
    _
  %v11 = vld [vmem:[%s0] sm:$0xff]
  %v12 = vld [vmem:[%s0 + $0x8] sm:$0xff]
  %v13 = vld [vmem:[%s0 + $0x10] sm:$0xff]
  %v14 = vld [vmem:[%s0 + $0x18] sm:$0xff]
  %v15 = vld [vmem:[%s0 + $0x20] sm:$0xff]
  %v16 = vld [vmem:[%s0 + $0x28] sm:$0xff]
  %v17 = vld [vmem:[%s0 + $0x30] sm:$0xff]
  %v18 = vld [vmem:[%s0 + $0x38] sm:$0xff]
  %v19 = vld [vmem:[%s0 + $0x40] sm:$0xff]
  %v20 = vld [vmem:[%s0 + $0x48] sm:$0xff]
  %v21 = vld [vmem:[%s0 + $0x50] sm:$0xff]
  %v22 = vld [vmem:[%s0 + $0x58] sm:$0xff]
  %v23 = vld [vmem:[%s0 + $0x60] sm:$0xff]
  %v24 = vld [vmem:[%s0 + $0x68] sm:$0xff]
  %v25 = vld [vmem:[%s0 + $0x70] sm:$0xff]
  %v26 = vld [vmem:[%s0 + $0x78] sm:$0xff]
  %v27 = vld [vmem:[%s1] sm:$0xff]
  %v28 = vld [vmem:[%s1 + $0x8] sm:$0xff]
  %v29 = vld [vmem:[%s1 + $0x10] sm:$0xff]
  %v30 = vld [vmem:[%s1 + $0x18] sm:$0xff]
  %v31 = vld [vmem:[%s1 + $0x20] sm:$0xff]
  %v32 = vld [vmem:[%s1 + $0x28] sm:$0xff]
  %v33 = vld [vmem:[%s1 + $0x30] sm:$0xff]
  %v34 = vld [vmem:[%s1 + $0x38] sm:$0xff]
  %v35 = vld [vmem:[%s1 + $0x40] sm:$0xff]
  %v36 = vld [vmem:[%s1 + $0x48] sm:$0xff]
  %v37 = vld [vmem:[%s1 + $0x50] sm:$0xff]
  %v38 = vld [vmem:[%s1 + $0x58] sm:$0xff]
  %v39 = vld [vmem:[%s1 + $0x60] sm:$0xff]
  %v40 = vld [vmem:[%s1 + $0x68] sm:$0xff]
  %v41 = vld [vmem:[%s1 + $0x70] sm:$0xff]
  %v42 = vld [vmem:[%s1 + $0x78] sm:$0xff]
  %43 = vmatprep.subr.mxu0 0.0
  %44 = vmatpush1.msra.mxu0 %v27
  %45 = vmatprep.subr.mxu0 0.0
  %46 = vmatpush1.msra.mxu0 %v28
  %47 = vmatprep.subr.mxu0 0.0
  %48 = vmatpush1.msra.mxu0 %v29
  %49 = vmatprep.subr.mxu0 0.0
  %50 = vmatpush1.msra.mxu0 %v30
  %51 = vmatprep.subr.mxu0 0.0
  %52 = vmatpush1.msra.mxu0 %v31
  %53 = vmatprep.subr.mxu0 0.0
  %54 = vmatpush1.msra.mxu0 %v32
  %55 = vmatprep.subr.mxu0 0.0
  %56 = vmatpush1.msra.mxu0 %v33
  %57 = vmatprep.subr.mxu0 0.0
  %58 = vmatpush1.msra.mxu0 %v34
  %59 = vmatprep.subr.mxu0 0.0
  %60 = vmatpush1.msra.mxu0 %v35
  %61 = vmatprep.subr.mxu0 0.0
  %62 = vmatpush1.msra.mxu0 %v36
  %63 = vmatprep.subr.mxu0 0.0
  %64 = vmatpush1.msra.mxu0 %v37
  %65 = vmatprep.subr.mxu0 0.0
  %66 = vmatpush1.msra.mxu0 %v38
  %67 = vmatprep.subr.mxu0 0.0
  %68 = vmatpush1.msra.mxu0 %v39
  %69 = vmatprep.subr.mxu0 0.0
  %70 = vmatpush1.msra.mxu0 %v40
  %71 = vmatprep.subr.mxu0 0.0
  %72 = vmatpush1.msra.mxu0 %v41
  %73 = vmatprep.subr.mxu0 0.0
  %74 = vmatpush1.msra.mxu0 %v42
  %75 = vmatprep.subr.mxu0 0.0
  %76 = vmatpush1.msra.mxu0 0.0
  %77 = vmatprep.subr.mxu0 0.0
  %78 = vmatpush1.msra.mxu0 0.0
  %79 = vmatprep.subr.mxu0 0.0
  %80 = vmatpush1.msra.mxu0 0.0
  %81 = vmatprep.subr.mxu0 0.0
  %82 = vmatpush1.msra.mxu0 0.0
  %83 = vmatprep.subr.mxu0 0.0
  %84 = vmatpush1.msra.mxu0 0.0
  %85 = vmatprep.subr.mxu0 0.0
  %86 = vmatpush1.msra.mxu0 0.0
  %87 = vmatprep.subr.mxu0 0.0
  %88 = vmatpush1.msra.mxu0 0.0
  %89 = vmatprep.subr.mxu0 0.0
  %90 = vmatpush1.msra.mxu0 0.0
  %91 = vmatprep.subr.mxu0 0.0
  %92 = vmatpush1.msra.mxu0 0.0
  %93 = vmatprep.subr.mxu0 0.0
  %94 = vmatpush1.msra.mxu0 0.0
  %95 = vmatprep.subr.mxu0 0.0
  %96 = vmatpush1.msra.mxu0 0.0
  %97 = vmatprep.subr.mxu0 0.0
  %98 = vmatpush1.msra.mxu0 0.0
  %99 = vmatprep.subr.mxu0 0.0
  %100 = vmatpush1.msra.mxu0 0.0
  %101 = vmatprep.subr.mxu0 0.0
  %102 = vmatpush1.msra.mxu0 0.0
  %103 = vmatprep.subr.mxu0 0.0
  %104 = vmatpush1.msra.mxu0 0.0
  %105 = vmatprep.subr.mxu0 0.0
  %106 = vmatpush1.msra.mxu0 0.0
  %107 = vmatprep.mubr.f32.mxu0 0.0
  %108 = vmatmul.mubr.f32.gmra.mrb[0].mxu0 %v11
  %v109 = vpop.f32.mrb[0].mxu0
  %v110 = vadd.f32 0.0, %v109
  %v111 = vpop.f32.mrb[0].mxu0
  %112 = vmatprep.mubr.f32.mxu0 0.0
  %113 = vmatmul.mubr.f32.gmra.mrb[0].mxu0 %v12
  %v114 = vpop.f32.mrb[0].mxu0
  %v115 = vadd.f32 0.0, %v114
  %v116 = vpop.f32.mrb[0].mxu0
  %117 = vmatprep.mubr.f32.mxu0 0.0
  %118 = vmatmul.mubr.f32.gmra.mrb[0].mxu0 %v13
  %v119 = vpop.f32.mrb[0].mxu0
  %v120 = vadd.f32 0.0, %v119
  %v121 = vpop.f32.mrb[0].mxu0
  %122 = vmatprep.mubr.f32.mxu0 0.0
  %123 = vmatmul.mubr.f32.gmra.mrb[0].mxu0 %v14
  %v124 = vpop.f32.mrb[0].mxu0
  %v125 = vadd.f32 0.0, %v124
  %v126 = vpop.f32.mrb[0].mxu0
  %127 = vmatprep.mubr.f32.mxu0 0.0
  %128 = vmatmul.mubr.f32.gmra.mrb[0].mxu0 %v15
  %v129 = vpop.f32.mrb[0].mxu0
  %v130 = vadd.f32 0.0, %v129
  %v131 = vpop.f32.mrb[0].mxu0
  %132 = vmatprep.mubr.f32.mxu0 0.0
  %133 = vmatmul.mubr.f32.gmra.mrb[0].mxu0 %v16
  %v134 = vpop.f32.mrb[0].mxu0
  %v135 = vadd.f32 0.0, %v134
  %v136 = vpop.f32.mrb[0].mxu0
  %137 = vmatprep.mubr.f32.mxu0 0.0
  %138 = vmatmul.mubr.f32.gmra.mrb[0].mxu0 %v17
  %v139 = vpop.f32.mrb[0].mxu0
  %v140 = vadd.f32 0.0, %v139
  %v141 = vpop.f32.mrb[0].mxu0
  %142 = vmatprep.mubr.f32.mxu0 0.0
  %143 = vmatmul.mubr.f32.gmra.mrb[0].mxu0 %v18
  %v144 = vpop.f32.mrb[0].mxu0
  %v145 = vadd.f32 0.0, %v144
  %v146 = vpop.f32.mrb[0].mxu0
  %147 = vmatprep.mubr.f32.mxu0 0.0
  %148 = vmatmul.mubr.f32.gmra.mrb[0].mxu0 %v19
  %v149 = vpop.f32.mrb[0].mxu0
  %v150 = vadd.f32 0.0, %v149
  %v151 = vpop.f32.mrb[0].mxu0
  %152 = vmatprep.mubr.f32.mxu0 0.0
  %153 = vmatmul.mubr.f32.gmra.mrb[0].mxu0 %v20
  %v154 = vpop.f32.mrb[0].mxu0
  %v155 = vadd.f32 0.0, %v154
  %v156 = vpop.f32.mrb[0].mxu0
  %157 = vmatprep.mubr.f32.mxu0 0.0
  %158 = vmatmul.mubr.f32.gmra.mrb[0].mxu0 %v21
  %v159 = vpop.f32.mrb[0].mxu0
  %v160 = vadd.f32 0.0, %v159
  %v161 = vpop.f32.mrb[0].mxu0
  %162 = vmatprep.mubr.f32.mxu0 0.0
  %163 = vmatmul.mubr.f32.gmra.mrb[0].mxu0 %v22
  %v164 = vpop.f32.mrb[0].mxu0
  %v165 = vadd.f32 0.0, %v164
  %v166 = vpop.f32.mrb[0].mxu0
  %167 = vmatprep.mubr.f32.mxu0 0.0
  %168 = vmatmul.mubr.f32.gmra.mrb[0].mxu0 %v23
  %v169 = vpop.f32.mrb[0].mxu0
  %v170 = vadd.f32 0.0, %v169
  %v171 = vpop.f32.mrb[0].mxu0
  %172 = vmatprep.mubr.f32.mxu0 0.0
  %173 = vmatmul.mubr.f32.gmra.mrb[0].mxu0 %v24
  %v174 = vpop.f32.mrb[0].mxu0
  %v175 = vadd.f32 0.0, %v174
  %v176 = vpop.f32.mrb[0].mxu0
  %177 = vmatprep.mubr.f32.mxu0 0.0
  %178 = vmatmul.mubr.f32.gmra.mrb[0].mxu0 %v25
  %v179 = vpop.f32.mrb[0].mxu0
  %v180 = vadd.f32 0.0, %v179
  %v181 = vpop.f32.mrb[0].mxu0
  %182 = vmatprep.mubr.f32.mxu0 0.0
  %183 = vmatmul.mubr.f32.gmra.mrb[0].mxu0 %v26
  %v184 = vpop.f32.mrb[0].mxu0
  %v185 = vadd.f32 0.0, %v184
  %v186 = vpop.f32.mrb[0].mxu0
  %187 = vdwg.mxu0
  %188 = vst [vmem:[%s2] sm:$0xff] %v110
  %189 = vst [vmem:[%s2 + $0x8] sm:$0xff] %v115
  %190 = vst [vmem:[%s2 + $0x10] sm:$0xff] %v120
  %191 = vst [vmem:[%s2 + $0x18] sm:$0xff] %v125
  %192 = vst [vmem:[%s2 + $0x20] sm:$0xff] %v130
  %193 = vst [vmem:[%s2 + $0x28] sm:$0xff] %v135
  %194 = vst [vmem:[%s2 + $0x30] sm:$0xff] %v140
  %195 = vst [vmem:[%s2 + $0x38] sm:$0xff] %v145
  %196 = vst [vmem:[%s2 + $0x40] sm:$0xff] %v150
  %197 = vst [vmem:[%s2 + $0x48] sm:$0xff] %v155
  %198 = vst [vmem:[%s2 + $0x50] sm:$0xff] %v160
  %199 = vst [vmem:[%s2 + $0x58] sm:$0xff] %v165
  %200 = vst [vmem:[%s2 + $0x60] sm:$0xff] %v170
  %201 = vst [vmem:[%s2 + $0x68] sm:$0xff] %v175
  %202 = vst [vmem:[%s2 + $0x70] sm:$0xff] %v180
  %203 = vst [vmem:[%s2 + $0x78] sm:$0xff] %v185
  %v204 = vadd.f32 %v110, %v115
  %v205 = vadd.f32 %v204, %v120
  %v206 = vadd.f32 %v205, %v125
  %v207 = vadd.f32 %v206, %v130
  %v208 = vadd.f32 %v207, %v135
  %v209 = vadd.f32 %v208, %v140
  %v210 = vadd.f32 %v209, %v145
  %v211 = vadd.f32 %v210, %v150
  %v212 = vadd.f32 %v211, %v155
  %v213 = vadd.f32 %v212, %v160
  %v214 = vadd.f32 %v213, %v165
  %v215 = vadd.f32 %v214, %v170
  %v216 = vadd.f32 %v215, %v175
  %v217 = vadd.f32 %v216, %v180
  %v218 = vadd.f32 %v217, %v185
  %v219 = vrot.slane %v218, 4
  %v220 = vadd.f32 %v218, %v219
  %v221 = vrot.slane %v220, 2
  %v222 = vadd.f32 %v220, %v221
  %v223 = vrot.slane %v222, 1
  %v224 = vadd.f32 %v222, %v223
  %v225 = vadd.f32 %v224, 0.0
  %v226 = vmul.f32 %v110, %v110
  %v227 = vmul.f32 %v115, %v115
  %v228 = vmul.f32 %v120, %v120
  %v229 = vmul.f32 %v125, %v125
  %v230 = vmul.f32 %v130, %v130
  %v231 = vmul.f32 %v135, %v135
  %v232 = vmul.f32 %v140, %v140
  %v233 = vmul.f32 %v145, %v145
  %v234 = vmul.f32 %v150, %v150
  %v235 = vmul.f32 %v155, %v155
  %v236 = vmul.f32 %v160, %v160
  %v237 = vmul.f32 %v165, %v165
  %v238 = vmul.f32 %v170, %v170
  %v239 = vmul.f32 %v175, %v175
  %v240 = vmul.f32 %v180, %v180
  %v241 = vmul.f32 %v185, %v185
  %v242 = vadd.f32 %v226, %v227
  %v243 = vadd.f32 %v242, %v228
  %v244 = vadd.f32 %v243, %v229
  %v245 = vadd.f32 %v244, %v230
  %v246 = vadd.f32 %v245, %v231
  %v247 = vadd.f32 %v246, %v232
  %v248 = vadd.f32 %v247, %v233
  %v249 = vadd.f32 %v248, %v234
  %v250 = vadd.f32 %v249, %v235
  %v251 = vadd.f32 %v250, %v236
  %v252 = vadd.f32 %v251, %v237
  %v253 = vadd.f32 %v252, %v238
  %v254 = vadd.f32 %v253, %v239
  %v255 = vadd.f32 %v254, %v240
  %v256 = vadd.f32 %v255, %v241
  %v257 = vrot.slane %v256, 4
  %v258 = vadd.f32 %v256, %v257
  %v259 = vrot.slane %v258, 2
  %v260 = vadd.f32 %v258, %v259
  %v261 = vrot.slane %v260, 1
  %v262 = vadd.f32 %v260, %v261
  %v263 = vadd.f32 %v262, 0.0
  %s264 = scalar_lea.vmem %s0, 128
  %v265 = vld [vmem:[%s264] sm:$0xff]
  %v266 = vld [vmem:[%s264 + $0x8] sm:$0xff]
  %v267 = vld [vmem:[%s264 + $0x10] sm:$0xff]
  %v268 = vld [vmem:[%s264 + $0x18] sm:$0xff]
  %v269 = vld [vmem:[%s264 + $0x20] sm:$0xff]
  %v270 = vld [vmem:[%s264 + $0x28] sm:$0xff]
  %v271 = vld [vmem:[%s264 + $0x30] sm:$0xff]
  %v272 = vld [vmem:[%s264 + $0x38] sm:$0xff]
  %v273 = vld [vmem:[%s264 + $0x40] sm:$0xff]
  %v274 = vld [vmem:[%s264 + $0x48] sm:$0xff]
  %v275 = vld [vmem:[%s264 + $0x50] sm:$0xff]
  %v276 = vld [vmem:[%s264 + $0x58] sm:$0xff]
  %v277 = vld [vmem:[%s264 + $0x60] sm:$0xff]
  %v278 = vld [vmem:[%s264 + $0x68] sm:$0xff]
  %v279 = vld [vmem:[%s264 + $0x70] sm:$0xff]
  %v280 = vld [vmem:[%s264 + $0x78] sm:$0xff]
  %s281 = scalar_lea.vmem %s1, 128
  %v282 = vld [vmem:[%s281] sm:$0xff]
  %v283 = vld [vmem:[%s281 + $0x8] sm:$0xff]
  %v284 = vld [vmem:[%s281 + $0x10] sm:$0xff]
  %v285 = vld [vmem:[%s281 + $0x18] sm:$0xff]
  %v286 = vld [vmem:[%s281 + $0x20] sm:$0xff]
  %v287 = vld [vmem:[%s281 + $0x28] sm:$0xff]
  %v288 = vld [vmem:[%s281 + $0x30] sm:$0xff]
  %v289 = vld [vmem:[%s281 + $0x38] sm:$0xff]
  %v290 = vld [vmem:[%s281 + $0x40] sm:$0xff]
  %v291 = vld [vmem:[%s281 + $0x48] sm:$0xff]
  %v292 = vld [vmem:[%s281 + $0x50] sm:$0xff]
  %v293 = vld [vmem:[%s281 + $0x58] sm:$0xff]
  %v294 = vld [vmem:[%s281 + $0x60] sm:$0xff]
  %v295 = vld [vmem:[%s281 + $0x68] sm:$0xff]
  %v296 = vld [vmem:[%s281 + $0x70] sm:$0xff]
  %v297 = vld [vmem:[%s281 + $0x78] sm:$0xff]
  %298 = vmatprep.subr.mxu0 0.0
  %299 = vmatpush1.msra.mxu0 %v282
  %300 = vmatprep.subr.mxu0 0.0
  %301 = vmatpush1.msra.mxu0 %v283
  %302 = vmatprep.subr.mxu0 0.0
  %303 = vmatpush1.msra.mxu0 %v284
  %304 = vmatprep.subr.mxu0 0.0
  %305 = vmatpush1.msra.mxu0 %v285
  %306 = vmatprep.subr.mxu0 0.0
  %307 = vmatpush1.msra.mxu0 %v286
  %308 = vmatprep.subr.mxu0 0.0
  %309 = vmatpush1.msra.mxu0 %v287
  %310 = vmatprep.subr.mxu0 0.0
  %311 = vmatpush1.msra.mxu0 %v288
  %312 = vmatprep.subr.mxu0 0.0
  %313 = vmatpush1.msra.mxu0 %v289
  %314 = vmatprep.subr.mxu0 0.0
  %315 = vmatpush1.msra.mxu0 %v290
  %316 = vmatprep.subr.mxu0 0.0
  %317 = vmatpush1.msra.mxu0 %v291
  %318 = vmatprep.subr.mxu0 0.0
  %319 = vmatpush1.msra.mxu0 %v292
  %320 = vmatprep.subr.mxu0 0.0
  %321 = vmatpush1.msra.mxu0 %v293
  %322 = vmatprep.subr.mxu0 0.0
  %323 = vmatpush1.msra.mxu0 %v294
  %324 = vmatprep.subr.mxu0 0.0
  %325 = vmatpush1.msra.mxu0 %v295
  %326 = vmatprep.subr.mxu0 0.0
  %327 = vmatpush1.msra.mxu0 %v296
  %328 = vmatprep.subr.mxu0 0.0
  %329 = vmatpush1.msra.mxu0 %v297
  %330 = vmatprep.subr.mxu0 0.0
  %331 = vmatpush1.msra.mxu0 0.0
  %332 = vmatprep.subr.mxu0 0.0
  %333 = vmatpush1.msra.mxu0 0.0
  %334 = vmatprep.subr.mxu0 0.0
  %335 = vmatpush1.msra.mxu0 0.0
  %336 = vmatprep.subr.mxu0 0.0
  %337 = vmatpush1.msra.mxu0 0.0
  %338 = vmatprep.subr.mxu0 0.0
  %339 = vmatpush1.msra.mxu0 0.0
  %340 = vmatprep.subr.mxu0 0.0
  %341 = vmatpush1.msra.mxu0 0.0
  %342 = vmatprep.subr.mxu0 0.0
  %343 = vmatpush1.msra.mxu0 0.0
  %344 = vmatprep.subr.mxu0 0.0
  %345 = vmatpush1.msra.mxu0 0.0
  %346 = vmatprep.subr.mxu0 0.0
  %347 = vmatpush1.msra.mxu0 0.0
  %348 = vmatprep.subr.mxu0 0.0
  %349 = vmatpush1.msra.mxu0 0.0
  %350 = vmatprep.subr.mxu0 0.0
  %351 = vmatpush1.msra.mxu0 0.0
  %352 = vmatprep.subr.mxu0 0.0
  %353 = vmatpush1.msra.mxu0 0.0
  %354 = vmatprep.subr.mxu0 0.0
  %355 = vmatpush1.msra.mxu0 0.0
  %356 = vmatprep.subr.mxu0 0.0
  %357 = vmatpush1.msra.mxu0 0.0
  %358 = vmatprep.subr.mxu0 0.0
  %359 = vmatpush1.msra.mxu0 0.0
  %360 = vmatprep.subr.mxu0 0.0
  %361 = vmatpush1.msra.mxu0 0.0
  %362 = vmatprep.mubr.f32.mxu0 0.0
  %363 = vmatmul.mubr.f32.gmra.mrb[0].mxu0 %v265
  %v364 = vpop.f32.mrb[0].mxu0
  %v365 = vadd.f32 0.0, %v364
  %v366 = vpop.f32.mrb[0].mxu0
  %367 = vmatprep.mubr.f32.mxu0 0.0
  %368 = vmatmul.mubr.f32.gmra.mrb[0].mxu0 %v266
  %v369 = vpop.f32.mrb[0].mxu0
  %v370 = vadd.f32 0.0, %v369
  %v371 = vpop.f32.mrb[0].mxu0
  %372 = vmatprep.mubr.f32.mxu0 0.0
  %373 = vmatmul.mubr.f32.gmra.mrb[0].mxu0 %v267
  %v374 = vpop.f32.mrb[0].mxu0
  %v375 = vadd.f32 0.0, %v374
  %v376 = vpop.f32.mrb[0].mxu0
  %377 = vmatprep.mubr.f32.mxu0 0.0
  %378 = vmatmul.mubr.f32.gmra.mrb[0].mxu0 %v268
  %v379 = vpop.f32.mrb[0].mxu0
  %v380 = vadd.f32 0.0, %v379
  %v381 = vpop.f32.mrb[0].mxu0
  %382 = vmatprep.mubr.f32.mxu0 0.0
  %383 = vmatmul.mubr.f32.gmra.mrb[0].mxu0 %v269
  %v384 = vpop.f32.mrb[0].mxu0
  %v385 = vadd.f32 0.0, %v384
  %v386 = vpop.f32.mrb[0].mxu0
  %387 = vmatprep.mubr.f32.mxu0 0.0
  %388 = vmatmul.mubr.f32.gmra.mrb[0].mxu0 %v270
  %v389 = vpop.f32.mrb[0].mxu0
  %v390 = vadd.f32 0.0, %v389
  %v391 = vpop.f32.mrb[0].mxu0
  %392 = vmatprep.mubr.f32.mxu0 0.0
  %393 = vmatmul.mubr.f32.gmra.mrb[0].mxu0 %v271
  %v394 = vpop.f32.mrb[0].mxu0
  %v395 = vadd.f32 0.0, %v394
  %v396 = vpop.f32.mrb[0].mxu0
  %397 = vmatprep.mubr.f32.mxu0 0.0
  %398 = vmatmul.mubr.f32.gmra.mrb[0].mxu0 %v272
  %v399 = vpop.f32.mrb[0].mxu0
  %v400 = vadd.f32 0.0, %v399
  %v401 = vpop.f32.mrb[0].mxu0
  %402 = vmatprep.mubr.f32.mxu0 0.0
  %403 = vmatmul.mubr.f32.gmra.mrb[0].mxu0 %v273
  %v404 = vpop.f32.mrb[0].mxu0
  %v405 = vadd.f32 0.0, %v404
  %v406 = vpop.f32.mrb[0].mxu0
  %407 = vmatprep.mubr.f32.mxu0 0.0
  %408 = vmatmul.mubr.f32.gmra.mrb[0].mxu0 %v274
  %v409 = vpop.f32.mrb[0].mxu0
  %v410 = vadd.f32 0.0, %v409
  %v411 = vpop.f32.mrb[0].mxu0
  %412 = vmatprep.mubr.f32.mxu0 0.0
  %413 = vmatmul.mubr.f32.gmra.mrb[0].mxu0 %v275
  %v414 = vpop.f32.mrb[0].mxu0
  %v415 = vadd.f32 0.0, %v414
  %v416 = vpop.f32.mrb[0].mxu0
  %417 = vmatprep.mubr.f32.mxu0 0.0
  %418 = vmatmul.mubr.f32.gmra.mrb[0].mxu0 %v276
  %v419 = vpop.f32.mrb[0].mxu0
  %v420 = vadd.f32 0.0, %v419
  %v421 = vpop.f32.mrb[0].mxu0
  %422 = vmatprep.mubr.f32.mxu0 0.0
  %423 = vmatmul.mubr.f32.gmra.mrb[0].mxu0 %v277
  %v424 = vpop.f32.mrb[0].mxu0
  %v425 = vadd.f32 0.0, %v424
  %v426 = vpop.f32.mrb[0].mxu0
  %427 = vmatprep.mubr.f32.mxu0 0.0
  %428 = vmatmul.mubr.f32.gmra.mrb[0].mxu0 %v278
  %v429 = vpop.f32.mrb[0].mxu0
  %v430 = vadd.f32 0.0, %v429
  %v431 = vpop.f32.mrb[0].mxu0
  %432 = vmatprep.mubr.f32.mxu0 0.0
  %433 = vmatmul.mubr.f32.gmra.mrb[0].mxu0 %v279
  %v434 = vpop.f32.mrb[0].mxu0
  %v435 = vadd.f32 0.0, %v434
  %v436 = vpop.f32.mrb[0].mxu0
  %437 = vmatprep.mubr.f32.mxu0 0.0
  %438 = vmatmul.mubr.f32.gmra.mrb[0].mxu0 %v280
  %v439 = vpop.f32.mrb[0].mxu0
  %v440 = vadd.f32 0.0, %v439
  %v441 = vpop.f32.mrb[0].mxu0
  %442 = vdwg.mxu0
  %s443 = scalar_lea.vmem %s2, 128
  %444 = vst [vmem:[%s443] sm:$0xff] %v365
  %445 = vst [vmem:[%s443 + $0x8] sm:$0xff] %v370
  %446 = vst [vmem:[%s443 + $0x10] sm:$0xff] %v375
  %447 = vst [vmem:[%s443 + $0x18] sm:$0xff] %v380
  %448 = vst [vmem:[%s443 + $0x20] sm:$0xff] %v385
  %449 = vst [vmem:[%s443 + $0x28] sm:$0xff] %v390
  %450 = vst [vmem:[%s443 + $0x30] sm:$0xff] %v395
  %451 = vst [vmem:[%s443 + $0x38] sm:$0xff] %v400
  %452 = vst [vmem:[%s443 + $0x40] sm:$0xff] %v405
  %453 = vst [vmem:[%s443 + $0x48] sm:$0xff] %v410
  %454 = vst [vmem:[%s443 + $0x50] sm:$0xff] %v415
  %455 = vst [vmem:[%s443 + $0x58] sm:$0xff] %v420
  %456 = vst [vmem:[%s443 + $0x60] sm:$0xff] %v425
  %457 = vst [vmem:[%s443 + $0x68] sm:$0xff] %v430
  %458 = vst [vmem:[%s443 + $0x70] sm:$0xff] %v435
  %459 = vst [vmem:[%s443 + $0x78] sm:$0xff] %v440
  %v460 = vadd.f32 %v365, %v370
  %v461 = vadd.f32 %v460, %v375
  %v462 = vadd.f32 %v461, %v380
  %v463 = vadd.f32 %v462, %v385
  %v464 = vadd.f32 %v463, %v390
  %v465 = vadd.f32 %v464, %v395
  %v466 = vadd.f32 %v465, %v400
  %v467 = vadd.f32 %v466, %v405
  %v468 = vadd.f32 %v467, %v410
  %v469 = vadd.f32 %v468, %v415
  %v470 = vadd.f32 %v469, %v420
  %v471 = vadd.f32 %v470, %v425
  %v472 = vadd.f32 %v471, %v430
  %v473 = vadd.f32 %v472, %v435
  %v474 = vadd.f32 %v473, %v440
  %v475 = vrot.slane %v474, 4
  %v476 = vadd.f32 %v474, %v475
  %v477 = vrot.slane %v476, 2
  %v478 = vadd.f32 %v476, %v477
  %v479 = vrot.slane %v478, 1
  %v480 = vadd.f32 %v478, %v479
  %v481 = vadd.f32 %v225, %v480
  %v482 = vmul.f32 %v365, %v365
  %v483 = vmul.f32 %v370, %v370
  %v484 = vmul.f32 %v375, %v375
  %v485 = vmul.f32 %v380, %v380
  %v486 = vmul.f32 %v385, %v385
  %v487 = vmul.f32 %v390, %v390
  %v488 = vmul.f32 %v395, %v395
  %v489 = vmul.f32 %v400, %v400
  %v490 = vmul.f32 %v405, %v405
  %v491 = vmul.f32 %v410, %v410
  %v492 = vmul.f32 %v415, %v415
  %v493 = vmul.f32 %v420, %v420
  %v494 = vmul.f32 %v425, %v425
  %v495 = vmul.f32 %v430, %v430
  %v496 = vmul.f32 %v435, %v435
  %v497 = vmul.f32 %v440, %v440
  %v498 = vadd.f32 %v482, %v483
  %v499 = vadd.f32 %v498, %v484
  %v500 = vadd.f32 %v499, %v485
  %v501 = vadd.f32 %v500, %v486
  %v502 = vadd.f32 %v501, %v487
  %v503 = vadd.f32 %v502, %v488
  %v504 = vadd.f32 %v503, %v489
  %v505 = vadd.f32 %v504, %v490
  %v506 = vadd.f32 %v505, %v491
  %v507 = vadd.f32 %v506, %v492
  %v508 = vadd.f32 %v507, %v493
  %v509 = vadd.f32 %v508, %v494
  %v510 = vadd.f32 %v509, %v495
  %v511 = vadd.f32 %v510, %v496
  %v512 = vadd.f32 %v511, %v497
  %v513 = vrot.slane %v512, 4
  %v514 = vadd.f32 %v512, %v513
  %v515 = vrot.slane %v514, 2
  %v516 = vadd.f32 %v514, %v515
  %v517 = vrot.slane %v516, 1
  %v518 = vadd.f32 %v516, %v517
  %v519 = vadd.f32 %v263, %v518
  %s520 = scalar_lea.vmem %s0, 256
  %v521 = vld [vmem:[%s520] sm:$0xff]
  %v522 = vld [vmem:[%s520 + $0x8] sm:$0xff]
  %v523 = vld [vmem:[%s520 + $0x10] sm:$0xff]
  %v524 = vld [vmem:[%s520 + $0x18] sm:$0xff]
  %v525 = vld [vmem:[%s520 + $0x20] sm:$0xff]
  %v526 = vld [vmem:[%s520 + $0x28] sm:$0xff]
  %v527 = vld [vmem:[%s520 + $0x30] sm:$0xff]
  %v528 = vld [vmem:[%s520 + $0x38] sm:$0xff]
  %v529 = vld [vmem:[%s520 + $0x40] sm:$0xff]
  %v530 = vld [vmem:[%s520 + $0x48] sm:$0xff]
  %v531 = vld [vmem:[%s520 + $0x50] sm:$0xff]
  %v532 = vld [vmem:[%s520 + $0x58] sm:$0xff]
  %v533 = vld [vmem:[%s520 + $0x60] sm:$0xff]
  %v534 = vld [vmem:[%s520 + $0x68] sm:$0xff]
  %v535 = vld [vmem:[%s520 + $0x70] sm:$0xff]
  %v536 = vld [vmem:[%s520 + $0x78] sm:$0xff]
  %s537 = scalar_lea.vmem %s1, 256
  %v538 = vld [vmem:[%s537] sm:$0xff]
  %v539 = vld [vmem:[%s537 + $0x8] sm:$0xff]
  %v540 = vld [vmem:[%s537 + $0x10] sm:$0xff]
  %v541 = vld [vmem:[%s537 + $0x18] sm:$0xff]
  %v542 = vld [vmem:[%s537 + $0x20] sm:$0xff]
  %v543 = vld [vmem:[%s537 + $0x28] sm:$0xff]
  %v544 = vld [vmem:[%s537 + $0x30] sm:$0xff]
  %v545 = vld [vmem:[%s537 + $0x38] sm:$0xff]
  %v546 = vld [vmem:[%s537 + $0x40] sm:$0xff]
  %v547 = vld [vmem:[%s537 + $0x48] sm:$0xff]
  %v548 = vld [vmem:[%s537 + $0x50] sm:$0xff]
  %v549 = vld [vmem:[%s537 + $0x58] sm:$0xff]
  %v550 = vld [vmem:[%s537 + $0x60] sm:$0xff]
  %v551 = vld [vmem:[%s537 + $0x68] sm:$0xff]
  %v552 = vld [vmem:[%s537 + $0x70] sm:$0xff]
  %v553 = vld [vmem:[%s537 + $0x78] sm:$0xff]
  %554 = vmatprep.subr.mxu0 0.0
  %555 = vmatpush1.msra.mxu0 %v538
  %556 = vmatprep.subr.mxu0 0.0
  %557 = vmatpush1.msra.mxu0 %v539
  %558 = vmatprep.subr.mxu0 0.0
  %559 = vmatpush1.msra.mxu0 %v540
  %560 = vmatprep.subr.mxu0 0.0
  %561 = vmatpush1.msra.mxu0 %v541
  %562 = vmatprep.subr.mxu0 0.0
  %563 = vmatpush1.msra.mxu0 %v542
  %564 = vmatprep.subr.mxu0 0.0
  %565 = vmatpush1.msra.mxu0 %v543
  %566 = vmatprep.subr.mxu0 0.0
  %567 = vmatpush1.msra.mxu0 %v544
  %568 = vmatprep.subr.mxu0 0.0
  %569 = vmatpush1.msra.mxu0 %v545
  %570 = vmatprep.subr.mxu0 0.0
  %571 = vmatpush1.msra.mxu0 %v546
  %572 = vmatprep.subr.mxu0 0.0
  %573 = vmatpush1.msra.mxu0 %v547
  %574 = vmatprep.subr.mxu0 0.0
  %575 = vmatpush1.msra.mxu0 %v548
  %576 = vmatprep.subr.mxu0 0.0
  %577 = vmatpush1.msra.mxu0 %v549
  %578 = vmatprep.subr.mxu0 0.0
  %579 = vmatpush1.msra.mxu0 %v550
  %580 = vmatprep.subr.mxu0 0.0
  %581 = vmatpush1.msra.mxu0 %v551
  %582 = vmatprep.subr.mxu0 0.0
  %583 = vmatpush1.msra.mxu0 %v552
  %584 = vmatprep.subr.mxu0 0.0
  %585 = vmatpush1.msra.mxu0 %v553
  %586 = vmatprep.subr.mxu0 0.0
  %587 = vmatpush1.msra.mxu0 0.0
  %588 = vmatprep.subr.mxu0 0.0
  %589 = vmatpush1.msra.mxu0 0.0
  %590 = vmatprep.subr.mxu0 0.0
  %591 = vmatpush1.msra.mxu0 0.0
  %592 = vmatprep.subr.mxu0 0.0
  %593 = vmatpush1.msra.mxu0 0.0
  %594 = vmatprep.subr.mxu0 0.0
  %595 = vmatpush1.msra.mxu0 0.0
  %596 = vmatprep.subr.mxu0 0.0
  %597 = vmatpush1.msra.mxu0 0.0
  %598 = vmatprep.subr.mxu0 0.0
  %599 = vmatpush1.msra.mxu0 0.0
  %600 = vmatprep.subr.mxu0 0.0
  %601 = vmatpush1.msra.mxu0 0.0
  %602 = vmatprep.subr.mxu0 0.0
  %603 = vmatpush1.msra.mxu0 0.0
  %604 = vmatprep.subr.mxu0 0.0
  %605 = vmatpush1.msra.mxu0 0.0
  %606 = vmatprep.subr.mxu0 0.0
  %607 = vmatpush1.msra.mxu0 0.0
  %608 = vmatprep.subr.mxu0 0.0
  %609 = vmatpush1.msra.mxu0 0.0
  %610 = vmatprep.subr.mxu0 0.0
  %611 = vmatpush1.msra.mxu0 0.0
  %612 = vmatprep.subr.mxu0 0.0
  %613 = vmatpush1.msra.mxu0 0.0
  %614 = vmatprep.subr.mxu0 0.0
  %615 = vmatpush1.msra.mxu0 0.0
  %616 = vmatprep.subr.mxu0 0.0
  %617 = vmatpush1.msra.mxu0 0.0
  %618 = vmatprep.mubr.f32.mxu0 0.0
  %619 = vmatmul.mubr.f32.gmra.mrb[0].mxu0 %v521
  %v620 = vpop.f32.mrb[0].mxu0
  %v621 = vadd.f32 0.0, %v620
  %v622 = vpop.f32.mrb[0].mxu0
  %623 = vmatprep.mubr.f32.mxu0 0.0
  %624 = vmatmul.mubr.f32.gmra.mrb[0].mxu0 %v522
  %v625 = vpop.f32.mrb[0].mxu0
  %v626 = vadd.f32 0.0, %v625
  %v627 = vpop.f32.mrb[0].mxu0
  %628 = vmatprep.mubr.f32.mxu0 0.0
  %629 = vmatmul.mubr.f32.gmra.mrb[0].mxu0 %v523
  %v630 = vpop.f32.mrb[0].mxu0
  %v631 = vadd.f32 0.0, %v630
  %v632 = vpop.f32.mrb[0].mxu0
  %633 = vmatprep.mubr.f32.mxu0 0.0
  %634 = vmatmul.mubr.f32.gmra.mrb[0].mxu0 %v524
  %v635 = vpop.f32.mrb[0].mxu0
  %v636 = vadd.f32 0.0, %v635
  %v637 = vpop.f32.mrb[0].mxu0
  %638 = vmatprep.mubr.f32.mxu0 0.0
  %639 = vmatmul.mubr.f32.gmra.mrb[0].mxu0 %v525
  %v640 = vpop.f32.mrb[0].mxu0
  %v641 = vadd.f32 0.0, %v640
  %v642 = vpop.f32.mrb[0].mxu0
  %643 = vmatprep.mubr.f32.mxu0 0.0
  %644 = vmatmul.mubr.f32.gmra.mrb[0].mxu0 %v526
  %v645 = vpop.f32.mrb[0].mxu0
  %v646 = vadd.f32 0.0, %v645
  %v647 = vpop.f32.mrb[0].mxu0
  %648 = vmatprep.mubr.f32.mxu0 0.0
  %649 = vmatmul.mubr.f32.gmra.mrb[0].mxu0 %v527
  %v650 = vpop.f32.mrb[0].mxu0
  %v651 = vadd.f32 0.0, %v650
  %v652 = vpop.f32.mrb[0].mxu0
  %653 = vmatprep.mubr.f32.mxu0 0.0
  %654 = vmatmul.mubr.f32.gmra.mrb[0].mxu0 %v528
  %v655 = vpop.f32.mrb[0].mxu0
  %v656 = vadd.f32 0.0, %v655
  %v657 = vpop.f32.mrb[0].mxu0
  %658 = vmatprep.mubr.f32.mxu0 0.0
  %659 = vmatmul.mubr.f32.gmra.mrb[0].mxu0 %v529
  %v660 = vpop.f32.mrb[0].mxu0
  %v661 = vadd.f32 0.0, %v660
  %v662 = vpop.f32.mrb[0].mxu0
  %663 = vmatprep.mubr.f32.mxu0 0.0
  %664 = vmatmul.mubr.f32.gmra.mrb[0].mxu0 %v530
  %v665 = vpop.f32.mrb[0].mxu0
  %v666 = vadd.f32 0.0, %v665
  %v667 = vpop.f32.mrb[0].mxu0
  %668 = vmatprep.mubr.f32.mxu0 0.0
  %669 = vmatmul.mubr.f32.gmra.mrb[0].mxu0 %v531
  %v670 = vpop.f32.mrb[0].mxu0
  %v671 = vadd.f32 0.0, %v670
  %v672 = vpop.f32.mrb[0].mxu0
  %673 = vmatprep.mubr.f32.mxu0 0.0
  %674 = vmatmul.mubr.f32.gmra.mrb[0].mxu0 %v532
  %v675 = vpop.f32.mrb[0].mxu0
  %v676 = vadd.f32 0.0, %v675
  %v677 = vpop.f32.mrb[0].mxu0
  %678 = vmatprep.mubr.f32.mxu0 0.0
  %679 = vmatmul.mubr.f32.gmra.mrb[0].mxu0 %v533
  %v680 = vpop.f32.mrb[0].mxu0
  %v681 = vadd.f32 0.0, %v680
  %v682 = vpop.f32.mrb[0].mxu0
  %683 = vmatprep.mubr.f32.mxu0 0.0
  %684 = vmatmul.mubr.f32.gmra.mrb[0].mxu0 %v534
  %v685 = vpop.f32.mrb[0].mxu0
  %v686 = vadd.f32 0.0, %v685
  %v687 = vpop.f32.mrb[0].mxu0
  %688 = vmatprep.mubr.f32.mxu0 0.0
  %689 = vmatmul.mubr.f32.gmra.mrb[0].mxu0 %v535
  %v690 = vpop.f32.mrb[0].mxu0
  %v691 = vadd.f32 0.0, %v690
  %v692 = vpop.f32.mrb[0].mxu0
  %693 = vmatprep.mubr.f32.mxu0 0.0
  %694 = vmatmul.mubr.f32.gmra.mrb[0].mxu0 %v536
  %v695 = vpop.f32.mrb[0].mxu0
  %v696 = vadd.f32 0.0, %v695
  %v697 = vpop.f32.mrb[0].mxu0
  %698 = vdwg.mxu0
  %s699 = scalar_lea.vmem %s2, 256
  %700 = vst [vmem:[%s699] sm:$0xff] %v621
  %701 = vst [vmem:[%s699 + $0x8] sm:$0xff] %v626
  %702 = vst [vmem:[%s699 + $0x10] sm:$0xff] %v631
  %703 = vst [vmem:[%s699 + $0x18] sm:$0xff] %v636
  %704 = vst [vmem:[%s699 + $0x20] sm:$0xff] %v641
  %705 = vst [vmem:[%s699 + $0x28] sm:$0xff] %v646
  %706 = vst [vmem:[%s699 + $0x30] sm:$0xff] %v651
  %707 = vst [vmem:[%s699 + $0x38] sm:$0xff] %v656
  %708 = vst [vmem:[%s699 + $0x40] sm:$0xff] %v661
  %709 = vst [vmem:[%s699 + $0x48] sm:$0xff] %v666
  %710 = vst [vmem:[%s699 + $0x50] sm:$0xff] %v671
  %711 = vst [vmem:[%s699 + $0x58] sm:$0xff] %v676
  %712 = vst [vmem:[%s699 + $0x60] sm:$0xff] %v681
  %713 = vst [vmem:[%s699 + $0x68] sm:$0xff] %v686
  %714 = vst [vmem:[%s699 + $0x70] sm:$0xff] %v691
  %715 = vst [vmem:[%s699 + $0x78] sm:$0xff] %v696
  %v716 = vadd.f32 %v621, %v626
  %v717 = vadd.f32 %v716, %v631
  %v718 = vadd.f32 %v717, %v636
  %v719 = vadd.f32 %v718, %v641
  %v720 = vadd.f32 %v719, %v646
  %v721 = vadd.f32 %v720, %v651
  %v722 = vadd.f32 %v721, %v656
  %v723 = vadd.f32 %v722, %v661
  %v724 = vadd.f32 %v723, %v666
  %v725 = vadd.f32 %v724, %v671
  %v726 = vadd.f32 %v725, %v676
  %v727 = vadd.f32 %v726, %v681
  %v728 = vadd.f32 %v727, %v686
  %v729 = vadd.f32 %v728, %v691
  %v730 = vadd.f32 %v729, %v696
  %v731 = vrot.slane %v730, 4
  %v732 = vadd.f32 %v730, %v731
  %v733 = vrot.slane %v732, 2
  %v734 = vadd.f32 %v732, %v733
  %v735 = vrot.slane %v734, 1
  %v736 = vadd.f32 %v734, %v735
  %v737 = vadd.f32 %v481, %v736
  %v738 = vmul.f32 %v621, %v621
  %v739 = vmul.f32 %v626, %v626
  %v740 = vmul.f32 %v631, %v631
  %v741 = vmul.f32 %v636, %v636
  %v742 = vmul.f32 %v641, %v641
  %v743 = vmul.f32 %v646, %v646
  %v744 = vmul.f32 %v651, %v651
  %v745 = vmul.f32 %v656, %v656
  %v746 = vmul.f32 %v661, %v661
  %v747 = vmul.f32 %v666, %v666
  %v748 = vmul.f32 %v671, %v671
  %v749 = vmul.f32 %v676, %v676
  %v750 = vmul.f32 %v681, %v681
  %v751 = vmul.f32 %v686, %v686
  %v752 = vmul.f32 %v691, %v691
  %v753 = vmul.f32 %v696, %v696
  %v754 = vadd.f32 %v738, %v739
  %v755 = vadd.f32 %v754, %v740
  %v756 = vadd.f32 %v755, %v741
  %v757 = vadd.f32 %v756, %v742
  %v758 = vadd.f32 %v757, %v743
  %v759 = vadd.f32 %v758, %v744
  %v760 = vadd.f32 %v759, %v745
  %v761 = vadd.f32 %v760, %v746
  %v762 = vadd.f32 %v761, %v747
  %v763 = vadd.f32 %v762, %v748
  %v764 = vadd.f32 %v763, %v749
  %v765 = vadd.f32 %v764, %v750
  %v766 = vadd.f32 %v765, %v751
  %v767 = vadd.f32 %v766, %v752
  %v768 = vadd.f32 %v767, %v753
  %v769 = vrot.slane %v768, 4
  %v770 = vadd.f32 %v768, %v769
  %v771 = vrot.slane %v770, 2
  %v772 = vadd.f32 %v770, %v771
  %v773 = vrot.slane %v772, 1
  %v774 = vadd.f32 %v772, %v773
  %v775 = vadd.f32 %v519, %v774
  %s776 = scalar_lea.vmem %s0, 384
  %v777 = vld [vmem:[%s776] sm:$0xff]
  %v778 = vld [vmem:[%s776 + $0x8] sm:$0xff]
  %v779 = vld [vmem:[%s776 + $0x10] sm:$0xff]
  %v780 = vld [vmem:[%s776 + $0x18] sm:$0xff]
  %v781 = vld [vmem:[%s776 + $0x20] sm:$0xff]
  %v782 = vld [vmem:[%s776 + $0x28] sm:$0xff]
  %v783 = vld [vmem:[%s776 + $0x30] sm:$0xff]
  %v784 = vld [vmem:[%s776 + $0x38] sm:$0xff]
  %v785 = vld [vmem:[%s776 + $0x40] sm:$0xff]
  %v786 = vld [vmem:[%s776 + $0x48] sm:$0xff]
  %v787 = vld [vmem:[%s776 + $0x50] sm:$0xff]
  %v788 = vld [vmem:[%s776 + $0x58] sm:$0xff]
  %v789 = vld [vmem:[%s776 + $0x60] sm:$0xff]
  %v790 = vld [vmem:[%s776 + $0x68] sm:$0xff]
  %v791 = vld [vmem:[%s776 + $0x70] sm:$0xff]
  %v792 = vld [vmem:[%s776 + $0x78] sm:$0xff]
  %s793 = scalar_lea.vmem %s1, 384
  %v794 = vld [vmem:[%s793] sm:$0xff]
  %v795 = vld [vmem:[%s793 + $0x8] sm:$0xff]
  %v796 = vld [vmem:[%s793 + $0x10] sm:$0xff]
  %v797 = vld [vmem:[%s793 + $0x18] sm:$0xff]
  %v798 = vld [vmem:[%s793 + $0x20] sm:$0xff]
  %v799 = vld [vmem:[%s793 + $0x28] sm:$0xff]
  %v800 = vld [vmem:[%s793 + $0x30] sm:$0xff]
  %v801 = vld [vmem:[%s793 + $0x38] sm:$0xff]
  %v802 = vld [vmem:[%s793 + $0x40] sm:$0xff]
  %v803 = vld [vmem:[%s793 + $0x48] sm:$0xff]
  %v804 = vld [vmem:[%s793 + $0x50] sm:$0xff]
  %v805 = vld [vmem:[%s793 + $0x58] sm:$0xff]
  %v806 = vld [vmem:[%s793 + $0x60] sm:$0xff]
  %v807 = vld [vmem:[%s793 + $0x68] sm:$0xff]
  %v808 = vld [vmem:[%s793 + $0x70] sm:$0xff]
  %v809 = vld [vmem:[%s793 + $0x78] sm:$0xff]
  %810 = vmatprep.subr.mxu0 0.0
  %811 = vmatpush1.msra.mxu0 %v794
  %812 = vmatprep.subr.mxu0 0.0
  %813 = vmatpush1.msra.mxu0 %v795
  %814 = vmatprep.subr.mxu0 0.0
  %815 = vmatpush1.msra.mxu0 %v796
  %816 = vmatprep.subr.mxu0 0.0
  %817 = vmatpush1.msra.mxu0 %v797
  %818 = vmatprep.subr.mxu0 0.0
  %819 = vmatpush1.msra.mxu0 %v798
  %820 = vmatprep.subr.mxu0 0.0
  %821 = vmatpush1.msra.mxu0 %v799
  %822 = vmatprep.subr.mxu0 0.0
  %823 = vmatpush1.msra.mxu0 %v800
  %824 = vmatprep.subr.mxu0 0.0
  %825 = vmatpush1.msra.mxu0 %v801
  %826 = vmatprep.subr.mxu0 0.0
  %827 = vmatpush1.msra.mxu0 %v802
  %828 = vmatprep.subr.mxu0 0.0
  %829 = vmatpush1.msra.mxu0 %v803
  %830 = vmatprep.subr.mxu0 0.0
  %831 = vmatpush1.msra.mxu0 %v804
  %832 = vmatprep.subr.mxu0 0.0
  %833 = vmatpush1.msra.mxu0 %v805
  %834 = vmatprep.subr.mxu0 0.0
  %835 = vmatpush1.msra.mxu0 %v806
  %836 = vmatprep.subr.mxu0 0.0
  %837 = vmatpush1.msra.mxu0 %v807
  %838 = vmatprep.subr.mxu0 0.0
  %839 = vmatpush1.msra.mxu0 %v808
  %840 = vmatprep.subr.mxu0 0.0
  %841 = vmatpush1.msra.mxu0 %v809
  %842 = vmatprep.subr.mxu0 0.0
  %843 = vmatpush1.msra.mxu0 0.0
  %844 = vmatprep.subr.mxu0 0.0
  %845 = vmatpush1.msra.mxu0 0.0
  %846 = vmatprep.subr.mxu0 0.0
  %847 = vmatpush1.msra.mxu0 0.0
  %848 = vmatprep.subr.mxu0 0.0
  %849 = vmatpush1.msra.mxu0 0.0
  %850 = vmatprep.subr.mxu0 0.0
  %851 = vmatpush1.msra.mxu0 0.0
  %852 = vmatprep.subr.mxu0 0.0
  %853 = vmatpush1.msra.mxu0 0.0
  %854 = vmatprep.subr.mxu0 0.0
  %855 = vmatpush1.msra.mxu0 0.0
  %856 = vmatprep.subr.mxu0 0.0
  %857 = vmatpush1.msra.mxu0 0.0
  %858 = vmatprep.subr.mxu0 0.0
  %859 = vmatpush1.msra.mxu0 0.0
  %860 = vmatprep.subr.mxu0 0.0
  %861 = vmatpush1.msra.mxu0 0.0
  %862 = vmatprep.subr.mxu0 0.0
  %863 = vmatpush1.msra.mxu0 0.0
  %864 = vmatprep.subr.mxu0 0.0
  %865 = vmatpush1.msra.mxu0 0.0
  %866 = vmatprep.subr.mxu0 0.0
  %867 = vmatpush1.msra.mxu0 0.0
  %868 = vmatprep.subr.mxu0 0.0
  %869 = vmatpush1.msra.mxu0 0.0
  %870 = vmatprep.subr.mxu0 0.0
  %871 = vmatpush1.msra.mxu0 0.0
  %872 = vmatprep.subr.mxu0 0.0
  %873 = vmatpush1.msra.mxu0 0.0
  %874 = vmatprep.mubr.f32.mxu0 0.0
  %875 = vmatmul.mubr.f32.gmra.mrb[0].mxu0 %v777
  %v876 = vpop.f32.mrb[0].mxu0
  %v877 = vadd.f32 0.0, %v876
  %v878 = vpop.f32.mrb[0].mxu0
  %879 = vmatprep.mubr.f32.mxu0 0.0
  %880 = vmatmul.mubr.f32.gmra.mrb[0].mxu0 %v778
  %v881 = vpop.f32.mrb[0].mxu0
  %v882 = vadd.f32 0.0, %v881
  %v883 = vpop.f32.mrb[0].mxu0
  %884 = vmatprep.mubr.f32.mxu0 0.0
  %885 = vmatmul.mubr.f32.gmra.mrb[0].mxu0 %v779
  %v886 = vpop.f32.mrb[0].mxu0
  %v887 = vadd.f32 0.0, %v886
  %v888 = vpop.f32.mrb[0].mxu0
  %889 = vmatprep.mubr.f32.mxu0 0.0
  %890 = vmatmul.mubr.f32.gmra.mrb[0].mxu0 %v780
  %v891 = vpop.f32.mrb[0].mxu0
  %v892 = vadd.f32 0.0, %v891
  %v893 = vpop.f32.mrb[0].mxu0
  %894 = vmatprep.mubr.f32.mxu0 0.0
  %895 = vmatmul.mubr.f32.gmra.mrb[0].mxu0 %v781
  %v896 = vpop.f32.mrb[0].mxu0
  %v897 = vadd.f32 0.0, %v896
  %v898 = vpop.f32.mrb[0].mxu0
  %899 = vmatprep.mubr.f32.mxu0 0.0
  %900 = vmatmul.mubr.f32.gmra.mrb[0].mxu0 %v782
  %v901 = vpop.f32.mrb[0].mxu0
  %v902 = vadd.f32 0.0, %v901
  %v903 = vpop.f32.mrb[0].mxu0
  %904 = vmatprep.mubr.f32.mxu0 0.0
  %905 = vmatmul.mubr.f32.gmra.mrb[0].mxu0 %v783
  %v906 = vpop.f32.mrb[0].mxu0
  %v907 = vadd.f32 0.0, %v906
  %v908 = vpop.f32.mrb[0].mxu0
  %909 = vmatprep.mubr.f32.mxu0 0.0
  %910 = vmatmul.mubr.f32.gmra.mrb[0].mxu0 %v784
  %v911 = vpop.f32.mrb[0].mxu0
  %v912 = vadd.f32 0.0, %v911
  %v913 = vpop.f32.mrb[0].mxu0
  %914 = vmatprep.mubr.f32.mxu0 0.0
  %915 = vmatmul.mubr.f32.gmra.mrb[0].mxu0 %v785
  %v916 = vpop.f32.mrb[0].mxu0
  %v917 = vadd.f32 0.0, %v916
  %v918 = vpop.f32.mrb[0].mxu0
  %919 = vmatprep.mubr.f32.mxu0 0.0
  %920 = vmatmul.mubr.f32.gmra.mrb[0].mxu0 %v786
  %v921 = vpop.f32.mrb[0].mxu0
  %v922 = vadd.f32 0.0, %v921
  %v923 = vpop.f32.mrb[0].mxu0
  %924 = vmatprep.mubr.f32.mxu0 0.0
  %925 = vmatmul.mubr.f32.gmra.mrb[0].mxu0 %v787
  %v926 = vpop.f32.mrb[0].mxu0
  %v927 = vadd.f32 0.0, %v926
  %v928 = vpop.f32.mrb[0].mxu0
  %929 = vmatprep.mubr.f32.mxu0 0.0
  %930 = vmatmul.mubr.f32.gmra.mrb[0].mxu0 %v788
  %v931 = vpop.f32.mrb[0].mxu0
  %v932 = vadd.f32 0.0, %v931
  %v933 = vpop.f32.mrb[0].mxu0
  %934 = vmatprep.mubr.f32.mxu0 0.0
  %935 = vmatmul.mubr.f32.gmra.mrb[0].mxu0 %v789
  %v936 = vpop.f32.mrb[0].mxu0
  %v937 = vadd.f32 0.0, %v936
  %v938 = vpop.f32.mrb[0].mxu0
  %939 = vmatprep.mubr.f32.mxu0 0.0
  %940 = vmatmul.mubr.f32.gmra.mrb[0].mxu0 %v790
  %v941 = vpop.f32.mrb[0].mxu0
  %v942 = vadd.f32 0.0, %v941
  %v943 = vpop.f32.mrb[0].mxu0
  %944 = vmatprep.mubr.f32.mxu0 0.0
  %945 = vmatmul.mubr.f32.gmra.mrb[0].mxu0 %v791
  %v946 = vpop.f32.mrb[0].mxu0
  %v947 = vadd.f32 0.0, %v946
  %v948 = vpop.f32.mrb[0].mxu0
  %949 = vmatprep.mubr.f32.mxu0 0.0
  %950 = vmatmul.mubr.f32.gmra.mrb[0].mxu0 %v792
  %v951 = vpop.f32.mrb[0].mxu0
  %v952 = vadd.f32 0.0, %v951
  %v953 = vpop.f32.mrb[0].mxu0
  %954 = vdwg.mxu0
  %s955 = scalar_lea.vmem %s2, 384
  %956 = vst [vmem:[%s955] sm:$0xff] %v877
  %957 = vst [vmem:[%s955 + $0x8] sm:$0xff] %v882
  %958 = vst [vmem:[%s955 + $0x10] sm:$0xff] %v887
  %959 = vst [vmem:[%s955 + $0x18] sm:$0xff] %v892
  %960 = vst [vmem:[%s955 + $0x20] sm:$0xff] %v897
  %961 = vst [vmem:[%s955 + $0x28] sm:$0xff] %v902
  %962 = vst [vmem:[%s955 + $0x30] sm:$0xff] %v907
  %963 = vst [vmem:[%s955 + $0x38] sm:$0xff] %v912
  %964 = vst [vmem:[%s955 + $0x40] sm:$0xff] %v917
  %965 = vst [vmem:[%s955 + $0x48] sm:$0xff] %v922
  %966 = vst [vmem:[%s955 + $0x50] sm:$0xff] %v927
  %967 = vst [vmem:[%s955 + $0x58] sm:$0xff] %v932
  %968 = vst [vmem:[%s955 + $0x60] sm:$0xff] %v937
  %969 = vst [vmem:[%s955 + $0x68] sm:$0xff] %v942
  %970 = vst [vmem:[%s955 + $0x70] sm:$0xff] %v947
  %971 = vst [vmem:[%s955 + $0x78] sm:$0xff] %v952
  %v972 = vadd.f32 %v877, %v882
  %v973 = vadd.f32 %v972, %v887
  %v974 = vadd.f32 %v973, %v892
  %v975 = vadd.f32 %v974, %v897
  %v976 = vadd.f32 %v975, %v902
  %v977 = vadd.f32 %v976, %v907
  %v978 = vadd.f32 %v977, %v912
  %v979 = vadd.f32 %v978, %v917
  %v980 = vadd.f32 %v979, %v922
  %v981 = vadd.f32 %v980, %v927
  %v982 = vadd.f32 %v981, %v932
  %v983 = vadd.f32 %v982, %v937
  %v984 = vadd.f32 %v983, %v942
  %v985 = vadd.f32 %v984, %v947
  %v986 = vadd.f32 %v985, %v952
  %v987 = vrot.slane %v986, 4
  %v988 = vadd.f32 %v986, %v987
  %v989 = vrot.slane %v988, 2
  %v990 = vadd.f32 %v988, %v989
  %v991 = vrot.slane %v990, 1
  %v992 = vadd.f32 %v990, %v991
  %v993 = vadd.f32 %v737, %v992
  %v994 = vmul.f32 %v877, %v877
  %v995 = vmul.f32 %v882, %v882
  %v996 = vmul.f32 %v887, %v887
  %v997 = vmul.f32 %v892, %v892
  %v998 = vmul.f32 %v897, %v897
  %v999 = vmul.f32 %v902, %v902
  %v1000 = vmul.f32 %v907, %v907
  %v1001 = vmul.f32 %v912, %v912
  %v1002 = vmul.f32 %v917, %v917
  %v1003 = vmul.f32 %v922, %v922
  %v1004 = vmul.f32 %v927, %v927
  %v1005 = vmul.f32 %v932, %v932
  %v1006 = vmul.f32 %v937, %v937
  %v1007 = vmul.f32 %v942, %v942
  %v1008 = vmul.f32 %v947, %v947
  %v1009 = vmul.f32 %v952, %v952
  %v1010 = vadd.f32 %v994, %v995
  %v1011 = vadd.f32 %v1010, %v996
  %v1012 = vadd.f32 %v1011, %v997
  %v1013 = vadd.f32 %v1012, %v998
  %v1014 = vadd.f32 %v1013, %v999
  %v1015 = vadd.f32 %v1014, %v1000
  %v1016 = vadd.f32 %v1015, %v1001
  %v1017 = vadd.f32 %v1016, %v1002
  %v1018 = vadd.f32 %v1017, %v1003
  %v1019 = vadd.f32 %v1018, %v1004
  %v1020 = vadd.f32 %v1019, %v1005
  %v1021 = vadd.f32 %v1020, %v1006
  %v1022 = vadd.f32 %v1021, %v1007
  %v1023 = vadd.f32 %v1022, %v1008
  %v1024 = vadd.f32 %v1023, %v1009
  %v1025 = vrot.slane %v1024, 4
  %v1026 = vadd.f32 %v1024, %v1025
  %v1027 = vrot.slane %v1026, 2
  %v1028 = vadd.f32 %v1026, %v1027
  %v1029 = vrot.slane %v1028, 1
  %v1030 = vadd.f32 %v1028, %v1029
  %v1031 = vadd.f32 %v775, %v1030
  %v1032 = vrcp.pop 512.0
  %v1033 = vmul.f32 %v993, %v1032
  %v1034 = vmul.f32 %v1031, %v1032
  %v1035 = vmul.f32 %v1033, %v1033
  %v1036 = vsub.f32 %v1034, %v1035
  %v1037 = vadd.f32 %v1036, 1e-05
  %v1038 = vrsqrt.pop %v1037
  %v1039 = vsub.f32 0.0, %v1033
  %v1040 = vmul.f32 %v1039, %v1038
  %v1041 = vld [vmem:[%s2] sm:$0xff]
  %v1042 = vld [vmem:[%s2 + $0x8] sm:$0xff]
  %v1043 = vld [vmem:[%s2 + $0x10] sm:$0xff]
  %v1044 = vld [vmem:[%s2 + $0x18] sm:$0xff]
  %v1045 = vld [vmem:[%s2 + $0x20] sm:$0xff]
  %v1046 = vld [vmem:[%s2 + $0x28] sm:$0xff]
  %v1047 = vld [vmem:[%s2 + $0x30] sm:$0xff]
  %v1048 = vld [vmem:[%s2 + $0x38] sm:$0xff]
  %v1049 = vld [vmem:[%s2 + $0x40] sm:$0xff]
  %v1050 = vld [vmem:[%s2 + $0x48] sm:$0xff]
  %v1051 = vld [vmem:[%s2 + $0x50] sm:$0xff]
  %v1052 = vld [vmem:[%s2 + $0x58] sm:$0xff]
  %v1053 = vld [vmem:[%s2 + $0x60] sm:$0xff]
  %v1054 = vld [vmem:[%s2 + $0x68] sm:$0xff]
  %v1055 = vld [vmem:[%s2 + $0x70] sm:$0xff]
  %v1056 = vld [vmem:[%s2 + $0x78] sm:$0xff]
  %v1057 = vmul.f32 %v1041, %v1038
  %v1058 = vmul.f32 %v1042, %v1038
  %v1059 = vmul.f32 %v1043, %v1038
  %v1060 = vmul.f32 %v1044, %v1038
  %v1061 = vmul.f32 %v1045, %v1038
  %v1062 = vmul.f32 %v1046, %v1038
  %v1063 = vmul.f32 %v1047, %v1038
  %v1064 = vmul.f32 %v1048, %v1038
  %v1065 = vmul.f32 %v1049, %v1038
  %v1066 = vmul.f32 %v1050, %v1038
  %v1067 = vmul.f32 %v1051, %v1038
  %v1068 = vmul.f32 %v1052, %v1038
  %v1069 = vmul.f32 %v1053, %v1038
  %v1070 = vmul.f32 %v1054, %v1038
  %v1071 = vmul.f32 %v1055, %v1038
  %v1072 = vmul.f32 %v1056, %v1038
  %v1073 = vadd.f32 %v1057, %v1040
  %v1074 = vadd.f32 %v1058, %v1040
  %v1075 = vadd.f32 %v1059, %v1040
  %v1076 = vadd.f32 %v1060, %v1040
  %v1077 = vadd.f32 %v1061, %v1040
  %v1078 = vadd.f32 %v1062, %v1040
  %v1079 = vadd.f32 %v1063, %v1040
  %v1080 = vadd.f32 %v1064, %v1040
  %v1081 = vadd.f32 %v1065, %v1040
  %v1082 = vadd.f32 %v1066, %v1040
  %v1083 = vadd.f32 %v1067, %v1040
  %v1084 = vadd.f32 %v1068, %v1040
  %v1085 = vadd.f32 %v1069, %v1040
  %v1086 = vadd.f32 %v1070, %v1040
  %v1087 = vadd.f32 %v1071, %v1040
  %v1088 = vadd.f32 %v1072, %v1040
  %v1089 = vmax.f32 %v1073, 0.0
  %v1090 = vmax.f32 %v1074, 0.0
  %v1091 = vmax.f32 %v1075, 0.0
  %v1092 = vmax.f32 %v1076, 0.0
  %v1093 = vmax.f32 %v1077, 0.0
  %v1094 = vmax.f32 %v1078, 0.0
  %v1095 = vmax.f32 %v1079, 0.0
  %v1096 = vmax.f32 %v1080, 0.0
  %v1097 = vmax.f32 %v1081, 0.0
  %v1098 = vmax.f32 %v1082, 0.0
  %v1099 = vmax.f32 %v1083, 0.0
  %v1100 = vmax.f32 %v1084, 0.0
  %v1101 = vmax.f32 %v1085, 0.0
  %v1102 = vmax.f32 %v1086, 0.0
  %v1103 = vmax.f32 %v1087, 0.0
  %v1104 = vmax.f32 %v1088, 0.0
  %1105 = vst [vmem:[%s2] sm:$0xff] %v1089
  %1106 = vst [vmem:[%s2 + $0x8] sm:$0xff] %v1090
  %1107 = vst [vmem:[%s2 + $0x10] sm:$0xff] %v1091
  %1108 = vst [vmem:[%s2 + $0x18] sm:$0xff] %v1092
  %1109 = vst [vmem:[%s2 + $0x20] sm:$0xff] %v1093
  %1110 = vst [vmem:[%s2 + $0x28] sm:$0xff] %v1094
  %1111 = vst [vmem:[%s2 + $0x30] sm:$0xff] %v1095
  %1112 = vst [vmem:[%s2 + $0x38] sm:$0xff] %v1096
  %1113 = vst [vmem:[%s2 + $0x40] sm:$0xff] %v1097
  %1114 = vst [vmem:[%s2 + $0x48] sm:$0xff] %v1098
  %1115 = vst [vmem:[%s2 + $0x50] sm:$0xff] %v1099
  %1116 = vst [vmem:[%s2 + $0x58] sm:$0xff] %v1100
  %1117 = vst [vmem:[%s2 + $0x60] sm:$0xff] %v1101
  %1118 = vst [vmem:[%s2 + $0x68] sm:$0xff] %v1102
  %1119 = vst [vmem:[%s2 + $0x70] sm:$0xff] %v1103
  %1120 = vst [vmem:[%s2 + $0x78] sm:$0xff] %v1104
  %v1121 = vld [vmem:[%s443] sm:$0xff]
  %v1122 = vld [vmem:[%s443 + $0x8] sm:$0xff]
  %v1123 = vld [vmem:[%s443 + $0x10] sm:$0xff]
  %v1124 = vld [vmem:[%s443 + $0x18] sm:$0xff]
  %v1125 = vld [vmem:[%s443 + $0x20] sm:$0xff]
  %v1126 = vld [vmem:[%s443 + $0x28] sm:$0xff]
  %v1127 = vld [vmem:[%s443 + $0x30] sm:$0xff]
  %v1128 = vld [vmem:[%s443 + $0x38] sm:$0xff]
  %v1129 = vld [vmem:[%s443 + $0x40] sm:$0xff]
  %v1130 = vld [vmem:[%s443 + $0x48] sm:$0xff]
  %v1131 = vld [vmem:[%s443 + $0x50] sm:$0xff]
  %v1132 = vld [vmem:[%s443 + $0x58] sm:$0xff]
  %v1133 = vld [vmem:[%s443 + $0x60] sm:$0xff]
  %v1134 = vld [vmem:[%s443 + $0x68] sm:$0xff]
  %v1135 = vld [vmem:[%s443 + $0x70] sm:$0xff]
  %v1136 = vld [vmem:[%s443 + $0x78] sm:$0xff]
  %v1137 = vmul.f32 %v1121, %v1038
  %v1138 = vmul.f32 %v1122, %v1038
  %v1139 = vmul.f32 %v1123, %v1038
  %v1140 = vmul.f32 %v1124, %v1038
  %v1141 = vmul.f32 %v1125, %v1038
  %v1142 = vmul.f32 %v1126, %v1038
  %v1143 = vmul.f32 %v1127, %v1038
  %v1144 = vmul.f32 %v1128, %v1038
  %v1145 = vmul.f32 %v1129, %v1038
  %v1146 = vmul.f32 %v1130, %v1038
  %v1147 = vmul.f32 %v1131, %v1038
  %v1148 = vmul.f32 %v1132, %v1038
  %v1149 = vmul.f32 %v1133, %v1038
  %v1150 = vmul.f32 %v1134, %v1038
  %v1151 = vmul.f32 %v1135, %v1038
  %v1152 = vmul.f32 %v1136, %v1038
  %v1153 = vadd.f32 %v1137, %v1040
  %v1154 = vadd.f32 %v1138, %v1040
  %v1155 = vadd.f32 %v1139, %v1040
  %v1156 = vadd.f32 %v1140, %v1040
  %v1157 = vadd.f32 %v1141, %v1040
  %v1158 = vadd.f32 %v1142, %v1040
  %v1159 = vadd.f32 %v1143, %v1040
  %v1160 = vadd.f32 %v1144, %v1040
  %v1161 = vadd.f32 %v1145, %v1040
  %v1162 = vadd.f32 %v1146, %v1040
  %v1163 = vadd.f32 %v1147, %v1040
  %v1164 = vadd.f32 %v1148, %v1040
  %v1165 = vadd.f32 %v1149, %v1040
  %v1166 = vadd.f32 %v1150, %v1040
  %v1167 = vadd.f32 %v1151, %v1040
  %v1168 = vadd.f32 %v1152, %v1040
  %v1169 = vmax.f32 %v1153, 0.0
  %v1170 = vmax.f32 %v1154, 0.0
  %v1171 = vmax.f32 %v1155, 0.0
  %v1172 = vmax.f32 %v1156, 0.0
  %v1173 = vmax.f32 %v1157, 0.0
  %v1174 = vmax.f32 %v1158, 0.0
  %v1175 = vmax.f32 %v1159, 0.0
  %v1176 = vmax.f32 %v1160, 0.0
  %v1177 = vmax.f32 %v1161, 0.0
  %v1178 = vmax.f32 %v1162, 0.0
  %v1179 = vmax.f32 %v1163, 0.0
  %v1180 = vmax.f32 %v1164, 0.0
  %v1181 = vmax.f32 %v1165, 0.0
  %v1182 = vmax.f32 %v1166, 0.0
  %v1183 = vmax.f32 %v1167, 0.0
  %v1184 = vmax.f32 %v1168, 0.0
  %1185 = vst [vmem:[%s443] sm:$0xff] %v1169
  %1186 = vst [vmem:[%s443 + $0x8] sm:$0xff] %v1170
  %1187 = vst [vmem:[%s443 + $0x10] sm:$0xff] %v1171
  %1188 = vst [vmem:[%s443 + $0x18] sm:$0xff] %v1172
  %1189 = vst [vmem:[%s443 + $0x20] sm:$0xff] %v1173
  %1190 = vst [vmem:[%s443 + $0x28] sm:$0xff] %v1174
  %1191 = vst [vmem:[%s443 + $0x30] sm:$0xff] %v1175
  %1192 = vst [vmem:[%s443 + $0x38] sm:$0xff] %v1176
  %1193 = vst [vmem:[%s443 + $0x40] sm:$0xff] %v1177
  %1194 = vst [vmem:[%s443 + $0x48] sm:$0xff] %v1178
  %1195 = vst [vmem:[%s443 + $0x50] sm:$0xff] %v1179
  %1196 = vst [vmem:[%s443 + $0x58] sm:$0xff] %v1180
  %1197 = vst [vmem:[%s443 + $0x60] sm:$0xff] %v1181
  %1198 = vst [vmem:[%s443 + $0x68] sm:$0xff] %v1182
  %1199 = vst [vmem:[%s443 + $0x70] sm:$0xff] %v1183
  %1200 = vst [vmem:[%s443 + $0x78] sm:$0xff] %v1184
  %v1201 = vld [vmem:[%s699] sm:$0xff]
  %v1202 = vld [vmem:[%s699 + $0x8] sm:$0xff]
  %v1203 = vld [vmem:[%s699 + $0x10] sm:$0xff]
  %v1204 = vld [vmem:[%s699 + $0x18] sm:$0xff]
  %v1205 = vld [vmem:[%s699 + $0x20] sm:$0xff]
  %v1206 = vld [vmem:[%s699 + $0x28] sm:$0xff]
  %v1207 = vld [vmem:[%s699 + $0x30] sm:$0xff]
  %v1208 = vld [vmem:[%s699 + $0x38] sm:$0xff]
  %v1209 = vld [vmem:[%s699 + $0x40] sm:$0xff]
  %v1210 = vld [vmem:[%s699 + $0x48] sm:$0xff]
  %v1211 = vld [vmem:[%s699 + $0x50] sm:$0xff]
  %v1212 = vld [vmem:[%s699 + $0x58] sm:$0xff]
  %v1213 = vld [vmem:[%s699 + $0x60] sm:$0xff]
  %v1214 = vld [vmem:[%s699 + $0x68] sm:$0xff]
  %v1215 = vld [vmem:[%s699 + $0x70] sm:$0xff]
  %v1216 = vld [vmem:[%s699 + $0x78] sm:$0xff]
  %v1217 = vmul.f32 %v1201, %v1038
  %v1218 = vmul.f32 %v1202, %v1038
  %v1219 = vmul.f32 %v1203, %v1038
  %v1220 = vmul.f32 %v1204, %v1038
  %v1221 = vmul.f32 %v1205, %v1038
  %v1222 = vmul.f32 %v1206, %v1038
  %v1223 = vmul.f32 %v1207, %v1038
  %v1224 = vmul.f32 %v1208, %v1038
  %v1225 = vmul.f32 %v1209, %v1038
  %v1226 = vmul.f32 %v1210, %v1038
  %v1227 = vmul.f32 %v1211, %v1038
  %v1228 = vmul.f32 %v1212, %v1038
  %v1229 = vmul.f32 %v1213, %v1038
  %v1230 = vmul.f32 %v1214, %v1038
  %v1231 = vmul.f32 %v1215, %v1038
  %v1232 = vmul.f32 %v1216, %v1038
  %v1233 = vadd.f32 %v1217, %v1040
  %v1234 = vadd.f32 %v1218, %v1040
  %v1235 = vadd.f32 %v1219, %v1040
  %v1236 = vadd.f32 %v1220, %v1040
  %v1237 = vadd.f32 %v1221, %v1040
  %v1238 = vadd.f32 %v1222, %v1040
  %v1239 = vadd.f32 %v1223, %v1040
  %v1240 = vadd.f32 %v1224, %v1040
  %v1241 = vadd.f32 %v1225, %v1040
  %v1242 = vadd.f32 %v1226, %v1040
  %v1243 = vadd.f32 %v1227, %v1040
  %v1244 = vadd.f32 %v1228, %v1040
  %v1245 = vadd.f32 %v1229, %v1040
  %v1246 = vadd.f32 %v1230, %v1040
  %v1247 = vadd.f32 %v1231, %v1040
  %v1248 = vadd.f32 %v1232, %v1040
  %v1249 = vmax.f32 %v1233, 0.0
  %v1250 = vmax.f32 %v1234, 0.0
  %v1251 = vmax.f32 %v1235, 0.0
  %v1252 = vmax.f32 %v1236, 0.0
  %v1253 = vmax.f32 %v1237, 0.0
  %v1254 = vmax.f32 %v1238, 0.0
  %v1255 = vmax.f32 %v1239, 0.0
  %v1256 = vmax.f32 %v1240, 0.0
  %v1257 = vmax.f32 %v1241, 0.0
  %v1258 = vmax.f32 %v1242, 0.0
  %v1259 = vmax.f32 %v1243, 0.0
  %v1260 = vmax.f32 %v1244, 0.0
  %v1261 = vmax.f32 %v1245, 0.0
  %v1262 = vmax.f32 %v1246, 0.0
  %v1263 = vmax.f32 %v1247, 0.0
  %v1264 = vmax.f32 %v1248, 0.0
  %1265 = vst [vmem:[%s699] sm:$0xff] %v1249
  %1266 = vst [vmem:[%s699 + $0x8] sm:$0xff] %v1250
  %1267 = vst [vmem:[%s699 + $0x10] sm:$0xff] %v1251
  %1268 = vst [vmem:[%s699 + $0x18] sm:$0xff] %v1252
  %1269 = vst [vmem:[%s699 + $0x20] sm:$0xff] %v1253
  %1270 = vst [vmem:[%s699 + $0x28] sm:$0xff] %v1254
  %1271 = vst [vmem:[%s699 + $0x30] sm:$0xff] %v1255
  %1272 = vst [vmem:[%s699 + $0x38] sm:$0xff] %v1256
  %1273 = vst [vmem:[%s699 + $0x40] sm:$0xff] %v1257
  %1274 = vst [vmem:[%s699 + $0x48] sm:$0xff] %v1258
  %1275 = vst [vmem:[%s699 + $0x50] sm:$0xff] %v1259
  %1276 = vst [vmem:[%s699 + $0x58] sm:$0xff] %v1260
  %1277 = vst [vmem:[%s699 + $0x60] sm:$0xff] %v1261
  %1278 = vst [vmem:[%s699 + $0x68] sm:$0xff] %v1262
  %1279 = vst [vmem:[%s699 + $0x70] sm:$0xff] %v1263
  %1280 = vst [vmem:[%s699 + $0x78] sm:$0xff] %v1264
  %v1281 = vld [vmem:[%s955] sm:$0xff]
  %v1282 = vld [vmem:[%s955 + $0x8] sm:$0xff]
  %v1283 = vld [vmem:[%s955 + $0x10] sm:$0xff]
  %v1284 = vld [vmem:[%s955 + $0x18] sm:$0xff]
  %v1285 = vld [vmem:[%s955 + $0x20] sm:$0xff]
  %v1286 = vld [vmem:[%s955 + $0x28] sm:$0xff]
  %v1287 = vld [vmem:[%s955 + $0x30] sm:$0xff]
  %v1288 = vld [vmem:[%s955 + $0x38] sm:$0xff]
  %v1289 = vld [vmem:[%s955 + $0x40] sm:$0xff]
  %v1290 = vld [vmem:[%s955 + $0x48] sm:$0xff]
  %v1291 = vld [vmem:[%s955 + $0x50] sm:$0xff]
  %v1292 = vld [vmem:[%s955 + $0x58] sm:$0xff]
  %v1293 = vld [vmem:[%s955 + $0x60] sm:$0xff]
  %v1294 = vld [vmem:[%s955 + $0x68] sm:$0xff]
  %v1295 = vld [vmem:[%s955 + $0x70] sm:$0xff]
  %v1296 = vld [vmem:[%s955 + $0x78] sm:$0xff]
  %v1297 = vmul.f32 %v1281, %v1038
  %v1298 = vmul.f32 %v1282, %v1038
  %v1299 = vmul.f32 %v1283, %v1038
  %v1300 = vmul.f32 %v1284, %v1038
  %v1301 = vmul.f32 %v1285, %v1038
  %v1302 = vmul.f32 %v1286, %v1038
  %v1303 = vmul.f32 %v1287, %v1038
  %v1304 = vmul.f32 %v1288, %v1038
  %v1305 = vmul.f32 %v1289, %v1038
  %v1306 = vmul.f32 %v1290, %v1038
  %v1307 = vmul.f32 %v1291, %v1038
  %v1308 = vmul.f32 %v1292, %v1038
  %v1309 = vmul.f32 %v1293, %v1038
  %v1310 = vmul.f32 %v1294, %v1038
  %v1311 = vmul.f32 %v1295, %v1038
  %v1312 = vmul.f32 %v1296, %v1038
  %v1313 = vadd.f32 %v1297, %v1040
  %v1314 = vadd.f32 %v1298, %v1040
  %v1315 = vadd.f32 %v1299, %v1040
  %v1316 = vadd.f32 %v1300, %v1040
  %v1317 = vadd.f32 %v1301, %v1040
  %v1318 = vadd.f32 %v1302, %v1040
  %v1319 = vadd.f32 %v1303, %v1040
  %v1320 = vadd.f32 %v1304, %v1040
  %v1321 = vadd.f32 %v1305, %v1040
  %v1322 = vadd.f32 %v1306, %v1040
  %v1323 = vadd.f32 %v1307, %v1040
  %v1324 = vadd.f32 %v1308, %v1040
  %v1325 = vadd.f32 %v1309, %v1040
  %v1326 = vadd.f32 %v1310, %v1040
  %v1327 = vadd.f32 %v1311, %v1040
  %v1328 = vadd.f32 %v1312, %v1040
  %v1329 = vmax.f32 %v1313, 0.0
  %v1330 = vmax.f32 %v1314, 0.0
  %v1331 = vmax.f32 %v1315, 0.0
  %v1332 = vmax.f32 %v1316, 0.0
  %v1333 = vmax.f32 %v1317, 0.0
  %v1334 = vmax.f32 %v1318, 0.0
  %v1335 = vmax.f32 %v1319, 0.0
  %v1336 = vmax.f32 %v1320, 0.0
  %v1337 = vmax.f32 %v1321, 0.0
  %v1338 = vmax.f32 %v1322, 0.0
  %v1339 = vmax.f32 %v1323, 0.0
  %v1340 = vmax.f32 %v1324, 0.0
  %v1341 = vmax.f32 %v1325, 0.0
  %v1342 = vmax.f32 %v1326, 0.0
  %v1343 = vmax.f32 %v1327, 0.0
  %v1344 = vmax.f32 %v1328, 0.0
  %1345 = vst [vmem:[%s955] sm:$0xff] %v1329
  %1346 = vst [vmem:[%s955 + $0x8] sm:$0xff] %v1330
  %1347 = vst [vmem:[%s955 + $0x10] sm:$0xff] %v1331
  %1348 = vst [vmem:[%s955 + $0x18] sm:$0xff] %v1332
  %1349 = vst [vmem:[%s955 + $0x20] sm:$0xff] %v1333
  %1350 = vst [vmem:[%s955 + $0x28] sm:$0xff] %v1334
  %1351 = vst [vmem:[%s955 + $0x30] sm:$0xff] %v1335
  %1352 = vst [vmem:[%s955 + $0x38] sm:$0xff] %v1336
  %1353 = vst [vmem:[%s955 + $0x40] sm:$0xff] %v1337
  %1354 = vst [vmem:[%s955 + $0x48] sm:$0xff] %v1338
  %1355 = vst [vmem:[%s955 + $0x50] sm:$0xff] %v1339
  %1356 = vst [vmem:[%s955 + $0x58] sm:$0xff] %v1340
  %1357 = vst [vmem:[%s955 + $0x60] sm:$0xff] %v1341
  %1358 = vst [vmem:[%s955 + $0x68] sm:$0xff] %v1342
  %1359 = vst [vmem:[%s955 + $0x70] sm:$0xff] %v1343
  %1360 = vst [vmem:[%s955 + $0x78] sm:$0xff] %v1344
  // Predicated region
  $region10: #{generator_forward.6} parent=0 // pred_check
    _
  $region11: #{generator_forward.6} parent=0 // pred_check_branch
    %1362 = sbr.rel (0) target = $region13
  $region12: #{generator_forward.6} parent=0 // pred_region
    _
  $region13: #{generator_forward.6} parent=0 // pred_fallthru
    _
  // Predicated region
  $region14: #{generator_forward.6} parent=0 // pred_check
    _
  $region15: #{generator_forward.6} parent=0 // pred_check_branch
    %1364 = sbr.rel (0) target = $region17
  $region16: #{generator_forward.6} parent=0 // pred_region
    _
  $region17: #{generator_forward.6} parent=0 // pred_fallthru
    _

// kernel: generator_forward.7
$region0: #{generator_forward.7}
  #allocation0 [shape = 'u32[]', space=smem, size = 0x4, offset = 0x4, fixed_abs, tag = 'smem constant byte address 0x4 - core index']
  #allocation1 [shape = 'u32[144,128]{1,0:T(1,128)}', space=vmem, size = 0x12000, scoped, tag = 'internal scratch']
  %s0 = inlined_call_operand.vmem [shape: f32[4,512,64], index: 0, kind: input, shape index: {}]
  %s1 = inlined_call_operand.vmem [shape: f32[4,64,128], index: 1, kind: input, shape index: {}]
  %s2 = inlined_call_operand.vmem [shape: f32[1,128], index: 2, kind: input, shape index: {}]
  %s3 = inlined_call_operand.vmem [shape: f32[4,512,128], index: 3, kind: output, shape index: {}]
  %s4 = sld [smem:[#allocation0]]
  $region22: #{generator_forward.7} parent=0
    _
  %s6 = ssub.s32 1, %s4
  %s7 = scalar_select 0, %s6, %s4
  // Predicated region
  $region2: #{generator_forward.7} parent=0 // pred_check
    _
  $region3: #{generator_forward.7} parent=0 // pred_check_branch
    %9 = sbr.rel (0) target = $region5
  $region4: #{generator_forward.7} parent=0 // pred_region
    _
  $region5: #{generator_forward.7} parent=0 // pred_fallthru
    _
  // Predicated region
  $region6: #{generator_forward.7} parent=0 // pred_check
    _
  $region7: #{generator_forward.7} parent=0 // pred_check_branch
    %11 = sbr.rel (0) target = $region9
  $region8: #{generator_forward.7} parent=0 // pred_region
    _
  $region9: #{generator_forward.7} parent=0 // pred_fallthru
    _
  // Predicated region
  $region10: #{generator_forward.7} parent=0 // pred_check
    _
  $region11: #{generator_forward.7} parent=0 // pred_check_branch
    %13 = sbr.rel (0) target = $region13
  $region12: #{generator_forward.7} parent=0 // pred_region
    _
  $region13: #{generator_forward.7} parent=0 // pred_fallthru
    _
  %v14 = vld [vmem:[%s0] sm:$0xff]
  %v15 = vld [vmem:[%s0 + $0x8] sm:$0xff]
  %v16 = vld [vmem:[%s0 + $0x10] sm:$0xff]
  %v17 = vld [vmem:[%s0 + $0x18] sm:$0xff]
  %v18 = vld [vmem:[%s0 + $0x20] sm:$0xff]
  %v19 = vld [vmem:[%s0 + $0x28] sm:$0xff]
  %v20 = vld [vmem:[%s0 + $0x30] sm:$0xff]
  %v21 = vld [vmem:[%s0 + $0x38] sm:$0xff]
  %v22 = vld [vmem:[%s0 + $0x40] sm:$0xff]
  %v23 = vld [vmem:[%s0 + $0x48] sm:$0xff]
  %v24 = vld [vmem:[%s0 + $0x50] sm:$0xff]
  %v25 = vld [vmem:[%s0 + $0x58] sm:$0xff]
  %v26 = vld [vmem:[%s0 + $0x60] sm:$0xff]
  %v27 = vld [vmem:[%s0 + $0x68] sm:$0xff]
  %v28 = vld [vmem:[%s0 + $0x70] sm:$0xff]
  %v29 = vld [vmem:[%s0 + $0x78] sm:$0xff]
  %v30 = vld [vmem:[%s0 + $0x80] sm:$0xff]
  %v31 = vld [vmem:[%s0 + $0x88] sm:$0xff]
  %v32 = vld [vmem:[%s0 + $0x90] sm:$0xff]
  %v33 = vld [vmem:[%s0 + $0x98] sm:$0xff]
  %v34 = vld [vmem:[%s0 + $0xa0] sm:$0xff]
  %v35 = vld [vmem:[%s0 + $0xa8] sm:$0xff]
  %v36 = vld [vmem:[%s0 + $0xb0] sm:$0xff]
  %v37 = vld [vmem:[%s0 + $0xb8] sm:$0xff]
  %v38 = vld [vmem:[%s0 + $0xc0] sm:$0xff]
  %v39 = vld [vmem:[%s0 + $0xc8] sm:$0xff]
  %v40 = vld [vmem:[%s0 + $0xd0] sm:$0xff]
  %v41 = vld [vmem:[%s0 + $0xd8] sm:$0xff]
  %v42 = vld [vmem:[%s0 + $0xe0] sm:$0xff]
  %v43 = vld [vmem:[%s0 + $0xe8] sm:$0xff]
  %v44 = vld [vmem:[%s0 + $0xf0] sm:$0xff]
  %v45 = vld [vmem:[%s0 + $0xf8] sm:$0xff]
  %v46 = vld [vmem:[%s0 + $0x100] sm:$0xff]
  %v47 = vld [vmem:[%s0 + $0x108] sm:$0xff]
  %v48 = vld [vmem:[%s0 + $0x110] sm:$0xff]
  %v49 = vld [vmem:[%s0 + $0x118] sm:$0xff]
  %v50 = vld [vmem:[%s0 + $0x120] sm:$0xff]
  %v51 = vld [vmem:[%s0 + $0x128] sm:$0xff]
  %v52 = vld [vmem:[%s0 + $0x130] sm:$0xff]
  %v53 = vld [vmem:[%s0 + $0x138] sm:$0xff]
  %v54 = vld [vmem:[%s0 + $0x140] sm:$0xff]
  %v55 = vld [vmem:[%s0 + $0x148] sm:$0xff]
  %v56 = vld [vmem:[%s0 + $0x150] sm:$0xff]
  %v57 = vld [vmem:[%s0 + $0x158] sm:$0xff]
  %v58 = vld [vmem:[%s0 + $0x160] sm:$0xff]
  %v59 = vld [vmem:[%s0 + $0x168] sm:$0xff]
  %v60 = vld [vmem:[%s0 + $0x170] sm:$0xff]
  %v61 = vld [vmem:[%s0 + $0x178] sm:$0xff]
  %v62 = vld [vmem:[%s0 + $0x180] sm:$0xff]
  %v63 = vld [vmem:[%s0 + $0x188] sm:$0xff]
  %v64 = vld [vmem:[%s0 + $0x190] sm:$0xff]
  %v65 = vld [vmem:[%s0 + $0x198] sm:$0xff]
  %v66 = vld [vmem:[%s0 + $0x1a0] sm:$0xff]
  %v67 = vld [vmem:[%s0 + $0x1a8] sm:$0xff]
  %v68 = vld [vmem:[%s0 + $0x1b0] sm:$0xff]
  %v69 = vld [vmem:[%s0 + $0x1b8] sm:$0xff]
  %v70 = vld [vmem:[%s0 + $0x1c0] sm:$0xff]
  %v71 = vld [vmem:[%s0 + $0x1c8] sm:$0xff]
  %v72 = vld [vmem:[%s0 + $0x1d0] sm:$0xff]
  %v73 = vld [vmem:[%s0 + $0x1d8] sm:$0xff]
  %v74 = vld [vmem:[%s0 + $0x1e0] sm:$0xff]
  %v75 = vld [vmem:[%s0 + $0x1e8] sm:$0xff]
  %v76 = vld [vmem:[%s0 + $0x1f0] sm:$0xff]
  %v77 = vld [vmem:[%s0 + $0x1f8] sm:$0xff]
  %v78 = vld [vmem:[%s1] sm:$0xff]
  %v79 = vld [vmem:[%s1 + $0x8] sm:$0xff]
  %v80 = vld [vmem:[%s1 + $0x10] sm:$0xff]
  %v81 = vld [vmem:[%s1 + $0x18] sm:$0xff]
  %v82 = vld [vmem:[%s1 + $0x20] sm:$0xff]
  %v83 = vld [vmem:[%s1 + $0x28] sm:$0xff]
  %v84 = vld [vmem:[%s1 + $0x30] sm:$0xff]
  %v85 = vld [vmem:[%s1 + $0x38] sm:$0xff]
  %v86 = vld [vmem:[%s2] sm:$0x1]
  %v88 = vlaneseq
  %v89 = vshrl.u32 %v88, 7
  %v90 = vsub.s32 0, %v89
  %v91 = vrot.slane %v86, %v90
  %vm93 = vcmask 523264
  %v95 = vsel %vm93, %v14, 0
  %v98 = vsel %vm93, %v15, 0
  %v101 = vsel %vm93, %v16, 0
  %v104 = vsel %vm93, %v17, 0
  %v107 = vsel %vm93, %v18, 0
  %v110 = vsel %vm93, %v19, 0
  %v113 = vsel %vm93, %v20, 0
  %v116 = vsel %vm93, %v21, 0
  %v119 = vsel %vm93, %v22, 0
  %v122 = vsel %vm93, %v23, 0
  %v125 = vsel %vm93, %v24, 0
  %v128 = vsel %vm93, %v25, 0
  %v131 = vsel %vm93, %v26, 0
  %v134 = vsel %vm93, %v27, 0
  %v137 = vsel %vm93, %v28, 0
  %v140 = vsel %vm93, %v29, 0
  %v143 = vsel %vm93, %v30, 0
  %v146 = vsel %vm93, %v31, 0
  %v149 = vsel %vm93, %v32, 0
  %v152 = vsel %vm93, %v33, 0
  %v155 = vsel %vm93, %v34, 0
  %v158 = vsel %vm93, %v35, 0
  %v161 = vsel %vm93, %v36, 0
  %v164 = vsel %vm93, %v37, 0
  %v167 = vsel %vm93, %v38, 0
  %v170 = vsel %vm93, %v39, 0
  %v173 = vsel %vm93, %v40, 0
  %v176 = vsel %vm93, %v41, 0
  %v179 = vsel %vm93, %v42, 0
  %v182 = vsel %vm93, %v43, 0
  %v185 = vsel %vm93, %v44, 0
  %v188 = vsel %vm93, %v45, 0
  %v191 = vsel %vm93, %v46, 0
  %v194 = vsel %vm93, %v47, 0
  %v197 = vsel %vm93, %v48, 0
  %v200 = vsel %vm93, %v49, 0
  %v203 = vsel %vm93, %v50, 0
  %v206 = vsel %vm93, %v51, 0
  %v209 = vsel %vm93, %v52, 0
  %v212 = vsel %vm93, %v53, 0
  %v215 = vsel %vm93, %v54, 0
  %v218 = vsel %vm93, %v55, 0
  %v221 = vsel %vm93, %v56, 0
  %v224 = vsel %vm93, %v57, 0
  %v227 = vsel %vm93, %v58, 0
  %v230 = vsel %vm93, %v59, 0
  %v233 = vsel %vm93, %v60, 0
  %v236 = vsel %vm93, %v61, 0
  %v239 = vsel %vm93, %v62, 0
  %v242 = vsel %vm93, %v63, 0
  %v245 = vsel %vm93, %v64, 0
  %v248 = vsel %vm93, %v65, 0
  %v251 = vsel %vm93, %v66, 0
  %v254 = vsel %vm93, %v67, 0
  %v257 = vsel %vm93, %v68, 0
  %v260 = vsel %vm93, %v69, 0
  %v263 = vsel %vm93, %v70, 0
  %v266 = vsel %vm93, %v71, 0
  %v269 = vsel %vm93, %v72, 0
  %v272 = vsel %vm93, %v73, 0
  %v275 = vsel %vm93, %v74, 0
  %v278 = vsel %vm93, %v75, 0
  %v281 = vsel %vm93, %v76, 0
  %v284 = vsel %vm93, %v77, 0
  %286 = vmatprep.subr.mxu0 0.0
  %287 = vmatpush1.msra.mxu0 %v78
  %288 = vmatprep.subr.mxu0 0.0
  %289 = vmatpush1.msra.mxu0 %v79
  %290 = vmatprep.subr.mxu0 0.0
  %291 = vmatpush1.msra.mxu0 %v80
  %292 = vmatprep.subr.mxu0 0.0
  %293 = vmatpush1.msra.mxu0 %v81
  %294 = vmatprep.subr.mxu0 0.0
  %295 = vmatpush1.msra.mxu0 %v82
  %296 = vmatprep.subr.mxu0 0.0
  %297 = vmatpush1.msra.mxu0 %v83
  %298 = vmatprep.subr.mxu0 0.0
  %299 = vmatpush1.msra.mxu0 %v84
  %300 = vmatprep.subr.mxu0 0.0
  %301 = vmatpush1.msra.mxu0 %v85
  %302 = vmatprep.subr.mxu0 0.0
  %303 = vmatpush1.msra.mxu0 0.0
  %304 = vmatprep.subr.mxu0 0.0
  %305 = vmatpush1.msra.mxu0 0.0
  %306 = vmatprep.subr.mxu0 0.0
  %307 = vmatpush1.msra.mxu0 0.0
  %308 = vmatprep.subr.mxu0 0.0
  %309 = vmatpush1.msra.mxu0 0.0
  %310 = vmatprep.subr.mxu0 0.0
  %311 = vmatpush1.msra.mxu0 0.0
  %312 = vmatprep.subr.mxu0 0.0
  %313 = vmatpush1.msra.mxu0 0.0
  %314 = vmatprep.subr.mxu0 0.0
  %315 = vmatpush1.msra.mxu0 0.0
  %316 = vmatprep.subr.mxu0 0.0
  %317 = vmatpush1.msra.mxu0 0.0
  %318 = vmatprep.subr.mxu0 0.0
  %319 = vmatpush1.msra.mxu0 0.0
  %320 = vmatprep.subr.mxu0 0.0
  %321 = vmatpush1.msra.mxu0 0.0
  %322 = vmatprep.subr.mxu0 0.0
  %323 = vmatpush1.msra.mxu0 0.0
  %324 = vmatprep.subr.mxu0 0.0
  %325 = vmatpush1.msra.mxu0 0.0
  %326 = vmatprep.subr.mxu0 0.0
  %327 = vmatpush1.msra.mxu0 0.0
  %328 = vmatprep.subr.mxu0 0.0
  %329 = vmatpush1.msra.mxu0 0.0
  %330 = vmatprep.subr.mxu0 0.0
  %331 = vmatpush1.msra.mxu0 0.0
  %332 = vmatprep.subr.mxu0 0.0
  %333 = vmatpush1.msra.mxu0 0.0
  %334 = vmatprep.subr.mxu0 0.0
  %335 = vmatpush1.msra.mxu0 0.0
  %336 = vmatprep.subr.mxu0 0.0
  %337 = vmatpush1.msra.mxu0 0.0
  %338 = vmatprep.subr.mxu0 0.0
  %339 = vmatpush1.msra.mxu0 0.0
  %340 = vmatprep.subr.mxu0 0.0
  %341 = vmatpush1.msra.mxu0 0.0
  %342 = vmatprep.subr.mxu0 0.0
  %343 = vmatpush1.msra.mxu0 0.0
  %344 = vmatprep.subr.mxu0 0.0
  %345 = vmatpush1.msra.mxu0 0.0
  %346 = vmatprep.subr.mxu0 0.0
  %347 = vmatpush1.msra.mxu0 0.0
  %348 = vmatprep.subr.mxu0 0.0
  %349 = vmatpush1.msra.mxu0 0.0
  %350 = vmatprep.mubr.f32.mxu0 0.0
  %351 = vmatmul.mubr.f32.gmra.mrb[0].mxu0 %v95
  %v352 = vpop.f32.mrb[0].mxu0
  %v353 = vadd.f32 %v91, %v352
  %v354 = vpop.f32.mrb[0].mxu0
  %355 = vmatprep.mubr.f32.mxu0 0.0
  %356 = vmatmul.mubr.f32.gmra.mrb[0].mxu0 %v98
  %v357 = vpop.f32.mrb[0].mxu0
  %v358 = vadd.f32 %v91, %v357
  %v359 = vpop.f32.mrb[0].mxu0
  %360 = vmatprep.mubr.f32.mxu0 0.0
  %361 = vmatmul.mubr.f32.gmra.mrb[0].mxu0 %v101
  %v362 = vpop.f32.mrb[0].mxu0
  %v363 = vadd.f32 %v91, %v362
  %v364 = vpop.f32.mrb[0].mxu0
  %365 = vmatprep.mubr.f32.mxu0 0.0
  %366 = vmatmul.mubr.f32.gmra.mrb[0].mxu0 %v104
  %v367 = vpop.f32.mrb[0].mxu0
  %v368 = vadd.f32 %v91, %v367
  %v369 = vpop.f32.mrb[0].mxu0
  %370 = vmatprep.mubr.f32.mxu0 0.0
  %371 = vmatmul.mubr.f32.gmra.mrb[0].mxu0 %v107
  %v372 = vpop.f32.mrb[0].mxu0
  %v373 = vadd.f32 %v91, %v372
  %v374 = vpop.f32.mrb[0].mxu0
  %375 = vmatprep.mubr.f32.mxu0 0.0
  %376 = vmatmul.mubr.f32.gmra.mrb[0].mxu0 %v110
  %v377 = vpop.f32.mrb[0].mxu0
  %v378 = vadd.f32 %v91, %v377
  %v379 = vpop.f32.mrb[0].mxu0
  %380 = vmatprep.mubr.f32.mxu0 0.0
  %381 = vmatmul.mubr.f32.gmra.mrb[0].mxu0 %v113
  %v382 = vpop.f32.mrb[0].mxu0
  %v383 = vadd.f32 %v91, %v382
  %v384 = vpop.f32.mrb[0].mxu0
  %385 = vmatprep.mubr.f32.mxu0 0.0
  %386 = vmatmul.mubr.f32.gmra.mrb[0].mxu0 %v116
  %v387 = vpop.f32.mrb[0].mxu0
  %v388 = vadd.f32 %v91, %v387
  %v389 = vpop.f32.mrb[0].mxu0
  %390 = vmatprep.mubr.f32.mxu0 0.0
  %391 = vmatmul.mubr.f32.gmra.mrb[0].mxu0 %v119
  %v392 = vpop.f32.mrb[0].mxu0
  %v393 = vadd.f32 %v91, %v392
  %v394 = vpop.f32.mrb[0].mxu0
  %395 = vmatprep.mubr.f32.mxu0 0.0
  %396 = vmatmul.mubr.f32.gmra.mrb[0].mxu0 %v122
  %v397 = vpop.f32.mrb[0].mxu0
  %v398 = vadd.f32 %v91, %v397
  %v399 = vpop.f32.mrb[0].mxu0
  %400 = vmatprep.mubr.f32.mxu0 0.0
  %401 = vmatmul.mubr.f32.gmra.mrb[0].mxu0 %v125
  %v402 = vpop.f32.mrb[0].mxu0
  %v403 = vadd.f32 %v91, %v402
  %v404 = vpop.f32.mrb[0].mxu0
  %405 = vmatprep.mubr.f32.mxu0 0.0
  %406 = vmatmul.mubr.f32.gmra.mrb[0].mxu0 %v128
  %v407 = vpop.f32.mrb[0].mxu0
  %v408 = vadd.f32 %v91, %v407
  %v409 = vpop.f32.mrb[0].mxu0
  %410 = vmatprep.mubr.f32.mxu0 0.0
  %411 = vmatmul.mubr.f32.gmra.mrb[0].mxu0 %v131
  %v412 = vpop.f32.mrb[0].mxu0
  %v413 = vadd.f32 %v91, %v412
  %v414 = vpop.f32.mrb[0].mxu0
  %415 = vmatprep.mubr.f32.mxu0 0.0
  %416 = vmatmul.mubr.f32.gmra.mrb[0].mxu0 %v134
  %v417 = vpop.f32.mrb[0].mxu0
  %v418 = vadd.f32 %v91, %v417
  %v419 = vpop.f32.mrb[0].mxu0
  %420 = vmatprep.mubr.f32.mxu0 0.0
  %421 = vmatmul.mubr.f32.gmra.mrb[0].mxu0 %v137
  %v422 = vpop.f32.mrb[0].mxu0
  %v423 = vadd.f32 %v91, %v422
  %v424 = vpop.f32.mrb[0].mxu0
  %425 = vmatprep.mubr.f32.mxu0 0.0
  %426 = vmatmul.mubr.f32.gmra.mrb[0].mxu0 %v140
  %v427 = vpop.f32.mrb[0].mxu0
  %v428 = vadd.f32 %v91, %v427
  %v429 = vpop.f32.mrb[0].mxu0
  %430 = vmatprep.mubr.f32.mxu0 0.0
  %431 = vmatmul.mubr.f32.gmra.mrb[0].mxu0 %v143
  %v432 = vpop.f32.mrb[0].mxu0
  %v433 = vadd.f32 %v91, %v432
  %v434 = vpop.f32.mrb[0].mxu0
  %435 = vmatprep.mubr.f32.mxu0 0.0
  %436 = vmatmul.mubr.f32.gmra.mrb[0].mxu0 %v146
  %v437 = vpop.f32.mrb[0].mxu0
  %v438 = vadd.f32 %v91, %v437
  %v439 = vpop.f32.mrb[0].mxu0
  %440 = vmatprep.mubr.f32.mxu0 0.0
  %441 = vmatmul.mubr.f32.gmra.mrb[0].mxu0 %v149
  %v442 = vpop.f32.mrb[0].mxu0
  %v443 = vadd.f32 %v91, %v442
  %v444 = vpop.f32.mrb[0].mxu0
  %445 = vmatprep.mubr.f32.mxu0 0.0
  %446 = vmatmul.mubr.f32.gmra.mrb[0].mxu0 %v152
  %v447 = vpop.f32.mrb[0].mxu0
  %v448 = vadd.f32 %v91, %v447
  %v449 = vpop.f32.mrb[0].mxu0
  %450 = vmatprep.mubr.f32.mxu0 0.0
  %451 = vmatmul.mubr.f32.gmra.mrb[0].mxu0 %v155
  %v452 = vpop.f32.mrb[0].mxu0
  %v453 = vadd.f32 %v91, %v452
  %v454 = vpop.f32.mrb[0].mxu0
  %455 = vmatprep.mubr.f32.mxu0 0.0
  %456 = vmatmul.mubr.f32.gmra.mrb[0].mxu0 %v158
  %v457 = vpop.f32.mrb[0].mxu0
  %v458 = vadd.f32 %v91, %v457
  %v459 = vpop.f32.mrb[0].mxu0
  %460 = vmatprep.mubr.f32.mxu0 0.0
  %461 = vmatmul.mubr.f32.gmra.mrb[0].mxu0 %v161
  %v462 = vpop.f32.mrb[0].mxu0
  %v463 = vadd.f32 %v91, %v462
  %v464 = vpop.f32.mrb[0].mxu0
  %465 = vmatprep.mubr.f32.mxu0 0.0
  %466 = vmatmul.mubr.f32.gmra.mrb[0].mxu0 %v164
  %v467 = vpop.f32.mrb[0].mxu0
  %v468 = vadd.f32 %v91, %v467
  %v469 = vpop.f32.mrb[0].mxu0
  %470 = vmatprep.mubr.f32.mxu0 0.0
  %471 = vmatmul.mubr.f32.gmra.mrb[0].mxu0 %v167
  %v472 = vpop.f32.mrb[0].mxu0
  %v473 = vadd.f32 %v91, %v472
  %v474 = vpop.f32.mrb[0].mxu0
  %475 = vmatprep.mubr.f32.mxu0 0.0
  %476 = vmatmul.mubr.f32.gmra.mrb[0].mxu0 %v170
  %v477 = vpop.f32.mrb[0].mxu0
  %v478 = vadd.f32 %v91, %v477
  %v479 = vpop.f32.mrb[0].mxu0
  %480 = vmatprep.mubr.f32.mxu0 0.0
  %481 = vmatmul.mubr.f32.gmra.mrb[0].mxu0 %v173
  %v482 = vpop.f32.mrb[0].mxu0
  %v483 = vadd.f32 %v91, %v482
  %v484 = vpop.f32.mrb[0].mxu0
  %485 = vmatprep.mubr.f32.mxu0 0.0
  %486 = vmatmul.mubr.f32.gmra.mrb[0].mxu0 %v176
  %v487 = vpop.f32.mrb[0].mxu0
  %v488 = vadd.f32 %v91, %v487
  %v489 = vpop.f32.mrb[0].mxu0
  %490 = vmatprep.mubr.f32.mxu0 0.0
  %491 = vmatmul.mubr.f32.gmra.mrb[0].mxu0 %v179
  %v492 = vpop.f32.mrb[0].mxu0
  %v493 = vadd.f32 %v91, %v492
  %v494 = vpop.f32.mrb[0].mxu0
  %495 = vmatprep.mubr.f32.mxu0 0.0
  %496 = vmatmul.mubr.f32.gmra.mrb[0].mxu0 %v182
  %v497 = vpop.f32.mrb[0].mxu0
  %v498 = vadd.f32 %v91, %v497
  %v499 = vpop.f32.mrb[0].mxu0
  %500 = vmatprep.mubr.f32.mxu0 0.0
  %501 = vmatmul.mubr.f32.gmra.mrb[0].mxu0 %v185
  %v502 = vpop.f32.mrb[0].mxu0
  %v503 = vadd.f32 %v91, %v502
  %v504 = vpop.f32.mrb[0].mxu0
  %505 = vmatprep.mubr.f32.mxu0 0.0
  %506 = vmatmul.mubr.f32.gmra.mrb[0].mxu0 %v188
  %v507 = vpop.f32.mrb[0].mxu0
  %v508 = vadd.f32 %v91, %v507
  %v509 = vpop.f32.mrb[0].mxu0
  %510 = vmatprep.mubr.f32.mxu0 0.0
  %511 = vmatmul.mubr.f32.gmra.mrb[0].mxu0 %v191
  %v512 = vpop.f32.mrb[0].mxu0
  %v513 = vadd.f32 %v91, %v512
  %v514 = vpop.f32.mrb[0].mxu0
  %515 = vmatprep.mubr.f32.mxu0 0.0
  %516 = vmatmul.mubr.f32.gmra.mrb[0].mxu0 %v194
  %v517 = vpop.f32.mrb[0].mxu0
  %v518 = vadd.f32 %v91, %v517
  %v519 = vpop.f32.mrb[0].mxu0
  %520 = vmatprep.mubr.f32.mxu0 0.0
  %521 = vmatmul.mubr.f32.gmra.mrb[0].mxu0 %v197
  %v522 = vpop.f32.mrb[0].mxu0
  %v523 = vadd.f32 %v91, %v522
  %v524 = vpop.f32.mrb[0].mxu0
  %525 = vmatprep.mubr.f32.mxu0 0.0
  %526 = vmatmul.mubr.f32.gmra.mrb[0].mxu0 %v200
  %v527 = vpop.f32.mrb[0].mxu0
  %v528 = vadd.f32 %v91, %v527
  %v529 = vpop.f32.mrb[0].mxu0
  %530 = vmatprep.mubr.f32.mxu0 0.0
  %531 = vmatmul.mubr.f32.gmra.mrb[0].mxu0 %v203
  %v532 = vpop.f32.mrb[0].mxu0
  %v533 = vadd.f32 %v91, %v532
  %v534 = vpop.f32.mrb[0].mxu0
  %535 = vmatprep.mubr.f32.mxu0 0.0
  %536 = vmatmul.mubr.f32.gmra.mrb[0].mxu0 %v206
  %v537 = vpop.f32.mrb[0].mxu0
  %v538 = vadd.f32 %v91, %v537
  %v539 = vpop.f32.mrb[0].mxu0
  %540 = vmatprep.mubr.f32.mxu0 0.0
  %541 = vmatmul.mubr.f32.gmra.mrb[0].mxu0 %v209
  %v542 = vpop.f32.mrb[0].mxu0
  %v543 = vadd.f32 %v91, %v542
  %v544 = vpop.f32.mrb[0].mxu0
  %545 = vmatprep.mubr.f32.mxu0 0.0
  %546 = vmatmul.mubr.f32.gmra.mrb[0].mxu0 %v212
  %v547 = vpop.f32.mrb[0].mxu0
  %v548 = vadd.f32 %v91, %v547
  %v549 = vpop.f32.mrb[0].mxu0
  %550 = vmatprep.mubr.f32.mxu0 0.0
  %551 = vmatmul.mubr.f32.gmra.mrb[0].mxu0 %v215
  %v552 = vpop.f32.mrb[0].mxu0
  %v553 = vadd.f32 %v91, %v552
  %v554 = vpop.f32.mrb[0].mxu0
  %555 = vmatprep.mubr.f32.mxu0 0.0
  %556 = vmatmul.mubr.f32.gmra.mrb[0].mxu0 %v218
  %v557 = vpop.f32.mrb[0].mxu0
  %v558 = vadd.f32 %v91, %v557
  %v559 = vpop.f32.mrb[0].mxu0
  %560 = vmatprep.mubr.f32.mxu0 0.0
  %561 = vmatmul.mubr.f32.gmra.mrb[0].mxu0 %v221
  %v562 = vpop.f32.mrb[0].mxu0
  %v563 = vadd.f32 %v91, %v562
  %v564 = vpop.f32.mrb[0].mxu0
  %565 = vmatprep.mubr.f32.mxu0 0.0
  %566 = vmatmul.mubr.f32.gmra.mrb[0].mxu0 %v224
  %v567 = vpop.f32.mrb[0].mxu0
  %v568 = vadd.f32 %v91, %v567
  %v569 = vpop.f32.mrb[0].mxu0
  %570 = vmatprep.mubr.f32.mxu0 0.0
  %571 = vmatmul.mubr.f32.gmra.mrb[0].mxu0 %v227
  %v572 = vpop.f32.mrb[0].mxu0
  %v573 = vadd.f32 %v91, %v572
  %v574 = vpop.f32.mrb[0].mxu0
  %575 = vmatprep.mubr.f32.mxu0 0.0
  %576 = vmatmul.mubr.f32.gmra.mrb[0].mxu0 %v230
  %v577 = vpop.f32.mrb[0].mxu0
  %v578 = vadd.f32 %v91, %v577
  %v579 = vpop.f32.mrb[0].mxu0
  %580 = vmatprep.mubr.f32.mxu0 0.0
  %581 = vmatmul.mubr.f32.gmra.mrb[0].mxu0 %v233
  %v582 = vpop.f32.mrb[0].mxu0
  %v583 = vadd.f32 %v91, %v582
  %v584 = vpop.f32.mrb[0].mxu0
  %585 = vmatprep.mubr.f32.mxu0 0.0
  %586 = vmatmul.mubr.f32.gmra.mrb[0].mxu0 %v236
  %v587 = vpop.f32.mrb[0].mxu0
  %v588 = vadd.f32 %v91, %v587
  %v589 = vpop.f32.mrb[0].mxu0
  %590 = vmatprep.mubr.f32.mxu0 0.0
  %591 = vmatmul.mubr.f32.gmra.mrb[0].mxu0 %v239
  %v592 = vpop.f32.mrb[0].mxu0
  %v593 = vadd.f32 %v91, %v592
  %v594 = vpop.f32.mrb[0].mxu0
  %595 = vmatprep.mubr.f32.mxu0 0.0
  %596 = vmatmul.mubr.f32.gmra.mrb[0].mxu0 %v242
  %v597 = vpop.f32.mrb[0].mxu0
  %v598 = vadd.f32 %v91, %v597
  %v599 = vpop.f32.mrb[0].mxu0
  %600 = vmatprep.mubr.f32.mxu0 0.0
  %601 = vmatmul.mubr.f32.gmra.mrb[0].mxu0 %v245
  %v602 = vpop.f32.mrb[0].mxu0
  %v603 = vadd.f32 %v91, %v602
  %v604 = vpop.f32.mrb[0].mxu0
  %605 = vmatprep.mubr.f32.mxu0 0.0
  %606 = vmatmul.mubr.f32.gmra.mrb[0].mxu0 %v248
  %v607 = vpop.f32.mrb[0].mxu0
  %v608 = vadd.f32 %v91, %v607
  %v609 = vpop.f32.mrb[0].mxu0
  %610 = vmatprep.mubr.f32.mxu0 0.0
  %611 = vmatmul.mubr.f32.gmra.mrb[0].mxu0 %v251
  %v612 = vpop.f32.mrb[0].mxu0
  %v613 = vadd.f32 %v91, %v612
  %v614 = vpop.f32.mrb[0].mxu0
  %615 = vmatprep.mubr.f32.mxu0 0.0
  %616 = vmatmul.mubr.f32.gmra.mrb[0].mxu0 %v254
  %v617 = vpop.f32.mrb[0].mxu0
  %v618 = vadd.f32 %v91, %v617
  %v619 = vpop.f32.mrb[0].mxu0
  %620 = vmatprep.mubr.f32.mxu0 0.0
  %621 = vmatmul.mubr.f32.gmra.mrb[0].mxu0 %v257
  %v622 = vpop.f32.mrb[0].mxu0
  %v623 = vadd.f32 %v91, %v622
  %v624 = vpop.f32.mrb[0].mxu0
  %625 = vmatprep.mubr.f32.mxu0 0.0
  %626 = vmatmul.mubr.f32.gmra.mrb[0].mxu0 %v260
  %v627 = vpop.f32.mrb[0].mxu0
  %v628 = vadd.f32 %v91, %v627
  %v629 = vpop.f32.mrb[0].mxu0
  %630 = vmatprep.mubr.f32.mxu0 0.0
  %631 = vmatmul.mubr.f32.gmra.mrb[0].mxu0 %v263
  %v632 = vpop.f32.mrb[0].mxu0
  %v633 = vadd.f32 %v91, %v632
  %v634 = vpop.f32.mrb[0].mxu0
  %635 = vmatprep.mubr.f32.mxu0 0.0
  %636 = vmatmul.mubr.f32.gmra.mrb[0].mxu0 %v266
  %v637 = vpop.f32.mrb[0].mxu0
  %v638 = vadd.f32 %v91, %v637
  %v639 = vpop.f32.mrb[0].mxu0
  %640 = vmatprep.mubr.f32.mxu0 0.0
  %641 = vmatmul.mubr.f32.gmra.mrb[0].mxu0 %v269
  %v642 = vpop.f32.mrb[0].mxu0
  %v643 = vadd.f32 %v91, %v642
  %v644 = vpop.f32.mrb[0].mxu0
  %645 = vmatprep.mubr.f32.mxu0 0.0
  %646 = vmatmul.mubr.f32.gmra.mrb[0].mxu0 %v272
  %v647 = vpop.f32.mrb[0].mxu0
  %v648 = vadd.f32 %v91, %v647
  %v649 = vpop.f32.mrb[0].mxu0
  %650 = vmatprep.mubr.f32.mxu0 0.0
  %651 = vmatmul.mubr.f32.gmra.mrb[0].mxu0 %v275
  %v652 = vpop.f32.mrb[0].mxu0
  %v653 = vadd.f32 %v91, %v652
  %v654 = vpop.f32.mrb[0].mxu0
  %655 = vmatprep.mubr.f32.mxu0 0.0
  %656 = vmatmul.mubr.f32.gmra.mrb[0].mxu0 %v278
  %v657 = vpop.f32.mrb[0].mxu0
  %v658 = vadd.f32 %v91, %v657
  %v659 = vpop.f32.mrb[0].mxu0
  %660 = vmatprep.mubr.f32.mxu0 0.0
  %661 = vmatmul.mubr.f32.gmra.mrb[0].mxu0 %v281
  %v662 = vpop.f32.mrb[0].mxu0
  %v663 = vadd.f32 %v91, %v662
  %v664 = vpop.f32.mrb[0].mxu0
  %665 = vmatprep.mubr.f32.mxu0 0.0
  %666 = vmatmul.mubr.f32.gmra.mrb[0].mxu0 %v284
  %v667 = vpop.f32.mrb[0].mxu0
  %v668 = vadd.f32 %v91, %v667
  %v669 = vpop.f32.mrb[0].mxu0
  %670 = vdwg.mxu0
  %v671 = vtanh.pop %v353
  %v672 = vtanh.pop %v358
  %v673 = vtanh.pop %v363
  %v674 = vtanh.pop %v368
  %v675 = vtanh.pop %v373
  %v676 = vtanh.pop %v378
  %v677 = vtanh.pop %v383
  %v678 = vtanh.pop %v388
  %v679 = vtanh.pop %v393
  %v680 = vtanh.pop %v398
  %v681 = vtanh.pop %v403
  %v682 = vtanh.pop %v408
  %v683 = vtanh.pop %v413
  %v684 = vtanh.pop %v418
  %v685 = vtanh.pop %v423
  %v686 = vtanh.pop %v428
  %v687 = vtanh.pop %v433
  %v688 = vtanh.pop %v438
  %v689 = vtanh.pop %v443
  %v690 = vtanh.pop %v448
  %v691 = vtanh.pop %v453
  %v692 = vtanh.pop %v458
  %v693 = vtanh.pop %v463
  %v694 = vtanh.pop %v468
  %v695 = vtanh.pop %v473
  %v696 = vtanh.pop %v478
  %v697 = vtanh.pop %v483
  %v698 = vtanh.pop %v488
  %v699 = vtanh.pop %v493
  %v700 = vtanh.pop %v498
  %v701 = vtanh.pop %v503
  %v702 = vtanh.pop %v508
  %v703 = vtanh.pop %v513
  %v704 = vtanh.pop %v518
  %v705 = vtanh.pop %v523
  %v706 = vtanh.pop %v528
  %v707 = vtanh.pop %v533
  %v708 = vtanh.pop %v538
  %v709 = vtanh.pop %v543
  %v710 = vtanh.pop %v548
  %v711 = vtanh.pop %v553
  %v712 = vtanh.pop %v558
  %v713 = vtanh.pop %v563
  %v714 = vtanh.pop %v568
  %v715 = vtanh.pop %v573
  %v716 = vtanh.pop %v578
  %v717 = vtanh.pop %v583
  %v718 = vtanh.pop %v588
  %v719 = vtanh.pop %v593
  %v720 = vtanh.pop %v598
  %v721 = vtanh.pop %v603
  %v722 = vtanh.pop %v608
  %v723 = vtanh.pop %v613
  %v724 = vtanh.pop %v618
  %v725 = vtanh.pop %v623
  %v726 = vtanh.pop %v628
  %v727 = vtanh.pop %v633
  %v728 = vtanh.pop %v638
  %v729 = vtanh.pop %v643
  %v730 = vtanh.pop %v648
  %v731 = vtanh.pop %v653
  %v732 = vtanh.pop %v658
  %v733 = vtanh.pop %v663
  %v734 = vtanh.pop %v668
  %735 = vst [vmem:[%s3] sm:$0xff] %v671
  %736 = vst [vmem:[%s3 + $0x8] sm:$0xff] %v672
  %737 = vst [vmem:[%s3 + $0x10] sm:$0xff] %v673
  %738 = vst [vmem:[%s3 + $0x18] sm:$0xff] %v674
  %739 = vst [vmem:[%s3 + $0x20] sm:$0xff] %v675
  %740 = vst [vmem:[%s3 + $0x28] sm:$0xff] %v676
  %741 = vst [vmem:[%s3 + $0x30] sm:$0xff] %v677
  %742 = vst [vmem:[%s3 + $0x38] sm:$0xff] %v678
  %743 = vst [vmem:[%s3 + $0x40] sm:$0xff] %v679
  %744 = vst [vmem:[%s3 + $0x48] sm:$0xff] %v680
  %745 = vst [vmem:[%s3 + $0x50] sm:$0xff] %v681
  %746 = vst [vmem:[%s3 + $0x58] sm:$0xff] %v682
  %747 = vst [vmem:[%s3 + $0x60] sm:$0xff] %v683
  %748 = vst [vmem:[%s3 + $0x68] sm:$0xff] %v684
  %749 = vst [vmem:[%s3 + $0x70] sm:$0xff] %v685
  %750 = vst [vmem:[%s3 + $0x78] sm:$0xff] %v686
  %751 = vst [vmem:[%s3 + $0x80] sm:$0xff] %v687
  %752 = vst [vmem:[%s3 + $0x88] sm:$0xff] %v688
  %753 = vst [vmem:[%s3 + $0x90] sm:$0xff] %v689
  %754 = vst [vmem:[%s3 + $0x98] sm:$0xff] %v690
  %755 = vst [vmem:[%s3 + $0xa0] sm:$0xff] %v691
  %756 = vst [vmem:[%s3 + $0xa8] sm:$0xff] %v692
  %757 = vst [vmem:[%s3 + $0xb0] sm:$0xff] %v693
  %758 = vst [vmem:[%s3 + $0xb8] sm:$0xff] %v694
  %759 = vst [vmem:[%s3 + $0xc0] sm:$0xff] %v695
  %760 = vst [vmem:[%s3 + $0xc8] sm:$0xff] %v696
  %761 = vst [vmem:[%s3 + $0xd0] sm:$0xff] %v697
  %762 = vst [vmem:[%s3 + $0xd8] sm:$0xff] %v698
  %763 = vst [vmem:[%s3 + $0xe0] sm:$0xff] %v699
  %764 = vst [vmem:[%s3 + $0xe8] sm:$0xff] %v700
  %765 = vst [vmem:[%s3 + $0xf0] sm:$0xff] %v701
  %766 = vst [vmem:[%s3 + $0xf8] sm:$0xff] %v702
  %767 = vst [vmem:[%s3 + $0x100] sm:$0xff] %v703
  %768 = vst [vmem:[%s3 + $0x108] sm:$0xff] %v704
  %769 = vst [vmem:[%s3 + $0x110] sm:$0xff] %v705
  %770 = vst [vmem:[%s3 + $0x118] sm:$0xff] %v706
  %771 = vst [vmem:[%s3 + $0x120] sm:$0xff] %v707
  %772 = vst [vmem:[%s3 + $0x128] sm:$0xff] %v708
  %773 = vst [vmem:[%s3 + $0x130] sm:$0xff] %v709
  %774 = vst [vmem:[%s3 + $0x138] sm:$0xff] %v710
  %775 = vst [vmem:[%s3 + $0x140] sm:$0xff] %v711
  %776 = vst [vmem:[%s3 + $0x148] sm:$0xff] %v712
  %777 = vst [vmem:[%s3 + $0x150] sm:$0xff] %v713
  %778 = vst [vmem:[%s3 + $0x158] sm:$0xff] %v714
  %779 = vst [vmem:[%s3 + $0x160] sm:$0xff] %v715
  %780 = vst [vmem:[%s3 + $0x168] sm:$0xff] %v716
  %781 = vst [vmem:[%s3 + $0x170] sm:$0xff] %v717
  %782 = vst [vmem:[%s3 + $0x178] sm:$0xff] %v718
  %783 = vst [vmem:[%s3 + $0x180] sm:$0xff] %v719
  %784 = vst [vmem:[%s3 + $0x188] sm:$0xff] %v720
  %785 = vst [vmem:[%s3 + $0x190] sm:$0xff] %v721
  %786 = vst [vmem:[%s3 + $0x198] sm:$0xff] %v722
  %787 = vst [vmem:[%s3 + $0x1a0] sm:$0xff] %v723
  %788 = vst [vmem:[%s3 + $0x1a8] sm:$0xff] %v724
  %789 = vst [vmem:[%s3 + $0x1b0] sm:$0xff] %v725
  %790 = vst [vmem:[%s3 + $0x1b8] sm:$0xff] %v726
  %791 = vst [vmem:[%s3 + $0x1c0] sm:$0xff] %v727
  %792 = vst [vmem:[%s3 + $0x1c8] sm:$0xff] %v728
  %793 = vst [vmem:[%s3 + $0x1d0] sm:$0xff] %v729
  %794 = vst [vmem:[%s3 + $0x1d8] sm:$0xff] %v730
  %795 = vst [vmem:[%s3 + $0x1e0] sm:$0xff] %v731
  %796 = vst [vmem:[%s3 + $0x1e8] sm:$0xff] %v732
  %797 = vst [vmem:[%s3 + $0x1f0] sm:$0xff] %v733
  %798 = vst [vmem:[%s3 + $0x1f8] sm:$0xff] %v734
  %s799 = scalar_lea.vmem %s0, 512
  %v800 = vld [vmem:[%s799] sm:$0xff]
  %v801 = vld [vmem:[%s799 + $0x8] sm:$0xff]
  %v802 = vld [vmem:[%s799 + $0x10] sm:$0xff]
  %v803 = vld [vmem:[%s799 + $0x18] sm:$0xff]
  %v804 = vld [vmem:[%s799 + $0x20] sm:$0xff]
  %v805 = vld [vmem:[%s799 + $0x28] sm:$0xff]
  %v806 = vld [vmem:[%s799 + $0x30] sm:$0xff]
  %v807 = vld [vmem:[%s799 + $0x38] sm:$0xff]
  %v808 = vld [vmem:[%s799 + $0x40] sm:$0xff]
  %v809 = vld [vmem:[%s799 + $0x48] sm:$0xff]
  %v810 = vld [vmem:[%s799 + $0x50] sm:$0xff]
  %v811 = vld [vmem:[%s799 + $0x58] sm:$0xff]
  %v812 = vld [vmem:[%s799 + $0x60] sm:$0xff]
  %v813 = vld [vmem:[%s799 + $0x68] sm:$0xff]
  %v814 = vld [vmem:[%s799 + $0x70] sm:$0xff]
  %v815 = vld [vmem:[%s799 + $0x78] sm:$0xff]
  %v816 = vld [vmem:[%s799 + $0x80] sm:$0xff]
  %v817 = vld [vmem:[%s799 + $0x88] sm:$0xff]
  %v818 = vld [vmem:[%s799 + $0x90] sm:$0xff]
  %v819 = vld [vmem:[%s799 + $0x98] sm:$0xff]
  %v820 = vld [vmem:[%s799 + $0xa0] sm:$0xff]
  %v821 = vld [vmem:[%s799 + $0xa8] sm:$0xff]
  %v822 = vld [vmem:[%s799 + $0xb0] sm:$0xff]
  %v823 = vld [vmem:[%s799 + $0xb8] sm:$0xff]
  %v824 = vld [vmem:[%s799 + $0xc0] sm:$0xff]
  %v825 = vld [vmem:[%s799 + $0xc8] sm:$0xff]
  %v826 = vld [vmem:[%s799 + $0xd0] sm:$0xff]
  %v827 = vld [vmem:[%s799 + $0xd8] sm:$0xff]
  %v828 = vld [vmem:[%s799 + $0xe0] sm:$0xff]
  %v829 = vld [vmem:[%s799 + $0xe8] sm:$0xff]
  %v830 = vld [vmem:[%s799 + $0xf0] sm:$0xff]
  %v831 = vld [vmem:[%s799 + $0xf8] sm:$0xff]
  %v832 = vld [vmem:[%s799 + $0x100] sm:$0xff]
  %v833 = vld [vmem:[%s799 + $0x108] sm:$0xff]
  %v834 = vld [vmem:[%s799 + $0x110] sm:$0xff]
  %v835 = vld [vmem:[%s799 + $0x118] sm:$0xff]
  %v836 = vld [vmem:[%s799 + $0x120] sm:$0xff]
  %v837 = vld [vmem:[%s799 + $0x128] sm:$0xff]
  %v838 = vld [vmem:[%s799 + $0x130] sm:$0xff]
  %v839 = vld [vmem:[%s799 + $0x138] sm:$0xff]
  %v840 = vld [vmem:[%s799 + $0x140] sm:$0xff]
  %v841 = vld [vmem:[%s799 + $0x148] sm:$0xff]
  %v842 = vld [vmem:[%s799 + $0x150] sm:$0xff]
  %v843 = vld [vmem:[%s799 + $0x158] sm:$0xff]
  %v844 = vld [vmem:[%s799 + $0x160] sm:$0xff]
  %v845 = vld [vmem:[%s799 + $0x168] sm:$0xff]
  %v846 = vld [vmem:[%s799 + $0x170] sm:$0xff]
  %v847 = vld [vmem:[%s799 + $0x178] sm:$0xff]
  %v848 = vld [vmem:[%s799 + $0x180] sm:$0xff]
  %v849 = vld [vmem:[%s799 + $0x188] sm:$0xff]
  %v850 = vld [vmem:[%s799 + $0x190] sm:$0xff]
  %v851 = vld [vmem:[%s799 + $0x198] sm:$0xff]
  %v852 = vld [vmem:[%s799 + $0x1a0] sm:$0xff]
  %v853 = vld [vmem:[%s799 + $0x1a8] sm:$0xff]
  %v854 = vld [vmem:[%s799 + $0x1b0] sm:$0xff]
  %v855 = vld [vmem:[%s799 + $0x1b8] sm:$0xff]
  %v856 = vld [vmem:[%s799 + $0x1c0] sm:$0xff]
  %v857 = vld [vmem:[%s799 + $0x1c8] sm:$0xff]
  %v858 = vld [vmem:[%s799 + $0x1d0] sm:$0xff]
  %v859 = vld [vmem:[%s799 + $0x1d8] sm:$0xff]
  %v860 = vld [vmem:[%s799 + $0x1e0] sm:$0xff]
  %v861 = vld [vmem:[%s799 + $0x1e8] sm:$0xff]
  %v862 = vld [vmem:[%s799 + $0x1f0] sm:$0xff]
  %v863 = vld [vmem:[%s799 + $0x1f8] sm:$0xff]
  %s864 = scalar_lea.vmem %s1, 64
  %v865 = vld [vmem:[%s864] sm:$0xff]
  %v866 = vld [vmem:[%s864 + $0x8] sm:$0xff]
  %v867 = vld [vmem:[%s864 + $0x10] sm:$0xff]
  %v868 = vld [vmem:[%s864 + $0x18] sm:$0xff]
  %v869 = vld [vmem:[%s864 + $0x20] sm:$0xff]
  %v870 = vld [vmem:[%s864 + $0x28] sm:$0xff]
  %v871 = vld [vmem:[%s864 + $0x30] sm:$0xff]
  %v872 = vld [vmem:[%s864 + $0x38] sm:$0xff]
  %v873 = vld [vmem:[%s2] sm:$0x1]
  %v875 = vlaneseq
  %v876 = vshrl.u32 %v875, 7
  %v877 = vsub.s32 0, %v876
  %v878 = vrot.slane %v873, %v877
  %v881 = vsel %vm93, %v800, 0
  %v884 = vsel %vm93, %v801, 0
  %v887 = vsel %vm93, %v802, 0
  %v890 = vsel %vm93, %v803, 0
  %v893 = vsel %vm93, %v804, 0
  %v896 = vsel %vm93, %v805, 0
  %v899 = vsel %vm93, %v806, 0
  %v902 = vsel %vm93, %v807, 0
  %v905 = vsel %vm93, %v808, 0
  %v908 = vsel %vm93, %v809, 0
  %v911 = vsel %vm93, %v810, 0
  %v914 = vsel %vm93, %v811, 0
  %v917 = vsel %vm93, %v812, 0
  %v920 = vsel %vm93, %v813, 0
  %v923 = vsel %vm93, %v814, 0
  %v926 = vsel %vm93, %v815, 0
  %v929 = vsel %vm93, %v816, 0
  %v932 = vsel %vm93, %v817, 0
  %v935 = vsel %vm93, %v818, 0
  %v938 = vsel %vm93, %v819, 0
  %v941 = vsel %vm93, %v820, 0
  %v944 = vsel %vm93, %v821, 0
  %v947 = vsel %vm93, %v822, 0
  %v950 = vsel %vm93, %v823, 0
  %v953 = vsel %vm93, %v824, 0
  %v956 = vsel %vm93, %v825, 0
  %v959 = vsel %vm93, %v826, 0
  %v962 = vsel %vm93, %v827, 0
  %v965 = vsel %vm93, %v828, 0
  %v968 = vsel %vm93, %v829, 0
  %v971 = vsel %vm93, %v830, 0
  %v974 = vsel %vm93, %v831, 0
  %v977 = vsel %vm93, %v832, 0
  %v980 = vsel %vm93, %v833, 0
  %v983 = vsel %vm93, %v834, 0
  %v986 = vsel %vm93, %v835, 0
  %v989 = vsel %vm93, %v836, 0
  %v992 = vsel %vm93, %v837, 0
  %v995 = vsel %vm93, %v838, 0
  %v998 = vsel %vm93, %v839, 0
  %v1001 = vsel %vm93, %v840, 0
  %v1004 = vsel %vm93, %v841, 0
  %v1007 = vsel %vm93, %v842, 0
  %v1010 = vsel %vm93, %v843, 0
  %v1013 = vsel %vm93, %v844, 0
  %v1016 = vsel %vm93, %v845, 0
  %v1019 = vsel %vm93, %v846, 0
  %v1022 = vsel %vm93, %v847, 0
  %v1025 = vsel %vm93, %v848, 0
  %v1028 = vsel %vm93, %v849, 0
  %v1031 = vsel %vm93, %v850, 0
  %v1034 = vsel %vm93, %v851, 0
  %v1037 = vsel %vm93, %v852, 0
  %v1040 = vsel %vm93, %v853, 0
  %v1043 = vsel %vm93, %v854, 0
  %v1046 = vsel %vm93, %v855, 0
  %v1049 = vsel %vm93, %v856, 0
  %v1052 = vsel %vm93, %v857, 0
  %v1055 = vsel %vm93, %v858, 0
  %v1058 = vsel %vm93, %v859, 0
  %v1061 = vsel %vm93, %v860, 0
  %v1064 = vsel %vm93, %v861, 0
  %v1067 = vsel %vm93, %v862, 0
  %v1070 = vsel %vm93, %v863, 0
  %1072 = vmatprep.subr.mxu0 0.0
  %1073 = vmatpush1.msra.mxu0 %v865
  %1074 = vmatprep.subr.mxu0 0.0
  %1075 = vmatpush1.msra.mxu0 %v866
  %1076 = vmatprep.subr.mxu0 0.0
  %1077 = vmatpush1.msra.mxu0 %v867
  %1078 = vmatprep.subr.mxu0 0.0
  %1079 = vmatpush1.msra.mxu0 %v868
  %1080 = vmatprep.subr.mxu0 0.0
  %1081 = vmatpush1.msra.mxu0 %v869
  %1082 = vmatprep.subr.mxu0 0.0
  %1083 = vmatpush1.msra.mxu0 %v870
  %1084 = vmatprep.subr.mxu0 0.0
  %1085 = vmatpush1.msra.mxu0 %v871
  %1086 = vmatprep.subr.mxu0 0.0
  %1087 = vmatpush1.msra.mxu0 %v872
  %1088 = vmatprep.subr.mxu0 0.0
  %1089 = vmatpush1.msra.mxu0 0.0
  %1090 = vmatprep.subr.mxu0 0.0
  %1091 = vmatpush1.msra.mxu0 0.0
  %1092 = vmatprep.subr.mxu0 0.0
  %1093 = vmatpush1.msra.mxu0 0.0
  %1094 = vmatprep.subr.mxu0 0.0
  %1095 = vmatpush1.msra.mxu0 0.0
  %1096 = vmatprep.subr.mxu0 0.0
  %1097 = vmatpush1.msra.mxu0 0.0
  %1098 = vmatprep.subr.mxu0 0.0
  %1099 = vmatpush1.msra.mxu0 0.0
  %1100 = vmatprep.subr.mxu0 0.0
  %1101 = vmatpush1.msra.mxu0 0.0
  %1102 = vmatprep.subr.mxu0 0.0
  %1103 = vmatpush1.msra.mxu0 0.0
  %1104 = vmatprep.subr.mxu0 0.0
  %1105 = vmatpush1.msra.mxu0 0.0
  %1106 = vmatprep.subr.mxu0 0.0
  %1107 = vmatpush1.msra.mxu0 0.0
  %1108 = vmatprep.subr.mxu0 0.0
  %1109 = vmatpush1.msra.mxu0 0.0
  %1110 = vmatprep.subr.mxu0 0.0
  %1111 = vmatpush1.msra.mxu0 0.0
  %1112 = vmatprep.subr.mxu0 0.0
  %1113 = vmatpush1.msra.mxu0 0.0
  %1114 = vmatprep.subr.mxu0 0.0
  %1115 = vmatpush1.msra.mxu0 0.0
  %1116 = vmatprep.subr.mxu0 0.0
  %1117 = vmatpush1.msra.mxu0 0.0
  %1118 = vmatprep.subr.mxu0 0.0
  %1119 = vmatpush1.msra.mxu0 0.0
  %1120 = vmatprep.subr.mxu0 0.0
  %1121 = vmatpush1.msra.mxu0 0.0
  %1122 = vmatprep.subr.mxu0 0.0
  %1123 = vmatpush1.msra.mxu0 0.0
  %1124 = vmatprep.subr.mxu0 0.0
  %1125 = vmatpush1.msra.mxu0 0.0
  %1126 = vmatprep.subr.mxu0 0.0
  %1127 = vmatpush1.msra.mxu0 0.0
  %1128 = vmatprep.subr.mxu0 0.0
  %1129 = vmatpush1.msra.mxu0 0.0
  %1130 = vmatprep.subr.mxu0 0.0
  %1131 = vmatpush1.msra.mxu0 0.0
  %1132 = vmatprep.subr.mxu0 0.0
  %1133 = vmatpush1.msra.mxu0 0.0
  %1134 = vmatprep.subr.mxu0 0.0
  %1135 = vmatpush1.msra.mxu0 0.0
  %1136 = vmatprep.mubr.f32.mxu0 0.0
  %1137 = vmatmul.mubr.f32.gmra.mrb[0].mxu0 %v881
  %v1138 = vpop.f32.mrb[0].mxu0
  %v1139 = vadd.f32 %v878, %v1138
  %v1140 = vpop.f32.mrb[0].mxu0
  %1141 = vmatprep.mubr.f32.mxu0 0.0
  %1142 = vmatmul.mubr.f32.gmra.mrb[0].mxu0 %v884
  %v1143 = vpop.f32.mrb[0].mxu0
  %v1144 = vadd.f32 %v878, %v1143
  %v1145 = vpop.f32.mrb[0].mxu0
  %1146 = vmatprep.mubr.f32.mxu0 0.0
  %1147 = vmatmul.mubr.f32.gmra.mrb[0].mxu0 %v887
  %v1148 = vpop.f32.mrb[0].mxu0
  %v1149 = vadd.f32 %v878, %v1148
  %v1150 = vpop.f32.mrb[0].mxu0
  %1151 = vmatprep.mubr.f32.mxu0 0.0
  %1152 = vmatmul.mubr.f32.gmra.mrb[0].mxu0 %v890
  %v1153 = vpop.f32.mrb[0].mxu0
  %v1154 = vadd.f32 %v878, %v1153
  %v1155 = vpop.f32.mrb[0].mxu0
  %1156 = vmatprep.mubr.f32.mxu0 0.0
  %1157 = vmatmul.mubr.f32.gmra.mrb[0].mxu0 %v893
  %v1158 = vpop.f32.mrb[0].mxu0
  %v1159 = vadd.f32 %v878, %v1158
  %v1160 = vpop.f32.mrb[0].mxu0
  %1161 = vmatprep.mubr.f32.mxu0 0.0
  %1162 = vmatmul.mubr.f32.gmra.mrb[0].mxu0 %v896
  %v1163 = vpop.f32.mrb[0].mxu0
  %v1164 = vadd.f32 %v878, %v1163
  %v1165 = vpop.f32.mrb[0].mxu0
  %1166 = vmatprep.mubr.f32.mxu0 0.0
  %1167 = vmatmul.mubr.f32.gmra.mrb[0].mxu0 %v899
  %v1168 = vpop.f32.mrb[0].mxu0
  %v1169 = vadd.f32 %v878, %v1168
  %v1170 = vpop.f32.mrb[0].mxu0
  %1171 = vmatprep.mubr.f32.mxu0 0.0
  %1172 = vmatmul.mubr.f32.gmra.mrb[0].mxu0 %v902
  %v1173 = vpop.f32.mrb[0].mxu0
  %v1174 = vadd.f32 %v878, %v1173
  %v1175 = vpop.f32.mrb[0].mxu0
  %1176 = vmatprep.mubr.f32.mxu0 0.0
  %1177 = vmatmul.mubr.f32.gmra.mrb[0].mxu0 %v905
  %v1178 = vpop.f32.mrb[0].mxu0
  %v1179 = vadd.f32 %v878, %v1178
  %v1180 = vpop.f32.mrb[0].mxu0
  %1181 = vmatprep.mubr.f32.mxu0 0.0
  %1182 = vmatmul.mubr.f32.gmra.mrb[0].mxu0 %v908
  %v1183 = vpop.f32.mrb[0].mxu0
  %v1184 = vadd.f32 %v878, %v1183
  %v1185 = vpop.f32.mrb[0].mxu0
  %1186 = vmatprep.mubr.f32.mxu0 0.0
  %1187 = vmatmul.mubr.f32.gmra.mrb[0].mxu0 %v911
  %v1188 = vpop.f32.mrb[0].mxu0
  %v1189 = vadd.f32 %v878, %v1188
  %v1190 = vpop.f32.mrb[0].mxu0
  %1191 = vmatprep.mubr.f32.mxu0 0.0
  %1192 = vmatmul.mubr.f32.gmra.mrb[0].mxu0 %v914
  %v1193 = vpop.f32.mrb[0].mxu0
  %v1194 = vadd.f32 %v878, %v1193
  %v1195 = vpop.f32.mrb[0].mxu0
  %1196 = vmatprep.mubr.f32.mxu0 0.0
  %1197 = vmatmul.mubr.f32.gmra.mrb[0].mxu0 %v917
  %v1198 = vpop.f32.mrb[0].mxu0
  %v1199 = vadd.f32 %v878, %v1198
  %v1200 = vpop.f32.mrb[0].mxu0
  %1201 = vmatprep.mubr.f32.mxu0 0.0
  %1202 = vmatmul.mubr.f32.gmra.mrb[0].mxu0 %v920
  %v1203 = vpop.f32.mrb[0].mxu0
  %v1204 = vadd.f32 %v878, %v1203
  %v1205 = vpop.f32.mrb[0].mxu0
  %1206 = vmatprep.mubr.f32.mxu0 0.0
  %1207 = vmatmul.mubr.f32.gmra.mrb[0].mxu0 %v923
  %v1208 = vpop.f32.mrb[0].mxu0
  %v1209 = vadd.f32 %v878, %v1208
  %v1210 = vpop.f32.mrb[0].mxu0
  %1211 = vmatprep.mubr.f32.mxu0 0.0
  %1212 = vmatmul.mubr.f32.gmra.mrb[0].mxu0 %v926
  %v1213 = vpop.f32.mrb[0].mxu0
  %v1214 = vadd.f32 %v878, %v1213
  %v1215 = vpop.f32.mrb[0].mxu0
  %1216 = vmatprep.mubr.f32.mxu0 0.0
  %1217 = vmatmul.mubr.f32.gmra.mrb[0].mxu0 %v929
  %v1218 = vpop.f32.mrb[0].mxu0
  %v1219 = vadd.f32 %v878, %v1218
  %v1220 = vpop.f32.mrb[0].mxu0
  %1221 = vmatprep.mubr.f32.mxu0 0.0
  %1222 = vmatmul.mubr.f32.gmra.mrb[0].mxu0 %v932
  %v1223 = vpop.f32.mrb[0].mxu0
  %v1224 = vadd.f32 %v878, %v1223
  %v1225 = vpop.f32.mrb[0].mxu0
  %1226 = vmatprep.mubr.f32.mxu0 0.0
  %1227 = vmatmul.mubr.f32.gmra.mrb[0].mxu0 %v935
  %v1228 = vpop.f32.mrb[0].mxu0
  %v1229 = vadd.f32 %v878, %v1228
  %v1230 = vpop.f32.mrb[0].mxu0
  %1231 = vmatprep.mubr.f32.mxu0 0.0
  %1232 = vmatmul.mubr.f32.gmra.mrb[0].mxu0 %v938
  %v1233 = vpop.f32.mrb[0].mxu0
  %v1234 = vadd.f32 %v878, %v1233
  %v1235 = vpop.f32.mrb[0].mxu0
  %1236 = vmatprep.mubr.f32.mxu0 0.0
  %1237 = vmatmul.mubr.f32.gmra.mrb[0].mxu0 %v941
  %v1238 = vpop.f32.mrb[0].mxu0
  %v1239 = vadd.f32 %v878, %v1238
  %v1240 = vpop.f32.mrb[0].mxu0
  %1241 = vmatprep.mubr.f32.mxu0 0.0
  %1242 = vmatmul.mubr.f32.gmra.mrb[0].mxu0 %v944
  %v1243 = vpop.f32.mrb[0].mxu0
  %v1244 = vadd.f32 %v878, %v1243
  %v1245 = vpop.f32.mrb[0].mxu0
  %1246 = vmatprep.mubr.f32.mxu0 0.0
  %1247 = vmatmul.mubr.f32.gmra.mrb[0].mxu0 %v947
  %v1248 = vpop.f32.mrb[0].mxu0
  %v1249 = vadd.f32 %v878, %v1248
  %v1250 = vpop.f32.mrb[0].mxu0
  %1251 = vmatprep.mubr.f32.mxu0 0.0
  %1252 = vmatmul.mubr.f32.gmra.mrb[0].mxu0 %v950
  %v1253 = vpop.f32.mrb[0].mxu0
  %v1254 = vadd.f32 %v878, %v1253
  %v1255 = vpop.f32.mrb[0].mxu0
  %1256 = vmatprep.mubr.f32.mxu0 0.0
  %1257 = vmatmul.mubr.f32.gmra.mrb[0].mxu0 %v953
  %v1258 = vpop.f32.mrb[0].mxu0
  %v1259 = vadd.f32 %v878, %v1258
  %v1260 = vpop.f32.mrb[0].mxu0
  %1261 = vmatprep.mubr.f32.mxu0 0.0
  %1262 = vmatmul.mubr.f32.gmra.mrb[0].mxu0 %v956
  %v1263 = vpop.f32.mrb[0].mxu0
  %v1264 = vadd.f32 %v878, %v1263
  %v1265 = vpop.f32.mrb[0].mxu0
  %1266 = vmatprep.mubr.f32.mxu0 0.0
  %1267 = vmatmul.mubr.f32.gmra.mrb[0].mxu0 %v959
  %v1268 = vpop.f32.mrb[0].mxu0
  %v1269 = vadd.f32 %v878, %v1268
  %v1270 = vpop.f32.mrb[0].mxu0
  %1271 = vmatprep.mubr.f32.mxu0 0.0
  %1272 = vmatmul.mubr.f32.gmra.mrb[0].mxu0 %v962
  %v1273 = vpop.f32.mrb[0].mxu0
  %v1274 = vadd.f32 %v878, %v1273
  %v1275 = vpop.f32.mrb[0].mxu0
  %1276 = vmatprep.mubr.f32.mxu0 0.0
  %1277 = vmatmul.mubr.f32.gmra.mrb[0].mxu0 %v965
  %v1278 = vpop.f32.mrb[0].mxu0
  %v1279 = vadd.f32 %v878, %v1278
  %v1280 = vpop.f32.mrb[0].mxu0
  %1281 = vmatprep.mubr.f32.mxu0 0.0
  %1282 = vmatmul.mubr.f32.gmra.mrb[0].mxu0 %v968
  %v1283 = vpop.f32.mrb[0].mxu0
  %v1284 = vadd.f32 %v878, %v1283
  %v1285 = vpop.f32.mrb[0].mxu0
  %1286 = vmatprep.mubr.f32.mxu0 0.0
  %1287 = vmatmul.mubr.f32.gmra.mrb[0].mxu0 %v971
  %v1288 = vpop.f32.mrb[0].mxu0
  %v1289 = vadd.f32 %v878, %v1288
  %v1290 = vpop.f32.mrb[0].mxu0
  %1291 = vmatprep.mubr.f32.mxu0 0.0
  %1292 = vmatmul.mubr.f32.gmra.mrb[0].mxu0 %v974
  %v1293 = vpop.f32.mrb[0].mxu0
  %v1294 = vadd.f32 %v878, %v1293
  %v1295 = vpop.f32.mrb[0].mxu0
  %1296 = vmatprep.mubr.f32.mxu0 0.0
  %1297 = vmatmul.mubr.f32.gmra.mrb[0].mxu0 %v977
  %v1298 = vpop.f32.mrb[0].mxu0
  %v1299 = vadd.f32 %v878, %v1298
  %v1300 = vpop.f32.mrb[0].mxu0
  %1301 = vmatprep.mubr.f32.mxu0 0.0
  %1302 = vmatmul.mubr.f32.gmra.mrb[0].mxu0 %v980
  %v1303 = vpop.f32.mrb[0].mxu0
  %v1304 = vadd.f32 %v878, %v1303
  %v1305 = vpop.f32.mrb[0].mxu0
  %1306 = vmatprep.mubr.f32.mxu0 0.0
  %1307 = vmatmul.mubr.f32.gmra.mrb[0].mxu0 %v983
  %v1308 = vpop.f32.mrb[0].mxu0
  %v1309 = vadd.f32 %v878, %v1308
  %v1310 = vpop.f32.mrb[0].mxu0
  %1311 = vmatprep.mubr.f32.mxu0 0.0
  %1312 = vmatmul.mubr.f32.gmra.mrb[0].mxu0 %v986
  %v1313 = vpop.f32.mrb[0].mxu0
  %v1314 = vadd.f32 %v878, %v1313
  %v1315 = vpop.f32.mrb[0].mxu0
  %1316 = vmatprep.mubr.f32.mxu0 0.0
  %1317 = vmatmul.mubr.f32.gmra.mrb[0].mxu0 %v989
  %v1318 = vpop.f32.mrb[0].mxu0
  %v1319 = vadd.f32 %v878, %v1318
  %v1320 = vpop.f32.mrb[0].mxu0
  %1321 = vmatprep.mubr.f32.mxu0 0.0
  %1322 = vmatmul.mubr.f32.gmra.mrb[0].mxu0 %v992
  %v1323 = vpop.f32.mrb[0].mxu0
  %v1324 = vadd.f32 %v878, %v1323
  %v1325 = vpop.f32.mrb[0].mxu0
  %1326 = vmatprep.mubr.f32.mxu0 0.0
  %1327 = vmatmul.mubr.f32.gmra.mrb[0].mxu0 %v995
  %v1328 = vpop.f32.mrb[0].mxu0
  %v1329 = vadd.f32 %v878, %v1328
  %v1330 = vpop.f32.mrb[0].mxu0
  %1331 = vmatprep.mubr.f32.mxu0 0.0
  %1332 = vmatmul.mubr.f32.gmra.mrb[0].mxu0 %v998
  %v1333 = vpop.f32.mrb[0].mxu0
  %v1334 = vadd.f32 %v878, %v1333
  %v1335 = vpop.f32.mrb[0].mxu0
  %1336 = vmatprep.mubr.f32.mxu0 0.0
  %1337 = vmatmul.mubr.f32.gmra.mrb[0].mxu0 %v1001
  %v1338 = vpop.f32.mrb[0].mxu0
  %v1339 = vadd.f32 %v878, %v1338
  %v1340 = vpop.f32.mrb[0].mxu0
  %1341 = vmatprep.mubr.f32.mxu0 0.0
  %1342 = vmatmul.mubr.f32.gmra.mrb[0].mxu0 %v1004
  %v1343 = vpop.f32.mrb[0].mxu0
  %v1344 = vadd.f32 %v878, %v1343
  %v1345 = vpop.f32.mrb[0].mxu0
  %1346 = vmatprep.mubr.f32.mxu0 0.0
  %1347 = vmatmul.mubr.f32.gmra.mrb[0].mxu0 %v1007
  %v1348 = vpop.f32.mrb[0].mxu0
  %v1349 = vadd.f32 %v878, %v1348
  %v1350 = vpop.f32.mrb[0].mxu0
  %1351 = vmatprep.mubr.f32.mxu0 0.0
  %1352 = vmatmul.mubr.f32.gmra.mrb[0].mxu0 %v1010
  %v1353 = vpop.f32.mrb[0].mxu0
  %v1354 = vadd.f32 %v878, %v1353
  %v1355 = vpop.f32.mrb[0].mxu0
  %1356 = vmatprep.mubr.f32.mxu0 0.0
  %1357 = vmatmul.mubr.f32.gmra.mrb[0].mxu0 %v1013
  %v1358 = vpop.f32.mrb[0].mxu0
  %v1359 = vadd.f32 %v878, %v1358
  %v1360 = vpop.f32.mrb[0].mxu0
  %1361 = vmatprep.mubr.f32.mxu0 0.0
  %1362 = vmatmul.mubr.f32.gmra.mrb[0].mxu0 %v1016
  %v1363 = vpop.f32.mrb[0].mxu0
  %v1364 = vadd.f32 %v878, %v1363
  %v1365 = vpop.f32.mrb[0].mxu0
  %1366 = vmatprep.mubr.f32.mxu0 0.0
  %1367 = vmatmul.mubr.f32.gmra.mrb[0].mxu0 %v1019
  %v1368 = vpop.f32.mrb[0].mxu0
  %v1369 = vadd.f32 %v878, %v1368
  %v1370 = vpop.f32.mrb[0].mxu0
  %1371 = vmatprep.mubr.f32.mxu0 0.0
  %1372 = vmatmul.mubr.f32.gmra.mrb[0].mxu0 %v1022
  %v1373 = vpop.f32.mrb[0].mxu0
  %v1374 = vadd.f32 %v878, %v1373
  %v1375 = vpop.f32.mrb[0].mxu0
  %1376 = vmatprep.mubr.f32.mxu0 0.0
  %1377 = vmatmul.mubr.f32.gmra.mrb[0].mxu0 %v1025
  %v1378 = vpop.f32.mrb[0].mxu0
  %v1379 = vadd.f32 %v878, %v1378
  %v1380 = vpop.f32.mrb[0].mxu0
  %1381 = vmatprep.mubr.f32.mxu0 0.0
  %1382 = vmatmul.mubr.f32.gmra.mrb[0].mxu0 %v1028
  %v1383 = vpop.f32.mrb[0].mxu0
  %v1384 = vadd.f32 %v878, %v1383
  %v1385 = vpop.f32.mrb[0].mxu0
  %1386 = vmatprep.mubr.f32.mxu0 0.0
  %1387 = vmatmul.mubr.f32.gmra.mrb[0].mxu0 %v1031
  %v1388 = vpop.f32.mrb[0].mxu0
  %v1389 = vadd.f32 %v878, %v1388
  %v1390 = vpop.f32.mrb[0].mxu0
  %1391 = vmatprep.mubr.f32.mxu0 0.0
  %1392 = vmatmul.mubr.f32.gmra.mrb[0].mxu0 %v1034
  %v1393 = vpop.f32.mrb[0].mxu0
  %v1394 = vadd.f32 %v878, %v1393
  %v1395 = vpop.f32.mrb[0].mxu0
  %1396 = vmatprep.mubr.f32.mxu0 0.0
  %1397 = vmatmul.mubr.f32.gmra.mrb[0].mxu0 %v1037
  %v1398 = vpop.f32.mrb[0].mxu0
  %v1399 = vadd.f32 %v878, %v1398
  %v1400 = vpop.f32.mrb[0].mxu0
  %1401 = vmatprep.mubr.f32.mxu0 0.0
  %1402 = vmatmul.mubr.f32.gmra.mrb[0].mxu0 %v1040
  %v1403 = vpop.f32.mrb[0].mxu0
  %v1404 = vadd.f32 %v878, %v1403
  %v1405 = vpop.f32.mrb[0].mxu0
  %1406 = vmatprep.mubr.f32.mxu0 0.0
  %1407 = vmatmul.mubr.f32.gmra.mrb[0].mxu0 %v1043
  %v1408 = vpop.f32.mrb[0].mxu0
  %v1409 = vadd.f32 %v878, %v1408
  %v1410 = vpop.f32.mrb[0].mxu0
  %1411 = vmatprep.mubr.f32.mxu0 0.0
  %1412 = vmatmul.mubr.f32.gmra.mrb[0].mxu0 %v1046
  %v1413 = vpop.f32.mrb[0].mxu0
  %v1414 = vadd.f32 %v878, %v1413
  %v1415 = vpop.f32.mrb[0].mxu0
  %1416 = vmatprep.mubr.f32.mxu0 0.0
  %1417 = vmatmul.mubr.f32.gmra.mrb[0].mxu0 %v1049
  %v1418 = vpop.f32.mrb[0].mxu0
  %v1419 = vadd.f32 %v878, %v1418
  %v1420 = vpop.f32.mrb[0].mxu0
  %1421 = vmatprep.mubr.f32.mxu0 0.0
  %1422 = vmatmul.mubr.f32.gmra.mrb[0].mxu0 %v1052
  %v1423 = vpop.f32.mrb[0].mxu0
  %v1424 = vadd.f32 %v878, %v1423
  %v1425 = vpop.f32.mrb[0].mxu0
  %1426 = vmatprep.mubr.f32.mxu0 0.0
  %1427 = vmatmul.mubr.f32.gmra.mrb[0].mxu0 %v1055
  %v1428 = vpop.f32.mrb[0].mxu0
  %v1429 = vadd.f32 %v878, %v1428
  %v1430 = vpop.f32.mrb[0].mxu0
  %1431 = vmatprep.mubr.f32.mxu0 0.0
  %1432 = vmatmul.mubr.f32.gmra.mrb[0].mxu0 %v1058
  %v1433 = vpop.f32.mrb[0].mxu0
  %v1434 = vadd.f32 %v878, %v1433
  %v1435 = vpop.f32.mrb[0].mxu0
  %1436 = vmatprep.mubr.f32.mxu0 0.0
  %1437 = vmatmul.mubr.f32.gmra.mrb[0].mxu0 %v1061
  %v1438 = vpop.f32.mrb[0].mxu0
  %v1439 = vadd.f32 %v878, %v1438
  %v1440 = vpop.f32.mrb[0].mxu0
  %1441 = vmatprep.mubr.f32.mxu0 0.0
  %1442 = vmatmul.mubr.f32.gmra.mrb[0].mxu0 %v1064
  %v1443 = vpop.f32.mrb[0].mxu0
  %v1444 = vadd.f32 %v878, %v1443
  %v1445 = vpop.f32.mrb[0].mxu0
  %1446 = vmatprep.mubr.f32.mxu0 0.0
  %1447 = vmatmul.mubr.f32.gmra.mrb[0].mxu0 %v1067
  %v1448 = vpop.f32.mrb[0].mxu0
  %v1449 = vadd.f32 %v878, %v1448
  %v1450 = vpop.f32.mrb[0].mxu0
  %1451 = vmatprep.mubr.f32.mxu0 0.0
  %1452 = vmatmul.mubr.f32.gmra.mrb[0].mxu0 %v1070
  %v1453 = vpop.f32.mrb[0].mxu0
  %v1454 = vadd.f32 %v878, %v1453
  %v1455 = vpop.f32.mrb[0].mxu0
  %1456 = vdwg.mxu0
  %v1457 = vtanh.pop %v1139
  %v1458 = vtanh.pop %v1144
  %v1459 = vtanh.pop %v1149
  %v1460 = vtanh.pop %v1154
  %v1461 = vtanh.pop %v1159
  %v1462 = vtanh.pop %v1164
  %v1463 = vtanh.pop %v1169
  %v1464 = vtanh.pop %v1174
  %v1465 = vtanh.pop %v1179
  %v1466 = vtanh.pop %v1184
  %v1467 = vtanh.pop %v1189
  %v1468 = vtanh.pop %v1194
  %v1469 = vtanh.pop %v1199
  %v1470 = vtanh.pop %v1204
  %v1471 = vtanh.pop %v1209
  %v1472 = vtanh.pop %v1214
  %v1473 = vtanh.pop %v1219
  %v1474 = vtanh.pop %v1224
  %v1475 = vtanh.pop %v1229
  %v1476 = vtanh.pop %v1234
  %v1477 = vtanh.pop %v1239
  %v1478 = vtanh.pop %v1244
  %v1479 = vtanh.pop %v1249
  %v1480 = vtanh.pop %v1254
  %v1481 = vtanh.pop %v1259
  %v1482 = vtanh.pop %v1264
  %v1483 = vtanh.pop %v1269
  %v1484 = vtanh.pop %v1274
  %v1485 = vtanh.pop %v1279
  %v1486 = vtanh.pop %v1284
  %v1487 = vtanh.pop %v1289
  %v1488 = vtanh.pop %v1294
  %v1489 = vtanh.pop %v1299
  %v1490 = vtanh.pop %v1304
  %v1491 = vtanh.pop %v1309
  %v1492 = vtanh.pop %v1314
  %v1493 = vtanh.pop %v1319
  %v1494 = vtanh.pop %v1324
  %v1495 = vtanh.pop %v1329
  %v1496 = vtanh.pop %v1334
  %v1497 = vtanh.pop %v1339
  %v1498 = vtanh.pop %v1344
  %v1499 = vtanh.pop %v1349
  %v1500 = vtanh.pop %v1354
  %v1501 = vtanh.pop %v1359
  %v1502 = vtanh.pop %v1364
  %v1503 = vtanh.pop %v1369
  %v1504 = vtanh.pop %v1374
  %v1505 = vtanh.pop %v1379
  %v1506 = vtanh.pop %v1384
  %v1507 = vtanh.pop %v1389
  %v1508 = vtanh.pop %v1394
  %v1509 = vtanh.pop %v1399
  %v1510 = vtanh.pop %v1404
  %v1511 = vtanh.pop %v1409
  %v1512 = vtanh.pop %v1414
  %v1513 = vtanh.pop %v1419
  %v1514 = vtanh.pop %v1424
  %v1515 = vtanh.pop %v1429
  %v1516 = vtanh.pop %v1434
  %v1517 = vtanh.pop %v1439
  %v1518 = vtanh.pop %v1444
  %v1519 = vtanh.pop %v1449
  %v1520 = vtanh.pop %v1454
  %s1521 = scalar_lea.vmem %s3, 512
  %1522 = vst [vmem:[%s1521] sm:$0xff] %v1457
  %1523 = vst [vmem:[%s1521 + $0x8] sm:$0xff] %v1458
  %1524 = vst [vmem:[%s1521 + $0x10] sm:$0xff] %v1459
  %1525 = vst [vmem:[%s1521 + $0x18] sm:$0xff] %v1460
  %1526 = vst [vmem:[%s1521 + $0x20] sm:$0xff] %v1461
  %1527 = vst [vmem:[%s1521 + $0x28] sm:$0xff] %v1462
  %1528 = vst [vmem:[%s1521 + $0x30] sm:$0xff] %v1463
  %1529 = vst [vmem:[%s1521 + $0x38] sm:$0xff] %v1464
  %1530 = vst [vmem:[%s1521 + $0x40] sm:$0xff] %v1465
  %1531 = vst [vmem:[%s1521 + $0x48] sm:$0xff] %v1466
  %1532 = vst [vmem:[%s1521 + $0x50] sm:$0xff] %v1467
  %1533 = vst [vmem:[%s1521 + $0x58] sm:$0xff] %v1468
  %1534 = vst [vmem:[%s1521 + $0x60] sm:$0xff] %v1469
  %1535 = vst [vmem:[%s1521 + $0x68] sm:$0xff] %v1470
  %1536 = vst [vmem:[%s1521 + $0x70] sm:$0xff] %v1471
  %1537 = vst [vmem:[%s1521 + $0x78] sm:$0xff] %v1472
  %1538 = vst [vmem:[%s1521 + $0x80] sm:$0xff] %v1473
  %1539 = vst [vmem:[%s1521 + $0x88] sm:$0xff] %v1474
  %1540 = vst [vmem:[%s1521 + $0x90] sm:$0xff] %v1475
  %1541 = vst [vmem:[%s1521 + $0x98] sm:$0xff] %v1476
  %1542 = vst [vmem:[%s1521 + $0xa0] sm:$0xff] %v1477
  %1543 = vst [vmem:[%s1521 + $0xa8] sm:$0xff] %v1478
  %1544 = vst [vmem:[%s1521 + $0xb0] sm:$0xff] %v1479
  %1545 = vst [vmem:[%s1521 + $0xb8] sm:$0xff] %v1480
  %1546 = vst [vmem:[%s1521 + $0xc0] sm:$0xff] %v1481
  %1547 = vst [vmem:[%s1521 + $0xc8] sm:$0xff] %v1482
  %1548 = vst [vmem:[%s1521 + $0xd0] sm:$0xff] %v1483
  %1549 = vst [vmem:[%s1521 + $0xd8] sm:$0xff] %v1484
  %1550 = vst [vmem:[%s1521 + $0xe0] sm:$0xff] %v1485
  %1551 = vst [vmem:[%s1521 + $0xe8] sm:$0xff] %v1486
  %1552 = vst [vmem:[%s1521 + $0xf0] sm:$0xff] %v1487
  %1553 = vst [vmem:[%s1521 + $0xf8] sm:$0xff] %v1488
  %1554 = vst [vmem:[%s1521 + $0x100] sm:$0xff] %v1489
  %1555 = vst [vmem:[%s1521 + $0x108] sm:$0xff] %v1490
  %1556 = vst [vmem:[%s1521 + $0x110] sm:$0xff] %v1491
  %1557 = vst [vmem:[%s1521 + $0x118] sm:$0xff] %v1492
  %1558 = vst [vmem:[%s1521 + $0x120] sm:$0xff] %v1493
  %1559 = vst [vmem:[%s1521 + $0x128] sm:$0xff] %v1494
  %1560 = vst [vmem:[%s1521 + $0x130] sm:$0xff] %v1495
  %1561 = vst [vmem:[%s1521 + $0x138] sm:$0xff] %v1496
  %1562 = vst [vmem:[%s1521 + $0x140] sm:$0xff] %v1497
  %1563 = vst [vmem:[%s1521 + $0x148] sm:$0xff] %v1498
  %1564 = vst [vmem:[%s1521 + $0x150] sm:$0xff] %v1499
  %1565 = vst [vmem:[%s1521 + $0x158] sm:$0xff] %v1500
  %1566 = vst [vmem:[%s1521 + $0x160] sm:$0xff] %v1501
  %1567 = vst [vmem:[%s1521 + $0x168] sm:$0xff] %v1502
  %1568 = vst [vmem:[%s1521 + $0x170] sm:$0xff] %v1503
  %1569 = vst [vmem:[%s1521 + $0x178] sm:$0xff] %v1504
  %1570 = vst [vmem:[%s1521 + $0x180] sm:$0xff] %v1505
  %1571 = vst [vmem:[%s1521 + $0x188] sm:$0xff] %v1506
  %1572 = vst [vmem:[%s1521 + $0x190] sm:$0xff] %v1507
  %1573 = vst [vmem:[%s1521 + $0x198] sm:$0xff] %v1508
  %1574 = vst [vmem:[%s1521 + $0x1a0] sm:$0xff] %v1509
  %1575 = vst [vmem:[%s1521 + $0x1a8] sm:$0xff] %v1510
  %1576 = vst [vmem:[%s1521 + $0x1b0] sm:$0xff] %v1511
  %1577 = vst [vmem:[%s1521 + $0x1b8] sm:$0xff] %v1512
  %1578 = vst [vmem:[%s1521 + $0x1c0] sm:$0xff] %v1513
  %1579 = vst [vmem:[%s1521 + $0x1c8] sm:$0xff] %v1514
  %1580 = vst [vmem:[%s1521 + $0x1d0] sm:$0xff] %v1515
  %1581 = vst [vmem:[%s1521 + $0x1d8] sm:$0xff] %v1516
  %1582 = vst [vmem:[%s1521 + $0x1e0] sm:$0xff] %v1517
  %1583 = vst [vmem:[%s1521 + $0x1e8] sm:$0xff] %v1518
  %1584 = vst [vmem:[%s1521 + $0x1f0] sm:$0xff] %v1519
  %1585 = vst [vmem:[%s1521 + $0x1f8] sm:$0xff] %v1520
  %s1586 = scalar_lea.vmem %s0, 1024
  %v1587 = vld [vmem:[%s1586] sm:$0xff]
  %v1588 = vld [vmem:[%s1586 + $0x8] sm:$0xff]
  %v1589 = vld [vmem:[%s1586 + $0x10] sm:$0xff]
  %v1590 = vld [vmem:[%s1586 + $0x18] sm:$0xff]
  %v1591 = vld [vmem:[%s1586 + $0x20] sm:$0xff]
  %v1592 = vld [vmem:[%s1586 + $0x28] sm:$0xff]
  %v1593 = vld [vmem:[%s1586 + $0x30] sm:$0xff]
  %v1594 = vld [vmem:[%s1586 + $0x38] sm:$0xff]
  %v1595 = vld [vmem:[%s1586 + $0x40] sm:$0xff]
  %v1596 = vld [vmem:[%s1586 + $0x48] sm:$0xff]
  %v1597 = vld [vmem:[%s1586 + $0x50] sm:$0xff]
  %v1598 = vld [vmem:[%s1586 + $0x58] sm:$0xff]
  %v1599 = vld [vmem:[%s1586 + $0x60] sm:$0xff]
  %v1600 = vld [vmem:[%s1586 + $0x68] sm:$0xff]
  %v1601 = vld [vmem:[%s1586 + $0x70] sm:$0xff]
  %v1602 = vld [vmem:[%s1586 + $0x78] sm:$0xff]
  %v1603 = vld [vmem:[%s1586 + $0x80] sm:$0xff]
  %v1604 = vld [vmem:[%s1586 + $0x88] sm:$0xff]
  %v1605 = vld [vmem:[%s1586 + $0x90] sm:$0xff]
  %v1606 = vld [vmem:[%s1586 + $0x98] sm:$0xff]
  %v1607 = vld [vmem:[%s1586 + $0xa0] sm:$0xff]
  %v1608 = vld [vmem:[%s1586 + $0xa8] sm:$0xff]
  %v1609 = vld [vmem:[%s1586 + $0xb0] sm:$0xff]
  %v1610 = vld [vmem:[%s1586 + $0xb8] sm:$0xff]
  %v1611 = vld [vmem:[%s1586 + $0xc0] sm:$0xff]
  %v1612 = vld [vmem:[%s1586 + $0xc8] sm:$0xff]
  %v1613 = vld [vmem:[%s1586 + $0xd0] sm:$0xff]
  %v1614 = vld [vmem:[%s1586 + $0xd8] sm:$0xff]
  %v1615 = vld [vmem:[%s1586 + $0xe0] sm:$0xff]
  %v1616 = vld [vmem:[%s1586 + $0xe8] sm:$0xff]
  %v1617 = vld [vmem:[%s1586 + $0xf0] sm:$0xff]
  %v1618 = vld [vmem:[%s1586 + $0xf8] sm:$0xff]
  %v1619 = vld [vmem:[%s1586 + $0x100] sm:$0xff]
  %v1620 = vld [vmem:[%s1586 + $0x108] sm:$0xff]
  %v1621 = vld [vmem:[%s1586 + $0x110] sm:$0xff]
  %v1622 = vld [vmem:[%s1586 + $0x118] sm:$0xff]
  %v1623 = vld [vmem:[%s1586 + $0x120] sm:$0xff]
  %v1624 = vld [vmem:[%s1586 + $0x128] sm:$0xff]
  %v1625 = vld [vmem:[%s1586 + $0x130] sm:$0xff]
  %v1626 = vld [vmem:[%s1586 + $0x138] sm:$0xff]
  %v1627 = vld [vmem:[%s1586 + $0x140] sm:$0xff]
  %v1628 = vld [vmem:[%s1586 + $0x148] sm:$0xff]
  %v1629 = vld [vmem:[%s1586 + $0x150] sm:$0xff]
  %v1630 = vld [vmem:[%s1586 + $0x158] sm:$0xff]
  %v1631 = vld [vmem:[%s1586 + $0x160] sm:$0xff]
  %v1632 = vld [vmem:[%s1586 + $0x168] sm:$0xff]
  %v1633 = vld [vmem:[%s1586 + $0x170] sm:$0xff]
  %v1634 = vld [vmem:[%s1586 + $0x178] sm:$0xff]
  %v1635 = vld [vmem:[%s1586 + $0x180] sm:$0xff]
  %v1636 = vld [vmem:[%s1586 + $0x188] sm:$0xff]
  %v1637 = vld [vmem:[%s1586 + $0x190] sm:$0xff]
  %v1638 = vld [vmem:[%s1586 + $0x198] sm:$0xff]
  %v1639 = vld [vmem:[%s1586 + $0x1a0] sm:$0xff]
  %v1640 = vld [vmem:[%s1586 + $0x1a8] sm:$0xff]
  %v1641 = vld [vmem:[%s1586 + $0x1b0] sm:$0xff]
  %v1642 = vld [vmem:[%s1586 + $0x1b8] sm:$0xff]
  %v1643 = vld [vmem:[%s1586 + $0x1c0] sm:$0xff]
  %v1644 = vld [vmem:[%s1586 + $0x1c8] sm:$0xff]
  %v1645 = vld [vmem:[%s1586 + $0x1d0] sm:$0xff]
  %v1646 = vld [vmem:[%s1586 + $0x1d8] sm:$0xff]
  %v1647 = vld [vmem:[%s1586 + $0x1e0] sm:$0xff]
  %v1648 = vld [vmem:[%s1586 + $0x1e8] sm:$0xff]
  %v1649 = vld [vmem:[%s1586 + $0x1f0] sm:$0xff]
  %v1650 = vld [vmem:[%s1586 + $0x1f8] sm:$0xff]
  %s1651 = scalar_lea.vmem %s1, 128
  %v1652 = vld [vmem:[%s1651] sm:$0xff]
  %v1653 = vld [vmem:[%s1651 + $0x8] sm:$0xff]
  %v1654 = vld [vmem:[%s1651 + $0x10] sm:$0xff]
  %v1655 = vld [vmem:[%s1651 + $0x18] sm:$0xff]
  %v1656 = vld [vmem:[%s1651 + $0x20] sm:$0xff]
  %v1657 = vld [vmem:[%s1651 + $0x28] sm:$0xff]
  %v1658 = vld [vmem:[%s1651 + $0x30] sm:$0xff]
  %v1659 = vld [vmem:[%s1651 + $0x38] sm:$0xff]
  %v1660 = vld [vmem:[%s2] sm:$0x1]
  %v1662 = vlaneseq
  %v1663 = vshrl.u32 %v1662, 7
  %v1664 = vsub.s32 0, %v1663
  %v1665 = vrot.slane %v1660, %v1664
  %v1668 = vsel %vm93, %v1587, 0
  %v1671 = vsel %vm93, %v1588, 0
  %v1674 = vsel %vm93, %v1589, 0
  %v1677 = vsel %vm93, %v1590, 0
  %v1680 = vsel %vm93, %v1591, 0
  %v1683 = vsel %vm93, %v1592, 0
  %v1686 = vsel %vm93, %v1593, 0
  %v1689 = vsel %vm93, %v1594, 0
  %v1692 = vsel %vm93, %v1595, 0
  %v1695 = vsel %vm93, %v1596, 0
  %v1698 = vsel %vm93, %v1597, 0
  %v1701 = vsel %vm93, %v1598, 0
  %v1704 = vsel %vm93, %v1599, 0
  %v1707 = vsel %vm93, %v1600, 0
  %v1710 = vsel %vm93, %v1601, 0
  %v1713 = vsel %vm93, %v1602, 0
  %v1716 = vsel %vm93, %v1603, 0
  %v1719 = vsel %vm93, %v1604, 0
  %v1722 = vsel %vm93, %v1605, 0
  %v1725 = vsel %vm93, %v1606, 0
  %v1728 = vsel %vm93, %v1607, 0
  %v1731 = vsel %vm93, %v1608, 0
  %v1734 = vsel %vm93, %v1609, 0
  %v1737 = vsel %vm93, %v1610, 0
  %v1740 = vsel %vm93, %v1611, 0
  %v1743 = vsel %vm93, %v1612, 0
  %v1746 = vsel %vm93, %v1613, 0
  %v1749 = vsel %vm93, %v1614, 0
  %v1752 = vsel %vm93, %v1615, 0
  %v1755 = vsel %vm93, %v1616, 0
  %v1758 = vsel %vm93, %v1617, 0
  %v1761 = vsel %vm93, %v1618, 0
  %v1764 = vsel %vm93, %v1619, 0
  %v1767 = vsel %vm93, %v1620, 0
  %v1770 = vsel %vm93, %v1621, 0
  %v1773 = vsel %vm93, %v1622, 0
  %v1776 = vsel %vm93, %v1623, 0
  %v1779 = vsel %vm93, %v1624, 0
  %v1782 = vsel %vm93, %v1625, 0
  %v1785 = vsel %vm93, %v1626, 0
  %v1788 = vsel %vm93, %v1627, 0
  %v1791 = vsel %vm93, %v1628, 0
  %v1794 = vsel %vm93, %v1629, 0
  %v1797 = vsel %vm93, %v1630, 0
  %v1800 = vsel %vm93, %v1631, 0
  %v1803 = vsel %vm93, %v1632, 0
  %v1806 = vsel %vm93, %v1633, 0
  %v1809 = vsel %vm93, %v1634, 0
  %v1812 = vsel %vm93, %v1635, 0
  %v1815 = vsel %vm93, %v1636, 0
  %v1818 = vsel %vm93, %v1637, 0
  %v1821 = vsel %vm93, %v1638, 0
  %v1824 = vsel %vm93, %v1639, 0
  %v1827 = vsel %vm93, %v1640, 0
  %v1830 = vsel %vm93, %v1641, 0
  %v1833 = vsel %vm93, %v1642, 0
  %v1836 = vsel %vm93, %v1643, 0
  %v1839 = vsel %vm93, %v1644, 0
  %v1842 = vsel %vm93, %v1645, 0
  %v1845 = vsel %vm93, %v1646, 0
  %v1848 = vsel %vm93, %v1647, 0
  %v1851 = vsel %vm93, %v1648, 0
  %v1854 = vsel %vm93, %v1649, 0
  %v1857 = vsel %vm93, %v1650, 0
  %1859 = vmatprep.subr.mxu0 0.0
  %1860 = vmatpush1.msra.mxu0 %v1652
  %1861 = vmatprep.subr.mxu0 0.0
  %1862 = vmatpush1.msra.mxu0 %v1653
  %1863 = vmatprep.subr.mxu0 0.0
  %1864 = vmatpush1.msra.mxu0 %v1654
  %1865 = vmatprep.subr.mxu0 0.0
  %1866 = vmatpush1.msra.mxu0 %v1655
  %1867 = vmatprep.subr.mxu0 0.0
  %1868 = vmatpush1.msra.mxu0 %v1656
  %1869 = vmatprep.subr.mxu0 0.0
  %1870 = vmatpush1.msra.mxu0 %v1657
  %1871 = vmatprep.subr.mxu0 0.0
  %1872 = vmatpush1.msra.mxu0 %v1658
  %1873 = vmatprep.subr.mxu0 0.0
  %1874 = vmatpush1.msra.mxu0 %v1659
  %1875 = vmatprep.subr.mxu0 0.0
  %1876 = vmatpush1.msra.mxu0 0.0
  %1877 = vmatprep.subr.mxu0 0.0
  %1878 = vmatpush1.msra.mxu0 0.0
  %1879 = vmatprep.subr.mxu0 0.0
  %1880 = vmatpush1.msra.mxu0 0.0
  %1881 = vmatprep.subr.mxu0 0.0
  %1882 = vmatpush1.msra.mxu0 0.0
  %1883 = vmatprep.subr.mxu0 0.0
  %1884 = vmatpush1.msra.mxu0 0.0
  %1885 = vmatprep.subr.mxu0 0.0
  %1886 = vmatpush1.msra.mxu0 0.0
  %1887 = vmatprep.subr.mxu0 0.0
  %1888 = vmatpush1.msra.mxu0 0.0
  %1889 = vmatprep.subr.mxu0 0.0
  %1890 = vmatpush1.msra.mxu0 0.0
  %1891 = vmatprep.subr.mxu0 0.0
  %1892 = vmatpush1.msra.mxu0 0.0
  %1893 = vmatprep.subr.mxu0 0.0
  %1894 = vmatpush1.msra.mxu0 0.0
  %1895 = vmatprep.subr.mxu0 0.0
  %1896 = vmatpush1.msra.mxu0 0.0
  %1897 = vmatprep.subr.mxu0 0.0
  %1898 = vmatpush1.msra.mxu0 0.0
  %1899 = vmatprep.subr.mxu0 0.0
  %1900 = vmatpush1.msra.mxu0 0.0
  %1901 = vmatprep.subr.mxu0 0.0
  %1902 = vmatpush1.msra.mxu0 0.0
  %1903 = vmatprep.subr.mxu0 0.0
  %1904 = vmatpush1.msra.mxu0 0.0
  %1905 = vmatprep.subr.mxu0 0.0
  %1906 = vmatpush1.msra.mxu0 0.0
  %1907 = vmatprep.subr.mxu0 0.0
  %1908 = vmatpush1.msra.mxu0 0.0
  %1909 = vmatprep.subr.mxu0 0.0
  %1910 = vmatpush1.msra.mxu0 0.0
  %1911 = vmatprep.subr.mxu0 0.0
  %1912 = vmatpush1.msra.mxu0 0.0
  %1913 = vmatprep.subr.mxu0 0.0
  %1914 = vmatpush1.msra.mxu0 0.0
  %1915 = vmatprep.subr.mxu0 0.0
  %1916 = vmatpush1.msra.mxu0 0.0
  %1917 = vmatprep.subr.mxu0 0.0
  %1918 = vmatpush1.msra.mxu0 0.0
  %1919 = vmatprep.subr.mxu0 0.0
  %1920 = vmatpush1.msra.mxu0 0.0
  %1921 = vmatprep.subr.mxu0 0.0
  %1922 = vmatpush1.msra.mxu0 0.0
  %1923 = vmatprep.mubr.f32.mxu0 0.0
  %1924 = vmatmul.mubr.f32.gmra.mrb[0].mxu0 %v1668
  %v1925 = vpop.f32.mrb[0].mxu0
  %v1926 = vadd.f32 %v1665, %v1925
  %v1927 = vpop.f32.mrb[0].mxu0
  %1928 = vmatprep.mubr.f32.mxu0 0.0
  %1929 = vmatmul.mubr.f32.gmra.mrb[0].mxu0 %v1671
  %v1930 = vpop.f32.mrb[0].mxu0
  %v1931 = vadd.f32 %v1665, %v1930
  %v1932 = vpop.f32.mrb[0].mxu0
  %1933 = vmatprep.mubr.f32.mxu0 0.0
  %1934 = vmatmul.mubr.f32.gmra.mrb[0].mxu0 %v1674
  %v1935 = vpop.f32.mrb[0].mxu0
  %v1936 = vadd.f32 %v1665, %v1935
  %v1937 = vpop.f32.mrb[0].mxu0
  %1938 = vmatprep.mubr.f32.mxu0 0.0
  %1939 = vmatmul.mubr.f32.gmra.mrb[0].mxu0 %v1677
  %v1940 = vpop.f32.mrb[0].mxu0
  %v1941 = vadd.f32 %v1665, %v1940
  %v1942 = vpop.f32.mrb[0].mxu0
  %1943 = vmatprep.mubr.f32.mxu0 0.0
  %1944 = vmatmul.mubr.f32.gmra.mrb[0].mxu0 %v1680
  %v1945 = vpop.f32.mrb[0].mxu0
  %v1946 = vadd.f32 %v1665, %v1945
  %v1947 = vpop.f32.mrb[0].mxu0
  %1948 = vmatprep.mubr.f32.mxu0 0.0
  %1949 = vmatmul.mubr.f32.gmra.mrb[0].mxu0 %v1683
  %v1950 = vpop.f32.mrb[0].mxu0
  %v1951 = vadd.f32 %v1665, %v1950
  %v1952 = vpop.f32.mrb[0].mxu0
  %1953 = vmatprep.mubr.f32.mxu0 0.0
  %1954 = vmatmul.mubr.f32.gmra.mrb[0].mxu0 %v1686
  %v1955 = vpop.f32.mrb[0].mxu0
  %v1956 = vadd.f32 %v1665, %v1955
  %v1957 = vpop.f32.mrb[0].mxu0
  %1958 = vmatprep.mubr.f32.mxu0 0.0
  %1959 = vmatmul.mubr.f32.gmra.mrb[0].mxu0 %v1689
  %v1960 = vpop.f32.mrb[0].mxu0
  %v1961 = vadd.f32 %v1665, %v1960
  %v1962 = vpop.f32.mrb[0].mxu0
  %1963 = vmatprep.mubr.f32.mxu0 0.0
  %1964 = vmatmul.mubr.f32.gmra.mrb[0].mxu0 %v1692
  %v1965 = vpop.f32.mrb[0].mxu0
  %v1966 = vadd.f32 %v1665, %v1965
  %v1967 = vpop.f32.mrb[0].mxu0
  %1968 = vmatprep.mubr.f32.mxu0 0.0
  %1969 = vmatmul.mubr.f32.gmra.mrb[0].mxu0 %v1695
  %v1970 = vpop.f32.mrb[0].mxu0
  %v1971 = vadd.f32 %v1665, %v1970
  %v1972 = vpop.f32.mrb[0].mxu0
  %1973 = vmatprep.mubr.f32.mxu0 0.0
  %1974 = vmatmul.mubr.f32.gmra.mrb[0].mxu0 %v1698
  %v1975 = vpop.f32.mrb[0].mxu0
  %v1976 = vadd.f32 %v1665, %v1975
  %v1977 = vpop.f32.mrb[0].mxu0
  %1978 = vmatprep.mubr.f32.mxu0 0.0
  %1979 = vmatmul.mubr.f32.gmra.mrb[0].mxu0 %v1701
  %v1980 = vpop.f32.mrb[0].mxu0
  %v1981 = vadd.f32 %v1665, %v1980
  %v1982 = vpop.f32.mrb[0].mxu0
  %1983 = vmatprep.mubr.f32.mxu0 0.0
  %1984 = vmatmul.mubr.f32.gmra.mrb[0].mxu0 %v1704
  %v1985 = vpop.f32.mrb[0].mxu0
  %v1986 = vadd.f32 %v1665, %v1985
  %v1987 = vpop.f32.mrb[0].mxu0
  %1988 = vmatprep.mubr.f32.mxu0 0.0
  %1989 = vmatmul.mubr.f32.gmra.mrb[0].mxu0 %v1707
  %v1990 = vpop.f32.mrb[0].mxu0
  %v1991 = vadd.f32 %v1665, %v1990
  %v1992 = vpop.f32.mrb[0].mxu0
  %1993 = vmatprep.mubr.f32.mxu0 0.0
  %1994 = vmatmul.mubr.f32.gmra.mrb[0].mxu0 %v1710
  %v1995 = vpop.f32.mrb[0].mxu0
  %v1996 = vadd.f32 %v1665, %v1995
  %v1997 = vpop.f32.mrb[0].mxu0
  %1998 = vmatprep.mubr.f32.mxu0 0.0
  %1999 = vmatmul.mubr.f32.gmra.mrb[0].mxu0 %v1713
  %v2000 = vpop.f32.mrb[0].mxu0
  %v2001 = vadd.f32 %v1665, %v2000
  %v2002 = vpop.f32.mrb[0].mxu0
  %2003 = vmatprep.mubr.f32.mxu0 0.0
  %2004 = vmatmul.mubr.f32.gmra.mrb[0].mxu0 %v1716
  %v2005 = vpop.f32.mrb[0].mxu0
  %v2006 = vadd.f32 %v1665, %v2005
  %v2007 = vpop.f32.mrb[0].mxu0
  %2008 = vmatprep.mubr.f32.mxu0 0.0
  %2009 = vmatmul.mubr.f32.gmra.mrb[0].mxu0 %v1719
  %v2010 = vpop.f32.mrb[0].mxu0
  %v2011 = vadd.f32 %v1665, %v2010
  %v2012 = vpop.f32.mrb[0].mxu0
  %2013 = vmatprep.mubr.f32.mxu0 0.0
  %2014 = vmatmul.mubr.f32.gmra.mrb[0].mxu0 %v1722
  %v2015 = vpop.f32.mrb[0].mxu0
  %v2016 = vadd.f32 %v1665, %v2015
  %v2017 = vpop.f32.mrb[0].mxu0
  %2018 = vmatprep.mubr.f32.mxu0 0.0
  %2019 = vmatmul.mubr.f32.gmra.mrb[0].mxu0 %v1725
  %v2020 = vpop.f32.mrb[0].mxu0
  %v2021 = vadd.f32 %v1665, %v2020
  %v2022 = vpop.f32.mrb[0].mxu0
  %2023 = vmatprep.mubr.f32.mxu0 0.0
  %2024 = vmatmul.mubr.f32.gmra.mrb[0].mxu0 %v1728
  %v2025 = vpop.f32.mrb[0].mxu0
  %v2026 = vadd.f32 %v1665, %v2025
  %v2027 = vpop.f32.mrb[0].mxu0
  %2028 = vmatprep.mubr.f32.mxu0 0.0
  %2029 = vmatmul.mubr.f32.gmra.mrb[0].mxu0 %v1731
  %v2030 = vpop.f32.mrb[0].mxu0
  %v2031 = vadd.f32 %v1665, %v2030
  %v2032 = vpop.f32.mrb[0].mxu0
  %2033 = vmatprep.mubr.f32.mxu0 0.0
  %2034 = vmatmul.mubr.f32.gmra.mrb[0].mxu0 %v1734
  %v2035 = vpop.f32.mrb[0].mxu0
  %v2036 = vadd.f32 %v1665, %v2035
  %v2037 = vpop.f32.mrb[0].mxu0
  %2038 = vmatprep.mubr.f32.mxu0 0.0
  %2039 = vmatmul.mubr.f32.gmra.mrb[0].mxu0 %v1737
  %v2040 = vpop.f32.mrb[0].mxu0
  %v2041 = vadd.f32 %v1665, %v2040
  %v2042 = vpop.f32.mrb[0].mxu0
  %2043 = vmatprep.mubr.f32.mxu0 0.0
  %2044 = vmatmul.mubr.f32.gmra.mrb[0].mxu0 %v1740
  %v2045 = vpop.f32.mrb[0].mxu0
  %v2046 = vadd.f32 %v1665, %v2045
  %v2047 = vpop.f32.mrb[0].mxu0
  %2048 = vmatprep.mubr.f32.mxu0 0.0
  %2049 = vmatmul.mubr.f32.gmra.mrb[0].mxu0 %v1743
  %v2050 = vpop.f32.mrb[0].mxu0
  %v2051 = vadd.f32 %v1665, %v2050
  %v2052 = vpop.f32.mrb[0].mxu0
  %2053 = vmatprep.mubr.f32.mxu0 0.0
  %2054 = vmatmul.mubr.f32.gmra.mrb[0].mxu0 %v1746
  %v2055 = vpop.f32.mrb[0].mxu0
  %v2056 = vadd.f32 %v1665, %v2055
  %v2057 = vpop.f32.mrb[0].mxu0
  %2058 = vmatprep.mubr.f32.mxu0 0.0
  %2059 = vmatmul.mubr.f32.gmra.mrb[0].mxu0 %v1749
  %v2060 = vpop.f32.mrb[0].mxu0
  %v2061 = vadd.f32 %v1665, %v2060
  %v2062 = vpop.f32.mrb[0].mxu0
  %2063 = vmatprep.mubr.f32.mxu0 0.0
  %2064 = vmatmul.mubr.f32.gmra.mrb[0].mxu0 %v1752
  %v2065 = vpop.f32.mrb[0].mxu0
  %v2066 = vadd.f32 %v1665, %v2065
  %v2067 = vpop.f32.mrb[0].mxu0
  %2068 = vmatprep.mubr.f32.mxu0 0.0
  %2069 = vmatmul.mubr.f32.gmra.mrb[0].mxu0 %v1755
  %v2070 = vpop.f32.mrb[0].mxu0
  %v2071 = vadd.f32 %v1665, %v2070
  %v2072 = vpop.f32.mrb[0].mxu0
  %2073 = vmatprep.mubr.f32.mxu0 0.0
  %2074 = vmatmul.mubr.f32.gmra.mrb[0].mxu0 %v1758
  %v2075 = vpop.f32.mrb[0].mxu0
  %v2076 = vadd.f32 %v1665, %v2075
  %v2077 = vpop.f32.mrb[0].mxu0
  %2078 = vmatprep.mubr.f32.mxu0 0.0
  %2079 = vmatmul.mubr.f32.gmra.mrb[0].mxu0 %v1761
  %v2080 = vpop.f32.mrb[0].mxu0
  %v2081 = vadd.f32 %v1665, %v2080
  %v2082 = vpop.f32.mrb[0].mxu0
  %2083 = vmatprep.mubr.f32.mxu0 0.0
  %2084 = vmatmul.mubr.f32.gmra.mrb[0].mxu0 %v1764
  %v2085 = vpop.f32.mrb[0].mxu0
  %v2086 = vadd.f32 %v1665, %v2085
  %v2087 = vpop.f32.mrb[0].mxu0
  %2088 = vmatprep.mubr.f32.mxu0 0.0
  %2089 = vmatmul.mubr.f32.gmra.mrb[0].mxu0 %v1767
  %v2090 = vpop.f32.mrb[0].mxu0
  %v2091 = vadd.f32 %v1665, %v2090
  %v2092 = vpop.f32.mrb[0].mxu0
  %2093 = vmatprep.mubr.f32.mxu0 0.0
  %2094 = vmatmul.mubr.f32.gmra.mrb[0].mxu0 %v1770
  %v2095 = vpop.f32.mrb[0].mxu0
  %v2096 = vadd.f32 %v1665, %v2095
  %v2097 = vpop.f32.mrb[0].mxu0
  %2098 = vmatprep.mubr.f32.mxu0 0.0
  %2099 = vmatmul.mubr.f32.gmra.mrb[0].mxu0 %v1773
  %v2100 = vpop.f32.mrb[0].mxu0
  %v2101 = vadd.f32 %v1665, %v2100
  %v2102 = vpop.f32.mrb[0].mxu0
  %2103 = vmatprep.mubr.f32.mxu0 0.0
  %2104 = vmatmul.mubr.f32.gmra.mrb[0].mxu0 %v1776
  %v2105 = vpop.f32.mrb[0].mxu0
  %v2106 = vadd.f32 %v1665, %v2105
  %v2107 = vpop.f32.mrb[0].mxu0
  %2108 = vmatprep.mubr.f32.mxu0 0.0
  %2109 = vmatmul.mubr.f32.gmra.mrb[0].mxu0 %v1779
  %v2110 = vpop.f32.mrb[0].mxu0
  %v2111 = vadd.f32 %v1665, %v2110
  %v2112 = vpop.f32.mrb[0].mxu0
  %2113 = vmatprep.mubr.f32.mxu0 0.0
  %2114 = vmatmul.mubr.f32.gmra.mrb[0].mxu0 %v1782
  %v2115 = vpop.f32.mrb[0].mxu0
  %v2116 = vadd.f32 %v1665, %v2115
  %v2117 = vpop.f32.mrb[0].mxu0
  %2118 = vmatprep.mubr.f32.mxu0 0.0
  %2119 = vmatmul.mubr.f32.gmra.mrb[0].mxu0 %v1785
  %v2120 = vpop.f32.mrb[0].mxu0
  %v2121 = vadd.f32 %v1665, %v2120
  %v2122 = vpop.f32.mrb[0].mxu0
  %2123 = vmatprep.mubr.f32.mxu0 0.0
  %2124 = vmatmul.mubr.f32.gmra.mrb[0].mxu0 %v1788
  %v2125 = vpop.f32.mrb[0].mxu0
  %v2126 = vadd.f32 %v1665, %v2125
  %v2127 = vpop.f32.mrb[0].mxu0
  %2128 = vmatprep.mubr.f32.mxu0 0.0
  %2129 = vmatmul.mubr.f32.gmra.mrb[0].mxu0 %v1791
  %v2130 = vpop.f32.mrb[0].mxu0
  %v2131 = vadd.f32 %v1665, %v2130
  %v2132 = vpop.f32.mrb[0].mxu0
  %2133 = vmatprep.mubr.f32.mxu0 0.0
  %2134 = vmatmul.mubr.f32.gmra.mrb[0].mxu0 %v1794
  %v2135 = vpop.f32.mrb[0].mxu0
  %v2136 = vadd.f32 %v1665, %v2135
  %v2137 = vpop.f32.mrb[0].mxu0
  %2138 = vmatprep.mubr.f32.mxu0 0.0
  %2139 = vmatmul.mubr.f32.gmra.mrb[0].mxu0 %v1797
  %v2140 = vpop.f32.mrb[0].mxu0
  %v2141 = vadd.f32 %v1665, %v2140
  %v2142 = vpop.f32.mrb[0].mxu0
  %2143 = vmatprep.mubr.f32.mxu0 0.0
  %2144 = vmatmul.mubr.f32.gmra.mrb[0].mxu0 %v1800
  %v2145 = vpop.f32.mrb[0].mxu0
  %v2146 = vadd.f32 %v1665, %v2145
  %v2147 = vpop.f32.mrb[0].mxu0
  %2148 = vmatprep.mubr.f32.mxu0 0.0
  %2149 = vmatmul.mubr.f32.gmra.mrb[0].mxu0 %v1803
  %v2150 = vpop.f32.mrb[0].mxu0
  %v2151 = vadd.f32 %v1665, %v2150
  %v2152 = vpop.f32.mrb[0].mxu0
  %2153 = vmatprep.mubr.f32.mxu0 0.0
  %2154 = vmatmul.mubr.f32.gmra.mrb[0].mxu0 %v1806
  %v2155 = vpop.f32.mrb[0].mxu0
  %v2156 = vadd.f32 %v1665, %v2155
  %v2157 = vpop.f32.mrb[0].mxu0
  %2158 = vmatprep.mubr.f32.mxu0 0.0
  %2159 = vmatmul.mubr.f32.gmra.mrb[0].mxu0 %v1809
  %v2160 = vpop.f32.mrb[0].mxu0
  %v2161 = vadd.f32 %v1665, %v2160
  %v2162 = vpop.f32.mrb[0].mxu0
  %2163 = vmatprep.mubr.f32.mxu0 0.0
  %2164 = vmatmul.mubr.f32.gmra.mrb[0].mxu0 %v1812
  %v2165 = vpop.f32.mrb[0].mxu0
  %v2166 = vadd.f32 %v1665, %v2165
  %v2167 = vpop.f32.mrb[0].mxu0
  %2168 = vmatprep.mubr.f32.mxu0 0.0
  %2169 = vmatmul.mubr.f32.gmra.mrb[0].mxu0 %v1815
  %v2170 = vpop.f32.mrb[0].mxu0
  %v2171 = vadd.f32 %v1665, %v2170
  %v2172 = vpop.f32.mrb[0].mxu0
  %2173 = vmatprep.mubr.f32.mxu0 0.0
  %2174 = vmatmul.mubr.f32.gmra.mrb[0].mxu0 %v1818
  %v2175 = vpop.f32.mrb[0].mxu0
  %v2176 = vadd.f32 %v1665, %v2175
  %v2177 = vpop.f32.mrb[0].mxu0
  %2178 = vmatprep.mubr.f32.mxu0 0.0
  %2179 = vmatmul.mubr.f32.gmra.mrb[0].mxu0 %v1821
  %v2180 = vpop.f32.mrb[0].mxu0
  %v2181 = vadd.f32 %v1665, %v2180
  %v2182 = vpop.f32.mrb[0].mxu0
  %2183 = vmatprep.mubr.f32.mxu0 0.0
  %2184 = vmatmul.mubr.f32.gmra.mrb[0].mxu0 %v1824
  %v2185 = vpop.f32.mrb[0].mxu0
  %v2186 = vadd.f32 %v1665, %v2185
  %v2187 = vpop.f32.mrb[0].mxu0
  %2188 = vmatprep.mubr.f32.mxu0 0.0
  %2189 = vmatmul.mubr.f32.gmra.mrb[0].mxu0 %v1827
  %v2190 = vpop.f32.mrb[0].mxu0
  %v2191 = vadd.f32 %v1665, %v2190
  %v2192 = vpop.f32.mrb[0].mxu0
  %2193 = vmatprep.mubr.f32.mxu0 0.0
  %2194 = vmatmul.mubr.f32.gmra.mrb[0].mxu0 %v1830
  %v2195 = vpop.f32.mrb[0].mxu0
  %v2196 = vadd.f32 %v1665, %v2195
  %v2197 = vpop.f32.mrb[0].mxu0
  %2198 = vmatprep.mubr.f32.mxu0 0.0
  %2199 = vmatmul.mubr.f32.gmra.mrb[0].mxu0 %v1833
  %v2200 = vpop.f32.mrb[0].mxu0
  %v2201 = vadd.f32 %v1665, %v2200
  %v2202 = vpop.f32.mrb[0].mxu0
  %2203 = vmatprep.mubr.f32.mxu0 0.0
  %2204 = vmatmul.mubr.f32.gmra.mrb[0].mxu0 %v1836
  %v2205 = vpop.f32.mrb[0].mxu0
  %v2206 = vadd.f32 %v1665, %v2205
  %v2207 = vpop.f32.mrb[0].mxu0
  %2208 = vmatprep.mubr.f32.mxu0 0.0
  %2209 = vmatmul.mubr.f32.gmra.mrb[0].mxu0 %v1839
  %v2210 = vpop.f32.mrb[0].mxu0
  %v2211 = vadd.f32 %v1665, %v2210
  %v2212 = vpop.f32.mrb[0].mxu0
  %2213 = vmatprep.mubr.f32.mxu0 0.0
  %2214 = vmatmul.mubr.f32.gmra.mrb[0].mxu0 %v1842
  %v2215 = vpop.f32.mrb[0].mxu0
  %v2216 = vadd.f32 %v1665, %v2215
  %v2217 = vpop.f32.mrb[0].mxu0
  %2218 = vmatprep.mubr.f32.mxu0 0.0
  %2219 = vmatmul.mubr.f32.gmra.mrb[0].mxu0 %v1845
  %v2220 = vpop.f32.mrb[0].mxu0
  %v2221 = vadd.f32 %v1665, %v2220
  %v2222 = vpop.f32.mrb[0].mxu0
  %2223 = vmatprep.mubr.f32.mxu0 0.0
  %2224 = vmatmul.mubr.f32.gmra.mrb[0].mxu0 %v1848
  %v2225 = vpop.f32.mrb[0].mxu0
  %v2226 = vadd.f32 %v1665, %v2225
  %v2227 = vpop.f32.mrb[0].mxu0
  %2228 = vmatprep.mubr.f32.mxu0 0.0
  %2229 = vmatmul.mubr.f32.gmra.mrb[0].mxu0 %v1851
  %v2230 = vpop.f32.mrb[0].mxu0
  %v2231 = vadd.f32 %v1665, %v2230
  %v2232 = vpop.f32.mrb[0].mxu0
  %2233 = vmatprep.mubr.f32.mxu0 0.0
  %2234 = vmatmul.mubr.f32.gmra.mrb[0].mxu0 %v1854
  %v2235 = vpop.f32.mrb[0].mxu0
  %v2236 = vadd.f32 %v1665, %v2235
  %v2237 = vpop.f32.mrb[0].mxu0
  %2238 = vmatprep.mubr.f32.mxu0 0.0
  %2239 = vmatmul.mubr.f32.gmra.mrb[0].mxu0 %v1857
  %v2240 = vpop.f32.mrb[0].mxu0
  %v2241 = vadd.f32 %v1665, %v2240
  %v2242 = vpop.f32.mrb[0].mxu0
  %2243 = vdwg.mxu0
  %v2244 = vtanh.pop %v1926
  %v2245 = vtanh.pop %v1931
  %v2246 = vtanh.pop %v1936
  %v2247 = vtanh.pop %v1941
  %v2248 = vtanh.pop %v1946
  %v2249 = vtanh.pop %v1951
  %v2250 = vtanh.pop %v1956
  %v2251 = vtanh.pop %v1961
  %v2252 = vtanh.pop %v1966
  %v2253 = vtanh.pop %v1971
  %v2254 = vtanh.pop %v1976
  %v2255 = vtanh.pop %v1981
  %v2256 = vtanh.pop %v1986
  %v2257 = vtanh.pop %v1991
  %v2258 = vtanh.pop %v1996
  %v2259 = vtanh.pop %v2001
  %v2260 = vtanh.pop %v2006
  %v2261 = vtanh.pop %v2011
  %v2262 = vtanh.pop %v2016
  %v2263 = vtanh.pop %v2021
  %v2264 = vtanh.pop %v2026
  %v2265 = vtanh.pop %v2031
  %v2266 = vtanh.pop %v2036
  %v2267 = vtanh.pop %v2041
  %v2268 = vtanh.pop %v2046
  %v2269 = vtanh.pop %v2051
  %v2270 = vtanh.pop %v2056
  %v2271 = vtanh.pop %v2061
  %v2272 = vtanh.pop %v2066
  %v2273 = vtanh.pop %v2071
  %v2274 = vtanh.pop %v2076
  %v2275 = vtanh.pop %v2081
  %v2276 = vtanh.pop %v2086
  %v2277 = vtanh.pop %v2091
  %v2278 = vtanh.pop %v2096
  %v2279 = vtanh.pop %v2101
  %v2280 = vtanh.pop %v2106
  %v2281 = vtanh.pop %v2111
  %v2282 = vtanh.pop %v2116
  %v2283 = vtanh.pop %v2121
  %v2284 = vtanh.pop %v2126
  %v2285 = vtanh.pop %v2131
  %v2286 = vtanh.pop %v2136
  %v2287 = vtanh.pop %v2141
  %v2288 = vtanh.pop %v2146
  %v2289 = vtanh.pop %v2151
  %v2290 = vtanh.pop %v2156
  %v2291 = vtanh.pop %v2161
  %v2292 = vtanh.pop %v2166
  %v2293 = vtanh.pop %v2171
  %v2294 = vtanh.pop %v2176
  %v2295 = vtanh.pop %v2181
  %v2296 = vtanh.pop %v2186
  %v2297 = vtanh.pop %v2191
  %v2298 = vtanh.pop %v2196
  %v2299 = vtanh.pop %v2201
  %v2300 = vtanh.pop %v2206
  %v2301 = vtanh.pop %v2211
  %v2302 = vtanh.pop %v2216
  %v2303 = vtanh.pop %v2221
  %v2304 = vtanh.pop %v2226
  %v2305 = vtanh.pop %v2231
  %v2306 = vtanh.pop %v2236
  %v2307 = vtanh.pop %v2241
  %s2308 = scalar_lea.vmem %s3, 1024
  %2309 = vst [vmem:[%s2308] sm:$0xff] %v2244
  %2310 = vst [vmem:[%s2308 + $0x8] sm:$0xff] %v2245
  %2311 = vst [vmem:[%s2308 + $0x10] sm:$0xff] %v2246
  %2312 = vst [vmem:[%s2308 + $0x18] sm:$0xff] %v2247
  %2313 = vst [vmem:[%s2308 + $0x20] sm:$0xff] %v2248
  %2314 = vst [vmem:[%s2308 + $0x28] sm:$0xff] %v2249
  %2315 = vst [vmem:[%s2308 + $0x30] sm:$0xff] %v2250
  %2316 = vst [vmem:[%s2308 + $0x38] sm:$0xff] %v2251
  %2317 = vst [vmem:[%s2308 + $0x40] sm:$0xff] %v2252
  %2318 = vst [vmem:[%s2308 + $0x48] sm:$0xff] %v2253
  %2319 = vst [vmem:[%s2308 + $0x50] sm:$0xff] %v2254
  %2320 = vst [vmem:[%s2308 + $0x58] sm:$0xff] %v2255
  %2321 = vst [vmem:[%s2308 + $0x60] sm:$0xff] %v2256
  %2322 = vst [vmem:[%s2308 + $0x68] sm:$0xff] %v2257
  %2323 = vst [vmem:[%s2308 + $0x70] sm:$0xff] %v2258
  %2324 = vst [vmem:[%s2308 + $0x78] sm:$0xff] %v2259
  %2325 = vst [vmem:[%s2308 + $0x80] sm:$0xff] %v2260
  %2326 = vst [vmem:[%s2308 + $0x88] sm:$0xff] %v2261
  %2327 = vst [vmem:[%s2308 + $0x90] sm:$0xff] %v2262
  %2328 = vst [vmem:[%s2308 + $0x98] sm:$0xff] %v2263
  %2329 = vst [vmem:[%s2308 + $0xa0] sm:$0xff] %v2264
  %2330 = vst [vmem:[%s2308 + $0xa8] sm:$0xff] %v2265
  %2331 = vst [vmem:[%s2308 + $0xb0] sm:$0xff] %v2266
  %2332 = vst [vmem:[%s2308 + $0xb8] sm:$0xff] %v2267
  %2333 = vst [vmem:[%s2308 + $0xc0] sm:$0xff] %v2268
  %2334 = vst [vmem:[%s2308 + $0xc8] sm:$0xff] %v2269
  %2335 = vst [vmem:[%s2308 + $0xd0] sm:$0xff] %v2270
  %2336 = vst [vmem:[%s2308 + $0xd8] sm:$0xff] %v2271
  %2337 = vst [vmem:[%s2308 + $0xe0] sm:$0xff] %v2272
  %2338 = vst [vmem:[%s2308 + $0xe8] sm:$0xff] %v2273
  %2339 = vst [vmem:[%s2308 + $0xf0] sm:$0xff] %v2274
  %2340 = vst [vmem:[%s2308 + $0xf8] sm:$0xff] %v2275
  %2341 = vst [vmem:[%s2308 + $0x100] sm:$0xff] %v2276
  %2342 = vst [vmem:[%s2308 + $0x108] sm:$0xff] %v2277
  %2343 = vst [vmem:[%s2308 + $0x110] sm:$0xff] %v2278
  %2344 = vst [vmem:[%s2308 + $0x118] sm:$0xff] %v2279
  %2345 = vst [vmem:[%s2308 + $0x120] sm:$0xff] %v2280
  %2346 = vst [vmem:[%s2308 + $0x128] sm:$0xff] %v2281
  %2347 = vst [vmem:[%s2308 + $0x130] sm:$0xff] %v2282
  %2348 = vst [vmem:[%s2308 + $0x138] sm:$0xff] %v2283
  %2349 = vst [vmem:[%s2308 + $0x140] sm:$0xff] %v2284
  %2350 = vst [vmem:[%s2308 + $0x148] sm:$0xff] %v2285
  %2351 = vst [vmem:[%s2308 + $0x150] sm:$0xff] %v2286
  %2352 = vst [vmem:[%s2308 + $0x158] sm:$0xff] %v2287
  %2353 = vst [vmem:[%s2308 + $0x160] sm:$0xff] %v2288
  %2354 = vst [vmem:[%s2308 + $0x168] sm:$0xff] %v2289
  %2355 = vst [vmem:[%s2308 + $0x170] sm:$0xff] %v2290
  %2356 = vst [vmem:[%s2308 + $0x178] sm:$0xff] %v2291
  %2357 = vst [vmem:[%s2308 + $0x180] sm:$0xff] %v2292
  %2358 = vst [vmem:[%s2308 + $0x188] sm:$0xff] %v2293
  %2359 = vst [vmem:[%s2308 + $0x190] sm:$0xff] %v2294
  %2360 = vst [vmem:[%s2308 + $0x198] sm:$0xff] %v2295
  %2361 = vst [vmem:[%s2308 + $0x1a0] sm:$0xff] %v2296
  %2362 = vst [vmem:[%s2308 + $0x1a8] sm:$0xff] %v2297
  %2363 = vst [vmem:[%s2308 + $0x1b0] sm:$0xff] %v2298
  %2364 = vst [vmem:[%s2308 + $0x1b8] sm:$0xff] %v2299
  %2365 = vst [vmem:[%s2308 + $0x1c0] sm:$0xff] %v2300
  %2366 = vst [vmem:[%s2308 + $0x1c8] sm:$0xff] %v2301
  %2367 = vst [vmem:[%s2308 + $0x1d0] sm:$0xff] %v2302
  %2368 = vst [vmem:[%s2308 + $0x1d8] sm:$0xff] %v2303
  %2369 = vst [vmem:[%s2308 + $0x1e0] sm:$0xff] %v2304
  %2370 = vst [vmem:[%s2308 + $0x1e8] sm:$0xff] %v2305
  %2371 = vst [vmem:[%s2308 + $0x1f0] sm:$0xff] %v2306
  %2372 = vst [vmem:[%s2308 + $0x1f8] sm:$0xff] %v2307
  %s2373 = scalar_lea.vmem %s0, 1536
  %v2374 = vld [vmem:[%s2373] sm:$0xff]
  %v2375 = vld [vmem:[%s2373 + $0x8] sm:$0xff]
  %v2376 = vld [vmem:[%s2373 + $0x10] sm:$0xff]
  %v2377 = vld [vmem:[%s2373 + $0x18] sm:$0xff]
  %v2378 = vld [vmem:[%s2373 + $0x20] sm:$0xff]
  %v2379 = vld [vmem:[%s2373 + $0x28] sm:$0xff]
  %v2380 = vld [vmem:[%s2373 + $0x30] sm:$0xff]
  %v2381 = vld [vmem:[%s2373 + $0x38] sm:$0xff]
  %v2382 = vld [vmem:[%s2373 + $0x40] sm:$0xff]
  %v2383 = vld [vmem:[%s2373 + $0x48] sm:$0xff]
  %v2384 = vld [vmem:[%s2373 + $0x50] sm:$0xff]
  %v2385 = vld [vmem:[%s2373 + $0x58] sm:$0xff]
  %v2386 = vld [vmem:[%s2373 + $0x60] sm:$0xff]
  %v2387 = vld [vmem:[%s2373 + $0x68] sm:$0xff]
  %v2388 = vld [vmem:[%s2373 + $0x70] sm:$0xff]
  %v2389 = vld [vmem:[%s2373 + $0x78] sm:$0xff]
  %v2390 = vld [vmem:[%s2373 + $0x80] sm:$0xff]
  %v2391 = vld [vmem:[%s2373 + $0x88] sm:$0xff]
  %v2392 = vld [vmem:[%s2373 + $0x90] sm:$0xff]
  %v2393 = vld [vmem:[%s2373 + $0x98] sm:$0xff]
  %v2394 = vld [vmem:[%s2373 + $0xa0] sm:$0xff]
  %v2395 = vld [vmem:[%s2373 + $0xa8] sm:$0xff]
  %v2396 = vld [vmem:[%s2373 + $0xb0] sm:$0xff]
  %v2397 = vld [vmem:[%s2373 + $0xb8] sm:$0xff]
  %v2398 = vld [vmem:[%s2373 + $0xc0] sm:$0xff]
  %v2399 = vld [vmem:[%s2373 + $0xc8] sm:$0xff]
  %v2400 = vld [vmem:[%s2373 + $0xd0] sm:$0xff]
  %v2401 = vld [vmem:[%s2373 + $0xd8] sm:$0xff]
  %v2402 = vld [vmem:[%s2373 + $0xe0] sm:$0xff]
  %v2403 = vld [vmem:[%s2373 + $0xe8] sm:$0xff]
  %v2404 = vld [vmem:[%s2373 + $0xf0] sm:$0xff]
  %v2405 = vld [vmem:[%s2373 + $0xf8] sm:$0xff]
  %v2406 = vld [vmem:[%s2373 + $0x100] sm:$0xff]
  %v2407 = vld [vmem:[%s2373 + $0x108] sm:$0xff]
  %v2408 = vld [vmem:[%s2373 + $0x110] sm:$0xff]
  %v2409 = vld [vmem:[%s2373 + $0x118] sm:$0xff]
  %v2410 = vld [vmem:[%s2373 + $0x120] sm:$0xff]
  %v2411 = vld [vmem:[%s2373 + $0x128] sm:$0xff]
  %v2412 = vld [vmem:[%s2373 + $0x130] sm:$0xff]
  %v2413 = vld [vmem:[%s2373 + $0x138] sm:$0xff]
  %v2414 = vld [vmem:[%s2373 + $0x140] sm:$0xff]
  %v2415 = vld [vmem:[%s2373 + $0x148] sm:$0xff]
  %v2416 = vld [vmem:[%s2373 + $0x150] sm:$0xff]
  %v2417 = vld [vmem:[%s2373 + $0x158] sm:$0xff]
  %v2418 = vld [vmem:[%s2373 + $0x160] sm:$0xff]
  %v2419 = vld [vmem:[%s2373 + $0x168] sm:$0xff]
  %v2420 = vld [vmem:[%s2373 + $0x170] sm:$0xff]
  %v2421 = vld [vmem:[%s2373 + $0x178] sm:$0xff]
  %v2422 = vld [vmem:[%s2373 + $0x180] sm:$0xff]
  %v2423 = vld [vmem:[%s2373 + $0x188] sm:$0xff]
  %v2424 = vld [vmem:[%s2373 + $0x190] sm:$0xff]
  %v2425 = vld [vmem:[%s2373 + $0x198] sm:$0xff]
  %v2426 = vld [vmem:[%s2373 + $0x1a0] sm:$0xff]
  %v2427 = vld [vmem:[%s2373 + $0x1a8] sm:$0xff]
  %v2428 = vld [vmem:[%s2373 + $0x1b0] sm:$0xff]
  %v2429 = vld [vmem:[%s2373 + $0x1b8] sm:$0xff]
  %v2430 = vld [vmem:[%s2373 + $0x1c0] sm:$0xff]
  %v2431 = vld [vmem:[%s2373 + $0x1c8] sm:$0xff]
  %v2432 = vld [vmem:[%s2373 + $0x1d0] sm:$0xff]
  %v2433 = vld [vmem:[%s2373 + $0x1d8] sm:$0xff]
  %v2434 = vld [vmem:[%s2373 + $0x1e0] sm:$0xff]
  %v2435 = vld [vmem:[%s2373 + $0x1e8] sm:$0xff]
  %v2436 = vld [vmem:[%s2373 + $0x1f0] sm:$0xff]
  %v2437 = vld [vmem:[%s2373 + $0x1f8] sm:$0xff]
  %s2438 = scalar_lea.vmem %s1, 192
  %v2439 = vld [vmem:[%s2438] sm:$0xff]
  %v2440 = vld [vmem:[%s2438 + $0x8] sm:$0xff]
  %v2441 = vld [vmem:[%s2438 + $0x10] sm:$0xff]
  %v2442 = vld [vmem:[%s2438 + $0x18] sm:$0xff]
  %v2443 = vld [vmem:[%s2438 + $0x20] sm:$0xff]
  %v2444 = vld [vmem:[%s2438 + $0x28] sm:$0xff]
  %v2445 = vld [vmem:[%s2438 + $0x30] sm:$0xff]
  %v2446 = vld [vmem:[%s2438 + $0x38] sm:$0xff]
  %v2447 = vld [vmem:[%s2] sm:$0x1]
  %v2449 = vlaneseq
  %v2450 = vshrl.u32 %v2449, 7
  %v2451 = vsub.s32 0, %v2450
  %v2452 = vrot.slane %v2447, %v2451
  %v2455 = vsel %vm93, %v2374, 0
  %v2458 = vsel %vm93, %v2375, 0
  %v2461 = vsel %vm93, %v2376, 0
  %v2464 = vsel %vm93, %v2377, 0
  %v2467 = vsel %vm93, %v2378, 0
  %v2470 = vsel %vm93, %v2379, 0
  %v2473 = vsel %vm93, %v2380, 0
  %v2476 = vsel %vm93, %v2381, 0
  %v2479 = vsel %vm93, %v2382, 0
  %v2482 = vsel %vm93, %v2383, 0
  %v2485 = vsel %vm93, %v2384, 0
  %v2488 = vsel %vm93, %v2385, 0
  %v2491 = vsel %vm93, %v2386, 0
  %v2494 = vsel %vm93, %v2387, 0
  %v2497 = vsel %vm93, %v2388, 0
  %v2500 = vsel %vm93, %v2389, 0
  %v2503 = vsel %vm93, %v2390, 0
  %v2506 = vsel %vm93, %v2391, 0
  %v2509 = vsel %vm93, %v2392, 0
  %v2512 = vsel %vm93, %v2393, 0
  %v2515 = vsel %vm93, %v2394, 0
  %v2518 = vsel %vm93, %v2395, 0
  %v2521 = vsel %vm93, %v2396, 0
  %v2524 = vsel %vm93, %v2397, 0
  %v2527 = vsel %vm93, %v2398, 0
  %v2530 = vsel %vm93, %v2399, 0
  %v2533 = vsel %vm93, %v2400, 0
  %v2536 = vsel %vm93, %v2401, 0
  %v2539 = vsel %vm93, %v2402, 0
  %v2542 = vsel %vm93, %v2403, 0
  %v2545 = vsel %vm93, %v2404, 0
  %v2548 = vsel %vm93, %v2405, 0
  %v2551 = vsel %vm93, %v2406, 0
  %v2554 = vsel %vm93, %v2407, 0
  %v2557 = vsel %vm93, %v2408, 0
  %v2560 = vsel %vm93, %v2409, 0
  %v2563 = vsel %vm93, %v2410, 0
  %v2566 = vsel %vm93, %v2411, 0
  %v2569 = vsel %vm93, %v2412, 0
  %v2572 = vsel %vm93, %v2413, 0
  %v2575 = vsel %vm93, %v2414, 0
  %v2578 = vsel %vm93, %v2415, 0
  %v2581 = vsel %vm93, %v2416, 0
  %v2584 = vsel %vm93, %v2417, 0
  %v2587 = vsel %vm93, %v2418, 0
  %v2590 = vsel %vm93, %v2419, 0
  %v2593 = vsel %vm93, %v2420, 0
  %v2596 = vsel %vm93, %v2421, 0
  %v2599 = vsel %vm93, %v2422, 0
  %v2602 = vsel %vm93, %v2423, 0
  %v2605 = vsel %vm93, %v2424, 0
  %v2608 = vsel %vm93, %v2425, 0
  %v2611 = vsel %vm93, %v2426, 0
  %v2614 = vsel %vm93, %v2427, 0
  %v2617 = vsel %vm93, %v2428, 0
  %v2620 = vsel %vm93, %v2429, 0
  %v2623 = vsel %vm93, %v2430, 0
  %v2626 = vsel %vm93, %v2431, 0
  %v2629 = vsel %vm93, %v2432, 0
  %v2632 = vsel %vm93, %v2433, 0
  %v2635 = vsel %vm93, %v2434, 0
  %v2638 = vsel %vm93, %v2435, 0
  %v2641 = vsel %vm93, %v2436, 0
  %v2644 = vsel %vm93, %v2437, 0
  %2646 = vmatprep.subr.mxu0 0.0
  %2647 = vmatpush1.msra.mxu0 %v2439
  %2648 = vmatprep.subr.mxu0 0.0
  %2649 = vmatpush1.msra.mxu0 %v2440
  %2650 = vmatprep.subr.mxu0 0.0
  %2651 = vmatpush1.msra.mxu0 %v2441
  %2652 = vmatprep.subr.mxu0 0.0
  %2653 = vmatpush1.msra.mxu0 %v2442
  %2654 = vmatprep.subr.mxu0 0.0
  %2655 = vmatpush1.msra.mxu0 %v2443
  %2656 = vmatprep.subr.mxu0 0.0
  %2657 = vmatpush1.msra.mxu0 %v2444
  %2658 = vmatprep.subr.mxu0 0.0
  %2659 = vmatpush1.msra.mxu0 %v2445
  %2660 = vmatprep.subr.mxu0 0.0
  %2661 = vmatpush1.msra.mxu0 %v2446
  %2662 = vmatprep.subr.mxu0 0.0
  %2663 = vmatpush1.msra.mxu0 0.0
  %2664 = vmatprep.subr.mxu0 0.0
  %2665 = vmatpush1.msra.mxu0 0.0
  %2666 = vmatprep.subr.mxu0 0.0
  %2667 = vmatpush1.msra.mxu0 0.0
  %2668 = vmatprep.subr.mxu0 0.0
  %2669 = vmatpush1.msra.mxu0 0.0
  %2670 = vmatprep.subr.mxu0 0.0
  %2671 = vmatpush1.msra.mxu0 0.0
  %2672 = vmatprep.subr.mxu0 0.0
  %2673 = vmatpush1.msra.mxu0 0.0
  %2674 = vmatprep.subr.mxu0 0.0
  %2675 = vmatpush1.msra.mxu0 0.0
  %2676 = vmatprep.subr.mxu0 0.0
  %2677 = vmatpush1.msra.mxu0 0.0
  %2678 = vmatprep.subr.mxu0 0.0
  %2679 = vmatpush1.msra.mxu0 0.0
  %2680 = vmatprep.subr.mxu0 0.0
  %2681 = vmatpush1.msra.mxu0 0.0
  %2682 = vmatprep.subr.mxu0 0.0
  %2683 = vmatpush1.msra.mxu0 0.0
  %2684 = vmatprep.subr.mxu0 0.0
  %2685 = vmatpush1.msra.mxu0 0.0
  %2686 = vmatprep.subr.mxu0 0.0
  %2687 = vmatpush1.msra.mxu0 0.0
  %2688 = vmatprep.subr.mxu0 0.0
  %2689 = vmatpush1.msra.mxu0 0.0
  %2690 = vmatprep.subr.mxu0 0.0
  %2691 = vmatpush1.msra.mxu0 0.0
  %2692 = vmatprep.subr.mxu0 0.0
  %2693 = vmatpush1.msra.mxu0 0.0
  %2694 = vmatprep.subr.mxu0 0.0
  %2695 = vmatpush1.msra.mxu0 0.0
  %2696 = vmatprep.subr.mxu0 0.0
  %2697 = vmatpush1.msra.mxu0 0.0
  %2698 = vmatprep.subr.mxu0 0.0
  %2699 = vmatpush1.msra.mxu0 0.0
  %2700 = vmatprep.subr.mxu0 0.0
  %2701 = vmatpush1.msra.mxu0 0.0
  %2702 = vmatprep.subr.mxu0 0.0
  %2703 = vmatpush1.msra.mxu0 0.0
  %2704 = vmatprep.subr.mxu0 0.0
  %2705 = vmatpush1.msra.mxu0 0.0
  %2706 = vmatprep.subr.mxu0 0.0
  %2707 = vmatpush1.msra.mxu0 0.0
  %2708 = vmatprep.subr.mxu0 0.0
  %2709 = vmatpush1.msra.mxu0 0.0
  %2710 = vmatprep.mubr.f32.mxu0 0.0
  %2711 = vmatmul.mubr.f32.gmra.mrb[0].mxu0 %v2455
  %v2712 = vpop.f32.mrb[0].mxu0
  %v2713 = vadd.f32 %v2452, %v2712
  %v2714 = vpop.f32.mrb[0].mxu0
  %2715 = vmatprep.mubr.f32.mxu0 0.0
  %2716 = vmatmul.mubr.f32.gmra.mrb[0].mxu0 %v2458
  %v2717 = vpop.f32.mrb[0].mxu0
  %v2718 = vadd.f32 %v2452, %v2717
  %v2719 = vpop.f32.mrb[0].mxu0
  %2720 = vmatprep.mubr.f32.mxu0 0.0
  %2721 = vmatmul.mubr.f32.gmra.mrb[0].mxu0 %v2461
  %v2722 = vpop.f32.mrb[0].mxu0
  %v2723 = vadd.f32 %v2452, %v2722
  %v2724 = vpop.f32.mrb[0].mxu0
  %2725 = vmatprep.mubr.f32.mxu0 0.0
  %2726 = vmatmul.mubr.f32.gmra.mrb[0].mxu0 %v2464
  %v2727 = vpop.f32.mrb[0].mxu0
  %v2728 = vadd.f32 %v2452, %v2727
  %v2729 = vpop.f32.mrb[0].mxu0
  %2730 = vmatprep.mubr.f32.mxu0 0.0
  %2731 = vmatmul.mubr.f32.gmra.mrb[0].mxu0 %v2467
  %v2732 = vpop.f32.mrb[0].mxu0
  %v2733 = vadd.f32 %v2452, %v2732
  %v2734 = vpop.f32.mrb[0].mxu0
  %2735 = vmatprep.mubr.f32.mxu0 0.0
  %2736 = vmatmul.mubr.f32.gmra.mrb[0].mxu0 %v2470
  %v2737 = vpop.f32.mrb[0].mxu0
  %v2738 = vadd.f32 %v2452, %v2737
  %v2739 = vpop.f32.mrb[0].mxu0
  %2740 = vmatprep.mubr.f32.mxu0 0.0
  %2741 = vmatmul.mubr.f32.gmra.mrb[0].mxu0 %v2473
  %v2742 = vpop.f32.mrb[0].mxu0
  %v2743 = vadd.f32 %v2452, %v2742
  %v2744 = vpop.f32.mrb[0].mxu0
  %2745 = vmatprep.mubr.f32.mxu0 0.0
  %2746 = vmatmul.mubr.f32.gmra.mrb[0].mxu0 %v2476
  %v2747 = vpop.f32.mrb[0].mxu0
  %v2748 = vadd.f32 %v2452, %v2747
  %v2749 = vpop.f32.mrb[0].mxu0
  %2750 = vmatprep.mubr.f32.mxu0 0.0
  %2751 = vmatmul.mubr.f32.gmra.mrb[0].mxu0 %v2479
  %v2752 = vpop.f32.mrb[0].mxu0
  %v2753 = vadd.f32 %v2452, %v2752
  %v2754 = vpop.f32.mrb[0].mxu0
  %2755 = vmatprep.mubr.f32.mxu0 0.0
  %2756 = vmatmul.mubr.f32.gmra.mrb[0].mxu0 %v2482
  %v2757 = vpop.f32.mrb[0].mxu0
  %v2758 = vadd.f32 %v2452, %v2757
  %v2759 = vpop.f32.mrb[0].mxu0
  %2760 = vmatprep.mubr.f32.mxu0 0.0
  %2761 = vmatmul.mubr.f32.gmra.mrb[0].mxu0 %v2485
  %v2762 = vpop.f32.mrb[0].mxu0
  %v2763 = vadd.f32 %v2452, %v2762
  %v2764 = vpop.f32.mrb[0].mxu0
  %2765 = vmatprep.mubr.f32.mxu0 0.0
  %2766 = vmatmul.mubr.f32.gmra.mrb[0].mxu0 %v2488
  %v2767 = vpop.f32.mrb[0].mxu0
  %v2768 = vadd.f32 %v2452, %v2767
  %v2769 = vpop.f32.mrb[0].mxu0
  %2770 = vmatprep.mubr.f32.mxu0 0.0
  %2771 = vmatmul.mubr.f32.gmra.mrb[0].mxu0 %v2491
  %v2772 = vpop.f32.mrb[0].mxu0
  %v2773 = vadd.f32 %v2452, %v2772
  %v2774 = vpop.f32.mrb[0].mxu0
  %2775 = vmatprep.mubr.f32.mxu0 0.0
  %2776 = vmatmul.mubr.f32.gmra.mrb[0].mxu0 %v2494
  %v2777 = vpop.f32.mrb[0].mxu0
  %v2778 = vadd.f32 %v2452, %v2777
  %v2779 = vpop.f32.mrb[0].mxu0
  %2780 = vmatprep.mubr.f32.mxu0 0.0
  %2781 = vmatmul.mubr.f32.gmra.mrb[0].mxu0 %v2497
  %v2782 = vpop.f32.mrb[0].mxu0
  %v2783 = vadd.f32 %v2452, %v2782
  %v2784 = vpop.f32.mrb[0].mxu0
  %2785 = vmatprep.mubr.f32.mxu0 0.0
  %2786 = vmatmul.mubr.f32.gmra.mrb[0].mxu0 %v2500
  %v2787 = vpop.f32.mrb[0].mxu0
  %v2788 = vadd.f32 %v2452, %v2787
  %v2789 = vpop.f32.mrb[0].mxu0
  %2790 = vmatprep.mubr.f32.mxu0 0.0
  %2791 = vmatmul.mubr.f32.gmra.mrb[0].mxu0 %v2503
  %v2792 = vpop.f32.mrb[0].mxu0
  %v2793 = vadd.f32 %v2452, %v2792
  %v2794 = vpop.f32.mrb[0].mxu0
  %2795 = vmatprep.mubr.f32.mxu0 0.0
  %2796 = vmatmul.mubr.f32.gmra.mrb[0].mxu0 %v2506
  %v2797 = vpop.f32.mrb[0].mxu0
  %v2798 = vadd.f32 %v2452, %v2797
  %v2799 = vpop.f32.mrb[0].mxu0
  %2800 = vmatprep.mubr.f32.mxu0 0.0
  %2801 = vmatmul.mubr.f32.gmra.mrb[0].mxu0 %v2509
  %v2802 = vpop.f32.mrb[0].mxu0
  %v2803 = vadd.f32 %v2452, %v2802
  %v2804 = vpop.f32.mrb[0].mxu0
  %2805 = vmatprep.mubr.f32.mxu0 0.0
  %2806 = vmatmul.mubr.f32.gmra.mrb[0].mxu0 %v2512
  %v2807 = vpop.f32.mrb[0].mxu0
  %v2808 = vadd.f32 %v2452, %v2807
  %v2809 = vpop.f32.mrb[0].mxu0
  %2810 = vmatprep.mubr.f32.mxu0 0.0
  %2811 = vmatmul.mubr.f32.gmra.mrb[0].mxu0 %v2515
  %v2812 = vpop.f32.mrb[0].mxu0
  %v2813 = vadd.f32 %v2452, %v2812
  %v2814 = vpop.f32.mrb[0].mxu0
  %2815 = vmatprep.mubr.f32.mxu0 0.0
  %2816 = vmatmul.mubr.f32.gmra.mrb[0].mxu0 %v2518
  %v2817 = vpop.f32.mrb[0].mxu0
  %v2818 = vadd.f32 %v2452, %v2817
  %v2819 = vpop.f32.mrb[0].mxu0
  %2820 = vmatprep.mubr.f32.mxu0 0.0
  %2821 = vmatmul.mubr.f32.gmra.mrb[0].mxu0 %v2521
  %v2822 = vpop.f32.mrb[0].mxu0
  %v2823 = vadd.f32 %v2452, %v2822
  %v2824 = vpop.f32.mrb[0].mxu0
  %2825 = vmatprep.mubr.f32.mxu0 0.0
  %2826 = vmatmul.mubr.f32.gmra.mrb[0].mxu0 %v2524
  %v2827 = vpop.f32.mrb[0].mxu0
  %v2828 = vadd.f32 %v2452, %v2827
  %v2829 = vpop.f32.mrb[0].mxu0
  %2830 = vmatprep.mubr.f32.mxu0 0.0
  %2831 = vmatmul.mubr.f32.gmra.mrb[0].mxu0 %v2527
  %v2832 = vpop.f32.mrb[0].mxu0
  %v2833 = vadd.f32 %v2452, %v2832
  %v2834 = vpop.f32.mrb[0].mxu0
  %2835 = vmatprep.mubr.f32.mxu0 0.0
  %2836 = vmatmul.mubr.f32.gmra.mrb[0].mxu0 %v2530
  %v2837 = vpop.f32.mrb[0].mxu0
  %v2838 = vadd.f32 %v2452, %v2837
  %v2839 = vpop.f32.mrb[0].mxu0
  %2840 = vmatprep.mubr.f32.mxu0 0.0
  %2841 = vmatmul.mubr.f32.gmra.mrb[0].mxu0 %v2533
  %v2842 = vpop.f32.mrb[0].mxu0
  %v2843 = vadd.f32 %v2452, %v2842
  %v2844 = vpop.f32.mrb[0].mxu0
  %2845 = vmatprep.mubr.f32.mxu0 0.0
  %2846 = vmatmul.mubr.f32.gmra.mrb[0].mxu0 %v2536
  %v2847 = vpop.f32.mrb[0].mxu0
  %v2848 = vadd.f32 %v2452, %v2847
  %v2849 = vpop.f32.mrb[0].mxu0
  %2850 = vmatprep.mubr.f32.mxu0 0.0
  %2851 = vmatmul.mubr.f32.gmra.mrb[0].mxu0 %v2539
  %v2852 = vpop.f32.mrb[0].mxu0
  %v2853 = vadd.f32 %v2452, %v2852
  %v2854 = vpop.f32.mrb[0].mxu0
  %2855 = vmatprep.mubr.f32.mxu0 0.0
  %2856 = vmatmul.mubr.f32.gmra.mrb[0].mxu0 %v2542
  %v2857 = vpop.f32.mrb[0].mxu0
  %v2858 = vadd.f32 %v2452, %v2857
  %v2859 = vpop.f32.mrb[0].mxu0
  %2860 = vmatprep.mubr.f32.mxu0 0.0
  %2861 = vmatmul.mubr.f32.gmra.mrb[0].mxu0 %v2545
  %v2862 = vpop.f32.mrb[0].mxu0
  %v2863 = vadd.f32 %v2452, %v2862
  %v2864 = vpop.f32.mrb[0].mxu0
  %2865 = vmatprep.mubr.f32.mxu0 0.0
  %2866 = vmatmul.mubr.f32.gmra.mrb[0].mxu0 %v2548
  %v2867 = vpop.f32.mrb[0].mxu0
  %v2868 = vadd.f32 %v2452, %v2867
  %v2869 = vpop.f32.mrb[0].mxu0
  %2870 = vmatprep.mubr.f32.mxu0 0.0
  %2871 = vmatmul.mubr.f32.gmra.mrb[0].mxu0 %v2551
  %v2872 = vpop.f32.mrb[0].mxu0
  %v2873 = vadd.f32 %v2452, %v2872
  %v2874 = vpop.f32.mrb[0].mxu0
  %2875 = vmatprep.mubr.f32.mxu0 0.0
  %2876 = vmatmul.mubr.f32.gmra.mrb[0].mxu0 %v2554
  %v2877 = vpop.f32.mrb[0].mxu0
  %v2878 = vadd.f32 %v2452, %v2877
  %v2879 = vpop.f32.mrb[0].mxu0
  %2880 = vmatprep.mubr.f32.mxu0 0.0
  %2881 = vmatmul.mubr.f32.gmra.mrb[0].mxu0 %v2557
  %v2882 = vpop.f32.mrb[0].mxu0
  %v2883 = vadd.f32 %v2452, %v2882
  %v2884 = vpop.f32.mrb[0].mxu0
  %2885 = vmatprep.mubr.f32.mxu0 0.0
  %2886 = vmatmul.mubr.f32.gmra.mrb[0].mxu0 %v2560
  %v2887 = vpop.f32.mrb[0].mxu0
  %v2888 = vadd.f32 %v2452, %v2887
  %v2889 = vpop.f32.mrb[0].mxu0
  %2890 = vmatprep.mubr.f32.mxu0 0.0
  %2891 = vmatmul.mubr.f32.gmra.mrb[0].mxu0 %v2563
  %v2892 = vpop.f32.mrb[0].mxu0
  %v2893 = vadd.f32 %v2452, %v2892
  %v2894 = vpop.f32.mrb[0].mxu0
  %2895 = vmatprep.mubr.f32.mxu0 0.0
  %2896 = vmatmul.mubr.f32.gmra.mrb[0].mxu0 %v2566
  %v2897 = vpop.f32.mrb[0].mxu0
  %v2898 = vadd.f32 %v2452, %v2897
  %v2899 = vpop.f32.mrb[0].mxu0
  %2900 = vmatprep.mubr.f32.mxu0 0.0
  %2901 = vmatmul.mubr.f32.gmra.mrb[0].mxu0 %v2569
  %v2902 = vpop.f32.mrb[0].mxu0
  %v2903 = vadd.f32 %v2452, %v2902
  %v2904 = vpop.f32.mrb[0].mxu0
  %2905 = vmatprep.mubr.f32.mxu0 0.0
  %2906 = vmatmul.mubr.f32.gmra.mrb[0].mxu0 %v2572
  %v2907 = vpop.f32.mrb[0].mxu0
  %v2908 = vadd.f32 %v2452, %v2907
  %v2909 = vpop.f32.mrb[0].mxu0
  %2910 = vmatprep.mubr.f32.mxu0 0.0
  %2911 = vmatmul.mubr.f32.gmra.mrb[0].mxu0 %v2575
  %v2912 = vpop.f32.mrb[0].mxu0
  %v2913 = vadd.f32 %v2452, %v2912
  %v2914 = vpop.f32.mrb[0].mxu0
  %2915 = vmatprep.mubr.f32.mxu0 0.0
  %2916 = vmatmul.mubr.f32.gmra.mrb[0].mxu0 %v2578
  %v2917 = vpop.f32.mrb[0].mxu0
  %v2918 = vadd.f32 %v2452, %v2917
  %v2919 = vpop.f32.mrb[0].mxu0
  %2920 = vmatprep.mubr.f32.mxu0 0.0
  %2921 = vmatmul.mubr.f32.gmra.mrb[0].mxu0 %v2581
  %v2922 = vpop.f32.mrb[0].mxu0
  %v2923 = vadd.f32 %v2452, %v2922
  %v2924 = vpop.f32.mrb[0].mxu0
  %2925 = vmatprep.mubr.f32.mxu0 0.0
  %2926 = vmatmul.mubr.f32.gmra.mrb[0].mxu0 %v2584
  %v2927 = vpop.f32.mrb[0].mxu0
  %v2928 = vadd.f32 %v2452, %v2927
  %v2929 = vpop.f32.mrb[0].mxu0
  %2930 = vmatprep.mubr.f32.mxu0 0.0
  %2931 = vmatmul.mubr.f32.gmra.mrb[0].mxu0 %v2587
  %v2932 = vpop.f32.mrb[0].mxu0
  %v2933 = vadd.f32 %v2452, %v2932
  %v2934 = vpop.f32.mrb[0].mxu0
  %2935 = vmatprep.mubr.f32.mxu0 0.0
  %2936 = vmatmul.mubr.f32.gmra.mrb[0].mxu0 %v2590
  %v2937 = vpop.f32.mrb[0].mxu0
  %v2938 = vadd.f32 %v2452, %v2937
  %v2939 = vpop.f32.mrb[0].mxu0
  %2940 = vmatprep.mubr.f32.mxu0 0.0
  %2941 = vmatmul.mubr.f32.gmra.mrb[0].mxu0 %v2593
  %v2942 = vpop.f32.mrb[0].mxu0
  %v2943 = vadd.f32 %v2452, %v2942
  %v2944 = vpop.f32.mrb[0].mxu0
  %2945 = vmatprep.mubr.f32.mxu0 0.0
  %2946 = vmatmul.mubr.f32.gmra.mrb[0].mxu0 %v2596
  %v2947 = vpop.f32.mrb[0].mxu0
  %v2948 = vadd.f32 %v2452, %v2947
  %v2949 = vpop.f32.mrb[0].mxu0
  %2950 = vmatprep.mubr.f32.mxu0 0.0
  %2951 = vmatmul.mubr.f32.gmra.mrb[0].mxu0 %v2599
  %v2952 = vpop.f32.mrb[0].mxu0
  %v2953 = vadd.f32 %v2452, %v2952
  %v2954 = vpop.f32.mrb[0].mxu0
  %2955 = vmatprep.mubr.f32.mxu0 0.0
  %2956 = vmatmul.mubr.f32.gmra.mrb[0].mxu0 %v2602
  %v2957 = vpop.f32.mrb[0].mxu0
  %v2958 = vadd.f32 %v2452, %v2957
  %v2959 = vpop.f32.mrb[0].mxu0
  %2960 = vmatprep.mubr.f32.mxu0 0.0
  %2961 = vmatmul.mubr.f32.gmra.mrb[0].mxu0 %v2605
  %v2962 = vpop.f32.mrb[0].mxu0
  %v2963 = vadd.f32 %v2452, %v2962
  %v2964 = vpop.f32.mrb[0].mxu0
  %2965 = vmatprep.mubr.f32.mxu0 0.0
  %2966 = vmatmul.mubr.f32.gmra.mrb[0].mxu0 %v2608
  %v2967 = vpop.f32.mrb[0].mxu0
  %v2968 = vadd.f32 %v2452, %v2967
  %v2969 = vpop.f32.mrb[0].mxu0
  %2970 = vmatprep.mubr.f32.mxu0 0.0
  %2971 = vmatmul.mubr.f32.gmra.mrb[0].mxu0 %v2611
  %v2972 = vpop.f32.mrb[0].mxu0
  %v2973 = vadd.f32 %v2452, %v2972
  %v2974 = vpop.f32.mrb[0].mxu0
  %2975 = vmatprep.mubr.f32.mxu0 0.0
  %2976 = vmatmul.mubr.f32.gmra.mrb[0].mxu0 %v2614
  %v2977 = vpop.f32.mrb[0].mxu0
  %v2978 = vadd.f32 %v2452, %v2977
  %v2979 = vpop.f32.mrb[0].mxu0
  %2980 = vmatprep.mubr.f32.mxu0 0.0
  %2981 = vmatmul.mubr.f32.gmra.mrb[0].mxu0 %v2617
  %v2982 = vpop.f32.mrb[0].mxu0
  %v2983 = vadd.f32 %v2452, %v2982
  %v2984 = vpop.f32.mrb[0].mxu0
  %2985 = vmatprep.mubr.f32.mxu0 0.0
  %2986 = vmatmul.mubr.f32.gmra.mrb[0].mxu0 %v2620
  %v2987 = vpop.f32.mrb[0].mxu0
  %v2988 = vadd.f32 %v2452, %v2987
  %v2989 = vpop.f32.mrb[0].mxu0
  %2990 = vmatprep.mubr.f32.mxu0 0.0
  %2991 = vmatmul.mubr.f32.gmra.mrb[0].mxu0 %v2623
  %v2992 = vpop.f32.mrb[0].mxu0
  %v2993 = vadd.f32 %v2452, %v2992
  %v2994 = vpop.f32.mrb[0].mxu0
  %2995 = vmatprep.mubr.f32.mxu0 0.0
  %2996 = vmatmul.mubr.f32.gmra.mrb[0].mxu0 %v2626
  %v2997 = vpop.f32.mrb[0].mxu0
  %v2998 = vadd.f32 %v2452, %v2997
  %v2999 = vpop.f32.mrb[0].mxu0
  %3000 = vmatprep.mubr.f32.mxu0 0.0
  %3001 = vmatmul.mubr.f32.gmra.mrb[0].mxu0 %v2629
  %v3002 = vpop.f32.mrb[0].mxu0
  %v3003 = vadd.f32 %v2452, %v3002
  %v3004 = vpop.f32.mrb[0].mxu0
  %3005 = vmatprep.mubr.f32.mxu0 0.0
  %3006 = vmatmul.mubr.f32.gmra.mrb[0].mxu0 %v2632
  %v3007 = vpop.f32.mrb[0].mxu0
  %v3008 = vadd.f32 %v2452, %v3007
  %v3009 = vpop.f32.mrb[0].mxu0
  %3010 = vmatprep.mubr.f32.mxu0 0.0
  %3011 = vmatmul.mubr.f32.gmra.mrb[0].mxu0 %v2635
  %v3012 = vpop.f32.mrb[0].mxu0
  %v3013 = vadd.f32 %v2452, %v3012
  %v3014 = vpop.f32.mrb[0].mxu0
  %3015 = vmatprep.mubr.f32.mxu0 0.0
  %3016 = vmatmul.mubr.f32.gmra.mrb[0].mxu0 %v2638
  %v3017 = vpop.f32.mrb[0].mxu0
  %v3018 = vadd.f32 %v2452, %v3017
  %v3019 = vpop.f32.mrb[0].mxu0
  %3020 = vmatprep.mubr.f32.mxu0 0.0
  %3021 = vmatmul.mubr.f32.gmra.mrb[0].mxu0 %v2641
  %v3022 = vpop.f32.mrb[0].mxu0
  %v3023 = vadd.f32 %v2452, %v3022
  %v3024 = vpop.f32.mrb[0].mxu0
  %3025 = vmatprep.mubr.f32.mxu0 0.0
  %3026 = vmatmul.mubr.f32.gmra.mrb[0].mxu0 %v2644
  %v3027 = vpop.f32.mrb[0].mxu0
  %v3028 = vadd.f32 %v2452, %v3027
  %v3029 = vpop.f32.mrb[0].mxu0
  %3030 = vdwg.mxu0
  %v3031 = vtanh.pop %v2713
  %v3032 = vtanh.pop %v2718
  %v3033 = vtanh.pop %v2723
  %v3034 = vtanh.pop %v2728
  %v3035 = vtanh.pop %v2733
  %v3036 = vtanh.pop %v2738
  %v3037 = vtanh.pop %v2743
  %v3038 = vtanh.pop %v2748
  %v3039 = vtanh.pop %v2753
  %v3040 = vtanh.pop %v2758
  %v3041 = vtanh.pop %v2763
  %v3042 = vtanh.pop %v2768
  %v3043 = vtanh.pop %v2773
  %v3044 = vtanh.pop %v2778
  %v3045 = vtanh.pop %v2783
  %v3046 = vtanh.pop %v2788
  %v3047 = vtanh.pop %v2793
  %v3048 = vtanh.pop %v2798
  %v3049 = vtanh.pop %v2803
  %v3050 = vtanh.pop %v2808
  %v3051 = vtanh.pop %v2813
  %v3052 = vtanh.pop %v2818
  %v3053 = vtanh.pop %v2823
  %v3054 = vtanh.pop %v2828
  %v3055 = vtanh.pop %v2833
  %v3056 = vtanh.pop %v2838
  %v3057 = vtanh.pop %v2843
  %v3058 = vtanh.pop %v2848
  %v3059 = vtanh.pop %v2853
  %v3060 = vtanh.pop %v2858
  %v3061 = vtanh.pop %v2863
  %v3062 = vtanh.pop %v2868
  %v3063 = vtanh.pop %v2873
  %v3064 = vtanh.pop %v2878
  %v3065 = vtanh.pop %v2883
  %v3066 = vtanh.pop %v2888
  %v3067 = vtanh.pop %v2893
  %v3068 = vtanh.pop %v2898
  %v3069 = vtanh.pop %v2903
  %v3070 = vtanh.pop %v2908
  %v3071 = vtanh.pop %v2913
  %v3072 = vtanh.pop %v2918
  %v3073 = vtanh.pop %v2923
  %v3074 = vtanh.pop %v2928
  %v3075 = vtanh.pop %v2933
  %v3076 = vtanh.pop %v2938
  %v3077 = vtanh.pop %v2943
  %v3078 = vtanh.pop %v2948
  %v3079 = vtanh.pop %v2953
  %v3080 = vtanh.pop %v2958
  %v3081 = vtanh.pop %v2963
  %v3082 = vtanh.pop %v2968
  %v3083 = vtanh.pop %v2973
  %v3084 = vtanh.pop %v2978
  %v3085 = vtanh.pop %v2983
  %v3086 = vtanh.pop %v2988
  %v3087 = vtanh.pop %v2993
  %v3088 = vtanh.pop %v2998
  %v3089 = vtanh.pop %v3003
  %v3090 = vtanh.pop %v3008
  %v3091 = vtanh.pop %v3013
  %v3092 = vtanh.pop %v3018
  %v3093 = vtanh.pop %v3023
  %v3094 = vtanh.pop %v3028
  %s3095 = scalar_lea.vmem %s3, 1536
  %3096 = vst [vmem:[%s3095] sm:$0xff] %v3031
  %3097 = vst [vmem:[%s3095 + $0x8] sm:$0xff] %v3032
  %3098 = vst [vmem:[%s3095 + $0x10] sm:$0xff] %v3033
  %3099 = vst [vmem:[%s3095 + $0x18] sm:$0xff] %v3034
  %3100 = vst [vmem:[%s3095 + $0x20] sm:$0xff] %v3035
  %3101 = vst [vmem:[%s3095 + $0x28] sm:$0xff] %v3036
  %3102 = vst [vmem:[%s3095 + $0x30] sm:$0xff] %v3037
  %3103 = vst [vmem:[%s3095 + $0x38] sm:$0xff] %v3038
  %3104 = vst [vmem:[%s3095 + $0x40] sm:$0xff] %v3039
  %3105 = vst [vmem:[%s3095 + $0x48] sm:$0xff] %v3040
  %3106 = vst [vmem:[%s3095 + $0x50] sm:$0xff] %v3041
  %3107 = vst [vmem:[%s3095 + $0x58] sm:$0xff] %v3042
  %3108 = vst [vmem:[%s3095 + $0x60] sm:$0xff] %v3043
  %3109 = vst [vmem:[%s3095 + $0x68] sm:$0xff] %v3044
  %3110 = vst [vmem:[%s3095 + $0x70] sm:$0xff] %v3045
  %3111 = vst [vmem:[%s3095 + $0x78] sm:$0xff] %v3046
  %3112 = vst [vmem:[%s3095 + $0x80] sm:$0xff] %v3047
  %3113 = vst [vmem:[%s3095 + $0x88] sm:$0xff] %v3048
  %3114 = vst [vmem:[%s3095 + $0x90] sm:$0xff] %v3049
  %3115 = vst [vmem:[%s3095 + $0x98] sm:$0xff] %v3050
  %3116 = vst [vmem:[%s3095 + $0xa0] sm:$0xff] %v3051
  %3117 = vst [vmem:[%s3095 + $0xa8] sm:$0xff] %v3052
  %3118 = vst [vmem:[%s3095 + $0xb0] sm:$0xff] %v3053
  %3119 = vst [vmem:[%s3095 + $0xb8] sm:$0xff] %v3054
  %3120 = vst [vmem:[%s3095 + $0xc0] sm:$0xff] %v3055
  %3121 = vst [vmem:[%s3095 + $0xc8] sm:$0xff] %v3056
  %3122 = vst [vmem:[%s3095 + $0xd0] sm:$0xff] %v3057
  %3123 = vst [vmem:[%s3095 + $0xd8] sm:$0xff] %v3058
  %3124 = vst [vmem:[%s3095 + $0xe0] sm:$0xff] %v3059
  %3125 = vst [vmem:[%s3095 + $0xe8] sm:$0xff] %v3060
  %3126 = vst [vmem:[%s3095 + $0xf0] sm:$0xff] %v3061
  %3127 = vst [vmem:[%s3095 + $0xf8] sm:$0xff] %v3062
  %3128 = vst [vmem:[%s3095 + $0x100] sm:$0xff] %v3063
  %3129 = vst [vmem:[%s3095 + $0x108] sm:$0xff] %v3064
  %3130 = vst [vmem:[%s3095 + $0x110] sm:$0xff] %v3065
  %3131 = vst [vmem:[%s3095 + $0x118] sm:$0xff] %v3066
  %3132 = vst [vmem:[%s3095 + $0x120] sm:$0xff] %v3067
  %3133 = vst [vmem:[%s3095 + $0x128] sm:$0xff] %v3068
  %3134 = vst [vmem:[%s3095 + $0x130] sm:$0xff] %v3069
  %3135 = vst [vmem:[%s3095 + $0x138] sm:$0xff] %v3070
  %3136 = vst [vmem:[%s3095 + $0x140] sm:$0xff] %v3071
  %3137 = vst [vmem:[%s3095 + $0x148] sm:$0xff] %v3072
  %3138 = vst [vmem:[%s3095 + $0x150] sm:$0xff] %v3073
  %3139 = vst [vmem:[%s3095 + $0x158] sm:$0xff] %v3074
  %3140 = vst [vmem:[%s3095 + $0x160] sm:$0xff] %v3075
  %3141 = vst [vmem:[%s3095 + $0x168] sm:$0xff] %v3076
  %3142 = vst [vmem:[%s3095 + $0x170] sm:$0xff] %v3077
  %3143 = vst [vmem:[%s3095 + $0x178] sm:$0xff] %v3078
  %3144 = vst [vmem:[%s3095 + $0x180] sm:$0xff] %v3079
  %3145 = vst [vmem:[%s3095 + $0x188] sm:$0xff] %v3080
  %3146 = vst [vmem:[%s3095 + $0x190] sm:$0xff] %v3081
  %3147 = vst [vmem:[%s3095 + $0x198] sm:$0xff] %v3082
  %3148 = vst [vmem:[%s3095 + $0x1a0] sm:$0xff] %v3083
  %3149 = vst [vmem:[%s3095 + $0x1a8] sm:$0xff] %v3084
  %3150 = vst [vmem:[%s3095 + $0x1b0] sm:$0xff] %v3085
  %3151 = vst [vmem:[%s3095 + $0x1b8] sm:$0xff] %v3086
  %3152 = vst [vmem:[%s3095 + $0x1c0] sm:$0xff] %v3087
  %3153 = vst [vmem:[%s3095 + $0x1c8] sm:$0xff] %v3088
  %3154 = vst [vmem:[%s3095 + $0x1d0] sm:$0xff] %v3089
  %3155 = vst [vmem:[%s3095 + $0x1d8] sm:$0xff] %v3090
  %3156 = vst [vmem:[%s3095 + $0x1e0] sm:$0xff] %v3091
  %3157 = vst [vmem:[%s3095 + $0x1e8] sm:$0xff] %v3092
  %3158 = vst [vmem:[%s3095 + $0x1f0] sm:$0xff] %v3093
  %3159 = vst [vmem:[%s3095 + $0x1f8] sm:$0xff] %v3094
  // Predicated region
  $region14: #{generator_forward.7} parent=0 // pred_check
    _
  $region15: #{generator_forward.7} parent=0 // pred_check_branch
    %3161 = sbr.rel (0) target = $region17
  $region16: #{generator_forward.7} parent=0 // pred_region
    _
  $region17: #{generator_forward.7} parent=0 // pred_fallthru
    _
  // Predicated region
  $region18: #{generator_forward.7} parent=0 // pred_check
    _
  $region19: #{generator_forward.7} parent=0 // pred_check_branch
    %3163 = sbr.rel (0) target = $region21
  $region20: #{generator_forward.7} parent=0 // pred_region
    _
  $region21: #{generator_forward.7} parent=0 // pred_fallthru
    _

</llo_original>
